<compile_context>
chip_gen: v7x
topology: tpu7x:2x2x1
jax: 0.10.0
libtpu: 0.0.40
codegen_flags: <defaults>
</compile_context>

<pallas_src>
import functools

import jax
import jax.numpy as jnp
from jax.experimental import pallas as pl
from jax.experimental.pallas import tpu as pltpu

_DOT_DTYPE = jnp.bfloat16        # MXU operand dtype for conv/final kernels (f32 accumulate)
_STORE_DTYPE = jnp.bfloat16      # HBM dtype of the big intermediates
_TILE_TARGET = 1024              # max rows per grid step
_MIN_TILE = 256                  # ~85% of HBM roofline per the tiling sweep
_MIN_STEPS = 4                   # >= 2 grid steps per v7x TensorCore
_SUBLANE = 16                    # bf16 sublane packing granularity
_VMEM_LIMIT = 48 * 1024 * 1024   # headroom inside v7x's 64 MiB physical VMEM

_COMPILER_PARAMS = pltpu.CompilerParams(
    dimension_semantics=("parallel",),
    vmem_limit_bytes=_VMEM_LIMIT,
)


def _round_up(x, m):
    return (x + m - 1) // m * m


def _pick_tile(n, align, target=_TILE_TARGET):
    """Row tile: <= target, >= _MIN_TILE, aims for >= _MIN_STEPS grid steps."""
    if n <= max(_MIN_TILE, align):
        return _round_up(n, align)
    tm = min(target, max(_MIN_TILE, pl.cdiv(n, _MIN_STEPS)))
    tm = min(tm, n)
    return _round_up(tm, align)


def _pad_rows(x, n_pad):
    n = x.shape[0]
    if n == n_pad:
        return x
    return jnp.pad(x, ((0, n_pad - n), (0, 0)))


def _full_spec(shape):
    zeros = (0,) * len(shape)
    return pl.BlockSpec(shape, lambda i: zeros)


# ---------------------------------------------------------------------------
# Kernel 1: two-layer MLP + attention scalar (VPU reduction).  Kept in f32:
# it is HBM/store bound (MXU dtype is irrelevant here) and it produces the sort
# key, which must stay f32 so near-ties do not reorder vs. the reference.
# The a*h gating array is no longer written (done inside the conv kernel).
# ---------------------------------------------------------------------------
def _mlp_attn_kernel(x_ref, w1_ref, b1_ref, w2_ref, b2_ref, wa_ref, ba_ref,
                     h_ref, key_ref):
    x = x_ref[...]
    h1 = jnp.maximum(
        jnp.dot(x, w1_ref[...], preferred_element_type=jnp.float32) + b1_ref[...], 0.0)
    # dropout(p, training=False) -> identity
    h = jnp.dot(h1, w2_ref[...], preferred_element_type=jnp.float32) + b2_ref[...]
    # attention scalar: elementwise multiply + lane reduction (VPU/XLU), not a
    # 1-lane-wide MXU matmul.
    a = jnp.sum(h * wa_ref[...], axis=1, keepdims=True) + ba_ref[...]
    h_ref[...] = h.astype(h_ref.dtype)
    key_ref[...] = -a                 # ascending argsort of (-a) == descending by a


def mlp_attn(x, w1, b1, w2, b2, wa, ba, *, tile_target=_TILE_TARGET):
    n, f = x.shape
    h0 = w1.shape[1]
    h1 = w2.shape[1]
    tm = _pick_tile(n, _SUBLANE, tile_target)
    n_pad = _round_up(n, tm)
    xp = _pad_rows(x, n_pad)
    grid = (n_pad // tm,)
    row = lambda i: (i, 0)
    before_h, key = pl.pallas_call(
        _mlp_attn_kernel,
        grid=grid,
        in_specs=[
            pl.BlockSpec((tm, f), row),
            _full_spec((f, h0)), _full_spec((1, h0)),
            _full_spec((h0, h1)), _full_spec((1, h1)),
            _full_spec((1, h1)), _full_spec((1, 1)),
        ],
        out_specs=(
            pl.BlockSpec((tm, h1), row),
            pl.BlockSpec((tm, 1), row),
        ),
        out_shape=(
            jax.ShapeDtypeStruct((n_pad, h1), _STORE_DTYPE),  # before_h (= h)
            jax.ShapeDtypeStruct((n_pad, 1), jnp.float32),    # sort key (-a)
        ),
        compiler_params=_COMPILER_PARAMS,
    )(xp, w1, b1.reshape(1, h0), w2, b2.reshape(1, h1),
      wa.reshape(1, h1), ba.reshape(1, 1))
    return before_h[:n], key[:n]


# ---------------------------------------------------------------------------
# Kernel 2: per-row gating (a*h) + conv1d -> relu -> conv1d along the sorted
# node axis, halo-tiled.  Each tile sees a contiguous window of
# (tile_n + halo_rows) rows of the pre-padded sorted sequence (left halo baked
# into the 2*pad leading zero rows, right halo delivered as a small extra block
# of the same HBM array).  Each conv layer is ONE stacked matmul (C_in, K*C_out)
# whose K lane-aligned result slabs are combined with sublane rolls.
# ---------------------------------------------------------------------------
def _conv_kernel(x_ref, xh_ref, a_ref, ah_ref, w1_ref, b1_ref, w2_ref, b2_ref,
                 out_ref, *, ksize, pad, tile_n, n_valid):
    dd = _DOT_DTYPE
    i = pl.program_id(0)
    c = out_ref.shape[1]
    halo_rows = xh_ref.shape[0]
    ell = tile_n + halo_rows                       # rows of the contiguous window
    # window row r corresponds to global sorted position g = i*tile_n - 2*pad + r

    # per-row gating a * h in f32 on the VPU (v5e has no bf16 VPU), then MXU dtype
    x = x_ref[...].astype(jnp.float32) * a_ref[...]
    hx = xh_ref[...].astype(jnp.float32) * ah_ref[...]
    xh = jnp.concatenate([x, hx], axis=0).astype(dd)

    # conv #1: one stacked matmul; slabs are 128-lane-aligned slices (free when
    # c % 128 == 0); rolls ride the XLU.  y1[s] = conv1 output at i*tile_n - pad + s.
    y_all = jnp.dot(xh, w1_ref[...].astype(dd), preferred_element_type=jnp.float32)
    y1 = y_all[:, :c]
    for k in range(1, ksize):
        y1 = y1 + pltpu.roll(y_all[:, k * c:(k + 1) * c], ell - k, axis=0)
    y1 = jnp.maximum(y1 + b1_ref[...], 0.0)
    # dropout(p, training=False) -> identity

    # Zero conv1 rows whose global position lies outside the real sequence
    # [0, n_valid): reproduces Conv1d's zero padding as seen by conv #2 and also
    # neutralizes the N -> N_pad row padding.  Rows >= tile_n + 2*pad are never
    # read by conv #2's kept rows, so roll wrap-around there is harmless.
    g = (i * tile_n - pad
         + jax.lax.broadcasted_iota(jnp.int32, (ell, 1), 0))
    y1 = jnp.where((g >= 0) & (g < n_valid), y1, 0.0).astype(dd)

    # conv #2: same stacked-matmul + roll scheme; keep only this tile's rows.
    y2_all = jnp.dot(y1, w2_ref[...].astype(dd), preferred_element_type=jnp.float32)
    y2 = y2_all[:, :c]
    for k in range(1, ksize):
        y2 = y2 + pltpu.roll(y2_all[:, k * c:(k + 1) * c], ell - k, axis=0)
    out_ref[...] = (y2[:tile_n] + b2_ref[...]).astype(out_ref.dtype)


def conv_stack(h, a, sort_index, cw1, cb1, cw2, cb2, *, window_size,
               tile_target=_TILE_TARGET):
    n, c = h.shape
    assert window_size % 2 == 1, "Conv1d 'same' padding assumes odd window_size"
    p = (window_size - 1) // 2
    halo_rows = _round_up(max(4 * p, 1), _SUBLANE)   # right halo block (>= 4*pad rows)
    tm = _pick_tile(n, halo_rows, tile_target)       # tile divisible by halo_rows
    # invariants of the halo/roll scheme (see derivation in kernel comments)
    assert halo_rows >= 4 * p
    assert tm % halo_rows == 0
    n_pad = _round_up(n, tm)
    total = n_pad + halo_rows
    grid = (n_pad // tm,)
    halo_blocks_per_tile = tm // halo_rows

    # Fused pad + gather: indices outside [2p, 2p+n) are out-of-range (== n) and
    # hit mode='fill' -> zero rows, producing the padded sorted layout directly
    # (no zeros().at[].set() re-materialization on top of the gather).
    pad_idx = jnp.full((total,), n, dtype=jnp.int32)
    pad_idx = pad_idx.at[2 * p:2 * p + n].set(sort_index.astype(jnp.int32))
    xsp = jnp.take(h, pad_idx, axis=0, mode="fill", fill_value=0)   # (total, c) bf16
    asp = jnp.take(a, pad_idx, axis=0, mode="fill", fill_value=0)   # (total, 1) f32

    # Stack the K taps along the output axis -> one matmul per conv layer.
    w1s = jnp.concatenate([cw1[k] for k in range(window_size)], axis=1).astype(_DOT_DTYPE)
    w2s = jnp.concatenate([cw2[k] for k in range(window_size)], axis=1).astype(_DOT_DTYPE)

    kernel = functools.partial(_conv_kernel, ksize=window_size, pad=p,
                               tile_n=tm, n_valid=n)
    row = lambda i: (i, 0)
    halo_map = lambda i: ((i + 1) * halo_blocks_per_tile, 0)
    out = pl.pallas_call(
        kernel,
        grid=grid,
        in_specs=[
            pl.BlockSpec((tm, c), row),
            pl.BlockSpec((halo_rows, c), halo_map),
            pl.BlockSpec((tm, 1), row),
            pl.BlockSpec((halo_rows, 1), halo_map),
            _full_spec(w1s.shape), _full_spec((1, c)),
            _full_spec(w2s.shape), _full_spec((1, c)),
        ],
        out_specs=pl.BlockSpec((tm, c), row),
        out_shape=jax.ShapeDtypeStruct((n_pad, c), _STORE_DTYPE),
        compiler_params=_COMPILER_PARAMS,
    )(xsp, xsp, asp, asp, w1s, cb1.reshape(1, c), w2s, cb2.reshape(1, c))
    return out[:n]


# ---------------------------------------------------------------------------
# Kernel 3: final linear on [before_h | conv_h] + log_softmax, tiled over rows.
# ---------------------------------------------------------------------------
def _final_kernel(bh_ref, ch_ref, wf1_ref, wf2_ref, bf_ref, out_ref):
    dd = _DOT_DTYPE
    logits = (jnp.dot(bh_ref[...].astype(dd), wf1_ref[...].astype(dd),
                      preferred_element_type=jnp.float32)
              + jnp.dot(ch_ref[...].astype(dd), wf2_ref[...].astype(dd),
                        preferred_element_type=jnp.float32)
              + bf_ref[...])
    m = jnp.max(logits, axis=1, keepdims=True)
    z = logits - m
    lse = jnp.log(jnp.sum(jnp.exp(z), axis=1, keepdims=True))
    out_ref[...] = z - lse


def final_layer(before_h, conv_h, wf, bf, *, tile_target=_TILE_TARGET):
    n, h1 = before_h.shape
    ncls = wf.shape[1]
    tm = _pick_tile(n, _SUBLANE, tile_target)
    n_pad = _round_up(n, tm)
    bh = _pad_rows(before_h, n_pad)
    ch = _pad_rows(conv_h, n_pad)
    wf1 = wf[:h1].astype(_DOT_DTYPE)   # split so no in-kernel concat is needed
    wf2 = wf[h1:].astype(_DOT_DTYPE)
    grid = (n_pad // tm,)
    row = lambda i: (i, 0)
    out = pl.pallas_call(
        _final_kernel,
        grid=grid,
        in_specs=[
            pl.BlockSpec((tm, h1), row),
            pl.BlockSpec((tm, h1), row),
            _full_spec((h1, ncls)), _full_spec((h1, ncls)),
            _full_spec((1, ncls)),
        ],
        out_specs=pl.BlockSpec((tm, ncls), row),
        out_shape=jax.ShapeDtypeStruct((n_pad, ncls), jnp.float32),
        compiler_params=_COMPILER_PARAMS,
    )(bh, ch, wf1, wf2, bf.reshape(1, ncls))
    return out[:n]


# ---------------------------------------------------------------------------
# Full NLGNN forward (le='mlp', eval)
# ---------------------------------------------------------------------------
def nlgnn_forward(x, params, *, window_size, tile_target=_TILE_TARGET):
    before_h, sort_key = mlp_attn(
        x, params["w1"], params["b1"], params["w2"], params["b2"],
        params["wa"], params["ba"], tile_target=tile_target)
    a = -sort_key                                     # (n, 1) attention scalar, f32

    # TODO(synk): argsort has no Pallas/Mosaic equivalent; the sort and the two
    # permutation gathers stay in XLA (see module docstring for the fusion plan).
    sort_index = jnp.argsort(sort_key.reshape(-1))    # ascending(-a) == descending(a)

    conv_sorted = conv_stack(
        before_h, a, sort_index,
        params["cw1"], params["cb1"], params["cw2"], params["cb2"],
        window_size=window_size, tile_target=tile_target)

    arg_index = jnp.argsort(sort_index)               # inverse permutation
    conv_h = jnp.take(conv_sorted, arg_index, axis=0)

    return final_layer(before_h, conv_h, params["wf"], params["bf"],
                       tile_target=tile_target)


# ---------------------------------------------------------------------------
# Pure-JAX reference (for the correctness check in __main__)
# ---------------------------------------------------------------------------
def _ref_conv1d(x_nc, w_kio, b):
    n = x_nc.shape[0]
    k = w_kio.shape[0]
    p = (k - 1) // 2
    xp = jnp.pad(x_nc, ((p, p), (0, 0)))
    acc = jnp.zeros((n, w_kio.shape[2]), jnp.float32) + b[None, :]
    for kk in range(k):
        acc = acc + jnp.dot(xp[kk:kk + n], w_kio[kk],
                            precision=jax.lax.Precision.HIGHEST)
    return acc


def reference_forward(x, params, *, sort_index=None):
    hp = jax.lax.Precision.HIGHEST
    h1 = jax.nn.relu(jnp.dot(x, params["w1"], precision=hp) + params["b1"])
    h = jnp.dot(h1, params["w2"], precision=hp) + params["b2"]
    a = jnp.dot(h, params["wa"], precision=hp) + params["ba"]
    if sort_index is None:
        sort_index = jnp.argsort(-a.reshape(-1))
    ah = a * h
    s = ah[sort_index]
    c1 = jax.nn.relu(_ref_conv1d(s, params["cw1"], params["cb1"]))
    c2 = _ref_conv1d(c1, params["cw2"], params["cb2"])
    conv_h = c2[jnp.argsort(sort_index)]
    logits = (jnp.dot(jnp.concatenate([h, conv_h], axis=1), params["wf"],
                      precision=hp) + params["bf"])
    return jax.nn.log_softmax(logits, axis=1)


def init_params(key, num_features, num_hidden, num_classes, window_size):
    h0, h1 = num_hidden
    ks = jax.random.split(key, 12)
    s = 0.1
    return {
        "w1": s * jax.random.normal(ks[0], (num_features, h0), jnp.float32),
        "b1": s * jax.random.normal(ks[1], (h0,), jnp.float32),
        "w2": s * jax.random.normal(ks[2], (h0, h1), jnp.float32),
        "b2": s * jax.random.normal(ks[3], (h1,), jnp.float32),
        "wa": s * jax.random.normal(ks[4], (h1, 1), jnp.float32),
        "ba": s * jax.random.normal(ks[5], (1,), jnp.float32),
        # conv weights stored as (K, C_in, C_out) == torch weight.permute(2, 1, 0)
        "cw1": s * jax.random.normal(ks[6], (window_size, h1, h1), jnp.float32),
        "cb1": s * jax.random.normal(ks[7], (h1,), jnp.float32),
        "cw2": s * jax.random.normal(ks[8], (window_size, h1, h1), jnp.float32),
        "cb2": s * jax.random.normal(ks[9], (h1,), jnp.float32),
        "wf": s * jax.random.normal(ks[10], (2 * h1, num_classes), jnp.float32),
        "bf": s * jax.random.normal(ks[11], (num_classes,), jnp.float32),
    }


if __name__ == "__main__":
    num_nodes = 2000           # deliberately not a multiple of the row tile
    num_features = 64
    num_hidden = (64, 128)
    num_classes = 8
    window_size = 3

    key = jax.random.PRNGKey(0)
    kx, kp = jax.random.split(key)
    x = jax.random.normal(kx, (num_nodes, num_features), jnp.float32)
    params = init_params(kp, num_features, num_hidden, num_classes, window_size)

    fwd = jax.jit(functools.partial(nlgnn_forward, window_size=window_size))
    out = jax.block_until_ready(fwd(x, params))

    assert out.shape == (num_nodes, num_classes)
    # rows of log_softmax must normalize (prob space sums to ~1)
    assert bool(jnp.all(jnp.abs(jnp.sum(jnp.exp(out), axis=1) - 1.0) < 1e-4))

    # Pure-JAX reference check.  The sort order is taken from the kernel's own
    # (f32) sort key so that float near-ties cannot flip the permutation between
    # the two implementations (tie order vs. torch already differs; not a bug).
    key_fn = jax.jit(lambda xx, pp: mlp_attn(
        xx, pp["w1"], pp["b1"], pp["w2"], pp["b2"], pp["wa"], pp["ba"])[1])
    sort_index = jnp.argsort(key_fn(x, params).reshape(-1))
    ref = reference_forward(x, params, sort_index=sort_index)
    # bf16 MXU operands / bf16 HBM intermediates vs. an f32 HIGHEST reference:
    # expected |err| ~1e-2; flipping _DOT_DTYPE/_STORE_DTYPE to f32 recovers <1e-3.
    tol = 1e-3 if (_DOT_DTYPE is jnp.float32 and _STORE_DTYPE is jnp.float32) else 5e-2
    max_err = float(jnp.max(jnp.abs(out - ref)))
    assert max_err < tol, f"max |out - ref| = {max_err} (tol {tol})"

    print("KERNEL_OK")
</pallas_src>

<mosaic_0001>
module attributes {stable_mosaic.version = 11 : i64} {
  func.func private @main(%arg0: i32) attributes {dimension_semantics = [#tpu.dimension_semantics<core_parallel>], iteration_bounds = array<i64: 2>, tpu.core_type = #tpu.core_type<sc_scalar_subcore>, window_params = []} {
    return
  }
}

module attributes {stable_mosaic.version = 11 : i64} {
  func.func private @main(%arg0: i32) attributes {dimension_semantics = [#tpu.dimension_semantics<core_parallel>], iteration_bounds = array<i64: 2>, tpu.core_type = #tpu.core_type<sc_scalar_subcore>, window_params = []} {
    return
  }
}

module attributes {stable_mosaic.version = 11 : i64} {
  func.func @_mlp_attn_kernel(%arg0: i32, %arg1: memref<512x64xf32, #tpu.memory_space<vmem>>, %arg2: memref<64x64xf32, #tpu.memory_space<vmem>>, %arg3: memref<1x64xf32, #tpu.memory_space<vmem>>, %arg4: memref<64x128xf32, #tpu.memory_space<vmem>>, %arg5: memref<1x128xf32, #tpu.memory_space<vmem>>, %arg6: memref<1x128xf32, #tpu.memory_space<vmem>>, %arg7: memref<1x1xf32, #tpu.memory_space<vmem>>, %arg8: memref<512x128xbf16, #tpu.memory_space<vmem>>, %arg9: memref<512x1xf32, #tpu.memory_space<vmem>>) attributes {dimension_semantics = [#tpu.dimension_semantics<parallel>], iteration_bounds = array<i64: 4>, scalar_prefetch = 0 : i64, scratch_operands = 0 : i64, tpu.core_type = #tpu.core_type<tc>, window_params = [{transform_indices = @transform_0, window_bounds = array<i64: 512, 64>}, {pipeline_mode = #tpu.pipeline_mode<synchronous>, transform_indices = @transform_1, window_bounds = array<i64: 64, 64>}, {pipeline_mode = #tpu.pipeline_mode<synchronous>, transform_indices = @transform_2, window_bounds = array<i64: 1, 64>}, {pipeline_mode = #tpu.pipeline_mode<synchronous>, transform_indices = @transform_3, window_bounds = array<i64: 64, 128>}, {pipeline_mode = #tpu.pipeline_mode<synchronous>, transform_indices = @transform_4, window_bounds = array<i64: 1, 128>}, {pipeline_mode = #tpu.pipeline_mode<synchronous>, transform_indices = @transform_5, window_bounds = array<i64: 1, 128>}, {pipeline_mode = #tpu.pipeline_mode<synchronous>, transform_indices = @transform_6, window_bounds = array<i64: 1, 1>}, {transform_indices = @transform_7, window_bounds = array<i64: 512, 128>}, {transform_indices = @transform_8, window_bounds = array<i64: 512, 1>}]} {
    %c0 = arith.constant 0 : index
    %c0_0 = arith.constant 0 : index
    %0 = vector.load %arg1[%c0, %c0_0] : memref<512x64xf32, #tpu.memory_space<vmem>>, vector<512x64xf32>
    %c0_1 = arith.constant 0 : index
    %c0_2 = arith.constant 0 : index
    %1 = vector.load %arg2[%c0_1, %c0_2] : memref<64x64xf32, #tpu.memory_space<vmem>>, vector<64x64xf32>
    %cst = arith.constant dense<0.000000e+00> : vector<512x64xf32>
    %2 = tpu.matmul %0, %1, %cst {dimension_numbers = #tpu.dot_dimension_numbers<[1], [0], [0], [1], [0, 0, 1, 1], [], []>} : vector<512x64xf32>, vector<64x64xf32>, vector<512x64xf32> -> vector<512x64xf32>
    %c0_3 = arith.constant 0 : index
    %c0_4 = arith.constant 0 : index
    %3 = vector.load %arg3[%c0_3, %c0_4] : memref<1x64xf32, #tpu.memory_space<vmem>>, vector<1x64xf32>
    %4 = vector.broadcast %3 : vector<1x64xf32> to vector<512x64xf32>
    %5 = arith.addf %2, %4 : vector<512x64xf32>
    %cst_5 = arith.constant 0.000000e+00 : f32
    %6 = vector.broadcast %cst_5 : f32 to vector<512x64xf32>
    %7 = arith.maximumf %5, %6 : vector<512x64xf32>
    %c0_6 = arith.constant 0 : index
    %c0_7 = arith.constant 0 : index
    %8 = vector.load %arg4[%c0_6, %c0_7] : memref<64x128xf32, #tpu.memory_space<vmem>>, vector<64x128xf32>
    %cst_8 = arith.constant dense<0.000000e+00> : vector<512x128xf32>
    %9 = tpu.matmul %7, %8, %cst_8 {dimension_numbers = #tpu.dot_dimension_numbers<[1], [0], [0], [1], [0, 0, 1, 1], [], []>} : vector<512x64xf32>, vector<64x128xf32>, vector<512x128xf32> -> vector<512x128xf32>
    %c0_9 = arith.constant 0 : index
    %c0_10 = arith.constant 0 : index
    %10 = vector.load %arg5[%c0_9, %c0_10] : memref<1x128xf32, #tpu.memory_space<vmem>>, vector<1x128xf32>
    %11 = vector.broadcast %10 : vector<1x128xf32> to vector<512x128xf32>
    %12 = arith.addf %9, %11 : vector<512x128xf32>
    %c0_11 = arith.constant 0 : index
    %c0_12 = arith.constant 0 : index
    %13 = vector.load %arg6[%c0_11, %c0_12] : memref<1x128xf32, #tpu.memory_space<vmem>>, vector<1x128xf32>
    %14 = vector.broadcast %13 : vector<1x128xf32> to vector<512x128xf32>
    %15 = arith.mulf %12, %14 : vector<512x128xf32>
    %cst_13 = arith.constant dense<0.000000e+00> : vector<512xf32>
    %16 = vector.multi_reduction <add>, %15, %cst_13 [1] : vector<512x128xf32> to vector<512xf32>
    %17 = vector.shape_cast %16 : vector<512xf32> to vector<512x1xf32>
    %c0_14 = arith.constant 0 : index
    %c0_15 = arith.constant 0 : index
    %18 = vector.load %arg7[%c0_14, %c0_15] : memref<1x1xf32, #tpu.memory_space<vmem>>, vector<1x1xf32>
    %19 = vector.broadcast %18 : vector<1x1xf32> to vector<512x1xf32>
    %20 = arith.addf %17, %19 : vector<512x1xf32>
    %21 = arith.truncf %12 : vector<512x128xf32> to vector<512x128xbf16>
    %c0_16 = arith.constant 0 : index
    %c0_17 = arith.constant 0 : index
    %22 = vector.load %arg8[%c0_16, %c0_17] : memref<512x128xbf16, #tpu.memory_space<vmem>>, vector<512x128xbf16>
    tpu.vector_store %arg8[%c0_16, %c0_17], %21 {strides = array<i32>} : memref<512x128xbf16, #tpu.memory_space<vmem>>, vector<512x128xbf16>,
    %cst_18 = arith.constant 0.000000e+00 : f32
    %23 = vector.broadcast %cst_18 : f32 to vector<512x1xf32>
    %24 = arith.subf %23, %20 : vector<512x1xf32>
    %c0_19 = arith.constant 0 : index
    %c0_20 = arith.constant 0 : index
    %25 = vector.load %arg9[%c0_19, %c0_20] : memref<512x1xf32, #tpu.memory_space<vmem>>, vector<512x1xf32>
    tpu.vector_store %arg9[%c0_19, %c0_20], %24 {strides = array<i32>} : memref<512x1xf32, #tpu.memory_space<vmem>>, vector<512x1xf32>,
    return
  }
  func.func @transform_0(%arg0: i32) -> (i32, i32) {
    %c0_i32 = arith.constant 0 : i32
    %c0_i32_0 = arith.constant 0 : i32
    return %arg0, %c0_i32 : i32, i32
  }
  func.func @transform_1(%arg0: i32) -> (i32, i32) {
    %c0_i32 = arith.constant 0 : i32
    %c0_i32_0 = arith.constant 0 : i32
    %c0_i32_1 = arith.constant 0 : i32
    return %c0_i32, %c0_i32_0 : i32, i32
  }
  func.func @transform_2(%arg0: i32) -> (i32, i32) {
    %c0_i32 = arith.constant 0 : i32
    %c0_i32_0 = arith.constant 0 : i32
    %c0_i32_1 = arith.constant 0 : i32
    return %c0_i32, %c0_i32_0 : i32, i32
  }
  func.func @transform_3(%arg0: i32) -> (i32, i32) {
    %c0_i32 = arith.constant 0 : i32
    %c0_i32_0 = arith.constant 0 : i32
    %c0_i32_1 = arith.constant 0 : i32
    return %c0_i32, %c0_i32_0 : i32, i32
  }
  func.func @transform_4(%arg0: i32) -> (i32, i32) {
    %c0_i32 = arith.constant 0 : i32
    %c0_i32_0 = arith.constant 0 : i32
    %c0_i32_1 = arith.constant 0 : i32
    return %c0_i32, %c0_i32_0 : i32, i32
  }
  func.func @transform_5(%arg0: i32) -> (i32, i32) {
    %c0_i32 = arith.constant 0 : i32
    %c0_i32_0 = arith.constant 0 : i32
    %c0_i32_1 = arith.constant 0 : i32
    return %c0_i32, %c0_i32_0 : i32, i32
  }
  func.func @transform_6(%arg0: i32) -> (i32, i32) {
    %c0_i32 = arith.constant 0 : i32
    %c0_i32_0 = arith.constant 0 : i32
    %c0_i32_1 = arith.constant 0 : i32
    return %c0_i32, %c0_i32_0 : i32, i32
  }
  func.func @transform_7(%arg0: i32) -> (i32, i32) {
    %c0_i32 = arith.constant 0 : i32
    %c0_i32_0 = arith.constant 0 : i32
    return %arg0, %c0_i32 : i32, i32
  }
  func.func @transform_8(%arg0: i32) -> (i32, i32) {
    %c0_i32 = arith.constant 0 : i32
    %c0_i32_0 = arith.constant 0 : i32
    return %arg0, %c0_i32 : i32, i32
  }
}

module attributes {stable_mosaic.version = 11 : i64} {
  func.func @_conv_kernel(%arg0: i32, %arg1: memref<512x128xbf16, #tpu.memory_space<vmem>>, %arg2: memref<16x128xbf16, #tpu.memory_space<vmem>>, %arg3: memref<512x1xf32, #tpu.memory_space<vmem>>, %arg4: memref<16x1xf32, #tpu.memory_space<vmem>>, %arg5: memref<128x384xbf16, #tpu.memory_space<vmem>>, %arg6: memref<1x128xf32, #tpu.memory_space<vmem>>, %arg7: memref<128x384xbf16, #tpu.memory_space<vmem>>, %arg8: memref<1x128xf32, #tpu.memory_space<vmem>>, %arg9: memref<512x128xbf16, #tpu.memory_space<vmem>>) attributes {dimension_semantics = [#tpu.dimension_semantics<parallel>], iteration_bounds = array<i64: 4>, scalar_prefetch = 0 : i64, scratch_operands = 0 : i64, tpu.core_type = #tpu.core_type<tc>, window_params = [{transform_indices = @transform_0, window_bounds = array<i64: 512, 128>}, {transform_indices = @transform_1, window_bounds = array<i64: 16, 128>}, {transform_indices = @transform_2, window_bounds = array<i64: 512, 1>}, {transform_indices = @transform_3, window_bounds = array<i64: 16, 1>}, {pipeline_mode = #tpu.pipeline_mode<synchronous>, transform_indices = @transform_4, window_bounds = array<i64: 128, 384>}, {pipeline_mode = #tpu.pipeline_mode<synchronous>, transform_indices = @transform_5, window_bounds = array<i64: 1, 128>}, {pipeline_mode = #tpu.pipeline_mode<synchronous>, transform_indices = @transform_6, window_bounds = array<i64: 128, 384>}, {pipeline_mode = #tpu.pipeline_mode<synchronous>, transform_indices = @transform_7, window_bounds = array<i64: 1, 128>}, {transform_indices = @transform_8, window_bounds = array<i64: 512, 128>}]} {
    %c0 = arith.constant 0 : index
    %c0_0 = arith.constant 0 : index
    %0 = vector.load %arg1[%c0, %c0_0] : memref<512x128xbf16, #tpu.memory_space<vmem>>, vector<512x128xbf16>
    %1 = arith.extf %0 : vector<512x128xbf16> to vector<512x128xf32>
    %c0_1 = arith.constant 0 : index
    %c0_2 = arith.constant 0 : index
    %2 = vector.load %arg3[%c0_1, %c0_2] : memref<512x1xf32, #tpu.memory_space<vmem>>, vector<512x1xf32>
    %3 = vector.broadcast %2 : vector<512x1xf32> to vector<512x128xf32>
    %4 = arith.mulf %1, %3 : vector<512x128xf32>
    %c0_3 = arith.constant 0 : index
    %c0_4 = arith.constant 0 : index
    %5 = vector.load %arg2[%c0_3, %c0_4] : memref<16x128xbf16, #tpu.memory_space<vmem>>, vector<16x128xbf16>
    %6 = arith.extf %5 : vector<16x128xbf16> to vector<16x128xf32>
    %c0_5 = arith.constant 0 : index
    %c0_6 = arith.constant 0 : index
    %7 = vector.load %arg4[%c0_5, %c0_6] : memref<16x1xf32, #tpu.memory_space<vmem>>, vector<16x1xf32>
    %8 = vector.broadcast %7 : vector<16x1xf32> to vector<16x128xf32>
    %9 = arith.mulf %6, %8 : vector<16x128xf32>
    %10 = tpu.concatenate %4, %9 in 0 : vector<512x128xf32>, vector<16x128xf32> -> vector<528x128xf32>
    %11 = arith.truncf %10 : vector<528x128xf32> to vector<528x128xbf16>
    %c0_7 = arith.constant 0 : index
    %c0_8 = arith.constant 0 : index
    %12 = vector.load %arg5[%c0_7, %c0_8] : memref<128x384xbf16, #tpu.memory_space<vmem>>, vector<128x384xbf16>
    %cst = arith.constant dense<0.000000e+00> : vector<528x384xf32>
    %13 = tpu.matmul %11, %12, %cst {dimension_numbers = #tpu.dot_dimension_numbers<[1], [0], [0], [1], [0, 0, 1, 1], [], []>} : vector<528x128xbf16>, vector<128x384xbf16>, vector<528x384xf32> -> vector<528x384xf32>
    %14 = vector.extract_strided_slice %13 {offsets = [0, 0], sizes = [528, 128], strides = [1, 1]} : vector<528x384xf32> to vector<528x128xf32>
    %15 = vector.extract_strided_slice %13 {offsets = [0, 128], sizes = [528, 128], strides = [1, 1]} : vector<528x384xf32> to vector<528x128xf32>
    %c527_i32 = arith.constant 527 : i32
    %16 = tpu.dynamic_rotate %15 by %c527_i32 dim 0 : vector<528x128xf32>, i32 -> vector<528x128xf32>
    %17 = arith.addf %14, %16 : vector<528x128xf32>
    %18 = vector.extract_strided_slice %13 {offsets = [0, 256], sizes = [528, 128], strides = [1, 1]} : vector<528x384xf32> to vector<528x128xf32>
    %c526_i32 = arith.constant 526 : i32
    %19 = tpu.dynamic_rotate %18 by %c526_i32 dim 0 : vector<528x128xf32>, i32 -> vector<528x128xf32>
    %20 = arith.addf %17, %19 : vector<528x128xf32>
    %c0_9 = arith.constant 0 : index
    %c0_10 = arith.constant 0 : index
    %21 = vector.load %arg6[%c0_9, %c0_10] : memref<1x128xf32, #tpu.memory_space<vmem>>, vector<1x128xf32>
    %22 = vector.broadcast %21 : vector<1x128xf32> to vector<528x128xf32>
    %23 = arith.addf %20, %22 : vector<528x128xf32>
    %cst_11 = arith.constant 0.000000e+00 : f32
    %24 = vector.broadcast %cst_11 : f32 to vector<528x128xf32>
    %25 = arith.maximumf %23, %24 : vector<528x128xf32>
    %c512_i32 = arith.constant 512 : i32
    %26 = arith.muli %arg0, %c512_i32 : i32
    %c1_i32 = arith.constant 1 : i32
    %27 = arith.subi %26, %c1_i32 : i32
    %28 = tpu.iota {dimensions = array<i32: 0>} : vector<528x1xi32>
    %29 = vector.broadcast %27 : i32 to vector<528x1xi32>
    %30 = arith.addi %29, %28 : vector<528x1xi32>
    %c0_i32 = arith.constant 0 : i32
    %31 = vector.broadcast %c0_i32 : i32 to vector<528x1xi32>
    %32 = arith.cmpi sge, %30, %31 : vector<528x1xi32>
    %c2000_i32 = arith.constant 2000 : i32
    %33 = vector.broadcast %c2000_i32 : i32 to vector<528x1xi32>
    %34 = arith.cmpi slt, %30, %33 : vector<528x1xi32>
    %35 = arith.andi %32, %34 : vector<528x1xi1>
    %cst_12 = arith.constant 0.000000e+00 : f32
    %36 = vector.shape_cast %35 : vector<528x1xi1> to vector<528x1xi1>
    %37 = vector.broadcast %36 : vector<528x1xi1> to vector<528x128xi1>
    %38 = vector.broadcast %cst_12 : f32 to vector<528x128xf32>
    %39 = arith.select %37, %25, %38 : vector<528x128xi1>, vector<528x128xf32>
    %40 = arith.truncf %39 : vector<528x128xf32> to vector<528x128xbf16>
    %c0_13 = arith.constant 0 : index
    %c0_14 = arith.constant 0 : index
    %41 = vector.load %arg7[%c0_13, %c0_14] : memref<128x384xbf16, #tpu.memory_space<vmem>>, vector<128x384xbf16>
    %cst_15 = arith.constant dense<0.000000e+00> : vector<528x384xf32>
    %42 = tpu.matmul %40, %41, %cst_15 {dimension_numbers = #tpu.dot_dimension_numbers<[1], [0], [0], [1], [0, 0, 1, 1], [], []>} : vector<528x128xbf16>, vector<128x384xbf16>, vector<528x384xf32> -> vector<528x384xf32>
    %43 = vector.extract_strided_slice %42 {offsets = [0, 0], sizes = [528, 128], strides = [1, 1]} : vector<528x384xf32> to vector<528x128xf32>
    %44 = vector.extract_strided_slice %42 {offsets = [0, 128], sizes = [528, 128], strides = [1, 1]} : vector<528x384xf32> to vector<528x128xf32>
    %c527_i32_16 = arith.constant 527 : i32
    %45 = tpu.dynamic_rotate %44 by %c527_i32_16 dim 0 : vector<528x128xf32>, i32 -> vector<528x128xf32>
    %46 = arith.addf %43, %45 : vector<528x128xf32>
    %47 = vector.extract_strided_slice %42 {offsets = [0, 256], sizes = [528, 128], strides = [1, 1]} : vector<528x384xf32> to vector<528x128xf32>
    %c526_i32_17 = arith.constant 526 : i32
    %48 = tpu.dynamic_rotate %47 by %c526_i32_17 dim 0 : vector<528x128xf32>, i32 -> vector<528x128xf32>
    %49 = arith.addf %46, %48 : vector<528x128xf32>
    %50 = vector.extract_strided_slice %49 {offsets = [0, 0], sizes = [512, 128], strides = [1, 1]} : vector<528x128xf32> to vector<512x128xf32>
    %c0_18 = arith.constant 0 : index
    %c0_19 = arith.constant 0 : index
    %51 = vector.load %arg8[%c0_18, %c0_19] : memref<1x128xf32, #tpu.memory_space<vmem>>, vector<1x128xf32>
    %52 = vector.broadcast %51 : vector<1x128xf32> to vector<512x128xf32>
    %53 = arith.addf %50, %52 : vector<512x128xf32>
    %54 = arith.truncf %53 : vector<512x128xf32> to vector<512x128xbf16>
    %c0_20 = arith.constant 0 : index
    %c0_21 = arith.constant 0 : index
    %55 = vector.load %arg9[%c0_20, %c0_21] : memref<512x128xbf16, #tpu.memory_space<vmem>>, vector<512x128xbf16>
    tpu.vector_store %arg9[%c0_20, %c0_21], %54 {strides = array<i32>} : memref<512x128xbf16, #tpu.memory_space<vmem>>, vector<512x128xbf16>,
    return
  }
  func.func @transform_0(%arg0: i32) -> (i32, i32) {
    %c0_i32 = arith.constant 0 : i32
    %c0_i32_0 = arith.constant 0 : i32
    return %arg0, %c0_i32 : i32, i32
  }
  func.func @transform_1(%arg0: i32) -> (i32, i32) {
    %c1_i32 = arith.constant 1 : i32
    %0 = arith.addi %arg0, %c1_i32 : i32
    %c32_i32 = arith.constant 32 : i32
    %1 = arith.muli %0, %c32_i32 : i32
    %c0_i32 = arith.constant 0 : i32
    %c0_i32_0 = arith.constant 0 : i32
    return %1, %c0_i32 : i32, i32
  }
  func.func @transform_2(%arg0: i32) -> (i32, i32) {
    %c0_i32 = arith.constant 0 : i32
    %c0_i32_0 = arith.constant 0 : i32
    return %arg0, %c0_i32 : i32, i32
  }
  func.func @transform_3(%arg0: i32) -> (i32, i32) {
    %c1_i32 = arith.constant 1 : i32
    %0 = arith.addi %arg0, %c1_i32 : i32
    %c32_i32 = arith.constant 32 : i32
    %1 = arith.muli %0, %c32_i32 : i32
    %c0_i32 = arith.constant 0 : i32
    %c0_i32_0 = arith.constant 0 : i32
    return %1, %c0_i32 : i32, i32
  }
  func.func @transform_4(%arg0: i32) -> (i32, i32) {
    %c0_i32 = arith.constant 0 : i32
    %c0_i32_0 = arith.constant 0 : i32
    %c0_i32_1 = arith.constant 0 : i32
    return %c0_i32, %c0_i32_0 : i32, i32
  }
  func.func @transform_5(%arg0: i32) -> (i32, i32) {
    %c0_i32 = arith.constant 0 : i32
    %c0_i32_0 = arith.constant 0 : i32
    %c0_i32_1 = arith.constant 0 : i32
    return %c0_i32, %c0_i32_0 : i32, i32
  }
  func.func @transform_6(%arg0: i32) -> (i32, i32) {
    %c0_i32 = arith.constant 0 : i32
    %c0_i32_0 = arith.constant 0 : i32
    %c0_i32_1 = arith.constant 0 : i32
    return %c0_i32, %c0_i32_0 : i32, i32
  }
  func.func @transform_7(%arg0: i32) -> (i32, i32) {
    %c0_i32 = arith.constant 0 : i32
    %c0_i32_0 = arith.constant 0 : i32
    %c0_i32_1 = arith.constant 0 : i32
    return %c0_i32, %c0_i32_0 : i32, i32
  }
  func.func @transform_8(%arg0: i32) -> (i32, i32) {
    %c0_i32 = arith.constant 0 : i32
    %c0_i32_0 = arith.constant 0 : i32
    return %arg0, %c0_i32 : i32, i32
  }
}

module attributes {stable_mosaic.version = 11 : i64} {
  func.func @_final_kernel(%arg0: i32, %arg1: memref<512x128xbf16, #tpu.memory_space<vmem>>, %arg2: memref<512x128xbf16, #tpu.memory_space<vmem>>, %arg3: memref<128x8xbf16, #tpu.memory_space<vmem>>, %arg4: memref<128x8xbf16, #tpu.memory_space<vmem>>, %arg5: memref<1x8xf32, #tpu.memory_space<vmem>>, %arg6: memref<512x8xf32, #tpu.memory_space<vmem>>) attributes {dimension_semantics = [#tpu.dimension_semantics<parallel>], iteration_bounds = array<i64: 4>, scalar_prefetch = 0 : i64, scratch_operands = 0 : i64, tpu.core_type = #tpu.core_type<tc>, window_params = [{transform_indices = @transform_0, window_bounds = array<i64: 512, 128>}, {transform_indices = @transform_1, window_bounds = array<i64: 512, 128>}, {pipeline_mode = #tpu.pipeline_mode<synchronous>, transform_indices = @transform_2, window_bounds = array<i64: 128, 8>}, {pipeline_mode = #tpu.pipeline_mode<synchronous>, transform_indices = @transform_3, window_bounds = array<i64: 128, 8>}, {pipeline_mode = #tpu.pipeline_mode<synchronous>, transform_indices = @transform_4, window_bounds = array<i64: 1, 8>}, {transform_indices = @transform_5, window_bounds = array<i64: 512, 8>}]} {
    %c0 = arith.constant 0 : index
    %c0_0 = arith.constant 0 : index
    %0 = vector.load %arg1[%c0, %c0_0] : memref<512x128xbf16, #tpu.memory_space<vmem>>, vector<512x128xbf16>
    %c0_1 = arith.constant 0 : index
    %c0_2 = arith.constant 0 : index
    %1 = vector.load %arg3[%c0_1, %c0_2] : memref<128x8xbf16, #tpu.memory_space<vmem>>, vector<128x8xbf16>
    %cst = arith.constant dense<0.000000e+00> : vector<512x8xf32>
    %2 = tpu.matmul %0, %1, %cst {dimension_numbers = #tpu.dot_dimension_numbers<[1], [0], [0], [1], [0, 0, 1, 1], [], []>} : vector<512x128xbf16>, vector<128x8xbf16>, vector<512x8xf32> -> vector<512x8xf32>
    %c0_3 = arith.constant 0 : index
    %c0_4 = arith.constant 0 : index
    %3 = vector.load %arg2[%c0_3, %c0_4] : memref<512x128xbf16, #tpu.memory_space<vmem>>, vector<512x128xbf16>
    %c0_5 = arith.constant 0 : index
    %c0_6 = arith.constant 0 : index
    %4 = vector.load %arg4[%c0_5, %c0_6] : memref<128x8xbf16, #tpu.memory_space<vmem>>, vector<128x8xbf16>
    %cst_7 = arith.constant dense<0.000000e+00> : vector<512x8xf32>
    %5 = tpu.matmul %3, %4, %cst_7 {dimension_numbers = #tpu.dot_dimension_numbers<[1], [0], [0], [1], [0, 0, 1, 1], [], []>} : vector<512x128xbf16>, vector<128x8xbf16>, vector<512x8xf32> -> vector<512x8xf32>
    %6 = arith.addf %2, %5 : vector<512x8xf32>
    %c0_8 = arith.constant 0 : index
    %c0_9 = arith.constant 0 : index
    %7 = vector.load %arg5[%c0_8, %c0_9] : memref<1x8xf32, #tpu.memory_space<vmem>>, vector<1x8xf32>
    %8 = vector.broadcast %7 : vector<1x8xf32> to vector<512x8xf32>
    %9 = arith.addf %6, %8 : vector<512x8xf32>
    %cst_10 = arith.constant dense<0xFF800000> : vector<512xf32>
    %10 = vector.multi_reduction <maximumf>, %9, %cst_10 [1] : vector<512x8xf32> to vector<512xf32>
    %11 = vector.shape_cast %10 : vector<512xf32> to vector<512x1xf32>
    %12 = vector.broadcast %11 : vector<512x1xf32> to vector<512x8xf32>
    %13 = arith.subf %9, %12 : vector<512x8xf32>
    %14 = math.exp %13 : vector<512x8xf32>
    %cst_11 = arith.constant dense<0.000000e+00> : vector<512xf32>
    %15 = vector.multi_reduction <add>, %14, %cst_11 [1] : vector<512x8xf32> to vector<512xf32>
    %16 = vector.shape_cast %15 : vector<512xf32> to vector<512x1xf32>
    %17 = math.log %16 : vector<512x1xf32>
    %18 = vector.broadcast %17 : vector<512x1xf32> to vector<512x8xf32>
    %19 = arith.subf %13, %18 : vector<512x8xf32>
    %c0_12 = arith.constant 0 : index
    %c0_13 = arith.constant 0 : index
    %20 = vector.load %arg6[%c0_12, %c0_13] : memref<512x8xf32, #tpu.memory_space<vmem>>, vector<512x8xf32>
    tpu.vector_store %arg6[%c0_12, %c0_13], %19 {strides = array<i32>} : memref<512x8xf32, #tpu.memory_space<vmem>>, vector<512x8xf32>,
    return
  }
  func.func @transform_0(%arg0: i32) -> (i32, i32) {
    %c0_i32 = arith.constant 0 : i32
    %c0_i32_0 = arith.constant 0 : i32
    return %arg0, %c0_i32 : i32, i32
  }
  func.func @transform_1(%arg0: i32) -> (i32, i32) {
    %c0_i32 = arith.constant 0 : i32
    %c0_i32_0 = arith.constant 0 : i32
    return %arg0, %c0_i32 : i32, i32
  }
  func.func @transform_2(%arg0: i32) -> (i32, i32) {
    %c0_i32 = arith.constant 0 : i32
    %c0_i32_0 = arith.constant 0 : i32
    %c0_i32_1 = arith.constant 0 : i32
    return %c0_i32, %c0_i32_0 : i32, i32
  }
  func.func @transform_3(%arg0: i32) -> (i32, i32) {
    %c0_i32 = arith.constant 0 : i32
    %c0_i32_0 = arith.constant 0 : i32
    %c0_i32_1 = arith.constant 0 : i32
    return %c0_i32, %c0_i32_0 : i32, i32
  }
  func.func @transform_4(%arg0: i32) -> (i32, i32) {
    %c0_i32 = arith.constant 0 : i32
    %c0_i32_0 = arith.constant 0 : i32
    %c0_i32_1 = arith.constant 0 : i32
    return %c0_i32, %c0_i32_0 : i32, i32
  }
  func.func @transform_5(%arg0: i32) -> (i32, i32) {
    %c0_i32 = arith.constant 0 : i32
    %c0_i32_0 = arith.constant 0 : i32
    return %arg0, %c0_i32 : i32, i32
  }
}

</mosaic_0001>

<llo_original>
// kernel: nlgnn_forward.3
$region0: #{nlgnn_forward.3}
  #allocation0 [shape = 'u32[]', space=smem, size = 0x4, offset = 0x4, fixed_abs, tag = 'smem constant byte address 0x4 - core index']
  #allocation1 [shape = 'u32[144,128]{1,0:T(1,128)}', space=vmem, size = 0x12000, scoped, tag = 'internal scratch']
  #allocation2 [shape = 'f32[1,1]{1,0:T(1,128)S(1)}', space=vmem, size = 0x200, scoped, tag = 'scoped memory for nlgnn_forward.3']
  %s0 = inlined_call_operand.vmem [shape: f32[2048,64], index: 0, kind: input, shape index: {}]
  %s1 = inlined_call_operand.vmem [shape: f32[64,64], index: 1, kind: input, shape index: {}]
  %s2 = inlined_call_operand.vmem [shape: f32[1,64], index: 2, kind: input, shape index: {}]
  %s3 = inlined_call_operand.vmem [shape: f32[64,128], index: 3, kind: input, shape index: {}]
  %s4 = inlined_call_operand.vmem [shape: f32[1,128], index: 4, kind: input, shape index: {}]
  %s5 = inlined_call_operand.vmem [shape: f32[1,128], index: 5, kind: input, shape index: {}]
  %s6 = inlined_call_operand.<no memory space> [shape: f32[1,1], index: 6, kind: input, shape index: {}]
  %s7 = inlined_call_operand.vmem [shape: bf16[2048,128], index: 7, kind: output, shape index: {0}]
  %s8 = inlined_call_operand.vmem [shape: f32[2048,1], index: 8, kind: output, shape index: {1}]
  %9 = xla_tuple %s7, %s8
  %s10 = sld [smem:[#allocation0]]
  $region69: #{nlgnn_forward.3} parent=0
    _
  %s12 = ssub.s32 1, %s10
  %s13 = scalar_select 0, %s12, %s10
  %v14 = vstv %s6
  %15 = vst [vmem:[#allocation2] sm:$0x1] %v14
  loop: start=0, step=1, limit=6
  $region2: #{nlgnn_forward.3} parent=0 // loop_pre_header
    _
  $region3: #{nlgnn_forward.3} parent=0 // loop_header
    %s17 = sphi 0, %s21
    %p18 = scmp.ge.s32.totalorder %s17, 6
    %s27 = sphi 0, %s29
    %s30 = sphi 0, %s27
    %s31 = sphi 0, %s30
    %s47 = sphi 0, %s31
    %s51 = sphi 0, %s51
    %s53 = sphi 0, %s51
    %s54 = sphi 0, %s53
    %s68 = sphi 0, %s54
    %s72 = sphi 0, %s72
    %s74 = sphi 0, %s72
    %s75 = sphi 0, %s74
    %s89 = sphi 0, %s75
    %s93 = sphi 0, %s93
    %s95 = sphi 0, %s93
    %s96 = sphi 0, %s95
    %s110 = sphi 0, %s96
    %s114 = sphi 0, %s114
    %s116 = sphi 0, %s114
    %s117 = sphi 0, %s116
    %s131 = sphi 0, %s117
    %s135 = sphi 0, %s135
    %s137 = sphi 0, %s135
    %s138 = sphi 0, %s137
    %s152 = sphi 0, %s138
    %s156 = sphi 0, %s156
    %s158 = sphi 0, %s156
    %s159 = sphi 0, %s158
    %s173 = sphi 0, %s159
    %s179 = sphi 0, %s181
    %s182 = sphi 0, %s179
    %s183 = sphi 0, %s182
    %s199 = sphi 0, %s183
    %s205 = sphi 0, %s207
    %s208 = sphi 0, %s205
    %s209 = sphi 0, %s208
    %s225 = sphi 0, %s209
  $region4: #{nlgnn_forward.3} parent=0 // loop_header_branch
    %20 = sbr.rel (%p18) target = $region8
  $region5: #{nlgnn_forward.3} parent=0 // loop_body
    %s22 = ssub.s32 %s17, 1
    %s23 = ssub.s32 %s17, 2
    %s24 = sadd.s32 %s17, 1
    %s25 = ssub.s32 %s17, %s24
    %p26 = scmp.eq.s32.totalorder %s25, 0
    %s28 = sadd.s32 %s27, 1
    %s29 = scalar_select %p26, %s27, %s28
    %p32 = pneg %p26
    %p33 = scmp.eq.s32.totalorder %s17, 3
    %p34 = por %p32, %p33
    %p35 = scmp.ne.s32.totalorder %s27, %s30
    %p36 = scmp.eq.s32.totalorder %s17, 0
    %p37 = por %p35, %p36
    %p38 = scmp.ne.s32.totalorder %s27, %s30
    %p39 = scmp.eq.s32.totalorder %s22, 3
    %p40 = por %p38, %p39
    %p41 = scmp.ne.s32.totalorder %s30, %s31
    %p42 = scmp.eq.s32.totalorder %s22, 0
    %p43 = por %p41, %p42
    %p44 = scmp.ne.s32.totalorder %s30, %s31
    %p45 = scmp.eq.s32.totalorder %s23, 3
    %p46 = por %p44, %p45
    %p48 = scmp.ne.s32.totalorder %s31, %s47
    %p49 = scmp.eq.s32.totalorder %s23, 0
    %p50 = por %p48, %p49
    %s52 = sadd.s32 %s51, 1
    %p55 = scmp.eq.s32.totalorder %s17, 3
    %p56 = scmp.ne.s32.totalorder %s51, %s53
    %p57 = scmp.eq.s32.totalorder %s17, 0
    %p58 = por %p56, %p57
    %p59 = scmp.ne.s32.totalorder %s51, %s53
    %p60 = scmp.eq.s32.totalorder %s22, 3
    %p61 = por %p59, %p60
    %p62 = scmp.ne.s32.totalorder %s53, %s54
    %p63 = scmp.eq.s32.totalorder %s22, 0
    %p64 = por %p62, %p63
    %p65 = scmp.ne.s32.totalorder %s53, %s54
    %p66 = scmp.eq.s32.totalorder %s23, 3
    %p67 = por %p65, %p66
    %p69 = scmp.ne.s32.totalorder %s54, %s68
    %p70 = scmp.eq.s32.totalorder %s23, 0
    %p71 = por %p69, %p70
    %s73 = sadd.s32 %s72, 1
    %p76 = scmp.eq.s32.totalorder %s17, 3
    %p77 = scmp.ne.s32.totalorder %s72, %s74
    %p78 = scmp.eq.s32.totalorder %s17, 0
    %p79 = por %p77, %p78
    %p80 = scmp.ne.s32.totalorder %s72, %s74
    %p81 = scmp.eq.s32.totalorder %s22, 3
    %p82 = por %p80, %p81
    %p83 = scmp.ne.s32.totalorder %s74, %s75
    %p84 = scmp.eq.s32.totalorder %s22, 0
    %p85 = por %p83, %p84
    %p86 = scmp.ne.s32.totalorder %s74, %s75
    %p87 = scmp.eq.s32.totalorder %s23, 3
    %p88 = por %p86, %p87
    %p90 = scmp.ne.s32.totalorder %s75, %s89
    %p91 = scmp.eq.s32.totalorder %s23, 0
    %p92 = por %p90, %p91
    %s94 = sadd.s32 %s93, 1
    %p97 = scmp.eq.s32.totalorder %s17, 3
    %p98 = scmp.ne.s32.totalorder %s93, %s95
    %p99 = scmp.eq.s32.totalorder %s17, 0
    %p100 = por %p98, %p99
    %p101 = scmp.ne.s32.totalorder %s93, %s95
    %p102 = scmp.eq.s32.totalorder %s22, 3
    %p103 = por %p101, %p102
    %p104 = scmp.ne.s32.totalorder %s95, %s96
    %p105 = scmp.eq.s32.totalorder %s22, 0
    %p106 = por %p104, %p105
    %p107 = scmp.ne.s32.totalorder %s95, %s96
    %p108 = scmp.eq.s32.totalorder %s23, 3
    %p109 = por %p107, %p108
    %p111 = scmp.ne.s32.totalorder %s96, %s110
    %p112 = scmp.eq.s32.totalorder %s23, 0
    %p113 = por %p111, %p112
    %s115 = sadd.s32 %s114, 1
    %p118 = scmp.eq.s32.totalorder %s17, 3
    %p119 = scmp.ne.s32.totalorder %s114, %s116
    %p120 = scmp.eq.s32.totalorder %s17, 0
    %p121 = por %p119, %p120
    %p122 = scmp.ne.s32.totalorder %s114, %s116
    %p123 = scmp.eq.s32.totalorder %s22, 3
    %p124 = por %p122, %p123
    %p125 = scmp.ne.s32.totalorder %s116, %s117
    %p126 = scmp.eq.s32.totalorder %s22, 0
    %p127 = por %p125, %p126
    %p128 = scmp.ne.s32.totalorder %s116, %s117
    %p129 = scmp.eq.s32.totalorder %s23, 3
    %p130 = por %p128, %p129
    %p132 = scmp.ne.s32.totalorder %s117, %s131
    %p133 = scmp.eq.s32.totalorder %s23, 0
    %p134 = por %p132, %p133
    %s136 = sadd.s32 %s135, 1
    %p139 = scmp.eq.s32.totalorder %s17, 3
    %p140 = scmp.ne.s32.totalorder %s135, %s137
    %p141 = scmp.eq.s32.totalorder %s17, 0
    %p142 = por %p140, %p141
    %p143 = scmp.ne.s32.totalorder %s135, %s137
    %p144 = scmp.eq.s32.totalorder %s22, 3
    %p145 = por %p143, %p144
    %p146 = scmp.ne.s32.totalorder %s137, %s138
    %p147 = scmp.eq.s32.totalorder %s22, 0
    %p148 = por %p146, %p147
    %p149 = scmp.ne.s32.totalorder %s137, %s138
    %p150 = scmp.eq.s32.totalorder %s23, 3
    %p151 = por %p149, %p150
    %p153 = scmp.ne.s32.totalorder %s138, %s152
    %p154 = scmp.eq.s32.totalorder %s23, 0
    %p155 = por %p153, %p154
    %s157 = sadd.s32 %s156, 1
    %p160 = scmp.eq.s32.totalorder %s17, 3
    %p161 = scmp.ne.s32.totalorder %s156, %s158
    %p162 = scmp.eq.s32.totalorder %s17, 0
    %p163 = por %p161, %p162
    %p164 = scmp.ne.s32.totalorder %s156, %s158
    %p165 = scmp.eq.s32.totalorder %s22, 3
    %p166 = por %p164, %p165
    %p167 = scmp.ne.s32.totalorder %s158, %s159
    %p168 = scmp.eq.s32.totalorder %s22, 0
    %p169 = por %p167, %p168
    %p170 = scmp.ne.s32.totalorder %s158, %s159
    %p171 = scmp.eq.s32.totalorder %s23, 3
    %p172 = por %p170, %p171
    %p174 = scmp.ne.s32.totalorder %s159, %s173
    %p175 = scmp.eq.s32.totalorder %s23, 0
    %p176 = por %p174, %p175
    %s177 = ssub.s32 %s17, %s24
    %p178 = scmp.eq.s32.totalorder %s177, 0
    %s180 = sadd.s32 %s179, 1
    %s181 = scalar_select %p178, %s179, %s180
    %p184 = pneg %p178
    %p185 = scmp.eq.s32.totalorder %s17, 3
    %p186 = por %p184, %p185
    %p187 = scmp.ne.s32.totalorder %s179, %s182
    %p188 = scmp.eq.s32.totalorder %s17, 0
    %p189 = por %p187, %p188
    %p190 = scmp.ne.s32.totalorder %s179, %s182
    %p191 = scmp.eq.s32.totalorder %s22, 3
    %p192 = por %p190, %p191
    %p193 = scmp.ne.s32.totalorder %s182, %s183
    %p194 = scmp.eq.s32.totalorder %s22, 0
    %p195 = por %p193, %p194
    %p196 = scmp.ne.s32.totalorder %s182, %s183
    %p197 = scmp.eq.s32.totalorder %s23, 3
    %p198 = por %p196, %p197
    %p200 = scmp.ne.s32.totalorder %s183, %s199
    %p201 = scmp.eq.s32.totalorder %s23, 0
    %p202 = por %p200, %p201
    %s203 = ssub.s32 %s17, %s24
    %p204 = scmp.eq.s32.totalorder %s203, 0
    %s206 = sadd.s32 %s205, 1
    %s207 = scalar_select %p204, %s205, %s206
    %p210 = pneg %p204
    %p211 = scmp.eq.s32.totalorder %s17, 3
    %p212 = por %p210, %p211
    %p213 = scmp.ne.s32.totalorder %s205, %s208
    %p214 = scmp.eq.s32.totalorder %s17, 0
    %p215 = por %p213, %p214
    %p216 = scmp.ne.s32.totalorder %s205, %s208
    %p217 = scmp.eq.s32.totalorder %s22, 3
    %p218 = por %p216, %p217
    %p219 = scmp.ne.s32.totalorder %s208, %s209
    %p220 = scmp.eq.s32.totalorder %s22, 0
    %p221 = por %p219, %p220
    %p222 = scmp.ne.s32.totalorder %s208, %s209
    %p223 = scmp.eq.s32.totalorder %s23, 3
    %p224 = por %p222, %p223
    %p226 = scmp.ne.s32.totalorder %s209, %s225
    %p227 = scmp.eq.s32.totalorder %s23, 0
    %p228 = por %p226, %p227
    %p229 = scmp.le.s32.totalorder 1, %s17
    %p230 = scmp.lt.s32.totalorder %s17, 5
    %p231 = pnand %p229, %p230
    %p232 = pneg %p231
    // Predicated region
    $region9: #{nlgnn_forward.3} parent=5 // pred_check
      _
    $region10: #{nlgnn_forward.3} parent=5 // pred_check_branch
      %234 = sbr.rel (%p231) target = $region12
    $region11: #{nlgnn_forward.3} parent=5 // pred_region
      %s235 = ssub.s32 %s17, 1
      // Predicated region
      $region13: #{nlgnn_forward.3} parent=11 // pred_check
        %p236 = pneg %p64
      $region14: #{nlgnn_forward.3} parent=11 // pred_check_branch
        %238 = sbr.rel (%p236) target = $region16
      $region15: #{nlgnn_forward.3} parent=11 // pred_region
        _
      $region16: #{nlgnn_forward.3} parent=11 // pred_fallthru
        _
      // Predicated region
      $region17: #{nlgnn_forward.3} parent=11 // pred_check
        %p239 = pneg %p85
      $region18: #{nlgnn_forward.3} parent=11 // pred_check_branch
        %241 = sbr.rel (%p239) target = $region20
      $region19: #{nlgnn_forward.3} parent=11 // pred_region
        _
      $region20: #{nlgnn_forward.3} parent=11 // pred_fallthru
        _
      // Predicated region
      $region21: #{nlgnn_forward.3} parent=11 // pred_check
        %p242 = pneg %p106
      $region22: #{nlgnn_forward.3} parent=11 // pred_check_branch
        %244 = sbr.rel (%p242) target = $region24
      $region23: #{nlgnn_forward.3} parent=11 // pred_region
        _
      $region24: #{nlgnn_forward.3} parent=11 // pred_fallthru
        _
      // Predicated region
      $region25: #{nlgnn_forward.3} parent=11 // pred_check
        %p245 = pneg %p127
      $region26: #{nlgnn_forward.3} parent=11 // pred_check_branch
        %247 = sbr.rel (%p245) target = $region28
      $region27: #{nlgnn_forward.3} parent=11 // pred_region
        _
      $region28: #{nlgnn_forward.3} parent=11 // pred_fallthru
        _
      // Predicated region
      $region29: #{nlgnn_forward.3} parent=11 // pred_check
        %p248 = pneg %p148
      $region30: #{nlgnn_forward.3} parent=11 // pred_check_branch
        %250 = sbr.rel (%p248) target = $region32
      $region31: #{nlgnn_forward.3} parent=11 // pred_region
        _
      $region32: #{nlgnn_forward.3} parent=11 // pred_fallthru
        _
      // Predicated region
      $region33: #{nlgnn_forward.3} parent=11 // pred_check
        %p251 = pneg %p169
      $region34: #{nlgnn_forward.3} parent=11 // pred_check_branch
        %253 = sbr.rel (%p251) target = $region36
      $region35: #{nlgnn_forward.3} parent=11 // pred_region
        _
      $region36: #{nlgnn_forward.3} parent=11 // pred_fallthru
        _
    $region12: #{nlgnn_forward.3} parent=5 // pred_fallthru
      _
    %p254 = scmp.lt.s32.totalorder %s17, 4
    // Predicated region
    $region37: #{nlgnn_forward.3} parent=5 // pred_check
      %p255 = pneg %p254
    $region38: #{nlgnn_forward.3} parent=5 // pred_check_branch
      %257 = sbr.rel (%p255) target = $region40
    $region39: #{nlgnn_forward.3} parent=5 // pred_region
      // Predicated region
      $region41: #{nlgnn_forward.3} parent=39 // pred_check
        %p258 = pneg %p37
      $region42: #{nlgnn_forward.3} parent=39 // pred_check_branch
        %260 = sbr.rel (%p258) target = $region44
      $region43: #{nlgnn_forward.3} parent=39 // pred_region
        %s261 = smul.u32 64, %s17
        %p262 = scmp.lt.s32.totalorder %s261, 255
        %s263 = scalar_select %p262, %s261, 255
        %s264 = smul.addr %s263, 8
        %s265 = scalar_lea.vmem %s0, %s264
        %s266 = smul.u32 64, %s17
      $region44: #{nlgnn_forward.3} parent=39 // pred_fallthru
        _
    $region40: #{nlgnn_forward.3} parent=5 // pred_fallthru
      _
    %p267 = scmp.le.s32.totalorder 1, %s17
    %p268 = scmp.lt.s32.totalorder %s17, 5
    %p269 = pnand %p267, %p268
    %p270 = pneg %p269
    // Predicated region
    $region45: #{nlgnn_forward.3} parent=5 // pred_check
      _
    $region46: #{nlgnn_forward.3} parent=5 // pred_check_branch
      %272 = sbr.rel (%p269) target = $region48
    $region47: #{nlgnn_forward.3} parent=5 // pred_region
      %s273 = ssub.s32 %s17, 1
      %s274 = smul.u32 64, %s22
      %p275 = scmp.lt.s32.totalorder %s274, 255
      %s276 = scalar_select %p275, %s274, 255
      %s277 = smul.addr %s276, 8
      %s278 = scalar_lea.vmem %s0, %s277
      %p279 = pneg %p43
      %p280 = pneg %p40
      %p281 = pneg %p64
      %p282 = pneg %p61
      %p283 = pneg %p85
      %p284 = pneg %p82
      %p285 = pneg %p106
      %p286 = pneg %p103
      %p287 = pneg %p127
      %p288 = pneg %p124
      %p289 = pneg %p148
      %p290 = pneg %p145
      %p291 = pneg %p169
      %p292 = pneg %p166
      %p293 = pneg %p195
      %p294 = pneg %p192
      %s295 = smul.u32 64, %s22
      %p296 = scmp.lt.s32.totalorder %s295, 255
      %s297 = scalar_select %p296, %s295, 255
      %s298 = smul.addr %s297, 4
      %s299 = scalar_lea.vmem %s7, %s298
      %p300 = pneg %p221
      %p301 = pneg %p218
      %s302 = smul.u32 64, %s22
      %p303 = scmp.lt.s32.totalorder %s302, 255
      %s304 = scalar_select %p303, %s302, 255
      %s305 = smul.addr %s304, 8
      %s306 = scalar_lea.vmem %s8, %s305
      %s307 = smul.u32 64, %s22
      %p308 = scmp.lt.s32.totalorder %s307, 255
      %s309 = scalar_select %p308, %s307, 255
      %s310 = smul.addr %s309, 8
      %s311 = scalar_lea.vmem %s0, %s310
      %s312 = smul.u32 64, %s22
      %s313 = smul.u32 64, %s22
      %p314 = scmp.lt.s32.totalorder %s313, 255
      %s315 = scalar_select %p314, %s313, 255
      %s316 = smul.addr %s315, 4
      %s317 = scalar_lea.vmem %s7, %s316
      %s318 = smul.u32 64, %s22
      %s319 = smul.u32 64, %s22
      %p320 = scmp.lt.s32.totalorder %s319, 255
      %s321 = scalar_select %p320, %s319, 255
      %s322 = smul.addr %s321, 8
      %s323 = scalar_lea.vmem %s8, %s322
      %s324 = smul.u32 64, %s22
      %v325 = vld [vmem:[%s311] sm:$0xff]
      %v326 = vld [vmem:[%s311 + $0x8] sm:$0xff]
      %v327 = vld [vmem:[%s311 + $0x10] sm:$0xff]
      %v328 = vld [vmem:[%s311 + $0x18] sm:$0xff]
      %v329 = vld [vmem:[%s311 + $0x20] sm:$0xff]
      %v330 = vld [vmem:[%s311 + $0x28] sm:$0xff]
      %v331 = vld [vmem:[%s311 + $0x30] sm:$0xff]
      %v332 = vld [vmem:[%s311 + $0x38] sm:$0xff]
      %v333 = vld [vmem:[%s311 + $0x40] sm:$0xff]
      %v334 = vld [vmem:[%s311 + $0x48] sm:$0xff]
      %v335 = vld [vmem:[%s311 + $0x50] sm:$0xff]
      %v336 = vld [vmem:[%s311 + $0x58] sm:$0xff]
      %v337 = vld [vmem:[%s311 + $0x60] sm:$0xff]
      %v338 = vld [vmem:[%s311 + $0x68] sm:$0xff]
      %v339 = vld [vmem:[%s311 + $0x70] sm:$0xff]
      %v340 = vld [vmem:[%s311 + $0x78] sm:$0xff]
      %v341 = vld [vmem:[%s311 + $0x80] sm:$0xff]
      %v342 = vld [vmem:[%s311 + $0x88] sm:$0xff]
      %v343 = vld [vmem:[%s311 + $0x90] sm:$0xff]
      %v344 = vld [vmem:[%s311 + $0x98] sm:$0xff]
      %v345 = vld [vmem:[%s311 + $0xa0] sm:$0xff]
      %v346 = vld [vmem:[%s311 + $0xa8] sm:$0xff]
      %v347 = vld [vmem:[%s311 + $0xb0] sm:$0xff]
      %v348 = vld [vmem:[%s311 + $0xb8] sm:$0xff]
      %v349 = vld [vmem:[%s311 + $0xc0] sm:$0xff]
      %v350 = vld [vmem:[%s311 + $0xc8] sm:$0xff]
      %v351 = vld [vmem:[%s311 + $0xd0] sm:$0xff]
      %v352 = vld [vmem:[%s311 + $0xd8] sm:$0xff]
      %v353 = vld [vmem:[%s311 + $0xe0] sm:$0xff]
      %v354 = vld [vmem:[%s311 + $0xe8] sm:$0xff]
      %v355 = vld [vmem:[%s311 + $0xf0] sm:$0xff]
      %v356 = vld [vmem:[%s311 + $0xf8] sm:$0xff]
      %v357 = vld [vmem:[%s311 + $0x100] sm:$0xff]
      %v358 = vld [vmem:[%s311 + $0x108] sm:$0xff]
      %v359 = vld [vmem:[%s311 + $0x110] sm:$0xff]
      %v360 = vld [vmem:[%s311 + $0x118] sm:$0xff]
      %v361 = vld [vmem:[%s311 + $0x120] sm:$0xff]
      %v362 = vld [vmem:[%s311 + $0x128] sm:$0xff]
      %v363 = vld [vmem:[%s311 + $0x130] sm:$0xff]
      %v364 = vld [vmem:[%s311 + $0x138] sm:$0xff]
      %v365 = vld [vmem:[%s311 + $0x140] sm:$0xff]
      %v366 = vld [vmem:[%s311 + $0x148] sm:$0xff]
      %v367 = vld [vmem:[%s311 + $0x150] sm:$0xff]
      %v368 = vld [vmem:[%s311 + $0x158] sm:$0xff]
      %v369 = vld [vmem:[%s311 + $0x160] sm:$0xff]
      %v370 = vld [vmem:[%s311 + $0x168] sm:$0xff]
      %v371 = vld [vmem:[%s311 + $0x170] sm:$0xff]
      %v372 = vld [vmem:[%s311 + $0x178] sm:$0xff]
      %v373 = vld [vmem:[%s311 + $0x180] sm:$0xff]
      %v374 = vld [vmem:[%s311 + $0x188] sm:$0xff]
      %v375 = vld [vmem:[%s311 + $0x190] sm:$0xff]
      %v376 = vld [vmem:[%s311 + $0x198] sm:$0xff]
      %v377 = vld [vmem:[%s311 + $0x1a0] sm:$0xff]
      %v378 = vld [vmem:[%s311 + $0x1a8] sm:$0xff]
      %v379 = vld [vmem:[%s311 + $0x1b0] sm:$0xff]
      %v380 = vld [vmem:[%s311 + $0x1b8] sm:$0xff]
      %v381 = vld [vmem:[%s311 + $0x1c0] sm:$0xff]
      %v382 = vld [vmem:[%s311 + $0x1c8] sm:$0xff]
      %v383 = vld [vmem:[%s311 + $0x1d0] sm:$0xff]
      %v384 = vld [vmem:[%s311 + $0x1d8] sm:$0xff]
      %v385 = vld [vmem:[%s311 + $0x1e0] sm:$0xff]
      %v386 = vld [vmem:[%s311 + $0x1e8] sm:$0xff]
      %v387 = vld [vmem:[%s311 + $0x1f0] sm:$0xff]
      %v388 = vld [vmem:[%s311 + $0x1f8] sm:$0xff]
      %v389 = vld [vmem:[%s1] sm:$0xff]
      %v390 = vld [vmem:[%s1 + $0x8] sm:$0xff]
      %v391 = vld [vmem:[%s1 + $0x10] sm:$0xff]
      %v392 = vld [vmem:[%s1 + $0x18] sm:$0xff]
      %v393 = vld [vmem:[%s1 + $0x20] sm:$0xff]
      %v394 = vld [vmem:[%s1 + $0x28] sm:$0xff]
      %v395 = vld [vmem:[%s1 + $0x30] sm:$0xff]
      %v396 = vld [vmem:[%s1 + $0x38] sm:$0xff]
      %v397 = vld [vmem:[%s2] sm:$0x1]
      %v399 = vlaneseq
      %v400 = vshrl.u32 %v399, 7
      %v401 = vsub.s32 0, %v400
      %v402 = vrot.slane %v397, %v401
      %vm404 = vcmask 523264
      %v406 = vsel %vm404, %v325, 0
      %v409 = vsel %vm404, %v326, 0
      %v412 = vsel %vm404, %v327, 0
      %v415 = vsel %vm404, %v328, 0
      %v418 = vsel %vm404, %v329, 0
      %v421 = vsel %vm404, %v330, 0
      %v424 = vsel %vm404, %v331, 0
      %v427 = vsel %vm404, %v332, 0
      %v430 = vsel %vm404, %v333, 0
      %v433 = vsel %vm404, %v334, 0
      %v436 = vsel %vm404, %v335, 0
      %v439 = vsel %vm404, %v336, 0
      %v442 = vsel %vm404, %v337, 0
      %v445 = vsel %vm404, %v338, 0
      %v448 = vsel %vm404, %v339, 0
      %v451 = vsel %vm404, %v340, 0
      %v454 = vsel %vm404, %v341, 0
      %v457 = vsel %vm404, %v342, 0
      %v460 = vsel %vm404, %v343, 0
      %v463 = vsel %vm404, %v344, 0
      %v466 = vsel %vm404, %v345, 0
      %v469 = vsel %vm404, %v346, 0
      %v472 = vsel %vm404, %v347, 0
      %v475 = vsel %vm404, %v348, 0
      %v478 = vsel %vm404, %v349, 0
      %v481 = vsel %vm404, %v350, 0
      %v484 = vsel %vm404, %v351, 0
      %v487 = vsel %vm404, %v352, 0
      %v490 = vsel %vm404, %v353, 0
      %v493 = vsel %vm404, %v354, 0
      %v496 = vsel %vm404, %v355, 0
      %v499 = vsel %vm404, %v356, 0
      %v502 = vsel %vm404, %v357, 0
      %v505 = vsel %vm404, %v358, 0
      %v508 = vsel %vm404, %v359, 0
      %v511 = vsel %vm404, %v360, 0
      %v514 = vsel %vm404, %v361, 0
      %v517 = vsel %vm404, %v362, 0
      %v520 = vsel %vm404, %v363, 0
      %v523 = vsel %vm404, %v364, 0
      %v526 = vsel %vm404, %v365, 0
      %v529 = vsel %vm404, %v366, 0
      %v532 = vsel %vm404, %v367, 0
      %v535 = vsel %vm404, %v368, 0
      %v538 = vsel %vm404, %v369, 0
      %v541 = vsel %vm404, %v370, 0
      %v544 = vsel %vm404, %v371, 0
      %v547 = vsel %vm404, %v372, 0
      %v550 = vsel %vm404, %v373, 0
      %v553 = vsel %vm404, %v374, 0
      %v556 = vsel %vm404, %v375, 0
      %v559 = vsel %vm404, %v376, 0
      %v562 = vsel %vm404, %v377, 0
      %v565 = vsel %vm404, %v378, 0
      %v568 = vsel %vm404, %v379, 0
      %v571 = vsel %vm404, %v380, 0
      %v574 = vsel %vm404, %v381, 0
      %v577 = vsel %vm404, %v382, 0
      %v580 = vsel %vm404, %v383, 0
      %v583 = vsel %vm404, %v384, 0
      %v586 = vsel %vm404, %v385, 0
      %v589 = vsel %vm404, %v386, 0
      %v592 = vsel %vm404, %v387, 0
      %v595 = vsel %vm404, %v388, 0
      %597 = vmatprep.subr.mxu0 0.0
      %598 = vmatpush1.msra.mxu0 %v389
      %599 = vmatprep.subr.mxu0 0.0
      %600 = vmatpush1.msra.mxu0 %v390
      %601 = vmatprep.subr.mxu0 0.0
      %602 = vmatpush1.msra.mxu0 %v391
      %603 = vmatprep.subr.mxu0 0.0
      %604 = vmatpush1.msra.mxu0 %v392
      %605 = vmatprep.subr.mxu0 0.0
      %606 = vmatpush1.msra.mxu0 %v393
      %607 = vmatprep.subr.mxu0 0.0
      %608 = vmatpush1.msra.mxu0 %v394
      %609 = vmatprep.subr.mxu0 0.0
      %610 = vmatpush1.msra.mxu0 %v395
      %611 = vmatprep.subr.mxu0 0.0
      %612 = vmatpush1.msra.mxu0 %v396
      %613 = vmatprep.subr.mxu0 0.0
      %614 = vmatpush1.msra.mxu0 0.0
      %615 = vmatprep.subr.mxu0 0.0
      %616 = vmatpush1.msra.mxu0 0.0
      %617 = vmatprep.subr.mxu0 0.0
      %618 = vmatpush1.msra.mxu0 0.0
      %619 = vmatprep.subr.mxu0 0.0
      %620 = vmatpush1.msra.mxu0 0.0
      %621 = vmatprep.subr.mxu0 0.0
      %622 = vmatpush1.msra.mxu0 0.0
      %623 = vmatprep.subr.mxu0 0.0
      %624 = vmatpush1.msra.mxu0 0.0
      %625 = vmatprep.subr.mxu0 0.0
      %626 = vmatpush1.msra.mxu0 0.0
      %627 = vmatprep.subr.mxu0 0.0
      %628 = vmatpush1.msra.mxu0 0.0
      %629 = vmatprep.subr.mxu0 0.0
      %630 = vmatpush1.msra.mxu0 0.0
      %631 = vmatprep.subr.mxu0 0.0
      %632 = vmatpush1.msra.mxu0 0.0
      %633 = vmatprep.subr.mxu0 0.0
      %634 = vmatpush1.msra.mxu0 0.0
      %635 = vmatprep.subr.mxu0 0.0
      %636 = vmatpush1.msra.mxu0 0.0
      %637 = vmatprep.subr.mxu0 0.0
      %638 = vmatpush1.msra.mxu0 0.0
      %639 = vmatprep.subr.mxu0 0.0
      %640 = vmatpush1.msra.mxu0 0.0
      %641 = vmatprep.subr.mxu0 0.0
      %642 = vmatpush1.msra.mxu0 0.0
      %643 = vmatprep.subr.mxu0 0.0
      %644 = vmatpush1.msra.mxu0 0.0
      %645 = vmatprep.subr.mxu0 0.0
      %646 = vmatpush1.msra.mxu0 0.0
      %647 = vmatprep.subr.mxu0 0.0
      %648 = vmatpush1.msra.mxu0 0.0
      %649 = vmatprep.subr.mxu0 0.0
      %650 = vmatpush1.msra.mxu0 0.0
      %651 = vmatprep.subr.mxu0 0.0
      %652 = vmatpush1.msra.mxu0 0.0
      %653 = vmatprep.subr.mxu0 0.0
      %654 = vmatpush1.msra.mxu0 0.0
      %655 = vmatprep.subr.mxu0 0.0
      %656 = vmatpush1.msra.mxu0 0.0
      %657 = vmatprep.subr.mxu0 0.0
      %658 = vmatpush1.msra.mxu0 0.0
      %659 = vmatprep.subr.mxu0 0.0
      %660 = vmatpush1.msra.mxu0 0.0
      %661 = vmatprep.mubr.f32.mxu0 0.0
      %662 = vmatmul.mubr.f32.gmra.mrb[0].mxu0 %v406
      %v663 = vpop.f32.mrb[0].mxu0
      %v664 = vadd.f32 %v402, %v663
      %v665 = vpop.f32.mrb[0].mxu0
      %666 = vmatprep.mubr.f32.mxu0 0.0
      %667 = vmatmul.mubr.f32.gmra.mrb[0].mxu0 %v409
      %v668 = vpop.f32.mrb[0].mxu0
      %v669 = vadd.f32 %v402, %v668
      %v670 = vpop.f32.mrb[0].mxu0
      %671 = vmatprep.mubr.f32.mxu0 0.0
      %672 = vmatmul.mubr.f32.gmra.mrb[0].mxu0 %v412
      %v673 = vpop.f32.mrb[0].mxu0
      %v674 = vadd.f32 %v402, %v673
      %v675 = vpop.f32.mrb[0].mxu0
      %676 = vmatprep.mubr.f32.mxu0 0.0
      %677 = vmatmul.mubr.f32.gmra.mrb[0].mxu0 %v415
      %v678 = vpop.f32.mrb[0].mxu0
      %v679 = vadd.f32 %v402, %v678
      %v680 = vpop.f32.mrb[0].mxu0
      %681 = vmatprep.mubr.f32.mxu0 0.0
      %682 = vmatmul.mubr.f32.gmra.mrb[0].mxu0 %v418
      %v683 = vpop.f32.mrb[0].mxu0
      %v684 = vadd.f32 %v402, %v683
      %v685 = vpop.f32.mrb[0].mxu0
      %686 = vmatprep.mubr.f32.mxu0 0.0
      %687 = vmatmul.mubr.f32.gmra.mrb[0].mxu0 %v421
      %v688 = vpop.f32.mrb[0].mxu0
      %v689 = vadd.f32 %v402, %v688
      %v690 = vpop.f32.mrb[0].mxu0
      %691 = vmatprep.mubr.f32.mxu0 0.0
      %692 = vmatmul.mubr.f32.gmra.mrb[0].mxu0 %v424
      %v693 = vpop.f32.mrb[0].mxu0
      %v694 = vadd.f32 %v402, %v693
      %v695 = vpop.f32.mrb[0].mxu0
      %696 = vmatprep.mubr.f32.mxu0 0.0
      %697 = vmatmul.mubr.f32.gmra.mrb[0].mxu0 %v427
      %v698 = vpop.f32.mrb[0].mxu0
      %v699 = vadd.f32 %v402, %v698
      %v700 = vpop.f32.mrb[0].mxu0
      %701 = vmatprep.mubr.f32.mxu0 0.0
      %702 = vmatmul.mubr.f32.gmra.mrb[0].mxu0 %v430
      %v703 = vpop.f32.mrb[0].mxu0
      %v704 = vadd.f32 %v402, %v703
      %v705 = vpop.f32.mrb[0].mxu0
      %706 = vmatprep.mubr.f32.mxu0 0.0
      %707 = vmatmul.mubr.f32.gmra.mrb[0].mxu0 %v433
      %v708 = vpop.f32.mrb[0].mxu0
      %v709 = vadd.f32 %v402, %v708
      %v710 = vpop.f32.mrb[0].mxu0
      %711 = vmatprep.mubr.f32.mxu0 0.0
      %712 = vmatmul.mubr.f32.gmra.mrb[0].mxu0 %v436
      %v713 = vpop.f32.mrb[0].mxu0
      %v714 = vadd.f32 %v402, %v713
      %v715 = vpop.f32.mrb[0].mxu0
      %716 = vmatprep.mubr.f32.mxu0 0.0
      %717 = vmatmul.mubr.f32.gmra.mrb[0].mxu0 %v439
      %v718 = vpop.f32.mrb[0].mxu0
      %v719 = vadd.f32 %v402, %v718
      %v720 = vpop.f32.mrb[0].mxu0
      %721 = vmatprep.mubr.f32.mxu0 0.0
      %722 = vmatmul.mubr.f32.gmra.mrb[0].mxu0 %v442
      %v723 = vpop.f32.mrb[0].mxu0
      %v724 = vadd.f32 %v402, %v723
      %v725 = vpop.f32.mrb[0].mxu0
      %726 = vmatprep.mubr.f32.mxu0 0.0
      %727 = vmatmul.mubr.f32.gmra.mrb[0].mxu0 %v445
      %v728 = vpop.f32.mrb[0].mxu0
      %v729 = vadd.f32 %v402, %v728
      %v730 = vpop.f32.mrb[0].mxu0
      %731 = vmatprep.mubr.f32.mxu0 0.0
      %732 = vmatmul.mubr.f32.gmra.mrb[0].mxu0 %v448
      %v733 = vpop.f32.mrb[0].mxu0
      %v734 = vadd.f32 %v402, %v733
      %v735 = vpop.f32.mrb[0].mxu0
      %736 = vmatprep.mubr.f32.mxu0 0.0
      %737 = vmatmul.mubr.f32.gmra.mrb[0].mxu0 %v451
      %v738 = vpop.f32.mrb[0].mxu0
      %v739 = vadd.f32 %v402, %v738
      %v740 = vpop.f32.mrb[0].mxu0
      %741 = vmatprep.mubr.f32.mxu0 0.0
      %742 = vmatmul.mubr.f32.gmra.mrb[0].mxu0 %v454
      %v743 = vpop.f32.mrb[0].mxu0
      %v744 = vadd.f32 %v402, %v743
      %v745 = vpop.f32.mrb[0].mxu0
      %746 = vmatprep.mubr.f32.mxu0 0.0
      %747 = vmatmul.mubr.f32.gmra.mrb[0].mxu0 %v457
      %v748 = vpop.f32.mrb[0].mxu0
      %v749 = vadd.f32 %v402, %v748
      %v750 = vpop.f32.mrb[0].mxu0
      %751 = vmatprep.mubr.f32.mxu0 0.0
      %752 = vmatmul.mubr.f32.gmra.mrb[0].mxu0 %v460
      %v753 = vpop.f32.mrb[0].mxu0
      %v754 = vadd.f32 %v402, %v753
      %v755 = vpop.f32.mrb[0].mxu0
      %756 = vmatprep.mubr.f32.mxu0 0.0
      %757 = vmatmul.mubr.f32.gmra.mrb[0].mxu0 %v463
      %v758 = vpop.f32.mrb[0].mxu0
      %v759 = vadd.f32 %v402, %v758
      %v760 = vpop.f32.mrb[0].mxu0
      %761 = vmatprep.mubr.f32.mxu0 0.0
      %762 = vmatmul.mubr.f32.gmra.mrb[0].mxu0 %v466
      %v763 = vpop.f32.mrb[0].mxu0
      %v764 = vadd.f32 %v402, %v763
      %v765 = vpop.f32.mrb[0].mxu0
      %766 = vmatprep.mubr.f32.mxu0 0.0
      %767 = vmatmul.mubr.f32.gmra.mrb[0].mxu0 %v469
      %v768 = vpop.f32.mrb[0].mxu0
      %v769 = vadd.f32 %v402, %v768
      %v770 = vpop.f32.mrb[0].mxu0
      %771 = vmatprep.mubr.f32.mxu0 0.0
      %772 = vmatmul.mubr.f32.gmra.mrb[0].mxu0 %v472
      %v773 = vpop.f32.mrb[0].mxu0
      %v774 = vadd.f32 %v402, %v773
      %v775 = vpop.f32.mrb[0].mxu0
      %776 = vmatprep.mubr.f32.mxu0 0.0
      %777 = vmatmul.mubr.f32.gmra.mrb[0].mxu0 %v475
      %v778 = vpop.f32.mrb[0].mxu0
      %v779 = vadd.f32 %v402, %v778
      %v780 = vpop.f32.mrb[0].mxu0
      %781 = vmatprep.mubr.f32.mxu0 0.0
      %782 = vmatmul.mubr.f32.gmra.mrb[0].mxu0 %v478
      %v783 = vpop.f32.mrb[0].mxu0
      %v784 = vadd.f32 %v402, %v783
      %v785 = vpop.f32.mrb[0].mxu0
      %786 = vmatprep.mubr.f32.mxu0 0.0
      %787 = vmatmul.mubr.f32.gmra.mrb[0].mxu0 %v481
      %v788 = vpop.f32.mrb[0].mxu0
      %v789 = vadd.f32 %v402, %v788
      %v790 = vpop.f32.mrb[0].mxu0
      %791 = vmatprep.mubr.f32.mxu0 0.0
      %792 = vmatmul.mubr.f32.gmra.mrb[0].mxu0 %v484
      %v793 = vpop.f32.mrb[0].mxu0
      %v794 = vadd.f32 %v402, %v793
      %v795 = vpop.f32.mrb[0].mxu0
      %796 = vmatprep.mubr.f32.mxu0 0.0
      %797 = vmatmul.mubr.f32.gmra.mrb[0].mxu0 %v487
      %v798 = vpop.f32.mrb[0].mxu0
      %v799 = vadd.f32 %v402, %v798
      %v800 = vpop.f32.mrb[0].mxu0
      %801 = vmatprep.mubr.f32.mxu0 0.0
      %802 = vmatmul.mubr.f32.gmra.mrb[0].mxu0 %v490
      %v803 = vpop.f32.mrb[0].mxu0
      %v804 = vadd.f32 %v402, %v803
      %v805 = vpop.f32.mrb[0].mxu0
      %806 = vmatprep.mubr.f32.mxu0 0.0
      %807 = vmatmul.mubr.f32.gmra.mrb[0].mxu0 %v493
      %v808 = vpop.f32.mrb[0].mxu0
      %v809 = vadd.f32 %v402, %v808
      %v810 = vpop.f32.mrb[0].mxu0
      %811 = vmatprep.mubr.f32.mxu0 0.0
      %812 = vmatmul.mubr.f32.gmra.mrb[0].mxu0 %v496
      %v813 = vpop.f32.mrb[0].mxu0
      %v814 = vadd.f32 %v402, %v813
      %v815 = vpop.f32.mrb[0].mxu0
      %816 = vmatprep.mubr.f32.mxu0 0.0
      %817 = vmatmul.mubr.f32.gmra.mrb[0].mxu0 %v499
      %v818 = vpop.f32.mrb[0].mxu0
      %v819 = vadd.f32 %v402, %v818
      %v820 = vpop.f32.mrb[0].mxu0
      %821 = vmatprep.mubr.f32.mxu0 0.0
      %822 = vmatmul.mubr.f32.gmra.mrb[0].mxu0 %v502
      %v823 = vpop.f32.mrb[0].mxu0
      %v824 = vadd.f32 %v402, %v823
      %v825 = vpop.f32.mrb[0].mxu0
      %826 = vmatprep.mubr.f32.mxu0 0.0
      %827 = vmatmul.mubr.f32.gmra.mrb[0].mxu0 %v505
      %v828 = vpop.f32.mrb[0].mxu0
      %v829 = vadd.f32 %v402, %v828
      %v830 = vpop.f32.mrb[0].mxu0
      %831 = vmatprep.mubr.f32.mxu0 0.0
      %832 = vmatmul.mubr.f32.gmra.mrb[0].mxu0 %v508
      %v833 = vpop.f32.mrb[0].mxu0
      %v834 = vadd.f32 %v402, %v833
      %v835 = vpop.f32.mrb[0].mxu0
      %836 = vmatprep.mubr.f32.mxu0 0.0
      %837 = vmatmul.mubr.f32.gmra.mrb[0].mxu0 %v511
      %v838 = vpop.f32.mrb[0].mxu0
      %v839 = vadd.f32 %v402, %v838
      %v840 = vpop.f32.mrb[0].mxu0
      %841 = vmatprep.mubr.f32.mxu0 0.0
      %842 = vmatmul.mubr.f32.gmra.mrb[0].mxu0 %v514
      %v843 = vpop.f32.mrb[0].mxu0
      %v844 = vadd.f32 %v402, %v843
      %v845 = vpop.f32.mrb[0].mxu0
      %846 = vmatprep.mubr.f32.mxu0 0.0
      %847 = vmatmul.mubr.f32.gmra.mrb[0].mxu0 %v517
      %v848 = vpop.f32.mrb[0].mxu0
      %v849 = vadd.f32 %v402, %v848
      %v850 = vpop.f32.mrb[0].mxu0
      %851 = vmatprep.mubr.f32.mxu0 0.0
      %852 = vmatmul.mubr.f32.gmra.mrb[0].mxu0 %v520
      %v853 = vpop.f32.mrb[0].mxu0
      %v854 = vadd.f32 %v402, %v853
      %v855 = vpop.f32.mrb[0].mxu0
      %856 = vmatprep.mubr.f32.mxu0 0.0
      %857 = vmatmul.mubr.f32.gmra.mrb[0].mxu0 %v523
      %v858 = vpop.f32.mrb[0].mxu0
      %v859 = vadd.f32 %v402, %v858
      %v860 = vpop.f32.mrb[0].mxu0
      %861 = vmatprep.mubr.f32.mxu0 0.0
      %862 = vmatmul.mubr.f32.gmra.mrb[0].mxu0 %v526
      %v863 = vpop.f32.mrb[0].mxu0
      %v864 = vadd.f32 %v402, %v863
      %v865 = vpop.f32.mrb[0].mxu0
      %866 = vmatprep.mubr.f32.mxu0 0.0
      %867 = vmatmul.mubr.f32.gmra.mrb[0].mxu0 %v529
      %v868 = vpop.f32.mrb[0].mxu0
      %v869 = vadd.f32 %v402, %v868
      %v870 = vpop.f32.mrb[0].mxu0
      %871 = vmatprep.mubr.f32.mxu0 0.0
      %872 = vmatmul.mubr.f32.gmra.mrb[0].mxu0 %v532
      %v873 = vpop.f32.mrb[0].mxu0
      %v874 = vadd.f32 %v402, %v873
      %v875 = vpop.f32.mrb[0].mxu0
      %876 = vmatprep.mubr.f32.mxu0 0.0
      %877 = vmatmul.mubr.f32.gmra.mrb[0].mxu0 %v535
      %v878 = vpop.f32.mrb[0].mxu0
      %v879 = vadd.f32 %v402, %v878
      %v880 = vpop.f32.mrb[0].mxu0
      %881 = vmatprep.mubr.f32.mxu0 0.0
      %882 = vmatmul.mubr.f32.gmra.mrb[0].mxu0 %v538
      %v883 = vpop.f32.mrb[0].mxu0
      %v884 = vadd.f32 %v402, %v883
      %v885 = vpop.f32.mrb[0].mxu0
      %886 = vmatprep.mubr.f32.mxu0 0.0
      %887 = vmatmul.mubr.f32.gmra.mrb[0].mxu0 %v541
      %v888 = vpop.f32.mrb[0].mxu0
      %v889 = vadd.f32 %v402, %v888
      %v890 = vpop.f32.mrb[0].mxu0
      %891 = vmatprep.mubr.f32.mxu0 0.0
      %892 = vmatmul.mubr.f32.gmra.mrb[0].mxu0 %v544
      %v893 = vpop.f32.mrb[0].mxu0
      %v894 = vadd.f32 %v402, %v893
      %v895 = vpop.f32.mrb[0].mxu0
      %896 = vmatprep.mubr.f32.mxu0 0.0
      %897 = vmatmul.mubr.f32.gmra.mrb[0].mxu0 %v547
      %v898 = vpop.f32.mrb[0].mxu0
      %v899 = vadd.f32 %v402, %v898
      %v900 = vpop.f32.mrb[0].mxu0
      %901 = vmatprep.mubr.f32.mxu0 0.0
      %902 = vmatmul.mubr.f32.gmra.mrb[0].mxu0 %v550
      %v903 = vpop.f32.mrb[0].mxu0
      %v904 = vadd.f32 %v402, %v903
      %v905 = vpop.f32.mrb[0].mxu0
      %906 = vmatprep.mubr.f32.mxu0 0.0
      %907 = vmatmul.mubr.f32.gmra.mrb[0].mxu0 %v553
      %v908 = vpop.f32.mrb[0].mxu0
      %v909 = vadd.f32 %v402, %v908
      %v910 = vpop.f32.mrb[0].mxu0
      %911 = vmatprep.mubr.f32.mxu0 0.0
      %912 = vmatmul.mubr.f32.gmra.mrb[0].mxu0 %v556
      %v913 = vpop.f32.mrb[0].mxu0
      %v914 = vadd.f32 %v402, %v913
      %v915 = vpop.f32.mrb[0].mxu0
      %916 = vmatprep.mubr.f32.mxu0 0.0
      %917 = vmatmul.mubr.f32.gmra.mrb[0].mxu0 %v559
      %v918 = vpop.f32.mrb[0].mxu0
      %v919 = vadd.f32 %v402, %v918
      %v920 = vpop.f32.mrb[0].mxu0
      %921 = vmatprep.mubr.f32.mxu0 0.0
      %922 = vmatmul.mubr.f32.gmra.mrb[0].mxu0 %v562
      %v923 = vpop.f32.mrb[0].mxu0
      %v924 = vadd.f32 %v402, %v923
      %v925 = vpop.f32.mrb[0].mxu0
      %926 = vmatprep.mubr.f32.mxu0 0.0
      %927 = vmatmul.mubr.f32.gmra.mrb[0].mxu0 %v565
      %v928 = vpop.f32.mrb[0].mxu0
      %v929 = vadd.f32 %v402, %v928
      %v930 = vpop.f32.mrb[0].mxu0
      %931 = vmatprep.mubr.f32.mxu0 0.0
      %932 = vmatmul.mubr.f32.gmra.mrb[0].mxu0 %v568
      %v933 = vpop.f32.mrb[0].mxu0
      %v934 = vadd.f32 %v402, %v933
      %v935 = vpop.f32.mrb[0].mxu0
      %936 = vmatprep.mubr.f32.mxu0 0.0
      %937 = vmatmul.mubr.f32.gmra.mrb[0].mxu0 %v571
      %v938 = vpop.f32.mrb[0].mxu0
      %v939 = vadd.f32 %v402, %v938
      %v940 = vpop.f32.mrb[0].mxu0
      %941 = vmatprep.mubr.f32.mxu0 0.0
      %942 = vmatmul.mubr.f32.gmra.mrb[0].mxu0 %v574
      %v943 = vpop.f32.mrb[0].mxu0
      %v944 = vadd.f32 %v402, %v943
      %v945 = vpop.f32.mrb[0].mxu0
      %946 = vmatprep.mubr.f32.mxu0 0.0
      %947 = vmatmul.mubr.f32.gmra.mrb[0].mxu0 %v577
      %v948 = vpop.f32.mrb[0].mxu0
      %v949 = vadd.f32 %v402, %v948
      %v950 = vpop.f32.mrb[0].mxu0
      %951 = vmatprep.mubr.f32.mxu0 0.0
      %952 = vmatmul.mubr.f32.gmra.mrb[0].mxu0 %v580
      %v953 = vpop.f32.mrb[0].mxu0
      %v954 = vadd.f32 %v402, %v953
      %v955 = vpop.f32.mrb[0].mxu0
      %956 = vmatprep.mubr.f32.mxu0 0.0
      %957 = vmatmul.mubr.f32.gmra.mrb[0].mxu0 %v583
      %v958 = vpop.f32.mrb[0].mxu0
      %v959 = vadd.f32 %v402, %v958
      %v960 = vpop.f32.mrb[0].mxu0
      %961 = vmatprep.mubr.f32.mxu0 0.0
      %962 = vmatmul.mubr.f32.gmra.mrb[0].mxu0 %v586
      %v963 = vpop.f32.mrb[0].mxu0
      %v964 = vadd.f32 %v402, %v963
      %v965 = vpop.f32.mrb[0].mxu0
      %966 = vmatprep.mubr.f32.mxu0 0.0
      %967 = vmatmul.mubr.f32.gmra.mrb[0].mxu0 %v589
      %v968 = vpop.f32.mrb[0].mxu0
      %v969 = vadd.f32 %v402, %v968
      %v970 = vpop.f32.mrb[0].mxu0
      %971 = vmatprep.mubr.f32.mxu0 0.0
      %972 = vmatmul.mubr.f32.gmra.mrb[0].mxu0 %v592
      %v973 = vpop.f32.mrb[0].mxu0
      %v974 = vadd.f32 %v402, %v973
      %v975 = vpop.f32.mrb[0].mxu0
      %976 = vmatprep.mubr.f32.mxu0 0.0
      %977 = vmatmul.mubr.f32.gmra.mrb[0].mxu0 %v595
      %v978 = vpop.f32.mrb[0].mxu0
      %v979 = vadd.f32 %v402, %v978
      %v980 = vpop.f32.mrb[0].mxu0
      %981 = vdwg.mxu0
      %v982 = vmax.f32 %v664, 0.0
      %v983 = vmax.f32 %v669, 0.0
      %v984 = vmax.f32 %v674, 0.0
      %v985 = vmax.f32 %v679, 0.0
      %v986 = vmax.f32 %v684, 0.0
      %v987 = vmax.f32 %v689, 0.0
      %v988 = vmax.f32 %v694, 0.0
      %v989 = vmax.f32 %v699, 0.0
      %v990 = vmax.f32 %v704, 0.0
      %v991 = vmax.f32 %v709, 0.0
      %v992 = vmax.f32 %v714, 0.0
      %v993 = vmax.f32 %v719, 0.0
      %v994 = vmax.f32 %v724, 0.0
      %v995 = vmax.f32 %v729, 0.0
      %v996 = vmax.f32 %v734, 0.0
      %v997 = vmax.f32 %v739, 0.0
      %v998 = vmax.f32 %v744, 0.0
      %v999 = vmax.f32 %v749, 0.0
      %v1000 = vmax.f32 %v754, 0.0
      %v1001 = vmax.f32 %v759, 0.0
      %v1002 = vmax.f32 %v764, 0.0
      %v1003 = vmax.f32 %v769, 0.0
      %v1004 = vmax.f32 %v774, 0.0
      %v1005 = vmax.f32 %v779, 0.0
      %v1006 = vmax.f32 %v784, 0.0
      %v1007 = vmax.f32 %v789, 0.0
      %v1008 = vmax.f32 %v794, 0.0
      %v1009 = vmax.f32 %v799, 0.0
      %v1010 = vmax.f32 %v804, 0.0
      %v1011 = vmax.f32 %v809, 0.0
      %v1012 = vmax.f32 %v814, 0.0
      %v1013 = vmax.f32 %v819, 0.0
      %v1014 = vmax.f32 %v824, 0.0
      %v1015 = vmax.f32 %v829, 0.0
      %v1016 = vmax.f32 %v834, 0.0
      %v1017 = vmax.f32 %v839, 0.0
      %v1018 = vmax.f32 %v844, 0.0
      %v1019 = vmax.f32 %v849, 0.0
      %v1020 = vmax.f32 %v854, 0.0
      %v1021 = vmax.f32 %v859, 0.0
      %v1022 = vmax.f32 %v864, 0.0
      %v1023 = vmax.f32 %v869, 0.0
      %v1024 = vmax.f32 %v874, 0.0
      %v1025 = vmax.f32 %v879, 0.0
      %v1026 = vmax.f32 %v884, 0.0
      %v1027 = vmax.f32 %v889, 0.0
      %v1028 = vmax.f32 %v894, 0.0
      %v1029 = vmax.f32 %v899, 0.0
      %v1030 = vmax.f32 %v904, 0.0
      %v1031 = vmax.f32 %v909, 0.0
      %v1032 = vmax.f32 %v914, 0.0
      %v1033 = vmax.f32 %v919, 0.0
      %v1034 = vmax.f32 %v924, 0.0
      %v1035 = vmax.f32 %v929, 0.0
      %v1036 = vmax.f32 %v934, 0.0
      %v1037 = vmax.f32 %v939, 0.0
      %v1038 = vmax.f32 %v944, 0.0
      %v1039 = vmax.f32 %v949, 0.0
      %v1040 = vmax.f32 %v954, 0.0
      %v1041 = vmax.f32 %v959, 0.0
      %v1042 = vmax.f32 %v964, 0.0
      %v1043 = vmax.f32 %v969, 0.0
      %v1044 = vmax.f32 %v974, 0.0
      %v1045 = vmax.f32 %v979, 0.0
      %v1046 = vld [vmem:[%s3] sm:$0xff]
      %v1047 = vld [vmem:[%s3 + $0x8] sm:$0xff]
      %v1048 = vld [vmem:[%s3 + $0x10] sm:$0xff]
      %v1049 = vld [vmem:[%s3 + $0x18] sm:$0xff]
      %v1050 = vld [vmem:[%s3 + $0x20] sm:$0xff]
      %v1051 = vld [vmem:[%s3 + $0x28] sm:$0xff]
      %v1052 = vld [vmem:[%s3 + $0x30] sm:$0xff]
      %v1053 = vld [vmem:[%s3 + $0x38] sm:$0xff]
      %v1054 = vld [vmem:[%s4] sm:$0x1]
      %v1056 = vlaneseq
      %v1057 = vshrl.u32 %v1056, 7
      %v1058 = vsub.s32 0, %v1057
      %v1059 = vrot.slane %v1054, %v1058
      %v1062 = vsel %vm404, %v982, 0
      %v1065 = vsel %vm404, %v983, 0
      %v1068 = vsel %vm404, %v984, 0
      %v1071 = vsel %vm404, %v985, 0
      %v1074 = vsel %vm404, %v986, 0
      %v1077 = vsel %vm404, %v987, 0
      %v1080 = vsel %vm404, %v988, 0
      %v1083 = vsel %vm404, %v989, 0
      %v1086 = vsel %vm404, %v990, 0
      %v1089 = vsel %vm404, %v991, 0
      %v1092 = vsel %vm404, %v992, 0
      %v1095 = vsel %vm404, %v993, 0
      %v1098 = vsel %vm404, %v994, 0
      %v1101 = vsel %vm404, %v995, 0
      %v1104 = vsel %vm404, %v996, 0
      %v1107 = vsel %vm404, %v997, 0
      %v1110 = vsel %vm404, %v998, 0
      %v1113 = vsel %vm404, %v999, 0
      %v1116 = vsel %vm404, %v1000, 0
      %v1119 = vsel %vm404, %v1001, 0
      %v1122 = vsel %vm404, %v1002, 0
      %v1125 = vsel %vm404, %v1003, 0
      %v1128 = vsel %vm404, %v1004, 0
      %v1131 = vsel %vm404, %v1005, 0
      %v1134 = vsel %vm404, %v1006, 0
      %v1137 = vsel %vm404, %v1007, 0
      %v1140 = vsel %vm404, %v1008, 0
      %v1143 = vsel %vm404, %v1009, 0
      %v1146 = vsel %vm404, %v1010, 0
      %v1149 = vsel %vm404, %v1011, 0
      %v1152 = vsel %vm404, %v1012, 0
      %v1155 = vsel %vm404, %v1013, 0
      %v1158 = vsel %vm404, %v1014, 0
      %v1161 = vsel %vm404, %v1015, 0
      %v1164 = vsel %vm404, %v1016, 0
      %v1167 = vsel %vm404, %v1017, 0
      %v1170 = vsel %vm404, %v1018, 0
      %v1173 = vsel %vm404, %v1019, 0
      %v1176 = vsel %vm404, %v1020, 0
      %v1179 = vsel %vm404, %v1021, 0
      %v1182 = vsel %vm404, %v1022, 0
      %v1185 = vsel %vm404, %v1023, 0
      %v1188 = vsel %vm404, %v1024, 0
      %v1191 = vsel %vm404, %v1025, 0
      %v1194 = vsel %vm404, %v1026, 0
      %v1197 = vsel %vm404, %v1027, 0
      %v1200 = vsel %vm404, %v1028, 0
      %v1203 = vsel %vm404, %v1029, 0
      %v1206 = vsel %vm404, %v1030, 0
      %v1209 = vsel %vm404, %v1031, 0
      %v1212 = vsel %vm404, %v1032, 0
      %v1215 = vsel %vm404, %v1033, 0
      %v1218 = vsel %vm404, %v1034, 0
      %v1221 = vsel %vm404, %v1035, 0
      %v1224 = vsel %vm404, %v1036, 0
      %v1227 = vsel %vm404, %v1037, 0
      %v1230 = vsel %vm404, %v1038, 0
      %v1233 = vsel %vm404, %v1039, 0
      %v1236 = vsel %vm404, %v1040, 0
      %v1239 = vsel %vm404, %v1041, 0
      %v1242 = vsel %vm404, %v1042, 0
      %v1245 = vsel %vm404, %v1043, 0
      %v1248 = vsel %vm404, %v1044, 0
      %v1251 = vsel %vm404, %v1045, 0
      %1253 = vmatprep.subr.mxu0 0.0
      %1254 = vmatpush1.msra.mxu0 %v1046
      %1255 = vmatprep.subr.mxu0 0.0
      %1256 = vmatpush1.msra.mxu0 %v1047
      %1257 = vmatprep.subr.mxu0 0.0
      %1258 = vmatpush1.msra.mxu0 %v1048
      %1259 = vmatprep.subr.mxu0 0.0
      %1260 = vmatpush1.msra.mxu0 %v1049
      %1261 = vmatprep.subr.mxu0 0.0
      %1262 = vmatpush1.msra.mxu0 %v1050
      %1263 = vmatprep.subr.mxu0 0.0
      %1264 = vmatpush1.msra.mxu0 %v1051
      %1265 = vmatprep.subr.mxu0 0.0
      %1266 = vmatpush1.msra.mxu0 %v1052
      %1267 = vmatprep.subr.mxu0 0.0
      %1268 = vmatpush1.msra.mxu0 %v1053
      %1269 = vmatprep.subr.mxu0 0.0
      %1270 = vmatpush1.msra.mxu0 0.0
      %1271 = vmatprep.subr.mxu0 0.0
      %1272 = vmatpush1.msra.mxu0 0.0
      %1273 = vmatprep.subr.mxu0 0.0
      %1274 = vmatpush1.msra.mxu0 0.0
      %1275 = vmatprep.subr.mxu0 0.0
      %1276 = vmatpush1.msra.mxu0 0.0
      %1277 = vmatprep.subr.mxu0 0.0
      %1278 = vmatpush1.msra.mxu0 0.0
      %1279 = vmatprep.subr.mxu0 0.0
      %1280 = vmatpush1.msra.mxu0 0.0
      %1281 = vmatprep.subr.mxu0 0.0
      %1282 = vmatpush1.msra.mxu0 0.0
      %1283 = vmatprep.subr.mxu0 0.0
      %1284 = vmatpush1.msra.mxu0 0.0
      %1285 = vmatprep.subr.mxu0 0.0
      %1286 = vmatpush1.msra.mxu0 0.0
      %1287 = vmatprep.subr.mxu0 0.0
      %1288 = vmatpush1.msra.mxu0 0.0
      %1289 = vmatprep.subr.mxu0 0.0
      %1290 = vmatpush1.msra.mxu0 0.0
      %1291 = vmatprep.subr.mxu0 0.0
      %1292 = vmatpush1.msra.mxu0 0.0
      %1293 = vmatprep.subr.mxu0 0.0
      %1294 = vmatpush1.msra.mxu0 0.0
      %1295 = vmatprep.subr.mxu0 0.0
      %1296 = vmatpush1.msra.mxu0 0.0
      %1297 = vmatprep.subr.mxu0 0.0
      %1298 = vmatpush1.msra.mxu0 0.0
      %1299 = vmatprep.subr.mxu0 0.0
      %1300 = vmatpush1.msra.mxu0 0.0
      %1301 = vmatprep.subr.mxu0 0.0
      %1302 = vmatpush1.msra.mxu0 0.0
      %1303 = vmatprep.subr.mxu0 0.0
      %1304 = vmatpush1.msra.mxu0 0.0
      %1305 = vmatprep.subr.mxu0 0.0
      %1306 = vmatpush1.msra.mxu0 0.0
      %1307 = vmatprep.subr.mxu0 0.0
      %1308 = vmatpush1.msra.mxu0 0.0
      %1309 = vmatprep.subr.mxu0 0.0
      %1310 = vmatpush1.msra.mxu0 0.0
      %1311 = vmatprep.subr.mxu0 0.0
      %1312 = vmatpush1.msra.mxu0 0.0
      %1313 = vmatprep.subr.mxu0 0.0
      %1314 = vmatpush1.msra.mxu0 0.0
      %1315 = vmatprep.subr.mxu0 0.0
      %1316 = vmatpush1.msra.mxu0 0.0
      %1317 = vmatprep.mubr.f32.mxu0 0.0
      %1318 = vmatmul.mubr.f32.gmra.mrb[0].mxu0 %v1062
      %v1319 = vpop.f32.mrb[0].mxu0
      %v1320 = vadd.f32 %v1059, %v1319
      %v1321 = vpop.f32.mrb[0].mxu0
      %1322 = vmatprep.mubr.f32.mxu0 0.0
      %1323 = vmatmul.mubr.f32.gmra.mrb[0].mxu0 %v1065
      %v1324 = vpop.f32.mrb[0].mxu0
      %v1325 = vadd.f32 %v1059, %v1324
      %v1326 = vpop.f32.mrb[0].mxu0
      %1327 = vmatprep.mubr.f32.mxu0 0.0
      %1328 = vmatmul.mubr.f32.gmra.mrb[0].mxu0 %v1068
      %v1329 = vpop.f32.mrb[0].mxu0
      %v1330 = vadd.f32 %v1059, %v1329
      %v1331 = vpop.f32.mrb[0].mxu0
      %1332 = vmatprep.mubr.f32.mxu0 0.0
      %1333 = vmatmul.mubr.f32.gmra.mrb[0].mxu0 %v1071
      %v1334 = vpop.f32.mrb[0].mxu0
      %v1335 = vadd.f32 %v1059, %v1334
      %v1336 = vpop.f32.mrb[0].mxu0
      %1337 = vmatprep.mubr.f32.mxu0 0.0
      %1338 = vmatmul.mubr.f32.gmra.mrb[0].mxu0 %v1074
      %v1339 = vpop.f32.mrb[0].mxu0
      %v1340 = vadd.f32 %v1059, %v1339
      %v1341 = vpop.f32.mrb[0].mxu0
      %1342 = vmatprep.mubr.f32.mxu0 0.0
      %1343 = vmatmul.mubr.f32.gmra.mrb[0].mxu0 %v1077
      %v1344 = vpop.f32.mrb[0].mxu0
      %v1345 = vadd.f32 %v1059, %v1344
      %v1346 = vpop.f32.mrb[0].mxu0
      %1347 = vmatprep.mubr.f32.mxu0 0.0
      %1348 = vmatmul.mubr.f32.gmra.mrb[0].mxu0 %v1080
      %v1349 = vpop.f32.mrb[0].mxu0
      %v1350 = vadd.f32 %v1059, %v1349
      %v1351 = vpop.f32.mrb[0].mxu0
      %1352 = vmatprep.mubr.f32.mxu0 0.0
      %1353 = vmatmul.mubr.f32.gmra.mrb[0].mxu0 %v1083
      %v1354 = vpop.f32.mrb[0].mxu0
      %v1355 = vadd.f32 %v1059, %v1354
      %v1356 = vpop.f32.mrb[0].mxu0
      %1357 = vmatprep.mubr.f32.mxu0 0.0
      %1358 = vmatmul.mubr.f32.gmra.mrb[0].mxu0 %v1086
      %v1359 = vpop.f32.mrb[0].mxu0
      %v1360 = vadd.f32 %v1059, %v1359
      %v1361 = vpop.f32.mrb[0].mxu0
      %1362 = vmatprep.mubr.f32.mxu0 0.0
      %1363 = vmatmul.mubr.f32.gmra.mrb[0].mxu0 %v1089
      %v1364 = vpop.f32.mrb[0].mxu0
      %v1365 = vadd.f32 %v1059, %v1364
      %v1366 = vpop.f32.mrb[0].mxu0
      %1367 = vmatprep.mubr.f32.mxu0 0.0
      %1368 = vmatmul.mubr.f32.gmra.mrb[0].mxu0 %v1092
      %v1369 = vpop.f32.mrb[0].mxu0
      %v1370 = vadd.f32 %v1059, %v1369
      %v1371 = vpop.f32.mrb[0].mxu0
      %1372 = vmatprep.mubr.f32.mxu0 0.0
      %1373 = vmatmul.mubr.f32.gmra.mrb[0].mxu0 %v1095
      %v1374 = vpop.f32.mrb[0].mxu0
      %v1375 = vadd.f32 %v1059, %v1374
      %v1376 = vpop.f32.mrb[0].mxu0
      %1377 = vmatprep.mubr.f32.mxu0 0.0
      %1378 = vmatmul.mubr.f32.gmra.mrb[0].mxu0 %v1098
      %v1379 = vpop.f32.mrb[0].mxu0
      %v1380 = vadd.f32 %v1059, %v1379
      %v1381 = vpop.f32.mrb[0].mxu0
      %1382 = vmatprep.mubr.f32.mxu0 0.0
      %1383 = vmatmul.mubr.f32.gmra.mrb[0].mxu0 %v1101
      %v1384 = vpop.f32.mrb[0].mxu0
      %v1385 = vadd.f32 %v1059, %v1384
      %v1386 = vpop.f32.mrb[0].mxu0
      %1387 = vmatprep.mubr.f32.mxu0 0.0
      %1388 = vmatmul.mubr.f32.gmra.mrb[0].mxu0 %v1104
      %v1389 = vpop.f32.mrb[0].mxu0
      %v1390 = vadd.f32 %v1059, %v1389
      %v1391 = vpop.f32.mrb[0].mxu0
      %1392 = vmatprep.mubr.f32.mxu0 0.0
      %1393 = vmatmul.mubr.f32.gmra.mrb[0].mxu0 %v1107
      %v1394 = vpop.f32.mrb[0].mxu0
      %v1395 = vadd.f32 %v1059, %v1394
      %v1396 = vpop.f32.mrb[0].mxu0
      %1397 = vmatprep.mubr.f32.mxu0 0.0
      %1398 = vmatmul.mubr.f32.gmra.mrb[0].mxu0 %v1110
      %v1399 = vpop.f32.mrb[0].mxu0
      %v1400 = vadd.f32 %v1059, %v1399
      %v1401 = vpop.f32.mrb[0].mxu0
      %1402 = vmatprep.mubr.f32.mxu0 0.0
      %1403 = vmatmul.mubr.f32.gmra.mrb[0].mxu0 %v1113
      %v1404 = vpop.f32.mrb[0].mxu0
      %v1405 = vadd.f32 %v1059, %v1404
      %v1406 = vpop.f32.mrb[0].mxu0
      %1407 = vmatprep.mubr.f32.mxu0 0.0
      %1408 = vmatmul.mubr.f32.gmra.mrb[0].mxu0 %v1116
      %v1409 = vpop.f32.mrb[0].mxu0
      %v1410 = vadd.f32 %v1059, %v1409
      %v1411 = vpop.f32.mrb[0].mxu0
      %1412 = vmatprep.mubr.f32.mxu0 0.0
      %1413 = vmatmul.mubr.f32.gmra.mrb[0].mxu0 %v1119
      %v1414 = vpop.f32.mrb[0].mxu0
      %v1415 = vadd.f32 %v1059, %v1414
      %v1416 = vpop.f32.mrb[0].mxu0
      %1417 = vmatprep.mubr.f32.mxu0 0.0
      %1418 = vmatmul.mubr.f32.gmra.mrb[0].mxu0 %v1122
      %v1419 = vpop.f32.mrb[0].mxu0
      %v1420 = vadd.f32 %v1059, %v1419
      %v1421 = vpop.f32.mrb[0].mxu0
      %1422 = vmatprep.mubr.f32.mxu0 0.0
      %1423 = vmatmul.mubr.f32.gmra.mrb[0].mxu0 %v1125
      %v1424 = vpop.f32.mrb[0].mxu0
      %v1425 = vadd.f32 %v1059, %v1424
      %v1426 = vpop.f32.mrb[0].mxu0
      %1427 = vmatprep.mubr.f32.mxu0 0.0
      %1428 = vmatmul.mubr.f32.gmra.mrb[0].mxu0 %v1128
      %v1429 = vpop.f32.mrb[0].mxu0
      %v1430 = vadd.f32 %v1059, %v1429
      %v1431 = vpop.f32.mrb[0].mxu0
      %1432 = vmatprep.mubr.f32.mxu0 0.0
      %1433 = vmatmul.mubr.f32.gmra.mrb[0].mxu0 %v1131
      %v1434 = vpop.f32.mrb[0].mxu0
      %v1435 = vadd.f32 %v1059, %v1434
      %v1436 = vpop.f32.mrb[0].mxu0
      %1437 = vmatprep.mubr.f32.mxu0 0.0
      %1438 = vmatmul.mubr.f32.gmra.mrb[0].mxu0 %v1134
      %v1439 = vpop.f32.mrb[0].mxu0
      %v1440 = vadd.f32 %v1059, %v1439
      %v1441 = vpop.f32.mrb[0].mxu0
      %1442 = vmatprep.mubr.f32.mxu0 0.0
      %1443 = vmatmul.mubr.f32.gmra.mrb[0].mxu0 %v1137
      %v1444 = vpop.f32.mrb[0].mxu0
      %v1445 = vadd.f32 %v1059, %v1444
      %v1446 = vpop.f32.mrb[0].mxu0
      %1447 = vmatprep.mubr.f32.mxu0 0.0
      %1448 = vmatmul.mubr.f32.gmra.mrb[0].mxu0 %v1140
      %v1449 = vpop.f32.mrb[0].mxu0
      %v1450 = vadd.f32 %v1059, %v1449
      %v1451 = vpop.f32.mrb[0].mxu0
      %1452 = vmatprep.mubr.f32.mxu0 0.0
      %1453 = vmatmul.mubr.f32.gmra.mrb[0].mxu0 %v1143
      %v1454 = vpop.f32.mrb[0].mxu0
      %v1455 = vadd.f32 %v1059, %v1454
      %v1456 = vpop.f32.mrb[0].mxu0
      %1457 = vmatprep.mubr.f32.mxu0 0.0
      %1458 = vmatmul.mubr.f32.gmra.mrb[0].mxu0 %v1146
      %v1459 = vpop.f32.mrb[0].mxu0
      %v1460 = vadd.f32 %v1059, %v1459
      %v1461 = vpop.f32.mrb[0].mxu0
      %1462 = vmatprep.mubr.f32.mxu0 0.0
      %1463 = vmatmul.mubr.f32.gmra.mrb[0].mxu0 %v1149
      %v1464 = vpop.f32.mrb[0].mxu0
      %v1465 = vadd.f32 %v1059, %v1464
      %v1466 = vpop.f32.mrb[0].mxu0
      %1467 = vmatprep.mubr.f32.mxu0 0.0
      %1468 = vmatmul.mubr.f32.gmra.mrb[0].mxu0 %v1152
      %v1469 = vpop.f32.mrb[0].mxu0
      %v1470 = vadd.f32 %v1059, %v1469
      %v1471 = vpop.f32.mrb[0].mxu0
      %1472 = vmatprep.mubr.f32.mxu0 0.0
      %1473 = vmatmul.mubr.f32.gmra.mrb[0].mxu0 %v1155
      %v1474 = vpop.f32.mrb[0].mxu0
      %v1475 = vadd.f32 %v1059, %v1474
      %v1476 = vpop.f32.mrb[0].mxu0
      %1477 = vmatprep.mubr.f32.mxu0 0.0
      %1478 = vmatmul.mubr.f32.gmra.mrb[0].mxu0 %v1158
      %v1479 = vpop.f32.mrb[0].mxu0
      %v1480 = vadd.f32 %v1059, %v1479
      %v1481 = vpop.f32.mrb[0].mxu0
      %1482 = vmatprep.mubr.f32.mxu0 0.0
      %1483 = vmatmul.mubr.f32.gmra.mrb[0].mxu0 %v1161
      %v1484 = vpop.f32.mrb[0].mxu0
      %v1485 = vadd.f32 %v1059, %v1484
      %v1486 = vpop.f32.mrb[0].mxu0
      %1487 = vmatprep.mubr.f32.mxu0 0.0
      %1488 = vmatmul.mubr.f32.gmra.mrb[0].mxu0 %v1164
      %v1489 = vpop.f32.mrb[0].mxu0
      %v1490 = vadd.f32 %v1059, %v1489
      %v1491 = vpop.f32.mrb[0].mxu0
      %1492 = vmatprep.mubr.f32.mxu0 0.0
      %1493 = vmatmul.mubr.f32.gmra.mrb[0].mxu0 %v1167
      %v1494 = vpop.f32.mrb[0].mxu0
      %v1495 = vadd.f32 %v1059, %v1494
      %v1496 = vpop.f32.mrb[0].mxu0
      %1497 = vmatprep.mubr.f32.mxu0 0.0
      %1498 = vmatmul.mubr.f32.gmra.mrb[0].mxu0 %v1170
      %v1499 = vpop.f32.mrb[0].mxu0
      %v1500 = vadd.f32 %v1059, %v1499
      %v1501 = vpop.f32.mrb[0].mxu0
      %1502 = vmatprep.mubr.f32.mxu0 0.0
      %1503 = vmatmul.mubr.f32.gmra.mrb[0].mxu0 %v1173
      %v1504 = vpop.f32.mrb[0].mxu0
      %v1505 = vadd.f32 %v1059, %v1504
      %v1506 = vpop.f32.mrb[0].mxu0
      %1507 = vmatprep.mubr.f32.mxu0 0.0
      %1508 = vmatmul.mubr.f32.gmra.mrb[0].mxu0 %v1176
      %v1509 = vpop.f32.mrb[0].mxu0
      %v1510 = vadd.f32 %v1059, %v1509
      %v1511 = vpop.f32.mrb[0].mxu0
      %1512 = vmatprep.mubr.f32.mxu0 0.0
      %1513 = vmatmul.mubr.f32.gmra.mrb[0].mxu0 %v1179
      %v1514 = vpop.f32.mrb[0].mxu0
      %v1515 = vadd.f32 %v1059, %v1514
      %v1516 = vpop.f32.mrb[0].mxu0
      %1517 = vmatprep.mubr.f32.mxu0 0.0
      %1518 = vmatmul.mubr.f32.gmra.mrb[0].mxu0 %v1182
      %v1519 = vpop.f32.mrb[0].mxu0
      %v1520 = vadd.f32 %v1059, %v1519
      %v1521 = vpop.f32.mrb[0].mxu0
      %1522 = vmatprep.mubr.f32.mxu0 0.0
      %1523 = vmatmul.mubr.f32.gmra.mrb[0].mxu0 %v1185
      %v1524 = vpop.f32.mrb[0].mxu0
      %v1525 = vadd.f32 %v1059, %v1524
      %v1526 = vpop.f32.mrb[0].mxu0
      %1527 = vmatprep.mubr.f32.mxu0 0.0
      %1528 = vmatmul.mubr.f32.gmra.mrb[0].mxu0 %v1188
      %v1529 = vpop.f32.mrb[0].mxu0
      %v1530 = vadd.f32 %v1059, %v1529
      %v1531 = vpop.f32.mrb[0].mxu0
      %1532 = vmatprep.mubr.f32.mxu0 0.0
      %1533 = vmatmul.mubr.f32.gmra.mrb[0].mxu0 %v1191
      %v1534 = vpop.f32.mrb[0].mxu0
      %v1535 = vadd.f32 %v1059, %v1534
      %v1536 = vpop.f32.mrb[0].mxu0
      %1537 = vmatprep.mubr.f32.mxu0 0.0
      %1538 = vmatmul.mubr.f32.gmra.mrb[0].mxu0 %v1194
      %v1539 = vpop.f32.mrb[0].mxu0
      %v1540 = vadd.f32 %v1059, %v1539
      %v1541 = vpop.f32.mrb[0].mxu0
      %1542 = vmatprep.mubr.f32.mxu0 0.0
      %1543 = vmatmul.mubr.f32.gmra.mrb[0].mxu0 %v1197
      %v1544 = vpop.f32.mrb[0].mxu0
      %v1545 = vadd.f32 %v1059, %v1544
      %v1546 = vpop.f32.mrb[0].mxu0
      %1547 = vmatprep.mubr.f32.mxu0 0.0
      %1548 = vmatmul.mubr.f32.gmra.mrb[0].mxu0 %v1200
      %v1549 = vpop.f32.mrb[0].mxu0
      %v1550 = vadd.f32 %v1059, %v1549
      %v1551 = vpop.f32.mrb[0].mxu0
      %1552 = vmatprep.mubr.f32.mxu0 0.0
      %1553 = vmatmul.mubr.f32.gmra.mrb[0].mxu0 %v1203
      %v1554 = vpop.f32.mrb[0].mxu0
      %v1555 = vadd.f32 %v1059, %v1554
      %v1556 = vpop.f32.mrb[0].mxu0
      %1557 = vmatprep.mubr.f32.mxu0 0.0
      %1558 = vmatmul.mubr.f32.gmra.mrb[0].mxu0 %v1206
      %v1559 = vpop.f32.mrb[0].mxu0
      %v1560 = vadd.f32 %v1059, %v1559
      %v1561 = vpop.f32.mrb[0].mxu0
      %1562 = vmatprep.mubr.f32.mxu0 0.0
      %1563 = vmatmul.mubr.f32.gmra.mrb[0].mxu0 %v1209
      %v1564 = vpop.f32.mrb[0].mxu0
      %v1565 = vadd.f32 %v1059, %v1564
      %v1566 = vpop.f32.mrb[0].mxu0
      %1567 = vmatprep.mubr.f32.mxu0 0.0
      %1568 = vmatmul.mubr.f32.gmra.mrb[0].mxu0 %v1212
      %v1569 = vpop.f32.mrb[0].mxu0
      %v1570 = vadd.f32 %v1059, %v1569
      %v1571 = vpop.f32.mrb[0].mxu0
      %1572 = vmatprep.mubr.f32.mxu0 0.0
      %1573 = vmatmul.mubr.f32.gmra.mrb[0].mxu0 %v1215
      %v1574 = vpop.f32.mrb[0].mxu0
      %v1575 = vadd.f32 %v1059, %v1574
      %v1576 = vpop.f32.mrb[0].mxu0
      %1577 = vmatprep.mubr.f32.mxu0 0.0
      %1578 = vmatmul.mubr.f32.gmra.mrb[0].mxu0 %v1218
      %v1579 = vpop.f32.mrb[0].mxu0
      %v1580 = vadd.f32 %v1059, %v1579
      %v1581 = vpop.f32.mrb[0].mxu0
      %1582 = vmatprep.mubr.f32.mxu0 0.0
      %1583 = vmatmul.mubr.f32.gmra.mrb[0].mxu0 %v1221
      %v1584 = vpop.f32.mrb[0].mxu0
      %v1585 = vadd.f32 %v1059, %v1584
      %v1586 = vpop.f32.mrb[0].mxu0
      %1587 = vmatprep.mubr.f32.mxu0 0.0
      %1588 = vmatmul.mubr.f32.gmra.mrb[0].mxu0 %v1224
      %v1589 = vpop.f32.mrb[0].mxu0
      %v1590 = vadd.f32 %v1059, %v1589
      %v1591 = vpop.f32.mrb[0].mxu0
      %1592 = vmatprep.mubr.f32.mxu0 0.0
      %1593 = vmatmul.mubr.f32.gmra.mrb[0].mxu0 %v1227
      %v1594 = vpop.f32.mrb[0].mxu0
      %v1595 = vadd.f32 %v1059, %v1594
      %v1596 = vpop.f32.mrb[0].mxu0
      %1597 = vmatprep.mubr.f32.mxu0 0.0
      %1598 = vmatmul.mubr.f32.gmra.mrb[0].mxu0 %v1230
      %v1599 = vpop.f32.mrb[0].mxu0
      %v1600 = vadd.f32 %v1059, %v1599
      %v1601 = vpop.f32.mrb[0].mxu0
      %1602 = vmatprep.mubr.f32.mxu0 0.0
      %1603 = vmatmul.mubr.f32.gmra.mrb[0].mxu0 %v1233
      %v1604 = vpop.f32.mrb[0].mxu0
      %v1605 = vadd.f32 %v1059, %v1604
      %v1606 = vpop.f32.mrb[0].mxu0
      %1607 = vmatprep.mubr.f32.mxu0 0.0
      %1608 = vmatmul.mubr.f32.gmra.mrb[0].mxu0 %v1236
      %v1609 = vpop.f32.mrb[0].mxu0
      %v1610 = vadd.f32 %v1059, %v1609
      %v1611 = vpop.f32.mrb[0].mxu0
      %1612 = vmatprep.mubr.f32.mxu0 0.0
      %1613 = vmatmul.mubr.f32.gmra.mrb[0].mxu0 %v1239
      %v1614 = vpop.f32.mrb[0].mxu0
      %v1615 = vadd.f32 %v1059, %v1614
      %v1616 = vpop.f32.mrb[0].mxu0
      %1617 = vmatprep.mubr.f32.mxu0 0.0
      %1618 = vmatmul.mubr.f32.gmra.mrb[0].mxu0 %v1242
      %v1619 = vpop.f32.mrb[0].mxu0
      %v1620 = vadd.f32 %v1059, %v1619
      %v1621 = vpop.f32.mrb[0].mxu0
      %1622 = vmatprep.mubr.f32.mxu0 0.0
      %1623 = vmatmul.mubr.f32.gmra.mrb[0].mxu0 %v1245
      %v1624 = vpop.f32.mrb[0].mxu0
      %v1625 = vadd.f32 %v1059, %v1624
      %v1626 = vpop.f32.mrb[0].mxu0
      %1627 = vmatprep.mubr.f32.mxu0 0.0
      %1628 = vmatmul.mubr.f32.gmra.mrb[0].mxu0 %v1248
      %v1629 = vpop.f32.mrb[0].mxu0
      %v1630 = vadd.f32 %v1059, %v1629
      %v1631 = vpop.f32.mrb[0].mxu0
      %1632 = vmatprep.mubr.f32.mxu0 0.0
      %1633 = vmatmul.mubr.f32.gmra.mrb[0].mxu0 %v1251
      %v1634 = vpop.f32.mrb[0].mxu0
      %v1635 = vadd.f32 %v1059, %v1634
      %v1636 = vpop.f32.mrb[0].mxu0
      %1637 = vdwg.mxu0
      %v1638 = vld [vmem:[%s5] sm:$0x1]
      %v1640 = vlaneseq
      %v1641 = vshrl.u32 %v1640, 7
      %v1642 = vsub.s32 0, %v1641
      %v1643 = vrot.slane %v1638, %v1642
      %v1645 = vmul.f32 %v1320, %v1643
      %v1646 = vmul.f32 %v1325, %v1643
      %v1647 = vmul.f32 %v1330, %v1643
      %v1648 = vmul.f32 %v1335, %v1643
      %v1649 = vmul.f32 %v1340, %v1643
      %v1650 = vmul.f32 %v1345, %v1643
      %v1651 = vmul.f32 %v1350, %v1643
      %v1652 = vmul.f32 %v1355, %v1643
      %v1653 = vmul.f32 %v1360, %v1643
      %v1654 = vmul.f32 %v1365, %v1643
      %v1655 = vmul.f32 %v1370, %v1643
      %v1656 = vmul.f32 %v1375, %v1643
      %v1657 = vmul.f32 %v1380, %v1643
      %v1658 = vmul.f32 %v1385, %v1643
      %v1659 = vmul.f32 %v1390, %v1643
      %v1660 = vmul.f32 %v1395, %v1643
      %v1661 = vmul.f32 %v1400, %v1643
      %v1662 = vmul.f32 %v1405, %v1643
      %v1663 = vmul.f32 %v1410, %v1643
      %v1664 = vmul.f32 %v1415, %v1643
      %v1665 = vmul.f32 %v1420, %v1643
      %v1666 = vmul.f32 %v1425, %v1643
      %v1667 = vmul.f32 %v1430, %v1643
      %v1668 = vmul.f32 %v1435, %v1643
      %v1669 = vmul.f32 %v1440, %v1643
      %v1670 = vmul.f32 %v1445, %v1643
      %v1671 = vmul.f32 %v1450, %v1643
      %v1672 = vmul.f32 %v1455, %v1643
      %v1673 = vmul.f32 %v1460, %v1643
      %v1674 = vmul.f32 %v1465, %v1643
      %v1675 = vmul.f32 %v1470, %v1643
      %v1676 = vmul.f32 %v1475, %v1643
      %v1677 = vmul.f32 %v1480, %v1643
      %v1678 = vmul.f32 %v1485, %v1643
      %v1679 = vmul.f32 %v1490, %v1643
      %v1680 = vmul.f32 %v1495, %v1643
      %v1681 = vmul.f32 %v1500, %v1643
      %v1682 = vmul.f32 %v1505, %v1643
      %v1683 = vmul.f32 %v1510, %v1643
      %v1684 = vmul.f32 %v1515, %v1643
      %v1685 = vmul.f32 %v1520, %v1643
      %v1686 = vmul.f32 %v1525, %v1643
      %v1687 = vmul.f32 %v1530, %v1643
      %v1688 = vmul.f32 %v1535, %v1643
      %v1689 = vmul.f32 %v1540, %v1643
      %v1690 = vmul.f32 %v1545, %v1643
      %v1691 = vmul.f32 %v1550, %v1643
      %v1692 = vmul.f32 %v1555, %v1643
      %v1693 = vmul.f32 %v1560, %v1643
      %v1694 = vmul.f32 %v1565, %v1643
      %v1695 = vmul.f32 %v1570, %v1643
      %v1696 = vmul.f32 %v1575, %v1643
      %v1697 = vmul.f32 %v1580, %v1643
      %v1698 = vmul.f32 %v1585, %v1643
      %v1699 = vmul.f32 %v1590, %v1643
      %v1700 = vmul.f32 %v1595, %v1643
      %v1701 = vmul.f32 %v1600, %v1643
      %v1702 = vmul.f32 %v1605, %v1643
      %v1703 = vmul.f32 %v1610, %v1643
      %v1704 = vmul.f32 %v1615, %v1643
      %v1705 = vmul.f32 %v1620, %v1643
      %v1706 = vmul.f32 %v1625, %v1643
      %v1707 = vmul.f32 %v1630, %v1643
      %v1708 = vmul.f32 %v1635, %v1643
      %1709 = vadd.xlane.f32.xlu0 %v1645
      %v1710 = vpop.xlane.xlu0 %1709
      %1711 = vadd.xlane.f32.xlu0 %v1646
      %v1712 = vpop.xlane.xlu0 %1711
      %1713 = vadd.xlane.f32.xlu0 %v1647
      %v1714 = vpop.xlane.xlu0 %1713
      %1715 = vadd.xlane.f32.xlu0 %v1648
      %v1716 = vpop.xlane.xlu0 %1715
      %1717 = vadd.xlane.f32.xlu0 %v1649
      %v1718 = vpop.xlane.xlu0 %1717
      %1719 = vadd.xlane.f32.xlu0 %v1650
      %v1720 = vpop.xlane.xlu0 %1719
      %1721 = vadd.xlane.f32.xlu0 %v1651
      %v1722 = vpop.xlane.xlu0 %1721
      %1723 = vadd.xlane.f32.xlu0 %v1652
      %v1724 = vpop.xlane.xlu0 %1723
      %1725 = vadd.xlane.f32.xlu0 %v1653
      %v1726 = vpop.xlane.xlu0 %1725
      %1727 = vadd.xlane.f32.xlu0 %v1654
      %v1728 = vpop.xlane.xlu0 %1727
      %1729 = vadd.xlane.f32.xlu0 %v1655
      %v1730 = vpop.xlane.xlu0 %1729
      %1731 = vadd.xlane.f32.xlu0 %v1656
      %v1732 = vpop.xlane.xlu0 %1731
      %1733 = vadd.xlane.f32.xlu0 %v1657
      %v1734 = vpop.xlane.xlu0 %1733
      %1735 = vadd.xlane.f32.xlu0 %v1658
      %v1736 = vpop.xlane.xlu0 %1735
      %1737 = vadd.xlane.f32.xlu0 %v1659
      %v1738 = vpop.xlane.xlu0 %1737
      %1739 = vadd.xlane.f32.xlu0 %v1660
      %v1740 = vpop.xlane.xlu0 %1739
      %1741 = vadd.xlane.f32.xlu0 %v1661
      %v1742 = vpop.xlane.xlu0 %1741
      %1743 = vadd.xlane.f32.xlu0 %v1662
      %v1744 = vpop.xlane.xlu0 %1743
      %1745 = vadd.xlane.f32.xlu0 %v1663
      %v1746 = vpop.xlane.xlu0 %1745
      %1747 = vadd.xlane.f32.xlu0 %v1664
      %v1748 = vpop.xlane.xlu0 %1747
      %1749 = vadd.xlane.f32.xlu0 %v1665
      %v1750 = vpop.xlane.xlu0 %1749
      %1751 = vadd.xlane.f32.xlu0 %v1666
      %v1752 = vpop.xlane.xlu0 %1751
      %1753 = vadd.xlane.f32.xlu0 %v1667
      %v1754 = vpop.xlane.xlu0 %1753
      %1755 = vadd.xlane.f32.xlu0 %v1668
      %v1756 = vpop.xlane.xlu0 %1755
      %1757 = vadd.xlane.f32.xlu0 %v1669
      %v1758 = vpop.xlane.xlu0 %1757
      %1759 = vadd.xlane.f32.xlu0 %v1670
      %v1760 = vpop.xlane.xlu0 %1759
      %1761 = vadd.xlane.f32.xlu0 %v1671
      %v1762 = vpop.xlane.xlu0 %1761
      %1763 = vadd.xlane.f32.xlu0 %v1672
      %v1764 = vpop.xlane.xlu0 %1763
      %1765 = vadd.xlane.f32.xlu0 %v1673
      %v1766 = vpop.xlane.xlu0 %1765
      %1767 = vadd.xlane.f32.xlu0 %v1674
      %v1768 = vpop.xlane.xlu0 %1767
      %1769 = vadd.xlane.f32.xlu0 %v1675
      %v1770 = vpop.xlane.xlu0 %1769
      %1771 = vadd.xlane.f32.xlu0 %v1676
      %v1772 = vpop.xlane.xlu0 %1771
      %1773 = vadd.xlane.f32.xlu0 %v1677
      %v1774 = vpop.xlane.xlu0 %1773
      %1775 = vadd.xlane.f32.xlu0 %v1678
      %v1776 = vpop.xlane.xlu0 %1775
      %1777 = vadd.xlane.f32.xlu0 %v1679
      %v1778 = vpop.xlane.xlu0 %1777
      %1779 = vadd.xlane.f32.xlu0 %v1680
      %v1780 = vpop.xlane.xlu0 %1779
      %1781 = vadd.xlane.f32.xlu0 %v1681
      %v1782 = vpop.xlane.xlu0 %1781
      %1783 = vadd.xlane.f32.xlu0 %v1682
      %v1784 = vpop.xlane.xlu0 %1783
      %1785 = vadd.xlane.f32.xlu0 %v1683
      %v1786 = vpop.xlane.xlu0 %1785
      %1787 = vadd.xlane.f32.xlu0 %v1684
      %v1788 = vpop.xlane.xlu0 %1787
      %1789 = vadd.xlane.f32.xlu0 %v1685
      %v1790 = vpop.xlane.xlu0 %1789
      %1791 = vadd.xlane.f32.xlu0 %v1686
      %v1792 = vpop.xlane.xlu0 %1791
      %1793 = vadd.xlane.f32.xlu0 %v1687
      %v1794 = vpop.xlane.xlu0 %1793
      %1795 = vadd.xlane.f32.xlu0 %v1688
      %v1796 = vpop.xlane.xlu0 %1795
      %1797 = vadd.xlane.f32.xlu0 %v1689
      %v1798 = vpop.xlane.xlu0 %1797
      %1799 = vadd.xlane.f32.xlu0 %v1690
      %v1800 = vpop.xlane.xlu0 %1799
      %1801 = vadd.xlane.f32.xlu0 %v1691
      %v1802 = vpop.xlane.xlu0 %1801
      %1803 = vadd.xlane.f32.xlu0 %v1692
      %v1804 = vpop.xlane.xlu0 %1803
      %1805 = vadd.xlane.f32.xlu0 %v1693
      %v1806 = vpop.xlane.xlu0 %1805
      %1807 = vadd.xlane.f32.xlu0 %v1694
      %v1808 = vpop.xlane.xlu0 %1807
      %1809 = vadd.xlane.f32.xlu0 %v1695
      %v1810 = vpop.xlane.xlu0 %1809
      %1811 = vadd.xlane.f32.xlu0 %v1696
      %v1812 = vpop.xlane.xlu0 %1811
      %1813 = vadd.xlane.f32.xlu0 %v1697
      %v1814 = vpop.xlane.xlu0 %1813
      %1815 = vadd.xlane.f32.xlu0 %v1698
      %v1816 = vpop.xlane.xlu0 %1815
      %1817 = vadd.xlane.f32.xlu0 %v1699
      %v1818 = vpop.xlane.xlu0 %1817
      %1819 = vadd.xlane.f32.xlu0 %v1700
      %v1820 = vpop.xlane.xlu0 %1819
      %1821 = vadd.xlane.f32.xlu0 %v1701
      %v1822 = vpop.xlane.xlu0 %1821
      %1823 = vadd.xlane.f32.xlu0 %v1702
      %v1824 = vpop.xlane.xlu0 %1823
      %1825 = vadd.xlane.f32.xlu0 %v1703
      %v1826 = vpop.xlane.xlu0 %1825
      %1827 = vadd.xlane.f32.xlu0 %v1704
      %v1828 = vpop.xlane.xlu0 %1827
      %1829 = vadd.xlane.f32.xlu0 %v1705
      %v1830 = vpop.xlane.xlu0 %1829
      %1831 = vadd.xlane.f32.xlu0 %v1706
      %v1832 = vpop.xlane.xlu0 %1831
      %1833 = vadd.xlane.f32.xlu0 %v1707
      %v1834 = vpop.xlane.xlu0 %1833
      %1835 = vadd.xlane.f32.xlu0 %v1708
      %v1836 = vpop.xlane.xlu0 %1835
      %v1837 = vld [vmem:[#allocation2] sm:$0x1]
      %v1839 = vlaneseq
      %v1840 = vshrl.u32 %v1839, 7
      %v1841 = vsub.s32 0, %v1840
      %v1842 = vrot.slane %v1837, %v1841
      %v1844 = vadd.f32 %v1710, %v1842
      %v1845 = vadd.f32 %v1712, %v1842
      %v1846 = vadd.f32 %v1714, %v1842
      %v1847 = vadd.f32 %v1716, %v1842
      %v1848 = vadd.f32 %v1718, %v1842
      %v1849 = vadd.f32 %v1720, %v1842
      %v1850 = vadd.f32 %v1722, %v1842
      %v1851 = vadd.f32 %v1724, %v1842
      %v1852 = vadd.f32 %v1726, %v1842
      %v1853 = vadd.f32 %v1728, %v1842
      %v1854 = vadd.f32 %v1730, %v1842
      %v1855 = vadd.f32 %v1732, %v1842
      %v1856 = vadd.f32 %v1734, %v1842
      %v1857 = vadd.f32 %v1736, %v1842
      %v1858 = vadd.f32 %v1738, %v1842
      %v1859 = vadd.f32 %v1740, %v1842
      %v1860 = vadd.f32 %v1742, %v1842
      %v1861 = vadd.f32 %v1744, %v1842
      %v1862 = vadd.f32 %v1746, %v1842
      %v1863 = vadd.f32 %v1748, %v1842
      %v1864 = vadd.f32 %v1750, %v1842
      %v1865 = vadd.f32 %v1752, %v1842
      %v1866 = vadd.f32 %v1754, %v1842
      %v1867 = vadd.f32 %v1756, %v1842
      %v1868 = vadd.f32 %v1758, %v1842
      %v1869 = vadd.f32 %v1760, %v1842
      %v1870 = vadd.f32 %v1762, %v1842
      %v1871 = vadd.f32 %v1764, %v1842
      %v1872 = vadd.f32 %v1766, %v1842
      %v1873 = vadd.f32 %v1768, %v1842
      %v1874 = vadd.f32 %v1770, %v1842
      %v1875 = vadd.f32 %v1772, %v1842
      %v1876 = vadd.f32 %v1774, %v1842
      %v1877 = vadd.f32 %v1776, %v1842
      %v1878 = vadd.f32 %v1778, %v1842
      %v1879 = vadd.f32 %v1780, %v1842
      %v1880 = vadd.f32 %v1782, %v1842
      %v1881 = vadd.f32 %v1784, %v1842
      %v1882 = vadd.f32 %v1786, %v1842
      %v1883 = vadd.f32 %v1788, %v1842
      %v1884 = vadd.f32 %v1790, %v1842
      %v1885 = vadd.f32 %v1792, %v1842
      %v1886 = vadd.f32 %v1794, %v1842
      %v1887 = vadd.f32 %v1796, %v1842
      %v1888 = vadd.f32 %v1798, %v1842
      %v1889 = vadd.f32 %v1800, %v1842
      %v1890 = vadd.f32 %v1802, %v1842
      %v1891 = vadd.f32 %v1804, %v1842
      %v1892 = vadd.f32 %v1806, %v1842
      %v1893 = vadd.f32 %v1808, %v1842
      %v1894 = vadd.f32 %v1810, %v1842
      %v1895 = vadd.f32 %v1812, %v1842
      %v1896 = vadd.f32 %v1814, %v1842
      %v1897 = vadd.f32 %v1816, %v1842
      %v1898 = vadd.f32 %v1818, %v1842
      %v1899 = vadd.f32 %v1820, %v1842
      %v1900 = vadd.f32 %v1822, %v1842
      %v1901 = vadd.f32 %v1824, %v1842
      %v1902 = vadd.f32 %v1826, %v1842
      %v1903 = vadd.f32 %v1828, %v1842
      %v1904 = vadd.f32 %v1830, %v1842
      %v1905 = vadd.f32 %v1832, %v1842
      %v1906 = vadd.f32 %v1834, %v1842
      %v1907 = vadd.f32 %v1836, %v1842
      %v1908 = vpack.c.bf16 %v1325, %v1320
      %v1909 = vpack.c.bf16 %v1335, %v1330
      %v1910 = vpack.c.bf16 %v1345, %v1340
      %v1911 = vpack.c.bf16 %v1355, %v1350
      %v1912 = vpack.c.bf16 %v1365, %v1360
      %v1913 = vpack.c.bf16 %v1375, %v1370
      %v1914 = vpack.c.bf16 %v1385, %v1380
      %v1915 = vpack.c.bf16 %v1395, %v1390
      %v1916 = vpack.c.bf16 %v1405, %v1400
      %v1917 = vpack.c.bf16 %v1415, %v1410
      %v1918 = vpack.c.bf16 %v1425, %v1420
      %v1919 = vpack.c.bf16 %v1435, %v1430
      %v1920 = vpack.c.bf16 %v1445, %v1440
      %v1921 = vpack.c.bf16 %v1455, %v1450
      %v1922 = vpack.c.bf16 %v1465, %v1460
      %v1923 = vpack.c.bf16 %v1475, %v1470
      %v1924 = vpack.c.bf16 %v1485, %v1480
      %v1925 = vpack.c.bf16 %v1495, %v1490
      %v1926 = vpack.c.bf16 %v1505, %v1500
      %v1927 = vpack.c.bf16 %v1515, %v1510
      %v1928 = vpack.c.bf16 %v1525, %v1520
      %v1929 = vpack.c.bf16 %v1535, %v1530
      %v1930 = vpack.c.bf16 %v1545, %v1540
      %v1931 = vpack.c.bf16 %v1555, %v1550
      %v1932 = vpack.c.bf16 %v1565, %v1560
      %v1933 = vpack.c.bf16 %v1575, %v1570
      %v1934 = vpack.c.bf16 %v1585, %v1580
      %v1935 = vpack.c.bf16 %v1595, %v1590
      %v1936 = vpack.c.bf16 %v1605, %v1600
      %v1937 = vpack.c.bf16 %v1615, %v1610
      %v1938 = vpack.c.bf16 %v1625, %v1620
      %v1939 = vpack.c.bf16 %v1635, %v1630
      %v1972 = vunpack.c.l.b16 %v1908
      %v1973 = vunpack.c.h.b16 %v1908
      %v1974 = vunpack.c.l.b16 %v1909
      %v1975 = vunpack.c.h.b16 %v1909
      %v1976 = vunpack.c.l.b16 %v1910
      %v1977 = vunpack.c.h.b16 %v1910
      %v1978 = vunpack.c.l.b16 %v1911
      %v1979 = vunpack.c.h.b16 %v1911
      %v1980 = vunpack.c.l.b16 %v1912
      %v1981 = vunpack.c.h.b16 %v1912
      %v1982 = vunpack.c.l.b16 %v1913
      %v1983 = vunpack.c.h.b16 %v1913
      %v1984 = vunpack.c.l.b16 %v1914
      %v1985 = vunpack.c.h.b16 %v1914
      %v1986 = vunpack.c.l.b16 %v1915
      %v1987 = vunpack.c.h.b16 %v1915
      %v1988 = vunpack.c.l.b16 %v1916
      %v1989 = vunpack.c.h.b16 %v1916
      %v1990 = vunpack.c.l.b16 %v1917
      %v1991 = vunpack.c.h.b16 %v1917
      %v1992 = vunpack.c.l.b16 %v1918
      %v1993 = vunpack.c.h.b16 %v1918
      %v1994 = vunpack.c.l.b16 %v1919
      %v1995 = vunpack.c.h.b16 %v1919
      %v1996 = vunpack.c.l.b16 %v1920
      %v1997 = vunpack.c.h.b16 %v1920
      %v1998 = vunpack.c.l.b16 %v1921
      %v1999 = vunpack.c.h.b16 %v1921
      %v2000 = vunpack.c.l.b16 %v1922
      %v2001 = vunpack.c.h.b16 %v1922
      %v2002 = vunpack.c.l.b16 %v1923
      %v2003 = vunpack.c.h.b16 %v1923
      %v2004 = vunpack.c.l.b16 %v1924
      %v2005 = vunpack.c.h.b16 %v1924
      %v2006 = vunpack.c.l.b16 %v1925
      %v2007 = vunpack.c.h.b16 %v1925
      %v2008 = vunpack.c.l.b16 %v1926
      %v2009 = vunpack.c.h.b16 %v1926
      %v2010 = vunpack.c.l.b16 %v1927
      %v2011 = vunpack.c.h.b16 %v1927
      %v2012 = vunpack.c.l.b16 %v1928
      %v2013 = vunpack.c.h.b16 %v1928
      %v2014 = vunpack.c.l.b16 %v1929
      %v2015 = vunpack.c.h.b16 %v1929
      %v2016 = vunpack.c.l.b16 %v1930
      %v2017 = vunpack.c.h.b16 %v1930
      %v2018 = vunpack.c.l.b16 %v1931
      %v2019 = vunpack.c.h.b16 %v1931
      %v2020 = vunpack.c.l.b16 %v1932
      %v2021 = vunpack.c.h.b16 %v1932
      %v2022 = vunpack.c.l.b16 %v1933
      %v2023 = vunpack.c.h.b16 %v1933
      %v2024 = vunpack.c.l.b16 %v1934
      %v2025 = vunpack.c.h.b16 %v1934
      %v2026 = vunpack.c.l.b16 %v1935
      %v2027 = vunpack.c.h.b16 %v1935
      %v2028 = vunpack.c.l.b16 %v1936
      %v2029 = vunpack.c.h.b16 %v1936
      %v2030 = vunpack.c.l.b16 %v1937
      %v2031 = vunpack.c.h.b16 %v1937
      %v2032 = vunpack.c.l.b16 %v1938
      %v2033 = vunpack.c.h.b16 %v1938
      %v2034 = vunpack.c.l.b16 %v1939
      %v2035 = vunpack.c.h.b16 %v1939
      %v2036 = vpack.c.b16 %v1972, %v1972
      %v2037 = vpack.c.b16 %v1973, %v1973
      %v2038 = vpack.c.b16 %v1974, %v1974
      %v2039 = vpack.c.b16 %v1975, %v1975
      %v2040 = vpack.c.b16 %v1976, %v1976
      %v2041 = vpack.c.b16 %v1977, %v1977
      %v2042 = vpack.c.b16 %v1978, %v1978
      %v2043 = vpack.c.b16 %v1979, %v1979
      %v2044 = vpack.c.b16 %v1980, %v1980
      %v2045 = vpack.c.b16 %v1981, %v1981
      %v2046 = vpack.c.b16 %v1982, %v1982
      %v2047 = vpack.c.b16 %v1983, %v1983
      %v2048 = vpack.c.b16 %v1984, %v1984
      %v2049 = vpack.c.b16 %v1985, %v1985
      %v2050 = vpack.c.b16 %v1986, %v1986
      %v2051 = vpack.c.b16 %v1987, %v1987
      %v2052 = vpack.c.b16 %v1988, %v1988
      %v2053 = vpack.c.b16 %v1989, %v1989
      %v2054 = vpack.c.b16 %v1990, %v1990
      %v2055 = vpack.c.b16 %v1991, %v1991
      %v2056 = vpack.c.b16 %v1992, %v1992
      %v2057 = vpack.c.b16 %v1993, %v1993
      %v2058 = vpack.c.b16 %v1994, %v1994
      %v2059 = vpack.c.b16 %v1995, %v1995
      %v2060 = vpack.c.b16 %v1996, %v1996
      %v2061 = vpack.c.b16 %v1997, %v1997
      %v2062 = vpack.c.b16 %v1998, %v1998
      %v2063 = vpack.c.b16 %v1999, %v1999
      %v2064 = vpack.c.b16 %v2000, %v2000
      %v2065 = vpack.c.b16 %v2001, %v2001
      %v2066 = vpack.c.b16 %v2002, %v2002
      %v2067 = vpack.c.b16 %v2003, %v2003
      %v2068 = vpack.c.b16 %v2004, %v2004
      %v2069 = vpack.c.b16 %v2005, %v2005
      %v2070 = vpack.c.b16 %v2006, %v2006
      %v2071 = vpack.c.b16 %v2007, %v2007
      %v2072 = vpack.c.b16 %v2008, %v2008
      %v2073 = vpack.c.b16 %v2009, %v2009
      %v2074 = vpack.c.b16 %v2010, %v2010
      %v2075 = vpack.c.b16 %v2011, %v2011
      %v2076 = vpack.c.b16 %v2012, %v2012
      %v2077 = vpack.c.b16 %v2013, %v2013
      %v2078 = vpack.c.b16 %v2014, %v2014
      %v2079 = vpack.c.b16 %v2015, %v2015
      %v2080 = vpack.c.b16 %v2016, %v2016
      %v2081 = vpack.c.b16 %v2017, %v2017
      %v2082 = vpack.c.b16 %v2018, %v2018
      %v2083 = vpack.c.b16 %v2019, %v2019
      %v2084 = vpack.c.b16 %v2020, %v2020
      %v2085 = vpack.c.b16 %v2021, %v2021
      %v2086 = vpack.c.b16 %v2022, %v2022
      %v2087 = vpack.c.b16 %v2023, %v2023
      %v2088 = vpack.c.b16 %v2024, %v2024
      %v2089 = vpack.c.b16 %v2025, %v2025
      %v2090 = vpack.c.b16 %v2026, %v2026
      %v2091 = vpack.c.b16 %v2027, %v2027
      %v2092 = vpack.c.b16 %v2028, %v2028
      %v2093 = vpack.c.b16 %v2029, %v2029
      %v2094 = vpack.c.b16 %v2030, %v2030
      %v2095 = vpack.c.b16 %v2031, %v2031
      %v2096 = vpack.c.b16 %v2032, %v2032
      %v2097 = vpack.c.b16 %v2033, %v2033
      %v2098 = vpack.c.b16 %v2034, %v2034
      %v2099 = vpack.c.b16 %v2035, %v2035
      %2164 = vst [vmem:[%s317] sm:$0xf] %v2036
      %2165 = vst [vmem:[%s317 + $0x4] sm:$0xf] %v2037
      %2166 = vst [vmem:[%s317 + $0x8] sm:$0xf] %v2038
      %2167 = vst [vmem:[%s317 + $0xc] sm:$0xf] %v2039
      %2168 = vst [vmem:[%s317 + $0x10] sm:$0xf] %v2040
      %2169 = vst [vmem:[%s317 + $0x14] sm:$0xf] %v2041
      %2170 = vst [vmem:[%s317 + $0x18] sm:$0xf] %v2042
      %2171 = vst [vmem:[%s317 + $0x1c] sm:$0xf] %v2043
      %2172 = vst [vmem:[%s317 + $0x20] sm:$0xf] %v2044
      %2173 = vst [vmem:[%s317 + $0x24] sm:$0xf] %v2045
      %2174 = vst [vmem:[%s317 + $0x28] sm:$0xf] %v2046
      %2175 = vst [vmem:[%s317 + $0x2c] sm:$0xf] %v2047
      %2176 = vst [vmem:[%s317 + $0x30] sm:$0xf] %v2048
      %2177 = vst [vmem:[%s317 + $0x34] sm:$0xf] %v2049
      %2178 = vst [vmem:[%s317 + $0x38] sm:$0xf] %v2050
      %2179 = vst [vmem:[%s317 + $0x3c] sm:$0xf] %v2051
      %2180 = vst [vmem:[%s317 + $0x40] sm:$0xf] %v2052
      %2181 = vst [vmem:[%s317 + $0x44] sm:$0xf] %v2053
      %2182 = vst [vmem:[%s317 + $0x48] sm:$0xf] %v2054
      %2183 = vst [vmem:[%s317 + $0x4c] sm:$0xf] %v2055
      %2184 = vst [vmem:[%s317 + $0x50] sm:$0xf] %v2056
      %2185 = vst [vmem:[%s317 + $0x54] sm:$0xf] %v2057
      %2186 = vst [vmem:[%s317 + $0x58] sm:$0xf] %v2058
      %2187 = vst [vmem:[%s317 + $0x5c] sm:$0xf] %v2059
      %2188 = vst [vmem:[%s317 + $0x60] sm:$0xf] %v2060
      %2189 = vst [vmem:[%s317 + $0x64] sm:$0xf] %v2061
      %2190 = vst [vmem:[%s317 + $0x68] sm:$0xf] %v2062
      %2191 = vst [vmem:[%s317 + $0x6c] sm:$0xf] %v2063
      %2192 = vst [vmem:[%s317 + $0x70] sm:$0xf] %v2064
      %2193 = vst [vmem:[%s317 + $0x74] sm:$0xf] %v2065
      %2194 = vst [vmem:[%s317 + $0x78] sm:$0xf] %v2066
      %2195 = vst [vmem:[%s317 + $0x7c] sm:$0xf] %v2067
      %2196 = vst [vmem:[%s317 + $0x80] sm:$0xf] %v2068
      %2197 = vst [vmem:[%s317 + $0x84] sm:$0xf] %v2069
      %2198 = vst [vmem:[%s317 + $0x88] sm:$0xf] %v2070
      %2199 = vst [vmem:[%s317 + $0x8c] sm:$0xf] %v2071
      %2200 = vst [vmem:[%s317 + $0x90] sm:$0xf] %v2072
      %2201 = vst [vmem:[%s317 + $0x94] sm:$0xf] %v2073
      %2202 = vst [vmem:[%s317 + $0x98] sm:$0xf] %v2074
      %2203 = vst [vmem:[%s317 + $0x9c] sm:$0xf] %v2075
      %2204 = vst [vmem:[%s317 + $0xa0] sm:$0xf] %v2076
      %2205 = vst [vmem:[%s317 + $0xa4] sm:$0xf] %v2077
      %2206 = vst [vmem:[%s317 + $0xa8] sm:$0xf] %v2078
      %2207 = vst [vmem:[%s317 + $0xac] sm:$0xf] %v2079
      %2208 = vst [vmem:[%s317 + $0xb0] sm:$0xf] %v2080
      %2209 = vst [vmem:[%s317 + $0xb4] sm:$0xf] %v2081
      %2210 = vst [vmem:[%s317 + $0xb8] sm:$0xf] %v2082
      %2211 = vst [vmem:[%s317 + $0xbc] sm:$0xf] %v2083
      %2212 = vst [vmem:[%s317 + $0xc0] sm:$0xf] %v2084
      %2213 = vst [vmem:[%s317 + $0xc4] sm:$0xf] %v2085
      %2214 = vst [vmem:[%s317 + $0xc8] sm:$0xf] %v2086
      %2215 = vst [vmem:[%s317 + $0xcc] sm:$0xf] %v2087
      %2216 = vst [vmem:[%s317 + $0xd0] sm:$0xf] %v2088
      %2217 = vst [vmem:[%s317 + $0xd4] sm:$0xf] %v2089
      %2218 = vst [vmem:[%s317 + $0xd8] sm:$0xf] %v2090
      %2219 = vst [vmem:[%s317 + $0xdc] sm:$0xf] %v2091
      %2220 = vst [vmem:[%s317 + $0xe0] sm:$0xf] %v2092
      %2221 = vst [vmem:[%s317 + $0xe4] sm:$0xf] %v2093
      %2222 = vst [vmem:[%s317 + $0xe8] sm:$0xf] %v2094
      %2223 = vst [vmem:[%s317 + $0xec] sm:$0xf] %v2095
      %2224 = vst [vmem:[%s317 + $0xf0] sm:$0xf] %v2096
      %2225 = vst [vmem:[%s317 + $0xf4] sm:$0xf] %v2097
      %2226 = vst [vmem:[%s317 + $0xf8] sm:$0xf] %v2098
      %2227 = vst [vmem:[%s317 + $0xfc] sm:$0xf] %v2099
      %v2228 = vsub.f32 0.0, %v1844
      %v2229 = vsub.f32 0.0, %v1845
      %v2230 = vsub.f32 0.0, %v1846
      %v2231 = vsub.f32 0.0, %v1847
      %v2232 = vsub.f32 0.0, %v1848
      %v2233 = vsub.f32 0.0, %v1849
      %v2234 = vsub.f32 0.0, %v1850
      %v2235 = vsub.f32 0.0, %v1851
      %v2236 = vsub.f32 0.0, %v1852
      %v2237 = vsub.f32 0.0, %v1853
      %v2238 = vsub.f32 0.0, %v1854
      %v2239 = vsub.f32 0.0, %v1855
      %v2240 = vsub.f32 0.0, %v1856
      %v2241 = vsub.f32 0.0, %v1857
      %v2242 = vsub.f32 0.0, %v1858
      %v2243 = vsub.f32 0.0, %v1859
      %v2244 = vsub.f32 0.0, %v1860
      %v2245 = vsub.f32 0.0, %v1861
      %v2246 = vsub.f32 0.0, %v1862
      %v2247 = vsub.f32 0.0, %v1863
      %v2248 = vsub.f32 0.0, %v1864
      %v2249 = vsub.f32 0.0, %v1865
      %v2250 = vsub.f32 0.0, %v1866
      %v2251 = vsub.f32 0.0, %v1867
      %v2252 = vsub.f32 0.0, %v1868
      %v2253 = vsub.f32 0.0, %v1869
      %v2254 = vsub.f32 0.0, %v1870
      %v2255 = vsub.f32 0.0, %v1871
      %v2256 = vsub.f32 0.0, %v1872
      %v2257 = vsub.f32 0.0, %v1873
      %v2258 = vsub.f32 0.0, %v1874
      %v2259 = vsub.f32 0.0, %v1875
      %v2260 = vsub.f32 0.0, %v1876
      %v2261 = vsub.f32 0.0, %v1877
      %v2262 = vsub.f32 0.0, %v1878
      %v2263 = vsub.f32 0.0, %v1879
      %v2264 = vsub.f32 0.0, %v1880
      %v2265 = vsub.f32 0.0, %v1881
      %v2266 = vsub.f32 0.0, %v1882
      %v2267 = vsub.f32 0.0, %v1883
      %v2268 = vsub.f32 0.0, %v1884
      %v2269 = vsub.f32 0.0, %v1885
      %v2270 = vsub.f32 0.0, %v1886
      %v2271 = vsub.f32 0.0, %v1887
      %v2272 = vsub.f32 0.0, %v1888
      %v2273 = vsub.f32 0.0, %v1889
      %v2274 = vsub.f32 0.0, %v1890
      %v2275 = vsub.f32 0.0, %v1891
      %v2276 = vsub.f32 0.0, %v1892
      %v2277 = vsub.f32 0.0, %v1893
      %v2278 = vsub.f32 0.0, %v1894
      %v2279 = vsub.f32 0.0, %v1895
      %v2280 = vsub.f32 0.0, %v1896
      %v2281 = vsub.f32 0.0, %v1897
      %v2282 = vsub.f32 0.0, %v1898
      %v2283 = vsub.f32 0.0, %v1899
      %v2284 = vsub.f32 0.0, %v1900
      %v2285 = vsub.f32 0.0, %v1901
      %v2286 = vsub.f32 0.0, %v1902
      %v2287 = vsub.f32 0.0, %v1903
      %v2288 = vsub.f32 0.0, %v1904
      %v2289 = vsub.f32 0.0, %v1905
      %v2290 = vsub.f32 0.0, %v1906
      %v2291 = vsub.f32 0.0, %v1907
      %vm2292 = vcmask 7168
      %2293 = vst.msk [vmem:[%s323] sm:$0xff] %vm2292, %v2228
      %2294 = vst.msk [vmem:[%s323 + $0x8] sm:$0xff] %vm2292, %v2229
      %2295 = vst.msk [vmem:[%s323 + $0x10] sm:$0xff] %vm2292, %v2230
      %2296 = vst.msk [vmem:[%s323 + $0x18] sm:$0xff] %vm2292, %v2231
      %2297 = vst.msk [vmem:[%s323 + $0x20] sm:$0xff] %vm2292, %v2232
      %2298 = vst.msk [vmem:[%s323 + $0x28] sm:$0xff] %vm2292, %v2233
      %2299 = vst.msk [vmem:[%s323 + $0x30] sm:$0xff] %vm2292, %v2234
      %2300 = vst.msk [vmem:[%s323 + $0x38] sm:$0xff] %vm2292, %v2235
      %2301 = vst.msk [vmem:[%s323 + $0x40] sm:$0xff] %vm2292, %v2236
      %2302 = vst.msk [vmem:[%s323 + $0x48] sm:$0xff] %vm2292, %v2237
      %2303 = vst.msk [vmem:[%s323 + $0x50] sm:$0xff] %vm2292, %v2238
      %2304 = vst.msk [vmem:[%s323 + $0x58] sm:$0xff] %vm2292, %v2239
      %2305 = vst.msk [vmem:[%s323 + $0x60] sm:$0xff] %vm2292, %v2240
      %2306 = vst.msk [vmem:[%s323 + $0x68] sm:$0xff] %vm2292, %v2241
      %2307 = vst.msk [vmem:[%s323 + $0x70] sm:$0xff] %vm2292, %v2242
      %2308 = vst.msk [vmem:[%s323 + $0x78] sm:$0xff] %vm2292, %v2243
      %2309 = vst.msk [vmem:[%s323 + $0x80] sm:$0xff] %vm2292, %v2244
      %2310 = vst.msk [vmem:[%s323 + $0x88] sm:$0xff] %vm2292, %v2245
      %2311 = vst.msk [vmem:[%s323 + $0x90] sm:$0xff] %vm2292, %v2246
      %2312 = vst.msk [vmem:[%s323 + $0x98] sm:$0xff] %vm2292, %v2247
      %2313 = vst.msk [vmem:[%s323 + $0xa0] sm:$0xff] %vm2292, %v2248
      %2314 = vst.msk [vmem:[%s323 + $0xa8] sm:$0xff] %vm2292, %v2249
      %2315 = vst.msk [vmem:[%s323 + $0xb0] sm:$0xff] %vm2292, %v2250
      %2316 = vst.msk [vmem:[%s323 + $0xb8] sm:$0xff] %vm2292, %v2251
      %2317 = vst.msk [vmem:[%s323 + $0xc0] sm:$0xff] %vm2292, %v2252
      %2318 = vst.msk [vmem:[%s323 + $0xc8] sm:$0xff] %vm2292, %v2253
      %2319 = vst.msk [vmem:[%s323 + $0xd0] sm:$0xff] %vm2292, %v2254
      %2320 = vst.msk [vmem:[%s323 + $0xd8] sm:$0xff] %vm2292, %v2255
      %2321 = vst.msk [vmem:[%s323 + $0xe0] sm:$0xff] %vm2292, %v2256
      %2322 = vst.msk [vmem:[%s323 + $0xe8] sm:$0xff] %vm2292, %v2257
      %2323 = vst.msk [vmem:[%s323 + $0xf0] sm:$0xff] %vm2292, %v2258
      %2324 = vst.msk [vmem:[%s323 + $0xf8] sm:$0xff] %vm2292, %v2259
      %2325 = vst.msk [vmem:[%s323 + $0x100] sm:$0xff] %vm2292, %v2260
      %2326 = vst.msk [vmem:[%s323 + $0x108] sm:$0xff] %vm2292, %v2261
      %2327 = vst.msk [vmem:[%s323 + $0x110] sm:$0xff] %vm2292, %v2262
      %2328 = vst.msk [vmem:[%s323 + $0x118] sm:$0xff] %vm2292, %v2263
      %2329 = vst.msk [vmem:[%s323 + $0x120] sm:$0xff] %vm2292, %v2264
      %2330 = vst.msk [vmem:[%s323 + $0x128] sm:$0xff] %vm2292, %v2265
      %2331 = vst.msk [vmem:[%s323 + $0x130] sm:$0xff] %vm2292, %v2266
      %2332 = vst.msk [vmem:[%s323 + $0x138] sm:$0xff] %vm2292, %v2267
      %2333 = vst.msk [vmem:[%s323 + $0x140] sm:$0xff] %vm2292, %v2268
      %2334 = vst.msk [vmem:[%s323 + $0x148] sm:$0xff] %vm2292, %v2269
      %2335 = vst.msk [vmem:[%s323 + $0x150] sm:$0xff] %vm2292, %v2270
      %2336 = vst.msk [vmem:[%s323 + $0x158] sm:$0xff] %vm2292, %v2271
      %2337 = vst.msk [vmem:[%s323 + $0x160] sm:$0xff] %vm2292, %v2272
      %2338 = vst.msk [vmem:[%s323 + $0x168] sm:$0xff] %vm2292, %v2273
      %2339 = vst.msk [vmem:[%s323 + $0x170] sm:$0xff] %vm2292, %v2274
      %2340 = vst.msk [vmem:[%s323 + $0x178] sm:$0xff] %vm2292, %v2275
      %2341 = vst.msk [vmem:[%s323 + $0x180] sm:$0xff] %vm2292, %v2276
      %2342 = vst.msk [vmem:[%s323 + $0x188] sm:$0xff] %vm2292, %v2277
      %2343 = vst.msk [vmem:[%s323 + $0x190] sm:$0xff] %vm2292, %v2278
      %2344 = vst.msk [vmem:[%s323 + $0x198] sm:$0xff] %vm2292, %v2279
      %2345 = vst.msk [vmem:[%s323 + $0x1a0] sm:$0xff] %vm2292, %v2280
      %2346 = vst.msk [vmem:[%s323 + $0x1a8] sm:$0xff] %vm2292, %v2281
      %2347 = vst.msk [vmem:[%s323 + $0x1b0] sm:$0xff] %vm2292, %v2282
      %2348 = vst.msk [vmem:[%s323 + $0x1b8] sm:$0xff] %vm2292, %v2283
      %2349 = vst.msk [vmem:[%s323 + $0x1c0] sm:$0xff] %vm2292, %v2284
      %2350 = vst.msk [vmem:[%s323 + $0x1c8] sm:$0xff] %vm2292, %v2285
      %2351 = vst.msk [vmem:[%s323 + $0x1d0] sm:$0xff] %vm2292, %v2286
      %2352 = vst.msk [vmem:[%s323 + $0x1d8] sm:$0xff] %vm2292, %v2287
      %2353 = vst.msk [vmem:[%s323 + $0x1e0] sm:$0xff] %vm2292, %v2288
      %2354 = vst.msk [vmem:[%s323 + $0x1e8] sm:$0xff] %vm2292, %v2289
      %2355 = vst.msk [vmem:[%s323 + $0x1f0] sm:$0xff] %vm2292, %v2290
      %2356 = vst.msk [vmem:[%s323 + $0x1f8] sm:$0xff] %vm2292, %v2291
      %s2357 = smul.u32 64, %s22
      %p2358 = scmp.lt.s32.totalorder %s2357, 255
      %s2359 = scalar_select %p2358, %s2357, 255
      %s2360 = smul.addr %s2359, 4
      %s2361 = scalar_lea.vmem %s7, %s2360
      %s2362 = smul.u32 64, %s22
      %p2363 = scmp.lt.s32.totalorder %s2362, 255
      %s2364 = scalar_select %p2363, %s2362, 255
      %s2365 = smul.addr %s2364, 8
      %s2366 = scalar_lea.vmem %s8, %s2365
      // Predicated region
      $region49: #{nlgnn_forward.3} parent=47 // pred_check
        %p2367 = pneg %p192
      $region50: #{nlgnn_forward.3} parent=47 // pred_check_branch
        %2369 = sbr.rel (%p2367) target = $region52
      $region51: #{nlgnn_forward.3} parent=47 // pred_region
        %s2370 = smul.u32 64, %s22
      $region52: #{nlgnn_forward.3} parent=47 // pred_fallthru
        _
      // Predicated region
      $region53: #{nlgnn_forward.3} parent=47 // pred_check
        %p2371 = pneg %p218
      $region54: #{nlgnn_forward.3} parent=47 // pred_check_branch
        %2373 = sbr.rel (%p2371) target = $region56
      $region55: #{nlgnn_forward.3} parent=47 // pred_region
        %s2374 = smul.u32 64, %s22
      $region56: #{nlgnn_forward.3} parent=47 // pred_fallthru
        _
    $region48: #{nlgnn_forward.3} parent=5 // pred_fallthru
      _
    %p2375 = scmp.le.s32.totalorder 2, %s17
    // Predicated region
    $region57: #{nlgnn_forward.3} parent=5 // pred_check
      %p2376 = pneg %p2375
    $region58: #{nlgnn_forward.3} parent=5 // pred_check_branch
      %2378 = sbr.rel (%p2376) target = $region60
    $region59: #{nlgnn_forward.3} parent=5 // pred_region
      %s2379 = ssub.s32 %s17, 2
      // Predicated region
      $region61: #{nlgnn_forward.3} parent=59 // pred_check
        %p2380 = pneg %p198
      $region62: #{nlgnn_forward.3} parent=59 // pred_check_branch
        %2382 = sbr.rel (%p2380) target = $region64
      $region63: #{nlgnn_forward.3} parent=59 // pred_region
        %s2383 = smul.u32 64, %s23
        %p2384 = scmp.lt.s32.totalorder %s2383, 255
        %s2385 = scalar_select %p2384, %s2383, 255
        %s2386 = smul.addr %s2385, 4
        %s2387 = scalar_lea.vmem %s7, %s2386
      $region64: #{nlgnn_forward.3} parent=59 // pred_fallthru
        _
      // Predicated region
      $region65: #{nlgnn_forward.3} parent=59 // pred_check
        %p2388 = pneg %p224
      $region66: #{nlgnn_forward.3} parent=59 // pred_check_branch
        %2390 = sbr.rel (%p2388) target = $region68
      $region67: #{nlgnn_forward.3} parent=59 // pred_region
        %s2391 = smul.u32 64, %s23
        %p2392 = scmp.lt.s32.totalorder %s2391, 255
        %s2393 = scalar_select %p2392, %s2391, 255
        %s2394 = smul.addr %s2393, 8
        %s2395 = scalar_lea.vmem %s8, %s2394
      $region68: #{nlgnn_forward.3} parent=59 // pred_fallthru
        _
    $region60: #{nlgnn_forward.3} parent=5 // pred_fallthru
      _
  $region6: #{nlgnn_forward.3} parent=0 // loop_footer
    %s21 = sadd.s32 1, %s17
  $region7: #{nlgnn_forward.3} parent=0 // loop_footer_branch
    %16 = sbr.rel target = $region3
  $region8: #{nlgnn_forward.3} parent=0 // loop_exit
    _

// kernel: nlgnn_forward.4
$region0: #{nlgnn_forward.4}
  #allocation0 [shape = 'u32[]', space=smem, size = 0x4, offset = 0x4, fixed_abs, tag = 'smem constant byte address 0x4 - core index']
  #allocation1 [shape = 'u32[144,128]{1,0:T(1,128)}', space=vmem, size = 0x12000, scoped, tag = 'internal scratch']
  %s0 = inlined_call_operand.vmem [shape: bf16[2064,128], index: 0, kind: input, shape index: {}, may-alias: {0,1}]
  %s1 = inlined_call_operand.vmem [shape: bf16[2064,128], index: 1, kind: input, shape index: {}, may-alias: {0,1}]
  %s2 = inlined_call_operand.vmem [shape: f32[2064,1], index: 2, kind: input, shape index: {}, may-alias: {2,3}]
  %s3 = inlined_call_operand.vmem [shape: f32[2064,1], index: 3, kind: input, shape index: {}, may-alias: {2,3}]
  %s4 = inlined_call_operand.vmem [shape: bf16[128,384], index: 4, kind: input, shape index: {}]
  %s5 = inlined_call_operand.vmem [shape: f32[1,128], index: 5, kind: input, shape index: {}]
  %s6 = inlined_call_operand.vmem [shape: bf16[128,384], index: 6, kind: input, shape index: {}]
  %s7 = inlined_call_operand.vmem [shape: f32[1,128], index: 7, kind: input, shape index: {}]
  %s8 = inlined_call_operand.vmem [shape: bf16[2048,128], index: 8, kind: output, shape index: {}]
  %s9 = sld [smem:[#allocation0]]
  $region65: #{nlgnn_forward.4} parent=0
    _
  %s11 = ssub.s32 1, %s9
  %s12 = scalar_select 0, %s11, %s9
  loop: start=0, step=1, limit=6
  $region2: #{nlgnn_forward.4} parent=0 // loop_pre_header
    _
  $region3: #{nlgnn_forward.4} parent=0 // loop_header
    %s14 = sphi 0, %s18
    %p15 = scmp.ge.s32.totalorder %s14, 6
    %s24 = sphi 0, %s26
    %s27 = sphi 0, %s24
    %s28 = sphi 0, %s27
    %s44 = sphi 0, %s28
    %s54 = sphi 0, %s56
    %s57 = sphi 0, %s54
    %s58 = sphi 0, %s57
    %s74 = sphi 0, %s58
    %s80 = sphi 0, %s82
    %s83 = sphi 0, %s80
    %s84 = sphi 0, %s83
    %s100 = sphi 0, %s84
    %s110 = sphi 0, %s112
    %s113 = sphi 0, %s110
    %s114 = sphi 0, %s113
    %s130 = sphi 0, %s114
    %s134 = sphi 0, %s134
    %s136 = sphi 0, %s134
    %s137 = sphi 0, %s136
    %s151 = sphi 0, %s137
    %s155 = sphi 0, %s155
    %s157 = sphi 0, %s155
    %s158 = sphi 0, %s157
    %s172 = sphi 0, %s158
    %s176 = sphi 0, %s176
    %s178 = sphi 0, %s176
    %s179 = sphi 0, %s178
    %s193 = sphi 0, %s179
    %s197 = sphi 0, %s197
    %s199 = sphi 0, %s197
    %s200 = sphi 0, %s199
    %s214 = sphi 0, %s200
    %s220 = sphi 0, %s222
    %s223 = sphi 0, %s220
    %s224 = sphi 0, %s223
    %s240 = sphi 0, %s224
  $region4: #{nlgnn_forward.4} parent=0 // loop_header_branch
    %17 = sbr.rel (%p15) target = $region8
  $region5: #{nlgnn_forward.4} parent=0 // loop_body
    %s19 = ssub.s32 %s14, 1
    %s20 = ssub.s32 %s14, 2
    %s21 = sadd.s32 %s14, 1
    %s22 = ssub.s32 %s14, %s21
    %p23 = scmp.eq.s32.totalorder %s22, 0
    %s25 = sadd.s32 %s24, 1
    %s26 = scalar_select %p23, %s24, %s25
    %p29 = pneg %p23
    %p30 = scmp.eq.s32.totalorder %s14, 3
    %p31 = por %p29, %p30
    %p32 = scmp.ne.s32.totalorder %s24, %s27
    %p33 = scmp.eq.s32.totalorder %s14, 0
    %p34 = por %p32, %p33
    %p35 = scmp.ne.s32.totalorder %s24, %s27
    %p36 = scmp.eq.s32.totalorder %s19, 3
    %p37 = por %p35, %p36
    %p38 = scmp.ne.s32.totalorder %s27, %s28
    %p39 = scmp.eq.s32.totalorder %s19, 0
    %p40 = por %p38, %p39
    %p41 = scmp.ne.s32.totalorder %s27, %s28
    %p42 = scmp.eq.s32.totalorder %s20, 3
    %p43 = por %p41, %p42
    %p45 = scmp.ne.s32.totalorder %s28, %s44
    %p46 = scmp.eq.s32.totalorder %s20, 0
    %p47 = por %p45, %p46
    %s48 = sadd.s32 %s14, 1
    %s49 = smul.u32 %s48, 32
    %s50 = sadd.s32 %s21, 1
    %s51 = smul.u32 %s50, 32
    %s52 = ssub.s32 %s49, %s51
    %p53 = scmp.eq.s32.totalorder %s52, 0
    %s55 = sadd.s32 %s54, 1
    %s56 = scalar_select %p53, %s54, %s55
    %p59 = pneg %p53
    %p60 = scmp.eq.s32.totalorder %s14, 3
    %p61 = por %p59, %p60
    %p62 = scmp.ne.s32.totalorder %s54, %s57
    %p63 = scmp.eq.s32.totalorder %s14, 0
    %p64 = por %p62, %p63
    %p65 = scmp.ne.s32.totalorder %s54, %s57
    %p66 = scmp.eq.s32.totalorder %s19, 3
    %p67 = por %p65, %p66
    %p68 = scmp.ne.s32.totalorder %s57, %s58
    %p69 = scmp.eq.s32.totalorder %s19, 0
    %p70 = por %p68, %p69
    %p71 = scmp.ne.s32.totalorder %s57, %s58
    %p72 = scmp.eq.s32.totalorder %s20, 3
    %p73 = por %p71, %p72
    %p75 = scmp.ne.s32.totalorder %s58, %s74
    %p76 = scmp.eq.s32.totalorder %s20, 0
    %p77 = por %p75, %p76
    %s78 = ssub.s32 %s14, %s21
    %p79 = scmp.eq.s32.totalorder %s78, 0
    %s81 = sadd.s32 %s80, 1
    %s82 = scalar_select %p79, %s80, %s81
    %p85 = pneg %p79
    %p86 = scmp.eq.s32.totalorder %s14, 3
    %p87 = por %p85, %p86
    %p88 = scmp.ne.s32.totalorder %s80, %s83
    %p89 = scmp.eq.s32.totalorder %s14, 0
    %p90 = por %p88, %p89
    %p91 = scmp.ne.s32.totalorder %s80, %s83
    %p92 = scmp.eq.s32.totalorder %s19, 3
    %p93 = por %p91, %p92
    %p94 = scmp.ne.s32.totalorder %s83, %s84
    %p95 = scmp.eq.s32.totalorder %s19, 0
    %p96 = por %p94, %p95
    %p97 = scmp.ne.s32.totalorder %s83, %s84
    %p98 = scmp.eq.s32.totalorder %s20, 3
    %p99 = por %p97, %p98
    %p101 = scmp.ne.s32.totalorder %s84, %s100
    %p102 = scmp.eq.s32.totalorder %s20, 0
    %p103 = por %p101, %p102
    %s104 = sadd.s32 %s14, 1
    %s105 = smul.u32 %s104, 32
    %s106 = sadd.s32 %s21, 1
    %s107 = smul.u32 %s106, 32
    %s108 = ssub.s32 %s105, %s107
    %p109 = scmp.eq.s32.totalorder %s108, 0
    %s111 = sadd.s32 %s110, 1
    %s112 = scalar_select %p109, %s110, %s111
    %p115 = pneg %p109
    %p116 = scmp.eq.s32.totalorder %s14, 3
    %p117 = por %p115, %p116
    %p118 = scmp.ne.s32.totalorder %s110, %s113
    %p119 = scmp.eq.s32.totalorder %s14, 0
    %p120 = por %p118, %p119
    %p121 = scmp.ne.s32.totalorder %s110, %s113
    %p122 = scmp.eq.s32.totalorder %s19, 3
    %p123 = por %p121, %p122
    %p124 = scmp.ne.s32.totalorder %s113, %s114
    %p125 = scmp.eq.s32.totalorder %s19, 0
    %p126 = por %p124, %p125
    %p127 = scmp.ne.s32.totalorder %s113, %s114
    %p128 = scmp.eq.s32.totalorder %s20, 3
    %p129 = por %p127, %p128
    %p131 = scmp.ne.s32.totalorder %s114, %s130
    %p132 = scmp.eq.s32.totalorder %s20, 0
    %p133 = por %p131, %p132
    %s135 = sadd.s32 %s134, 1
    %p138 = scmp.eq.s32.totalorder %s14, 3
    %p139 = scmp.ne.s32.totalorder %s134, %s136
    %p140 = scmp.eq.s32.totalorder %s14, 0
    %p141 = por %p139, %p140
    %p142 = scmp.ne.s32.totalorder %s134, %s136
    %p143 = scmp.eq.s32.totalorder %s19, 3
    %p144 = por %p142, %p143
    %p145 = scmp.ne.s32.totalorder %s136, %s137
    %p146 = scmp.eq.s32.totalorder %s19, 0
    %p147 = por %p145, %p146
    %p148 = scmp.ne.s32.totalorder %s136, %s137
    %p149 = scmp.eq.s32.totalorder %s20, 3
    %p150 = por %p148, %p149
    %p152 = scmp.ne.s32.totalorder %s137, %s151
    %p153 = scmp.eq.s32.totalorder %s20, 0
    %p154 = por %p152, %p153
    %s156 = sadd.s32 %s155, 1
    %p159 = scmp.eq.s32.totalorder %s14, 3
    %p160 = scmp.ne.s32.totalorder %s155, %s157
    %p161 = scmp.eq.s32.totalorder %s14, 0
    %p162 = por %p160, %p161
    %p163 = scmp.ne.s32.totalorder %s155, %s157
    %p164 = scmp.eq.s32.totalorder %s19, 3
    %p165 = por %p163, %p164
    %p166 = scmp.ne.s32.totalorder %s157, %s158
    %p167 = scmp.eq.s32.totalorder %s19, 0
    %p168 = por %p166, %p167
    %p169 = scmp.ne.s32.totalorder %s157, %s158
    %p170 = scmp.eq.s32.totalorder %s20, 3
    %p171 = por %p169, %p170
    %p173 = scmp.ne.s32.totalorder %s158, %s172
    %p174 = scmp.eq.s32.totalorder %s20, 0
    %p175 = por %p173, %p174
    %s177 = sadd.s32 %s176, 1
    %p180 = scmp.eq.s32.totalorder %s14, 3
    %p181 = scmp.ne.s32.totalorder %s176, %s178
    %p182 = scmp.eq.s32.totalorder %s14, 0
    %p183 = por %p181, %p182
    %p184 = scmp.ne.s32.totalorder %s176, %s178
    %p185 = scmp.eq.s32.totalorder %s19, 3
    %p186 = por %p184, %p185
    %p187 = scmp.ne.s32.totalorder %s178, %s179
    %p188 = scmp.eq.s32.totalorder %s19, 0
    %p189 = por %p187, %p188
    %p190 = scmp.ne.s32.totalorder %s178, %s179
    %p191 = scmp.eq.s32.totalorder %s20, 3
    %p192 = por %p190, %p191
    %p194 = scmp.ne.s32.totalorder %s179, %s193
    %p195 = scmp.eq.s32.totalorder %s20, 0
    %p196 = por %p194, %p195
    %s198 = sadd.s32 %s197, 1
    %p201 = scmp.eq.s32.totalorder %s14, 3
    %p202 = scmp.ne.s32.totalorder %s197, %s199
    %p203 = scmp.eq.s32.totalorder %s14, 0
    %p204 = por %p202, %p203
    %p205 = scmp.ne.s32.totalorder %s197, %s199
    %p206 = scmp.eq.s32.totalorder %s19, 3
    %p207 = por %p205, %p206
    %p208 = scmp.ne.s32.totalorder %s199, %s200
    %p209 = scmp.eq.s32.totalorder %s19, 0
    %p210 = por %p208, %p209
    %p211 = scmp.ne.s32.totalorder %s199, %s200
    %p212 = scmp.eq.s32.totalorder %s20, 3
    %p213 = por %p211, %p212
    %p215 = scmp.ne.s32.totalorder %s200, %s214
    %p216 = scmp.eq.s32.totalorder %s20, 0
    %p217 = por %p215, %p216
    %s218 = ssub.s32 %s14, %s21
    %p219 = scmp.eq.s32.totalorder %s218, 0
    %s221 = sadd.s32 %s220, 1
    %s222 = scalar_select %p219, %s220, %s221
    %p225 = pneg %p219
    %p226 = scmp.eq.s32.totalorder %s14, 3
    %p227 = por %p225, %p226
    %p228 = scmp.ne.s32.totalorder %s220, %s223
    %p229 = scmp.eq.s32.totalorder %s14, 0
    %p230 = por %p228, %p229
    %p231 = scmp.ne.s32.totalorder %s220, %s223
    %p232 = scmp.eq.s32.totalorder %s19, 3
    %p233 = por %p231, %p232
    %p234 = scmp.ne.s32.totalorder %s223, %s224
    %p235 = scmp.eq.s32.totalorder %s19, 0
    %p236 = por %p234, %p235
    %p237 = scmp.ne.s32.totalorder %s223, %s224
    %p238 = scmp.eq.s32.totalorder %s20, 3
    %p239 = por %p237, %p238
    %p241 = scmp.ne.s32.totalorder %s224, %s240
    %p242 = scmp.eq.s32.totalorder %s20, 0
    %p243 = por %p241, %p242
    %p244 = scmp.le.s32.totalorder 1, %s14
    %p245 = scmp.lt.s32.totalorder %s14, 5
    %p246 = pnand %p244, %p245
    %p247 = pneg %p246
    // Predicated region
    $region9: #{nlgnn_forward.4} parent=5 // pred_check
      _
    $region10: #{nlgnn_forward.4} parent=5 // pred_check_branch
      %249 = sbr.rel (%p246) target = $region12
    $region11: #{nlgnn_forward.4} parent=5 // pred_region
      %s250 = ssub.s32 %s14, 1
      // Predicated region
      $region13: #{nlgnn_forward.4} parent=11 // pred_check
        %p251 = pneg %p147
      $region14: #{nlgnn_forward.4} parent=11 // pred_check_branch
        %253 = sbr.rel (%p251) target = $region16
      $region15: #{nlgnn_forward.4} parent=11 // pred_region
        _
      $region16: #{nlgnn_forward.4} parent=11 // pred_fallthru
        _
      // Predicated region
      $region17: #{nlgnn_forward.4} parent=11 // pred_check
        %p254 = pneg %p168
      $region18: #{nlgnn_forward.4} parent=11 // pred_check_branch
        %256 = sbr.rel (%p254) target = $region20
      $region19: #{nlgnn_forward.4} parent=11 // pred_region
        _
      $region20: #{nlgnn_forward.4} parent=11 // pred_fallthru
        _
      // Predicated region
      $region21: #{nlgnn_forward.4} parent=11 // pred_check
        %p257 = pneg %p189
      $region22: #{nlgnn_forward.4} parent=11 // pred_check_branch
        %259 = sbr.rel (%p257) target = $region24
      $region23: #{nlgnn_forward.4} parent=11 // pred_region
        _
      $region24: #{nlgnn_forward.4} parent=11 // pred_fallthru
        _
      // Predicated region
      $region25: #{nlgnn_forward.4} parent=11 // pred_check
        %p260 = pneg %p210
      $region26: #{nlgnn_forward.4} parent=11 // pred_check_branch
        %262 = sbr.rel (%p260) target = $region28
      $region27: #{nlgnn_forward.4} parent=11 // pred_region
        _
      $region28: #{nlgnn_forward.4} parent=11 // pred_fallthru
        _
    $region12: #{nlgnn_forward.4} parent=5 // pred_fallthru
      _
    %p263 = scmp.lt.s32.totalorder %s14, 4
    // Predicated region
    $region29: #{nlgnn_forward.4} parent=5 // pred_check
      %p264 = pneg %p263
    $region30: #{nlgnn_forward.4} parent=5 // pred_check_branch
      %266 = sbr.rel (%p264) target = $region32
    $region31: #{nlgnn_forward.4} parent=5 // pred_region
      // Predicated region
      $region33: #{nlgnn_forward.4} parent=31 // pred_check
        %p267 = pneg %p34
      $region34: #{nlgnn_forward.4} parent=31 // pred_check_branch
        %269 = sbr.rel (%p267) target = $region36
      $region35: #{nlgnn_forward.4} parent=31 // pred_region
        %s270 = smul.u32 64, %s14
        %s271 = ssub.s32 258, %s270
        %p272 = scmp.lt.s32.totalorder %s271, 64
        %s273 = scalar_select %p272, %s271, 64
        %s274 = smul.u32 64, %s273
        %p275 = scmp.lt.s32.totalorder %s270, 257
        %s276 = scalar_select %p275, %s270, 257
        %s277 = smul.addr %s276, 4
        %s278 = scalar_lea.vmem %s0, %s277
        %s279 = smul.u32 64, %s14
        %s280 = ssub.s32 258, %s279
        %p281 = scmp.lt.s32.totalorder %s280, 64
        %s282 = scalar_select %p281, %s280, 64
        %s283 = smul.u32 64, %s282
      $region36: #{nlgnn_forward.4} parent=31 // pred_fallthru
        _
      // Predicated region
      $region37: #{nlgnn_forward.4} parent=31 // pred_check
        %p284 = pneg %p64
      $region38: #{nlgnn_forward.4} parent=31 // pred_check_branch
        %286 = sbr.rel (%p284) target = $region40
      $region39: #{nlgnn_forward.4} parent=31 // pred_region
        %s287 = sadd.s32 %s14, 1
        %s288 = smul.u32 %s287, 32
        %s289 = smul.u32 2, %s288
        %p290 = scmp.lt.s32.totalorder %s289, 257
        %s291 = scalar_select %p290, %s289, 257
        %s292 = smul.addr %s291, 4
        %s293 = scalar_lea.vmem %s1, %s292
        %s294 = sadd.s32 %s14, 1
        %s295 = smul.u32 %s294, 32
        %s296 = smul.u32 2, %s295
      $region40: #{nlgnn_forward.4} parent=31 // pred_fallthru
        _
      // Predicated region
      $region41: #{nlgnn_forward.4} parent=31 // pred_check
        %p297 = pneg %p90
      $region42: #{nlgnn_forward.4} parent=31 // pred_check_branch
        %299 = sbr.rel (%p297) target = $region44
      $region43: #{nlgnn_forward.4} parent=31 // pred_region
        %s300 = smul.u32 64, %s14
        %s301 = ssub.s32 258, %s300
        %p302 = scmp.lt.s32.totalorder %s301, 64
        %s303 = scalar_select %p302, %s301, 64
        %s304 = smul.u32 128, %s303
        %p305 = scmp.lt.s32.totalorder %s300, 257
        %s306 = scalar_select %p305, %s300, 257
        %s307 = smul.addr %s306, 8
        %s308 = scalar_lea.vmem %s2, %s307
        %s309 = smul.u32 64, %s14
        %s310 = ssub.s32 258, %s309
        %p311 = scmp.lt.s32.totalorder %s310, 64
        %s312 = scalar_select %p311, %s310, 64
        %s313 = smul.u32 128, %s312
      $region44: #{nlgnn_forward.4} parent=31 // pred_fallthru
        _
      // Predicated region
      $region45: #{nlgnn_forward.4} parent=31 // pred_check
        %p314 = pneg %p120
      $region46: #{nlgnn_forward.4} parent=31 // pred_check_branch
        %316 = sbr.rel (%p314) target = $region48
      $region47: #{nlgnn_forward.4} parent=31 // pred_region
        %s317 = sadd.s32 %s14, 1
        %s318 = smul.u32 %s317, 32
        %s319 = smul.u32 2, %s318
        %p320 = scmp.lt.s32.totalorder %s319, 257
        %s321 = scalar_select %p320, %s319, 257
        %s322 = smul.addr %s321, 8
        %s323 = scalar_lea.vmem %s3, %s322
        %s324 = sadd.s32 %s14, 1
        %s325 = smul.u32 %s324, 32
        %s326 = smul.u32 2, %s325
      $region48: #{nlgnn_forward.4} parent=31 // pred_fallthru
        _
    $region32: #{nlgnn_forward.4} parent=5 // pred_fallthru
      _
    %p327 = scmp.le.s32.totalorder 1, %s14
    %p328 = scmp.lt.s32.totalorder %s14, 5
    %p329 = pnand %p327, %p328
    %p330 = pneg %p329
    // Predicated region
    $region49: #{nlgnn_forward.4} parent=5 // pred_check
      _
    $region50: #{nlgnn_forward.4} parent=5 // pred_check_branch
      %332 = sbr.rel (%p329) target = $region52
    $region51: #{nlgnn_forward.4} parent=5 // pred_region
      %s333 = ssub.s32 %s14, 1
      %s334 = smul.u32 64, %s19
      %s335 = ssub.s32 258, %s334
      %p336 = scmp.lt.s32.totalorder %s335, 64
      %s337 = scalar_select %p336, %s335, 64
      %s338 = smul.u32 64, %s337
      %p339 = scmp.lt.s32.totalorder %s334, 257
      %s340 = scalar_select %p339, %s334, 257
      %s341 = smul.addr %s340, 4
      %s342 = scalar_lea.vmem %s0, %s341
      %p343 = pneg %p40
      %p344 = pneg %p37
      %s345 = sadd.s32 %s19, 1
      %s346 = smul.u32 %s345, 32
      %s347 = smul.u32 2, %s346
      %p348 = scmp.lt.s32.totalorder %s347, 257
      %s349 = scalar_select %p348, %s347, 257
      %s350 = smul.addr %s349, 4
      %s351 = scalar_lea.vmem %s1, %s350
      %p352 = pneg %p70
      %p353 = pneg %p67
      %s354 = smul.u32 64, %s19
      %s355 = ssub.s32 258, %s354
      %p356 = scmp.lt.s32.totalorder %s355, 64
      %s357 = scalar_select %p356, %s355, 64
      %s358 = smul.u32 128, %s357
      %p359 = scmp.lt.s32.totalorder %s354, 257
      %s360 = scalar_select %p359, %s354, 257
      %s361 = smul.addr %s360, 8
      %s362 = scalar_lea.vmem %s2, %s361
      %p363 = pneg %p96
      %p364 = pneg %p93
      %s365 = sadd.s32 %s19, 1
      %s366 = smul.u32 %s365, 32
      %s367 = smul.u32 2, %s366
      %p368 = scmp.lt.s32.totalorder %s367, 257
      %s369 = scalar_select %p368, %s367, 257
      %s370 = smul.addr %s369, 8
      %s371 = scalar_lea.vmem %s3, %s370
      %p372 = pneg %p126
      %p373 = pneg %p123
      %p374 = pneg %p147
      %p375 = pneg %p144
      %p376 = pneg %p168
      %p377 = pneg %p165
      %p378 = pneg %p189
      %p379 = pneg %p186
      %p380 = pneg %p210
      %p381 = pneg %p207
      %p382 = pneg %p236
      %p383 = pneg %p233
      %s384 = smul.u32 64, %s19
      %p385 = scmp.lt.s32.totalorder %s384, 255
      %s386 = scalar_select %p385, %s384, 255
      %s387 = smul.addr %s386, 4
      %s388 = scalar_lea.vmem %s8, %s387
      %s389 = smul.u32 64, %s19
      %s390 = ssub.s32 258, %s389
      %p391 = scmp.lt.s32.totalorder %s390, 64
      %s392 = scalar_select %p391, %s390, 64
      %s393 = smul.u32 64, %s392
      %p394 = scmp.lt.s32.totalorder %s389, 257
      %s395 = scalar_select %p394, %s389, 257
      %s396 = smul.addr %s395, 4
      %s397 = scalar_lea.vmem %s0, %s396
      %s398 = smul.u32 64, %s19
      %s399 = ssub.s32 258, %s398
      %p400 = scmp.lt.s32.totalorder %s399, 64
      %s401 = scalar_select %p400, %s399, 64
      %s402 = smul.u32 64, %s401
      %s403 = sadd.s32 %s19, 1
      %s404 = smul.u32 %s403, 32
      %s405 = smul.u32 2, %s404
      %p406 = scmp.lt.s32.totalorder %s405, 257
      %s407 = scalar_select %p406, %s405, 257
      %s408 = smul.addr %s407, 4
      %s409 = scalar_lea.vmem %s1, %s408
      %s410 = sadd.s32 %s19, 1
      %s411 = smul.u32 %s410, 32
      %s412 = smul.u32 2, %s411
      %s413 = smul.u32 64, %s19
      %s414 = ssub.s32 258, %s413
      %p415 = scmp.lt.s32.totalorder %s414, 64
      %s416 = scalar_select %p415, %s414, 64
      %s417 = smul.u32 128, %s416
      %p418 = scmp.lt.s32.totalorder %s413, 257
      %s419 = scalar_select %p418, %s413, 257
      %s420 = smul.addr %s419, 8
      %s421 = scalar_lea.vmem %s2, %s420
      %s422 = smul.u32 64, %s19
      %s423 = ssub.s32 258, %s422
      %p424 = scmp.lt.s32.totalorder %s423, 64
      %s425 = scalar_select %p424, %s423, 64
      %s426 = smul.u32 128, %s425
      %s427 = sadd.s32 %s19, 1
      %s428 = smul.u32 %s427, 32
      %s429 = smul.u32 2, %s428
      %p430 = scmp.lt.s32.totalorder %s429, 257
      %s431 = scalar_select %p430, %s429, 257
      %s432 = smul.addr %s431, 8
      %s433 = scalar_lea.vmem %s3, %s432
      %s434 = sadd.s32 %s19, 1
      %s435 = smul.u32 %s434, 32
      %s436 = smul.u32 2, %s435
      %s437 = smul.u32 64, %s19
      %p438 = scmp.lt.s32.totalorder %s437, 255
      %s439 = scalar_select %p438, %s437, 255
      %s440 = smul.addr %s439, 4
      %s441 = scalar_lea.vmem %s8, %s440
      %s442 = smul.u32 64, %s19
      %v444 = vld [vmem:[%s397] sm:$0xf]
      %v445 = vld [vmem:[%s397 + $0x4] sm:$0xf]
      %v446 = vld [vmem:[%s397 + $0x8] sm:$0xf]
      %v447 = vld [vmem:[%s397 + $0xc] sm:$0xf]
      %v448 = vld [vmem:[%s397 + $0x10] sm:$0xf]
      %v449 = vld [vmem:[%s397 + $0x14] sm:$0xf]
      %v450 = vld [vmem:[%s397 + $0x18] sm:$0xf]
      %v451 = vld [vmem:[%s397 + $0x1c] sm:$0xf]
      %v452 = vld [vmem:[%s397 + $0x20] sm:$0xf]
      %v453 = vld [vmem:[%s397 + $0x24] sm:$0xf]
      %v454 = vld [vmem:[%s397 + $0x28] sm:$0xf]
      %v455 = vld [vmem:[%s397 + $0x2c] sm:$0xf]
      %v456 = vld [vmem:[%s397 + $0x30] sm:$0xf]
      %v457 = vld [vmem:[%s397 + $0x34] sm:$0xf]
      %v458 = vld [vmem:[%s397 + $0x38] sm:$0xf]
      %v459 = vld [vmem:[%s397 + $0x3c] sm:$0xf]
      %v460 = vld [vmem:[%s397 + $0x40] sm:$0xf]
      %v461 = vld [vmem:[%s397 + $0x44] sm:$0xf]
      %v462 = vld [vmem:[%s397 + $0x48] sm:$0xf]
      %v463 = vld [vmem:[%s397 + $0x4c] sm:$0xf]
      %v464 = vld [vmem:[%s397 + $0x50] sm:$0xf]
      %v465 = vld [vmem:[%s397 + $0x54] sm:$0xf]
      %v466 = vld [vmem:[%s397 + $0x58] sm:$0xf]
      %v467 = vld [vmem:[%s397 + $0x5c] sm:$0xf]
      %v468 = vld [vmem:[%s397 + $0x60] sm:$0xf]
      %v469 = vld [vmem:[%s397 + $0x64] sm:$0xf]
      %v470 = vld [vmem:[%s397 + $0x68] sm:$0xf]
      %v471 = vld [vmem:[%s397 + $0x6c] sm:$0xf]
      %v472 = vld [vmem:[%s397 + $0x70] sm:$0xf]
      %v473 = vld [vmem:[%s397 + $0x74] sm:$0xf]
      %v474 = vld [vmem:[%s397 + $0x78] sm:$0xf]
      %v475 = vld [vmem:[%s397 + $0x7c] sm:$0xf]
      %v476 = vld [vmem:[%s397 + $0x80] sm:$0xf]
      %v477 = vld [vmem:[%s397 + $0x84] sm:$0xf]
      %v478 = vld [vmem:[%s397 + $0x88] sm:$0xf]
      %v479 = vld [vmem:[%s397 + $0x8c] sm:$0xf]
      %v480 = vld [vmem:[%s397 + $0x90] sm:$0xf]
      %v481 = vld [vmem:[%s397 + $0x94] sm:$0xf]
      %v482 = vld [vmem:[%s397 + $0x98] sm:$0xf]
      %v483 = vld [vmem:[%s397 + $0x9c] sm:$0xf]
      %v484 = vld [vmem:[%s397 + $0xa0] sm:$0xf]
      %v485 = vld [vmem:[%s397 + $0xa4] sm:$0xf]
      %v486 = vld [vmem:[%s397 + $0xa8] sm:$0xf]
      %v487 = vld [vmem:[%s397 + $0xac] sm:$0xf]
      %v488 = vld [vmem:[%s397 + $0xb0] sm:$0xf]
      %v489 = vld [vmem:[%s397 + $0xb4] sm:$0xf]
      %v490 = vld [vmem:[%s397 + $0xb8] sm:$0xf]
      %v491 = vld [vmem:[%s397 + $0xbc] sm:$0xf]
      %v492 = vld [vmem:[%s397 + $0xc0] sm:$0xf]
      %v493 = vld [vmem:[%s397 + $0xc4] sm:$0xf]
      %v494 = vld [vmem:[%s397 + $0xc8] sm:$0xf]
      %v495 = vld [vmem:[%s397 + $0xcc] sm:$0xf]
      %v496 = vld [vmem:[%s397 + $0xd0] sm:$0xf]
      %v497 = vld [vmem:[%s397 + $0xd4] sm:$0xf]
      %v498 = vld [vmem:[%s397 + $0xd8] sm:$0xf]
      %v499 = vld [vmem:[%s397 + $0xdc] sm:$0xf]
      %v500 = vld [vmem:[%s397 + $0xe0] sm:$0xf]
      %v501 = vld [vmem:[%s397 + $0xe4] sm:$0xf]
      %v502 = vld [vmem:[%s397 + $0xe8] sm:$0xf]
      %v503 = vld [vmem:[%s397 + $0xec] sm:$0xf]
      %v504 = vld [vmem:[%s397 + $0xf0] sm:$0xf]
      %v505 = vld [vmem:[%s397 + $0xf4] sm:$0xf]
      %v506 = vld [vmem:[%s397 + $0xf8] sm:$0xf]
      %v507 = vld [vmem:[%s397 + $0xfc] sm:$0xf]
      %v508 = vunpack.c.l.bf16 %v444
      %v509 = vunpack.c.l.bf16 %v445
      %v510 = vunpack.c.l.bf16 %v446
      %v511 = vunpack.c.l.bf16 %v447
      %v512 = vunpack.c.l.bf16 %v448
      %v513 = vunpack.c.l.bf16 %v449
      %v514 = vunpack.c.l.bf16 %v450
      %v515 = vunpack.c.l.bf16 %v451
      %v516 = vunpack.c.l.bf16 %v452
      %v517 = vunpack.c.l.bf16 %v453
      %v518 = vunpack.c.l.bf16 %v454
      %v519 = vunpack.c.l.bf16 %v455
      %v520 = vunpack.c.l.bf16 %v456
      %v521 = vunpack.c.l.bf16 %v457
      %v522 = vunpack.c.l.bf16 %v458
      %v523 = vunpack.c.l.bf16 %v459
      %v524 = vunpack.c.l.bf16 %v460
      %v525 = vunpack.c.l.bf16 %v461
      %v526 = vunpack.c.l.bf16 %v462
      %v527 = vunpack.c.l.bf16 %v463
      %v528 = vunpack.c.l.bf16 %v464
      %v529 = vunpack.c.l.bf16 %v465
      %v530 = vunpack.c.l.bf16 %v466
      %v531 = vunpack.c.l.bf16 %v467
      %v532 = vunpack.c.l.bf16 %v468
      %v533 = vunpack.c.l.bf16 %v469
      %v534 = vunpack.c.l.bf16 %v470
      %v535 = vunpack.c.l.bf16 %v471
      %v536 = vunpack.c.l.bf16 %v472
      %v537 = vunpack.c.l.bf16 %v473
      %v538 = vunpack.c.l.bf16 %v474
      %v539 = vunpack.c.l.bf16 %v475
      %v540 = vunpack.c.l.bf16 %v476
      %v541 = vunpack.c.l.bf16 %v477
      %v542 = vunpack.c.l.bf16 %v478
      %v543 = vunpack.c.l.bf16 %v479
      %v544 = vunpack.c.l.bf16 %v480
      %v545 = vunpack.c.l.bf16 %v481
      %v546 = vunpack.c.l.bf16 %v482
      %v547 = vunpack.c.l.bf16 %v483
      %v548 = vunpack.c.l.bf16 %v484
      %v549 = vunpack.c.l.bf16 %v485
      %v550 = vunpack.c.l.bf16 %v486
      %v551 = vunpack.c.l.bf16 %v487
      %v552 = vunpack.c.l.bf16 %v488
      %v553 = vunpack.c.l.bf16 %v489
      %v554 = vunpack.c.l.bf16 %v490
      %v555 = vunpack.c.l.bf16 %v491
      %v556 = vunpack.c.l.bf16 %v492
      %v557 = vunpack.c.l.bf16 %v493
      %v558 = vunpack.c.l.bf16 %v494
      %v559 = vunpack.c.l.bf16 %v495
      %v560 = vunpack.c.l.bf16 %v496
      %v561 = vunpack.c.l.bf16 %v497
      %v562 = vunpack.c.l.bf16 %v498
      %v563 = vunpack.c.l.bf16 %v499
      %v564 = vunpack.c.l.bf16 %v500
      %v565 = vunpack.c.l.bf16 %v501
      %v566 = vunpack.c.l.bf16 %v502
      %v567 = vunpack.c.l.bf16 %v503
      %v568 = vunpack.c.l.bf16 %v504
      %v569 = vunpack.c.l.bf16 %v505
      %v570 = vunpack.c.l.bf16 %v506
      %v571 = vunpack.c.l.bf16 %v507
      %v572 = vld [vmem:[%s421] sm:$0xff]
      %v573 = vld [vmem:[%s421 + $0x8] sm:$0xff]
      %v574 = vld [vmem:[%s421 + $0x10] sm:$0xff]
      %v575 = vld [vmem:[%s421 + $0x18] sm:$0xff]
      %v576 = vld [vmem:[%s421 + $0x20] sm:$0xff]
      %v577 = vld [vmem:[%s421 + $0x28] sm:$0xff]
      %v578 = vld [vmem:[%s421 + $0x30] sm:$0xff]
      %v579 = vld [vmem:[%s421 + $0x38] sm:$0xff]
      %v580 = vld [vmem:[%s421 + $0x40] sm:$0xff]
      %v581 = vld [vmem:[%s421 + $0x48] sm:$0xff]
      %v582 = vld [vmem:[%s421 + $0x50] sm:$0xff]
      %v583 = vld [vmem:[%s421 + $0x58] sm:$0xff]
      %v584 = vld [vmem:[%s421 + $0x60] sm:$0xff]
      %v585 = vld [vmem:[%s421 + $0x68] sm:$0xff]
      %v586 = vld [vmem:[%s421 + $0x70] sm:$0xff]
      %v587 = vld [vmem:[%s421 + $0x78] sm:$0xff]
      %v588 = vld [vmem:[%s421 + $0x80] sm:$0xff]
      %v589 = vld [vmem:[%s421 + $0x88] sm:$0xff]
      %v590 = vld [vmem:[%s421 + $0x90] sm:$0xff]
      %v591 = vld [vmem:[%s421 + $0x98] sm:$0xff]
      %v592 = vld [vmem:[%s421 + $0xa0] sm:$0xff]
      %v593 = vld [vmem:[%s421 + $0xa8] sm:$0xff]
      %v594 = vld [vmem:[%s421 + $0xb0] sm:$0xff]
      %v595 = vld [vmem:[%s421 + $0xb8] sm:$0xff]
      %v596 = vld [vmem:[%s421 + $0xc0] sm:$0xff]
      %v597 = vld [vmem:[%s421 + $0xc8] sm:$0xff]
      %v598 = vld [vmem:[%s421 + $0xd0] sm:$0xff]
      %v599 = vld [vmem:[%s421 + $0xd8] sm:$0xff]
      %v600 = vld [vmem:[%s421 + $0xe0] sm:$0xff]
      %v601 = vld [vmem:[%s421 + $0xe8] sm:$0xff]
      %v602 = vld [vmem:[%s421 + $0xf0] sm:$0xff]
      %v603 = vld [vmem:[%s421 + $0xf8] sm:$0xff]
      %v604 = vld [vmem:[%s421 + $0x100] sm:$0xff]
      %v605 = vld [vmem:[%s421 + $0x108] sm:$0xff]
      %v606 = vld [vmem:[%s421 + $0x110] sm:$0xff]
      %v607 = vld [vmem:[%s421 + $0x118] sm:$0xff]
      %v608 = vld [vmem:[%s421 + $0x120] sm:$0xff]
      %v609 = vld [vmem:[%s421 + $0x128] sm:$0xff]
      %v610 = vld [vmem:[%s421 + $0x130] sm:$0xff]
      %v611 = vld [vmem:[%s421 + $0x138] sm:$0xff]
      %v612 = vld [vmem:[%s421 + $0x140] sm:$0xff]
      %v613 = vld [vmem:[%s421 + $0x148] sm:$0xff]
      %v614 = vld [vmem:[%s421 + $0x150] sm:$0xff]
      %v615 = vld [vmem:[%s421 + $0x158] sm:$0xff]
      %v616 = vld [vmem:[%s421 + $0x160] sm:$0xff]
      %v617 = vld [vmem:[%s421 + $0x168] sm:$0xff]
      %v618 = vld [vmem:[%s421 + $0x170] sm:$0xff]
      %v619 = vld [vmem:[%s421 + $0x178] sm:$0xff]
      %v620 = vld [vmem:[%s421 + $0x180] sm:$0xff]
      %v621 = vld [vmem:[%s421 + $0x188] sm:$0xff]
      %v622 = vld [vmem:[%s421 + $0x190] sm:$0xff]
      %v623 = vld [vmem:[%s421 + $0x198] sm:$0xff]
      %v624 = vld [vmem:[%s421 + $0x1a0] sm:$0xff]
      %v625 = vld [vmem:[%s421 + $0x1a8] sm:$0xff]
      %v626 = vld [vmem:[%s421 + $0x1b0] sm:$0xff]
      %v627 = vld [vmem:[%s421 + $0x1b8] sm:$0xff]
      %v628 = vld [vmem:[%s421 + $0x1c0] sm:$0xff]
      %v629 = vld [vmem:[%s421 + $0x1c8] sm:$0xff]
      %v630 = vld [vmem:[%s421 + $0x1d0] sm:$0xff]
      %v631 = vld [vmem:[%s421 + $0x1d8] sm:$0xff]
      %v632 = vld [vmem:[%s421 + $0x1e0] sm:$0xff]
      %v633 = vld [vmem:[%s421 + $0x1e8] sm:$0xff]
      %v634 = vld [vmem:[%s421 + $0x1f0] sm:$0xff]
      %v635 = vld [vmem:[%s421 + $0x1f8] sm:$0xff]
      %637 = vset.pattern.permute.xlu0 0
      %638 = vperm.xlu0 %637, %v572
      %v639 = vpop.permute.xlu0 %638
      %642 = vset.pattern.permute.xlu0 0
      %643 = vperm.xlu0 %642, %v573
      %v644 = vpop.permute.xlu0 %643
      %647 = vset.pattern.permute.xlu0 0
      %648 = vperm.xlu0 %647, %v574
      %v649 = vpop.permute.xlu0 %648
      %652 = vset.pattern.permute.xlu0 0
      %653 = vperm.xlu0 %652, %v575
      %v654 = vpop.permute.xlu0 %653
      %657 = vset.pattern.permute.xlu0 0
      %658 = vperm.xlu0 %657, %v576
      %v659 = vpop.permute.xlu0 %658
      %662 = vset.pattern.permute.xlu0 0
      %663 = vperm.xlu0 %662, %v577
      %v664 = vpop.permute.xlu0 %663
      %667 = vset.pattern.permute.xlu0 0
      %668 = vperm.xlu0 %667, %v578
      %v669 = vpop.permute.xlu0 %668
      %672 = vset.pattern.permute.xlu0 0
      %673 = vperm.xlu0 %672, %v579
      %v674 = vpop.permute.xlu0 %673
      %677 = vset.pattern.permute.xlu0 0
      %678 = vperm.xlu0 %677, %v580
      %v679 = vpop.permute.xlu0 %678
      %682 = vset.pattern.permute.xlu0 0
      %683 = vperm.xlu0 %682, %v581
      %v684 = vpop.permute.xlu0 %683
      %687 = vset.pattern.permute.xlu0 0
      %688 = vperm.xlu0 %687, %v582
      %v689 = vpop.permute.xlu0 %688
      %692 = vset.pattern.permute.xlu0 0
      %693 = vperm.xlu0 %692, %v583
      %v694 = vpop.permute.xlu0 %693
      %697 = vset.pattern.permute.xlu0 0
      %698 = vperm.xlu0 %697, %v584
      %v699 = vpop.permute.xlu0 %698
      %702 = vset.pattern.permute.xlu0 0
      %703 = vperm.xlu0 %702, %v585
      %v704 = vpop.permute.xlu0 %703
      %707 = vset.pattern.permute.xlu0 0
      %708 = vperm.xlu0 %707, %v586
      %v709 = vpop.permute.xlu0 %708
      %712 = vset.pattern.permute.xlu0 0
      %713 = vperm.xlu0 %712, %v587
      %v714 = vpop.permute.xlu0 %713
      %717 = vset.pattern.permute.xlu0 0
      %718 = vperm.xlu0 %717, %v588
      %v719 = vpop.permute.xlu0 %718
      %722 = vset.pattern.permute.xlu0 0
      %723 = vperm.xlu0 %722, %v589
      %v724 = vpop.permute.xlu0 %723
      %727 = vset.pattern.permute.xlu0 0
      %728 = vperm.xlu0 %727, %v590
      %v729 = vpop.permute.xlu0 %728
      %732 = vset.pattern.permute.xlu0 0
      %733 = vperm.xlu0 %732, %v591
      %v734 = vpop.permute.xlu0 %733
      %737 = vset.pattern.permute.xlu0 0
      %738 = vperm.xlu0 %737, %v592
      %v739 = vpop.permute.xlu0 %738
      %742 = vset.pattern.permute.xlu0 0
      %743 = vperm.xlu0 %742, %v593
      %v744 = vpop.permute.xlu0 %743
      %747 = vset.pattern.permute.xlu0 0
      %748 = vperm.xlu0 %747, %v594
      %v749 = vpop.permute.xlu0 %748
      %752 = vset.pattern.permute.xlu0 0
      %753 = vperm.xlu0 %752, %v595
      %v754 = vpop.permute.xlu0 %753
      %757 = vset.pattern.permute.xlu0 0
      %758 = vperm.xlu0 %757, %v596
      %v759 = vpop.permute.xlu0 %758
      %762 = vset.pattern.permute.xlu0 0
      %763 = vperm.xlu0 %762, %v597
      %v764 = vpop.permute.xlu0 %763
      %767 = vset.pattern.permute.xlu0 0
      %768 = vperm.xlu0 %767, %v598
      %v769 = vpop.permute.xlu0 %768
      %772 = vset.pattern.permute.xlu0 0
      %773 = vperm.xlu0 %772, %v599
      %v774 = vpop.permute.xlu0 %773
      %777 = vset.pattern.permute.xlu0 0
      %778 = vperm.xlu0 %777, %v600
      %v779 = vpop.permute.xlu0 %778
      %782 = vset.pattern.permute.xlu0 0
      %783 = vperm.xlu0 %782, %v601
      %v784 = vpop.permute.xlu0 %783
      %787 = vset.pattern.permute.xlu0 0
      %788 = vperm.xlu0 %787, %v602
      %v789 = vpop.permute.xlu0 %788
      %792 = vset.pattern.permute.xlu0 0
      %793 = vperm.xlu0 %792, %v603
      %v794 = vpop.permute.xlu0 %793
      %797 = vset.pattern.permute.xlu0 0
      %798 = vperm.xlu0 %797, %v604
      %v799 = vpop.permute.xlu0 %798
      %802 = vset.pattern.permute.xlu0 0
      %803 = vperm.xlu0 %802, %v605
      %v804 = vpop.permute.xlu0 %803
      %807 = vset.pattern.permute.xlu0 0
      %808 = vperm.xlu0 %807, %v606
      %v809 = vpop.permute.xlu0 %808
      %812 = vset.pattern.permute.xlu0 0
      %813 = vperm.xlu0 %812, %v607
      %v814 = vpop.permute.xlu0 %813
      %817 = vset.pattern.permute.xlu0 0
      %818 = vperm.xlu0 %817, %v608
      %v819 = vpop.permute.xlu0 %818
      %822 = vset.pattern.permute.xlu0 0
      %823 = vperm.xlu0 %822, %v609
      %v824 = vpop.permute.xlu0 %823
      %827 = vset.pattern.permute.xlu0 0
      %828 = vperm.xlu0 %827, %v610
      %v829 = vpop.permute.xlu0 %828
      %832 = vset.pattern.permute.xlu0 0
      %833 = vperm.xlu0 %832, %v611
      %v834 = vpop.permute.xlu0 %833
      %837 = vset.pattern.permute.xlu0 0
      %838 = vperm.xlu0 %837, %v612
      %v839 = vpop.permute.xlu0 %838
      %842 = vset.pattern.permute.xlu0 0
      %843 = vperm.xlu0 %842, %v613
      %v844 = vpop.permute.xlu0 %843
      %847 = vset.pattern.permute.xlu0 0
      %848 = vperm.xlu0 %847, %v614
      %v849 = vpop.permute.xlu0 %848
      %852 = vset.pattern.permute.xlu0 0
      %853 = vperm.xlu0 %852, %v615
      %v854 = vpop.permute.xlu0 %853
      %857 = vset.pattern.permute.xlu0 0
      %858 = vperm.xlu0 %857, %v616
      %v859 = vpop.permute.xlu0 %858
      %862 = vset.pattern.permute.xlu0 0
      %863 = vperm.xlu0 %862, %v617
      %v864 = vpop.permute.xlu0 %863
      %867 = vset.pattern.permute.xlu0 0
      %868 = vperm.xlu0 %867, %v618
      %v869 = vpop.permute.xlu0 %868
      %872 = vset.pattern.permute.xlu0 0
      %873 = vperm.xlu0 %872, %v619
      %v874 = vpop.permute.xlu0 %873
      %877 = vset.pattern.permute.xlu0 0
      %878 = vperm.xlu0 %877, %v620
      %v879 = vpop.permute.xlu0 %878
      %882 = vset.pattern.permute.xlu0 0
      %883 = vperm.xlu0 %882, %v621
      %v884 = vpop.permute.xlu0 %883
      %887 = vset.pattern.permute.xlu0 0
      %888 = vperm.xlu0 %887, %v622
      %v889 = vpop.permute.xlu0 %888
      %892 = vset.pattern.permute.xlu0 0
      %893 = vperm.xlu0 %892, %v623
      %v894 = vpop.permute.xlu0 %893
      %897 = vset.pattern.permute.xlu0 0
      %898 = vperm.xlu0 %897, %v624
      %v899 = vpop.permute.xlu0 %898
      %902 = vset.pattern.permute.xlu0 0
      %903 = vperm.xlu0 %902, %v625
      %v904 = vpop.permute.xlu0 %903
      %907 = vset.pattern.permute.xlu0 0
      %908 = vperm.xlu0 %907, %v626
      %v909 = vpop.permute.xlu0 %908
      %912 = vset.pattern.permute.xlu0 0
      %913 = vperm.xlu0 %912, %v627
      %v914 = vpop.permute.xlu0 %913
      %917 = vset.pattern.permute.xlu0 0
      %918 = vperm.xlu0 %917, %v628
      %v919 = vpop.permute.xlu0 %918
      %922 = vset.pattern.permute.xlu0 0
      %923 = vperm.xlu0 %922, %v629
      %v924 = vpop.permute.xlu0 %923
      %927 = vset.pattern.permute.xlu0 0
      %928 = vperm.xlu0 %927, %v630
      %v929 = vpop.permute.xlu0 %928
      %932 = vset.pattern.permute.xlu0 0
      %933 = vperm.xlu0 %932, %v631
      %v934 = vpop.permute.xlu0 %933
      %937 = vset.pattern.permute.xlu0 0
      %938 = vperm.xlu0 %937, %v632
      %v939 = vpop.permute.xlu0 %938
      %942 = vset.pattern.permute.xlu0 0
      %943 = vperm.xlu0 %942, %v633
      %v944 = vpop.permute.xlu0 %943
      %947 = vset.pattern.permute.xlu0 0
      %948 = vperm.xlu0 %947, %v634
      %v949 = vpop.permute.xlu0 %948
      %952 = vset.pattern.permute.xlu0 0
      %953 = vperm.xlu0 %952, %v635
      %v954 = vpop.permute.xlu0 %953
      %v956 = vmul.f32 %v508, %v639
      %v957 = vmul.f32 %v509, %v644
      %v958 = vmul.f32 %v510, %v649
      %v959 = vmul.f32 %v511, %v654
      %v960 = vmul.f32 %v512, %v659
      %v961 = vmul.f32 %v513, %v664
      %v962 = vmul.f32 %v514, %v669
      %v963 = vmul.f32 %v515, %v674
      %v964 = vmul.f32 %v516, %v679
      %v965 = vmul.f32 %v517, %v684
      %v966 = vmul.f32 %v518, %v689
      %v967 = vmul.f32 %v519, %v694
      %v968 = vmul.f32 %v520, %v699
      %v969 = vmul.f32 %v521, %v704
      %v970 = vmul.f32 %v522, %v709
      %v971 = vmul.f32 %v523, %v714
      %v972 = vmul.f32 %v524, %v719
      %v973 = vmul.f32 %v525, %v724
      %v974 = vmul.f32 %v526, %v729
      %v975 = vmul.f32 %v527, %v734
      %v976 = vmul.f32 %v528, %v739
      %v977 = vmul.f32 %v529, %v744
      %v978 = vmul.f32 %v530, %v749
      %v979 = vmul.f32 %v531, %v754
      %v980 = vmul.f32 %v532, %v759
      %v981 = vmul.f32 %v533, %v764
      %v982 = vmul.f32 %v534, %v769
      %v983 = vmul.f32 %v535, %v774
      %v984 = vmul.f32 %v536, %v779
      %v985 = vmul.f32 %v537, %v784
      %v986 = vmul.f32 %v538, %v789
      %v987 = vmul.f32 %v539, %v794
      %v988 = vmul.f32 %v540, %v799
      %v989 = vmul.f32 %v541, %v804
      %v990 = vmul.f32 %v542, %v809
      %v991 = vmul.f32 %v543, %v814
      %v992 = vmul.f32 %v544, %v819
      %v993 = vmul.f32 %v545, %v824
      %v994 = vmul.f32 %v546, %v829
      %v995 = vmul.f32 %v547, %v834
      %v996 = vmul.f32 %v548, %v839
      %v997 = vmul.f32 %v549, %v844
      %v998 = vmul.f32 %v550, %v849
      %v999 = vmul.f32 %v551, %v854
      %v1000 = vmul.f32 %v552, %v859
      %v1001 = vmul.f32 %v553, %v864
      %v1002 = vmul.f32 %v554, %v869
      %v1003 = vmul.f32 %v555, %v874
      %v1004 = vmul.f32 %v556, %v879
      %v1005 = vmul.f32 %v557, %v884
      %v1006 = vmul.f32 %v558, %v889
      %v1007 = vmul.f32 %v559, %v894
      %v1008 = vmul.f32 %v560, %v899
      %v1009 = vmul.f32 %v561, %v904
      %v1010 = vmul.f32 %v562, %v909
      %v1011 = vmul.f32 %v563, %v914
      %v1012 = vmul.f32 %v564, %v919
      %v1013 = vmul.f32 %v565, %v924
      %v1014 = vmul.f32 %v566, %v929
      %v1015 = vmul.f32 %v567, %v934
      %v1016 = vmul.f32 %v568, %v939
      %v1017 = vmul.f32 %v569, %v944
      %v1018 = vmul.f32 %v570, %v949
      %v1019 = vmul.f32 %v571, %v954
      %v1020 = vld [vmem:[%s409] sm:$0xf]
      %v1021 = vld [vmem:[%s409 + $0x4] sm:$0xf]
      %v1022 = vunpack.c.l.bf16 %v1020
      %v1023 = vunpack.c.l.bf16 %v1021
      %v1024 = vld [vmem:[%s433] sm:$0xff]
      %v1025 = vld [vmem:[%s433 + $0x8] sm:$0xff]
      %1027 = vset.pattern.permute.xlu0 0
      %1028 = vperm.xlu0 %1027, %v1024
      %v1029 = vpop.permute.xlu0 %1028
      %1032 = vset.pattern.permute.xlu0 0
      %1033 = vperm.xlu0 %1032, %v1025
      %v1034 = vpop.permute.xlu0 %1033
      %v1036 = vmul.f32 %v1022, %v1029
      %v1037 = vmul.f32 %v1023, %v1034
      %v1038 = vpack.c.bf16 %v957, %v956
      %v1039 = vpack.c.bf16 %v959, %v958
      %v1040 = vpack.c.bf16 %v961, %v960
      %v1041 = vpack.c.bf16 %v963, %v962
      %v1042 = vpack.c.bf16 %v965, %v964
      %v1043 = vpack.c.bf16 %v967, %v966
      %v1044 = vpack.c.bf16 %v969, %v968
      %v1045 = vpack.c.bf16 %v971, %v970
      %v1046 = vpack.c.bf16 %v973, %v972
      %v1047 = vpack.c.bf16 %v975, %v974
      %v1048 = vpack.c.bf16 %v977, %v976
      %v1049 = vpack.c.bf16 %v979, %v978
      %v1050 = vpack.c.bf16 %v981, %v980
      %v1051 = vpack.c.bf16 %v983, %v982
      %v1052 = vpack.c.bf16 %v985, %v984
      %v1053 = vpack.c.bf16 %v987, %v986
      %v1054 = vpack.c.bf16 %v989, %v988
      %v1055 = vpack.c.bf16 %v991, %v990
      %v1056 = vpack.c.bf16 %v993, %v992
      %v1057 = vpack.c.bf16 %v995, %v994
      %v1058 = vpack.c.bf16 %v997, %v996
      %v1059 = vpack.c.bf16 %v999, %v998
      %v1060 = vpack.c.bf16 %v1001, %v1000
      %v1061 = vpack.c.bf16 %v1003, %v1002
      %v1062 = vpack.c.bf16 %v1005, %v1004
      %v1063 = vpack.c.bf16 %v1007, %v1006
      %v1064 = vpack.c.bf16 %v1009, %v1008
      %v1065 = vpack.c.bf16 %v1011, %v1010
      %v1066 = vpack.c.bf16 %v1013, %v1012
      %v1067 = vpack.c.bf16 %v1015, %v1014
      %v1068 = vpack.c.bf16 %v1017, %v1016
      %v1069 = vpack.c.bf16 %v1019, %v1018
      %v1070 = vpack.c.bf16 %v1037, %v1036
      %v1071 = vld [vmem:[%s4] sm:$0xff]
      %v1072 = vld [vmem:[%s4 + $0x8] sm:$0xf]
      %v1073 = vld [vmem:[%s4 + $0xc] sm:$0xff]
      %v1074 = vld [vmem:[%s4 + $0x14] sm:$0xf]
      %v1075 = vld [vmem:[%s4 + $0x18] sm:$0xff]
      %v1076 = vld [vmem:[%s4 + $0x20] sm:$0xf]
      %v1077 = vld [vmem:[%s4 + $0x24] sm:$0xff]
      %v1078 = vld [vmem:[%s4 + $0x2c] sm:$0xf]
      %v1079 = vld [vmem:[%s4 + $0x30] sm:$0xff]
      %v1080 = vld [vmem:[%s4 + $0x38] sm:$0xf]
      %v1081 = vld [vmem:[%s4 + $0x3c] sm:$0xff]
      %v1082 = vld [vmem:[%s4 + $0x44] sm:$0xf]
      %v1083 = vld [vmem:[%s4 + $0x48] sm:$0xff]
      %v1084 = vld [vmem:[%s4 + $0x50] sm:$0xf]
      %v1085 = vld [vmem:[%s4 + $0x54] sm:$0xff]
      %v1086 = vld [vmem:[%s4 + $0x5c] sm:$0xf]
      %v1087 = vld [vmem:[%s4 + $0x60] sm:$0xff]
      %v1088 = vld [vmem:[%s4 + $0x68] sm:$0xf]
      %v1089 = vld [vmem:[%s4 + $0x6c] sm:$0xff]
      %v1090 = vld [vmem:[%s4 + $0x74] sm:$0xf]
      %v1091 = vld [vmem:[%s4 + $0x78] sm:$0xff]
      %v1092 = vld [vmem:[%s4 + $0x80] sm:$0xf]
      %v1093 = vld [vmem:[%s4 + $0x84] sm:$0xff]
      %v1094 = vld [vmem:[%s4 + $0x8c] sm:$0xf]
      %v1095 = vld [vmem:[%s4 + $0x90] sm:$0xff]
      %v1096 = vld [vmem:[%s4 + $0x98] sm:$0xf]
      %v1097 = vld [vmem:[%s4 + $0x9c] sm:$0xff]
      %v1098 = vld [vmem:[%s4 + $0xa4] sm:$0xf]
      %v1099 = vld [vmem:[%s4 + $0xa8] sm:$0xff]
      %v1100 = vld [vmem:[%s4 + $0xb0] sm:$0xf]
      %v1101 = vld [vmem:[%s4 + $0xb4] sm:$0xff]
      %v1102 = vld [vmem:[%s4 + $0xbc] sm:$0xf]
      %v1135 = vunpack.c.l.b16 %v1071
      %v1136 = vunpack.c.h.b16 %v1071
      %v1137 = vunpack.c.l.b16 %v1072
      %v1138 = vunpack.c.l.b16 %v1073
      %v1139 = vunpack.c.h.b16 %v1073
      %v1140 = vunpack.c.l.b16 %v1074
      %v1141 = vunpack.c.l.b16 %v1075
      %v1142 = vunpack.c.h.b16 %v1075
      %v1143 = vunpack.c.l.b16 %v1076
      %v1144 = vunpack.c.l.b16 %v1077
      %v1145 = vunpack.c.h.b16 %v1077
      %v1146 = vunpack.c.l.b16 %v1078
      %v1147 = vunpack.c.l.b16 %v1079
      %v1148 = vunpack.c.h.b16 %v1079
      %v1149 = vunpack.c.l.b16 %v1080
      %v1150 = vunpack.c.l.b16 %v1081
      %v1151 = vunpack.c.h.b16 %v1081
      %v1152 = vunpack.c.l.b16 %v1082
      %v1153 = vunpack.c.l.b16 %v1083
      %v1154 = vunpack.c.h.b16 %v1083
      %v1155 = vunpack.c.l.b16 %v1084
      %v1156 = vunpack.c.l.b16 %v1085
      %v1157 = vunpack.c.h.b16 %v1085
      %v1158 = vunpack.c.l.b16 %v1086
      %v1159 = vunpack.c.l.b16 %v1087
      %v1160 = vunpack.c.h.b16 %v1087
      %v1161 = vunpack.c.l.b16 %v1088
      %v1162 = vunpack.c.l.b16 %v1089
      %v1163 = vunpack.c.h.b16 %v1089
      %v1164 = vunpack.c.l.b16 %v1090
      %v1165 = vunpack.c.l.b16 %v1091
      %v1166 = vunpack.c.h.b16 %v1091
      %v1167 = vunpack.c.l.b16 %v1092
      %v1168 = vunpack.c.l.b16 %v1093
      %v1169 = vunpack.c.h.b16 %v1093
      %v1170 = vunpack.c.l.b16 %v1094
      %v1171 = vunpack.c.l.b16 %v1095
      %v1172 = vunpack.c.h.b16 %v1095
      %v1173 = vunpack.c.l.b16 %v1096
      %v1174 = vunpack.c.l.b16 %v1097
      %v1175 = vunpack.c.h.b16 %v1097
      %v1176 = vunpack.c.l.b16 %v1098
      %v1177 = vunpack.c.l.b16 %v1099
      %v1178 = vunpack.c.h.b16 %v1099
      %v1179 = vunpack.c.l.b16 %v1100
      %v1180 = vunpack.c.l.b16 %v1101
      %v1181 = vunpack.c.h.b16 %v1101
      %v1182 = vunpack.c.l.b16 %v1102
      %v1183 = vpack.c.b16 %v1138, %v1135
      %v1184 = vpack.c.b16 %v1139, %v1136
      %v1185 = vpack.c.b16 %v1140, %v1137
      %v1186 = vpack.c.b16 %v1144, %v1141
      %v1187 = vpack.c.b16 %v1145, %v1142
      %v1188 = vpack.c.b16 %v1146, %v1143
      %v1189 = vpack.c.b16 %v1150, %v1147
      %v1190 = vpack.c.b16 %v1151, %v1148
      %v1191 = vpack.c.b16 %v1152, %v1149
      %v1192 = vpack.c.b16 %v1156, %v1153
      %v1193 = vpack.c.b16 %v1157, %v1154
      %v1194 = vpack.c.b16 %v1158, %v1155
      %v1195 = vpack.c.b16 %v1162, %v1159
      %v1196 = vpack.c.b16 %v1163, %v1160
      %v1197 = vpack.c.b16 %v1164, %v1161
      %v1198 = vpack.c.b16 %v1168, %v1165
      %v1199 = vpack.c.b16 %v1169, %v1166
      %v1200 = vpack.c.b16 %v1170, %v1167
      %v1201 = vpack.c.b16 %v1174, %v1171
      %v1202 = vpack.c.b16 %v1175, %v1172
      %v1203 = vpack.c.b16 %v1176, %v1173
      %v1204 = vpack.c.b16 %v1180, %v1177
      %v1205 = vpack.c.b16 %v1181, %v1178
      %v1206 = vpack.c.b16 %v1182, %v1179
      %1231 = vmatprep.subr.bf16.mxu0 %v1184
      %1232 = vmatpush1.bf16.msra.mxu0 %v1183
      %1233 = vmatprep.subr.bf16.mxu0 %v1187
      %1234 = vmatpush1.bf16.msra.mxu0 %v1186
      %1235 = vmatprep.subr.bf16.mxu0 %v1190
      %1236 = vmatpush1.bf16.msra.mxu0 %v1189
      %1237 = vmatprep.subr.bf16.mxu0 %v1193
      %1238 = vmatpush1.bf16.msra.mxu0 %v1192
      %1239 = vmatprep.subr.bf16.mxu0 %v1196
      %1240 = vmatpush1.bf16.msra.mxu0 %v1195
      %1241 = vmatprep.subr.bf16.mxu0 %v1199
      %1242 = vmatpush1.bf16.msra.mxu0 %v1198
      %1243 = vmatprep.subr.bf16.mxu0 %v1202
      %1244 = vmatpush1.bf16.msra.mxu0 %v1201
      %1245 = vmatprep.subr.bf16.mxu0 %v1205
      %1246 = vmatpush1.bf16.msra.mxu0 %v1204
      %1247 = vmatprep.subr.bf16.mxu0 0
      %1248 = vmatpush1.bf16.msra.mxu0 0
      %1249 = vmatprep.subr.bf16.mxu0 0
      %1250 = vmatpush1.bf16.msra.mxu0 0
      %1251 = vmatprep.subr.bf16.mxu0 0
      %1252 = vmatpush1.bf16.msra.mxu0 0
      %1253 = vmatprep.subr.bf16.mxu0 0
      %1254 = vmatpush1.bf16.msra.mxu0 0
      %1255 = vmatprep.subr.bf16.mxu0 0
      %1256 = vmatpush1.bf16.msra.mxu0 0
      %1257 = vmatprep.subr.bf16.mxu0 0
      %1258 = vmatpush1.bf16.msra.mxu0 0
      %1259 = vmatprep.subr.bf16.mxu0 0
      %1260 = vmatpush1.bf16.msra.mxu0 0
      %1261 = vmatprep.subr.bf16.mxu0 0
      %1262 = vmatpush1.bf16.msra.mxu0 0
      %1263 = vmatprep.mubr.bf16.mxu0 0
      %1264 = vmatmul.mubr.bf16.gmra.mrb[0].mxu0 %v1038
      %v1265 = vpop.f32.mrb[0].mxu0
      %v1266 = vadd.f32 0.0, %v1265
      %v1267 = vpop.f32.mrb[0].mxu0
      %v1268 = vadd.f32 0.0, %v1267
      %v1269 = vpop.f32.mrb[0].mxu0
      %v1270 = vadd.f32 0.0, %v1269
      %v1271 = vpop.f32.mrb[0].mxu0
      %v1272 = vadd.f32 0.0, %v1271
      %1273 = vmatprep.mubr.bf16.mxu0 0
      %1274 = vmatmul.mubr.bf16.gmra.mrb[0].mxu0 %v1039
      %v1275 = vpop.f32.mrb[0].mxu0
      %v1276 = vadd.f32 0.0, %v1275
      %v1277 = vpop.f32.mrb[0].mxu0
      %v1278 = vadd.f32 0.0, %v1277
      %v1279 = vpop.f32.mrb[0].mxu0
      %v1280 = vadd.f32 0.0, %v1279
      %v1281 = vpop.f32.mrb[0].mxu0
      %v1282 = vadd.f32 0.0, %v1281
      %1283 = vmatprep.mubr.bf16.mxu0 0
      %1284 = vmatmul.mubr.bf16.gmra.mrb[0].mxu0 %v1040
      %v1285 = vpop.f32.mrb[0].mxu0
      %v1286 = vadd.f32 0.0, %v1285
      %v1287 = vpop.f32.mrb[0].mxu0
      %v1288 = vadd.f32 0.0, %v1287
      %v1289 = vpop.f32.mrb[0].mxu0
      %v1290 = vadd.f32 0.0, %v1289
      %v1291 = vpop.f32.mrb[0].mxu0
      %v1292 = vadd.f32 0.0, %v1291
      %1293 = vmatprep.mubr.bf16.mxu0 0
      %1294 = vmatmul.mubr.bf16.gmra.mrb[0].mxu0 %v1041
      %v1295 = vpop.f32.mrb[0].mxu0
      %v1296 = vadd.f32 0.0, %v1295
      %v1297 = vpop.f32.mrb[0].mxu0
      %v1298 = vadd.f32 0.0, %v1297
      %v1299 = vpop.f32.mrb[0].mxu0
      %v1300 = vadd.f32 0.0, %v1299
      %v1301 = vpop.f32.mrb[0].mxu0
      %v1302 = vadd.f32 0.0, %v1301
      %1303 = vmatprep.mubr.bf16.mxu0 0
      %1304 = vmatmul.mubr.bf16.gmra.mrb[0].mxu0 %v1042
      %v1305 = vpop.f32.mrb[0].mxu0
      %v1306 = vadd.f32 0.0, %v1305
      %v1307 = vpop.f32.mrb[0].mxu0
      %v1308 = vadd.f32 0.0, %v1307
      %v1309 = vpop.f32.mrb[0].mxu0
      %v1310 = vadd.f32 0.0, %v1309
      %v1311 = vpop.f32.mrb[0].mxu0
      %v1312 = vadd.f32 0.0, %v1311
      %1313 = vmatprep.mubr.bf16.mxu0 0
      %1314 = vmatmul.mubr.bf16.gmra.mrb[0].mxu0 %v1043
      %v1315 = vpop.f32.mrb[0].mxu0
      %v1316 = vadd.f32 0.0, %v1315
      %v1317 = vpop.f32.mrb[0].mxu0
      %v1318 = vadd.f32 0.0, %v1317
      %v1319 = vpop.f32.mrb[0].mxu0
      %v1320 = vadd.f32 0.0, %v1319
      %v1321 = vpop.f32.mrb[0].mxu0
      %v1322 = vadd.f32 0.0, %v1321
      %1323 = vmatprep.mubr.bf16.mxu0 0
      %1324 = vmatmul.mubr.bf16.gmra.mrb[0].mxu0 %v1044
      %v1325 = vpop.f32.mrb[0].mxu0
      %v1326 = vadd.f32 0.0, %v1325
      %v1327 = vpop.f32.mrb[0].mxu0
      %v1328 = vadd.f32 0.0, %v1327
      %v1329 = vpop.f32.mrb[0].mxu0
      %v1330 = vadd.f32 0.0, %v1329
      %v1331 = vpop.f32.mrb[0].mxu0
      %v1332 = vadd.f32 0.0, %v1331
      %1333 = vmatprep.mubr.bf16.mxu0 0
      %1334 = vmatmul.mubr.bf16.gmra.mrb[0].mxu0 %v1045
      %v1335 = vpop.f32.mrb[0].mxu0
      %v1336 = vadd.f32 0.0, %v1335
      %v1337 = vpop.f32.mrb[0].mxu0
      %v1338 = vadd.f32 0.0, %v1337
      %v1339 = vpop.f32.mrb[0].mxu0
      %v1340 = vadd.f32 0.0, %v1339
      %v1341 = vpop.f32.mrb[0].mxu0
      %v1342 = vadd.f32 0.0, %v1341
      %1343 = vmatprep.mubr.bf16.mxu0 0
      %1344 = vmatmul.mubr.bf16.gmra.mrb[0].mxu0 %v1046
      %v1345 = vpop.f32.mrb[0].mxu0
      %v1346 = vadd.f32 0.0, %v1345
      %v1347 = vpop.f32.mrb[0].mxu0
      %v1348 = vadd.f32 0.0, %v1347
      %v1349 = vpop.f32.mrb[0].mxu0
      %v1350 = vadd.f32 0.0, %v1349
      %v1351 = vpop.f32.mrb[0].mxu0
      %v1352 = vadd.f32 0.0, %v1351
      %1353 = vmatprep.mubr.bf16.mxu0 0
      %1354 = vmatmul.mubr.bf16.gmra.mrb[0].mxu0 %v1047
      %v1355 = vpop.f32.mrb[0].mxu0
      %v1356 = vadd.f32 0.0, %v1355
      %v1357 = vpop.f32.mrb[0].mxu0
      %v1358 = vadd.f32 0.0, %v1357
      %v1359 = vpop.f32.mrb[0].mxu0
      %v1360 = vadd.f32 0.0, %v1359
      %v1361 = vpop.f32.mrb[0].mxu0
      %v1362 = vadd.f32 0.0, %v1361
      %1363 = vmatprep.mubr.bf16.mxu0 0
      %1364 = vmatmul.mubr.bf16.gmra.mrb[0].mxu0 %v1048
      %v1365 = vpop.f32.mrb[0].mxu0
      %v1366 = vadd.f32 0.0, %v1365
      %v1367 = vpop.f32.mrb[0].mxu0
      %v1368 = vadd.f32 0.0, %v1367
      %v1369 = vpop.f32.mrb[0].mxu0
      %v1370 = vadd.f32 0.0, %v1369
      %v1371 = vpop.f32.mrb[0].mxu0
      %v1372 = vadd.f32 0.0, %v1371
      %1373 = vmatprep.mubr.bf16.mxu0 0
      %1374 = vmatmul.mubr.bf16.gmra.mrb[0].mxu0 %v1049
      %v1375 = vpop.f32.mrb[0].mxu0
      %v1376 = vadd.f32 0.0, %v1375
      %v1377 = vpop.f32.mrb[0].mxu0
      %v1378 = vadd.f32 0.0, %v1377
      %v1379 = vpop.f32.mrb[0].mxu0
      %v1380 = vadd.f32 0.0, %v1379
      %v1381 = vpop.f32.mrb[0].mxu0
      %v1382 = vadd.f32 0.0, %v1381
      %1383 = vmatprep.mubr.bf16.mxu0 0
      %1384 = vmatmul.mubr.bf16.gmra.mrb[0].mxu0 %v1050
      %v1385 = vpop.f32.mrb[0].mxu0
      %v1386 = vadd.f32 0.0, %v1385
      %v1387 = vpop.f32.mrb[0].mxu0
      %v1388 = vadd.f32 0.0, %v1387
      %v1389 = vpop.f32.mrb[0].mxu0
      %v1390 = vadd.f32 0.0, %v1389
      %v1391 = vpop.f32.mrb[0].mxu0
      %v1392 = vadd.f32 0.0, %v1391
      %1393 = vmatprep.mubr.bf16.mxu0 0
      %1394 = vmatmul.mubr.bf16.gmra.mrb[0].mxu0 %v1051
      %v1395 = vpop.f32.mrb[0].mxu0
      %v1396 = vadd.f32 0.0, %v1395
      %v1397 = vpop.f32.mrb[0].mxu0
      %v1398 = vadd.f32 0.0, %v1397
      %v1399 = vpop.f32.mrb[0].mxu0
      %v1400 = vadd.f32 0.0, %v1399
      %v1401 = vpop.f32.mrb[0].mxu0
      %v1402 = vadd.f32 0.0, %v1401
      %1403 = vmatprep.mubr.bf16.mxu0 0
      %1404 = vmatmul.mubr.bf16.gmra.mrb[0].mxu0 %v1052
      %v1405 = vpop.f32.mrb[0].mxu0
      %v1406 = vadd.f32 0.0, %v1405
      %v1407 = vpop.f32.mrb[0].mxu0
      %v1408 = vadd.f32 0.0, %v1407
      %v1409 = vpop.f32.mrb[0].mxu0
      %v1410 = vadd.f32 0.0, %v1409
      %v1411 = vpop.f32.mrb[0].mxu0
      %v1412 = vadd.f32 0.0, %v1411
      %1413 = vmatprep.mubr.bf16.mxu0 0
      %1414 = vmatmul.mubr.bf16.gmra.mrb[0].mxu0 %v1053
      %v1415 = vpop.f32.mrb[0].mxu0
      %v1416 = vadd.f32 0.0, %v1415
      %v1417 = vpop.f32.mrb[0].mxu0
      %v1418 = vadd.f32 0.0, %v1417
      %v1419 = vpop.f32.mrb[0].mxu0
      %v1420 = vadd.f32 0.0, %v1419
      %v1421 = vpop.f32.mrb[0].mxu0
      %v1422 = vadd.f32 0.0, %v1421
      %1423 = vmatprep.mubr.bf16.mxu0 0
      %1424 = vmatmul.mubr.bf16.gmra.mrb[0].mxu0 %v1054
      %v1425 = vpop.f32.mrb[0].mxu0
      %v1426 = vadd.f32 0.0, %v1425
      %v1427 = vpop.f32.mrb[0].mxu0
      %v1428 = vadd.f32 0.0, %v1427
      %v1429 = vpop.f32.mrb[0].mxu0
      %v1430 = vadd.f32 0.0, %v1429
      %v1431 = vpop.f32.mrb[0].mxu0
      %v1432 = vadd.f32 0.0, %v1431
      %1433 = vmatprep.mubr.bf16.mxu0 0
      %1434 = vmatmul.mubr.bf16.gmra.mrb[0].mxu0 %v1055
      %v1435 = vpop.f32.mrb[0].mxu0
      %v1436 = vadd.f32 0.0, %v1435
      %v1437 = vpop.f32.mrb[0].mxu0
      %v1438 = vadd.f32 0.0, %v1437
      %v1439 = vpop.f32.mrb[0].mxu0
      %v1440 = vadd.f32 0.0, %v1439
      %v1441 = vpop.f32.mrb[0].mxu0
      %v1442 = vadd.f32 0.0, %v1441
      %1443 = vmatprep.mubr.bf16.mxu0 0
      %1444 = vmatmul.mubr.bf16.gmra.mrb[0].mxu0 %v1056
      %v1445 = vpop.f32.mrb[0].mxu0
      %v1446 = vadd.f32 0.0, %v1445
      %v1447 = vpop.f32.mrb[0].mxu0
      %v1448 = vadd.f32 0.0, %v1447
      %v1449 = vpop.f32.mrb[0].mxu0
      %v1450 = vadd.f32 0.0, %v1449
      %v1451 = vpop.f32.mrb[0].mxu0
      %v1452 = vadd.f32 0.0, %v1451
      %1453 = vmatprep.mubr.bf16.mxu0 0
      %1454 = vmatmul.mubr.bf16.gmra.mrb[0].mxu0 %v1057
      %v1455 = vpop.f32.mrb[0].mxu0
      %v1456 = vadd.f32 0.0, %v1455
      %v1457 = vpop.f32.mrb[0].mxu0
      %v1458 = vadd.f32 0.0, %v1457
      %v1459 = vpop.f32.mrb[0].mxu0
      %v1460 = vadd.f32 0.0, %v1459
      %v1461 = vpop.f32.mrb[0].mxu0
      %v1462 = vadd.f32 0.0, %v1461
      %1463 = vmatprep.mubr.bf16.mxu0 0
      %1464 = vmatmul.mubr.bf16.gmra.mrb[0].mxu0 %v1058
      %v1465 = vpop.f32.mrb[0].mxu0
      %v1466 = vadd.f32 0.0, %v1465
      %v1467 = vpop.f32.mrb[0].mxu0
      %v1468 = vadd.f32 0.0, %v1467
      %v1469 = vpop.f32.mrb[0].mxu0
      %v1470 = vadd.f32 0.0, %v1469
      %v1471 = vpop.f32.mrb[0].mxu0
      %v1472 = vadd.f32 0.0, %v1471
      %1473 = vmatprep.mubr.bf16.mxu0 0
      %1474 = vmatmul.mubr.bf16.gmra.mrb[0].mxu0 %v1059
      %v1475 = vpop.f32.mrb[0].mxu0
      %v1476 = vadd.f32 0.0, %v1475
      %v1477 = vpop.f32.mrb[0].mxu0
      %v1478 = vadd.f32 0.0, %v1477
      %v1479 = vpop.f32.mrb[0].mxu0
      %v1480 = vadd.f32 0.0, %v1479
      %v1481 = vpop.f32.mrb[0].mxu0
      %v1482 = vadd.f32 0.0, %v1481
      %1483 = vmatprep.mubr.bf16.mxu0 0
      %1484 = vmatmul.mubr.bf16.gmra.mrb[0].mxu0 %v1060
      %v1485 = vpop.f32.mrb[0].mxu0
      %v1486 = vadd.f32 0.0, %v1485
      %v1487 = vpop.f32.mrb[0].mxu0
      %v1488 = vadd.f32 0.0, %v1487
      %v1489 = vpop.f32.mrb[0].mxu0
      %v1490 = vadd.f32 0.0, %v1489
      %v1491 = vpop.f32.mrb[0].mxu0
      %v1492 = vadd.f32 0.0, %v1491
      %1493 = vmatprep.mubr.bf16.mxu0 0
      %1494 = vmatmul.mubr.bf16.gmra.mrb[0].mxu0 %v1061
      %v1495 = vpop.f32.mrb[0].mxu0
      %v1496 = vadd.f32 0.0, %v1495
      %v1497 = vpop.f32.mrb[0].mxu0
      %v1498 = vadd.f32 0.0, %v1497
      %v1499 = vpop.f32.mrb[0].mxu0
      %v1500 = vadd.f32 0.0, %v1499
      %v1501 = vpop.f32.mrb[0].mxu0
      %v1502 = vadd.f32 0.0, %v1501
      %1503 = vmatprep.mubr.bf16.mxu0 0
      %1504 = vmatmul.mubr.bf16.gmra.mrb[0].mxu0 %v1062
      %v1505 = vpop.f32.mrb[0].mxu0
      %v1506 = vadd.f32 0.0, %v1505
      %v1507 = vpop.f32.mrb[0].mxu0
      %v1508 = vadd.f32 0.0, %v1507
      %v1509 = vpop.f32.mrb[0].mxu0
      %v1510 = vadd.f32 0.0, %v1509
      %v1511 = vpop.f32.mrb[0].mxu0
      %v1512 = vadd.f32 0.0, %v1511
      %1513 = vmatprep.mubr.bf16.mxu0 0
      %1514 = vmatmul.mubr.bf16.gmra.mrb[0].mxu0 %v1063
      %v1515 = vpop.f32.mrb[0].mxu0
      %v1516 = vadd.f32 0.0, %v1515
      %v1517 = vpop.f32.mrb[0].mxu0
      %v1518 = vadd.f32 0.0, %v1517
      %v1519 = vpop.f32.mrb[0].mxu0
      %v1520 = vadd.f32 0.0, %v1519
      %v1521 = vpop.f32.mrb[0].mxu0
      %v1522 = vadd.f32 0.0, %v1521
      %1523 = vmatprep.mubr.bf16.mxu0 0
      %1524 = vmatmul.mubr.bf16.gmra.mrb[0].mxu0 %v1064
      %v1525 = vpop.f32.mrb[0].mxu0
      %v1526 = vadd.f32 0.0, %v1525
      %v1527 = vpop.f32.mrb[0].mxu0
      %v1528 = vadd.f32 0.0, %v1527
      %v1529 = vpop.f32.mrb[0].mxu0
      %v1530 = vadd.f32 0.0, %v1529
      %v1531 = vpop.f32.mrb[0].mxu0
      %v1532 = vadd.f32 0.0, %v1531
      %1533 = vmatprep.mubr.bf16.mxu0 0
      %1534 = vmatmul.mubr.bf16.gmra.mrb[0].mxu0 %v1065
      %v1535 = vpop.f32.mrb[0].mxu0
      %v1536 = vadd.f32 0.0, %v1535
      %v1537 = vpop.f32.mrb[0].mxu0
      %v1538 = vadd.f32 0.0, %v1537
      %v1539 = vpop.f32.mrb[0].mxu0
      %v1540 = vadd.f32 0.0, %v1539
      %v1541 = vpop.f32.mrb[0].mxu0
      %v1542 = vadd.f32 0.0, %v1541
      %1543 = vmatprep.mubr.bf16.mxu0 0
      %1544 = vmatmul.mubr.bf16.gmra.mrb[0].mxu0 %v1066
      %v1545 = vpop.f32.mrb[0].mxu0
      %v1546 = vadd.f32 0.0, %v1545
      %v1547 = vpop.f32.mrb[0].mxu0
      %v1548 = vadd.f32 0.0, %v1547
      %v1549 = vpop.f32.mrb[0].mxu0
      %v1550 = vadd.f32 0.0, %v1549
      %v1551 = vpop.f32.mrb[0].mxu0
      %v1552 = vadd.f32 0.0, %v1551
      %1553 = vmatprep.mubr.bf16.mxu0 0
      %1554 = vmatmul.mubr.bf16.gmra.mrb[0].mxu0 %v1067
      %v1555 = vpop.f32.mrb[0].mxu0
      %v1556 = vadd.f32 0.0, %v1555
      %v1557 = vpop.f32.mrb[0].mxu0
      %v1558 = vadd.f32 0.0, %v1557
      %v1559 = vpop.f32.mrb[0].mxu0
      %v1560 = vadd.f32 0.0, %v1559
      %v1561 = vpop.f32.mrb[0].mxu0
      %v1562 = vadd.f32 0.0, %v1561
      %1563 = vmatprep.mubr.bf16.mxu0 0
      %1564 = vmatmul.mubr.bf16.gmra.mrb[0].mxu0 %v1068
      %v1565 = vpop.f32.mrb[0].mxu0
      %v1566 = vadd.f32 0.0, %v1565
      %v1567 = vpop.f32.mrb[0].mxu0
      %v1568 = vadd.f32 0.0, %v1567
      %v1569 = vpop.f32.mrb[0].mxu0
      %v1570 = vadd.f32 0.0, %v1569
      %v1571 = vpop.f32.mrb[0].mxu0
      %v1572 = vadd.f32 0.0, %v1571
      %1573 = vmatprep.mubr.bf16.mxu0 0
      %1574 = vmatmul.mubr.bf16.gmra.mrb[0].mxu0 %v1069
      %v1575 = vpop.f32.mrb[0].mxu0
      %v1576 = vadd.f32 0.0, %v1575
      %v1577 = vpop.f32.mrb[0].mxu0
      %v1578 = vadd.f32 0.0, %v1577
      %v1579 = vpop.f32.mrb[0].mxu0
      %v1580 = vadd.f32 0.0, %v1579
      %v1581 = vpop.f32.mrb[0].mxu0
      %v1582 = vadd.f32 0.0, %v1581
      %1583 = vmatprep.mubr.bf16.mxu0 0
      %1584 = vmatmul.mubr.bf16.gmra.mrb[0].mxu0 %v1070
      %v1585 = vpop.f32.mrb[0].mxu0
      %v1586 = vadd.f32 0.0, %v1585
      %v1587 = vpop.f32.mrb[0].mxu0
      %v1588 = vadd.f32 0.0, %v1587
      %v1589 = vpop.f32.mrb[0].mxu0
      %v1590 = vadd.f32 0.0, %v1589
      %v1591 = vpop.f32.mrb[0].mxu0
      %v1592 = vadd.f32 0.0, %v1591
      %1593 = vdwg.mxu0
      %1594 = vmatprep.subr.bf16.mxu0 0
      %1595 = vmatpush1.bf16.msra.mxu0 %v1185
      %1596 = vmatprep.subr.bf16.mxu0 0
      %1597 = vmatpush1.bf16.msra.mxu0 %v1188
      %1598 = vmatprep.subr.bf16.mxu0 0
      %1599 = vmatpush1.bf16.msra.mxu0 %v1191
      %1600 = vmatprep.subr.bf16.mxu0 0
      %1601 = vmatpush1.bf16.msra.mxu0 %v1194
      %1602 = vmatprep.subr.bf16.mxu0 0
      %1603 = vmatpush1.bf16.msra.mxu0 %v1197
      %1604 = vmatprep.subr.bf16.mxu0 0
      %1605 = vmatpush1.bf16.msra.mxu0 %v1200
      %1606 = vmatprep.subr.bf16.mxu0 0
      %1607 = vmatpush1.bf16.msra.mxu0 %v1203
      %1608 = vmatprep.subr.bf16.mxu0 0
      %1609 = vmatpush1.bf16.msra.mxu0 %v1206
      %1610 = vmatprep.subr.bf16.mxu0 0
      %1611 = vmatpush1.bf16.msra.mxu0 0
      %1612 = vmatprep.subr.bf16.mxu0 0
      %1613 = vmatpush1.bf16.msra.mxu0 0
      %1614 = vmatprep.subr.bf16.mxu0 0
      %1615 = vmatpush1.bf16.msra.mxu0 0
      %1616 = vmatprep.subr.bf16.mxu0 0
      %1617 = vmatpush1.bf16.msra.mxu0 0
      %1618 = vmatprep.subr.bf16.mxu0 0
      %1619 = vmatpush1.bf16.msra.mxu0 0
      %1620 = vmatprep.subr.bf16.mxu0 0
      %1621 = vmatpush1.bf16.msra.mxu0 0
      %1622 = vmatprep.subr.bf16.mxu0 0
      %1623 = vmatpush1.bf16.msra.mxu0 0
      %1624 = vmatprep.subr.bf16.mxu0 0
      %1625 = vmatpush1.bf16.msra.mxu0 0
      %1626 = vmatprep.mubr.bf16.mxu0 0
      %1627 = vmatmul.mubr.bf16.gmra.mrb[0].mxu0 %v1038
      %v1628 = vpop.f32.mrb[0].mxu0
      %v1629 = vadd.f32 0.0, %v1628
      %v1630 = vpop.f32.mrb[0].mxu0
      %v1631 = vpop.f32.mrb[0].mxu0
      %v1632 = vadd.f32 0.0, %v1631
      %v1633 = vpop.f32.mrb[0].mxu0
      %1634 = vmatprep.mubr.bf16.mxu0 0
      %1635 = vmatmul.mubr.bf16.gmra.mrb[0].mxu0 %v1039
      %v1636 = vpop.f32.mrb[0].mxu0
      %v1637 = vadd.f32 0.0, %v1636
      %v1638 = vpop.f32.mrb[0].mxu0
      %v1639 = vpop.f32.mrb[0].mxu0
      %v1640 = vadd.f32 0.0, %v1639
      %v1641 = vpop.f32.mrb[0].mxu0
      %1642 = vmatprep.mubr.bf16.mxu0 0
      %1643 = vmatmul.mubr.bf16.gmra.mrb[0].mxu0 %v1040
      %v1644 = vpop.f32.mrb[0].mxu0
      %v1645 = vadd.f32 0.0, %v1644
      %v1646 = vpop.f32.mrb[0].mxu0
      %v1647 = vpop.f32.mrb[0].mxu0
      %v1648 = vadd.f32 0.0, %v1647
      %v1649 = vpop.f32.mrb[0].mxu0
      %1650 = vmatprep.mubr.bf16.mxu0 0
      %1651 = vmatmul.mubr.bf16.gmra.mrb[0].mxu0 %v1041
      %v1652 = vpop.f32.mrb[0].mxu0
      %v1653 = vadd.f32 0.0, %v1652
      %v1654 = vpop.f32.mrb[0].mxu0
      %v1655 = vpop.f32.mrb[0].mxu0
      %v1656 = vadd.f32 0.0, %v1655
      %v1657 = vpop.f32.mrb[0].mxu0
      %1658 = vmatprep.mubr.bf16.mxu0 0
      %1659 = vmatmul.mubr.bf16.gmra.mrb[0].mxu0 %v1042
      %v1660 = vpop.f32.mrb[0].mxu0
      %v1661 = vadd.f32 0.0, %v1660
      %v1662 = vpop.f32.mrb[0].mxu0
      %v1663 = vpop.f32.mrb[0].mxu0
      %v1664 = vadd.f32 0.0, %v1663
      %v1665 = vpop.f32.mrb[0].mxu0
      %1666 = vmatprep.mubr.bf16.mxu0 0
      %1667 = vmatmul.mubr.bf16.gmra.mrb[0].mxu0 %v1043
      %v1668 = vpop.f32.mrb[0].mxu0
      %v1669 = vadd.f32 0.0, %v1668
      %v1670 = vpop.f32.mrb[0].mxu0
      %v1671 = vpop.f32.mrb[0].mxu0
      %v1672 = vadd.f32 0.0, %v1671
      %v1673 = vpop.f32.mrb[0].mxu0
      %1674 = vmatprep.mubr.bf16.mxu0 0
      %1675 = vmatmul.mubr.bf16.gmra.mrb[0].mxu0 %v1044
      %v1676 = vpop.f32.mrb[0].mxu0
      %v1677 = vadd.f32 0.0, %v1676
      %v1678 = vpop.f32.mrb[0].mxu0
      %v1679 = vpop.f32.mrb[0].mxu0
      %v1680 = vadd.f32 0.0, %v1679
      %v1681 = vpop.f32.mrb[0].mxu0
      %1682 = vmatprep.mubr.bf16.mxu0 0
      %1683 = vmatmul.mubr.bf16.gmra.mrb[0].mxu0 %v1045
      %v1684 = vpop.f32.mrb[0].mxu0
      %v1685 = vadd.f32 0.0, %v1684
      %v1686 = vpop.f32.mrb[0].mxu0
      %v1687 = vpop.f32.mrb[0].mxu0
      %v1688 = vadd.f32 0.0, %v1687
      %v1689 = vpop.f32.mrb[0].mxu0
      %1690 = vmatprep.mubr.bf16.mxu0 0
      %1691 = vmatmul.mubr.bf16.gmra.mrb[0].mxu0 %v1046
      %v1692 = vpop.f32.mrb[0].mxu0
      %v1693 = vadd.f32 0.0, %v1692
      %v1694 = vpop.f32.mrb[0].mxu0
      %v1695 = vpop.f32.mrb[0].mxu0
      %v1696 = vadd.f32 0.0, %v1695
      %v1697 = vpop.f32.mrb[0].mxu0
      %1698 = vmatprep.mubr.bf16.mxu0 0
      %1699 = vmatmul.mubr.bf16.gmra.mrb[0].mxu0 %v1047
      %v1700 = vpop.f32.mrb[0].mxu0
      %v1701 = vadd.f32 0.0, %v1700
      %v1702 = vpop.f32.mrb[0].mxu0
      %v1703 = vpop.f32.mrb[0].mxu0
      %v1704 = vadd.f32 0.0, %v1703
      %v1705 = vpop.f32.mrb[0].mxu0
      %1706 = vmatprep.mubr.bf16.mxu0 0
      %1707 = vmatmul.mubr.bf16.gmra.mrb[0].mxu0 %v1048
      %v1708 = vpop.f32.mrb[0].mxu0
      %v1709 = vadd.f32 0.0, %v1708
      %v1710 = vpop.f32.mrb[0].mxu0
      %v1711 = vpop.f32.mrb[0].mxu0
      %v1712 = vadd.f32 0.0, %v1711
      %v1713 = vpop.f32.mrb[0].mxu0
      %1714 = vmatprep.mubr.bf16.mxu0 0
      %1715 = vmatmul.mubr.bf16.gmra.mrb[0].mxu0 %v1049
      %v1716 = vpop.f32.mrb[0].mxu0
      %v1717 = vadd.f32 0.0, %v1716
      %v1718 = vpop.f32.mrb[0].mxu0
      %v1719 = vpop.f32.mrb[0].mxu0
      %v1720 = vadd.f32 0.0, %v1719
      %v1721 = vpop.f32.mrb[0].mxu0
      %1722 = vmatprep.mubr.bf16.mxu0 0
      %1723 = vmatmul.mubr.bf16.gmra.mrb[0].mxu0 %v1050
      %v1724 = vpop.f32.mrb[0].mxu0
      %v1725 = vadd.f32 0.0, %v1724
      %v1726 = vpop.f32.mrb[0].mxu0
      %v1727 = vpop.f32.mrb[0].mxu0
      %v1728 = vadd.f32 0.0, %v1727
      %v1729 = vpop.f32.mrb[0].mxu0
      %1730 = vmatprep.mubr.bf16.mxu0 0
      %1731 = vmatmul.mubr.bf16.gmra.mrb[0].mxu0 %v1051
      %v1732 = vpop.f32.mrb[0].mxu0
      %v1733 = vadd.f32 0.0, %v1732
      %v1734 = vpop.f32.mrb[0].mxu0
      %v1735 = vpop.f32.mrb[0].mxu0
      %v1736 = vadd.f32 0.0, %v1735
      %v1737 = vpop.f32.mrb[0].mxu0
      %1738 = vmatprep.mubr.bf16.mxu0 0
      %1739 = vmatmul.mubr.bf16.gmra.mrb[0].mxu0 %v1052
      %v1740 = vpop.f32.mrb[0].mxu0
      %v1741 = vadd.f32 0.0, %v1740
      %v1742 = vpop.f32.mrb[0].mxu0
      %v1743 = vpop.f32.mrb[0].mxu0
      %v1744 = vadd.f32 0.0, %v1743
      %v1745 = vpop.f32.mrb[0].mxu0
      %1746 = vmatprep.mubr.bf16.mxu0 0
      %1747 = vmatmul.mubr.bf16.gmra.mrb[0].mxu0 %v1053
      %v1748 = vpop.f32.mrb[0].mxu0
      %v1749 = vadd.f32 0.0, %v1748
      %v1750 = vpop.f32.mrb[0].mxu0
      %v1751 = vpop.f32.mrb[0].mxu0
      %v1752 = vadd.f32 0.0, %v1751
      %v1753 = vpop.f32.mrb[0].mxu0
      %1754 = vmatprep.mubr.bf16.mxu0 0
      %1755 = vmatmul.mubr.bf16.gmra.mrb[0].mxu0 %v1054
      %v1756 = vpop.f32.mrb[0].mxu0
      %v1757 = vadd.f32 0.0, %v1756
      %v1758 = vpop.f32.mrb[0].mxu0
      %v1759 = vpop.f32.mrb[0].mxu0
      %v1760 = vadd.f32 0.0, %v1759
      %v1761 = vpop.f32.mrb[0].mxu0
      %1762 = vmatprep.mubr.bf16.mxu0 0
      %1763 = vmatmul.mubr.bf16.gmra.mrb[0].mxu0 %v1055
      %v1764 = vpop.f32.mrb[0].mxu0
      %v1765 = vadd.f32 0.0, %v1764
      %v1766 = vpop.f32.mrb[0].mxu0
      %v1767 = vpop.f32.mrb[0].mxu0
      %v1768 = vadd.f32 0.0, %v1767
      %v1769 = vpop.f32.mrb[0].mxu0
      %1770 = vmatprep.mubr.bf16.mxu0 0
      %1771 = vmatmul.mubr.bf16.gmra.mrb[0].mxu0 %v1056
      %v1772 = vpop.f32.mrb[0].mxu0
      %v1773 = vadd.f32 0.0, %v1772
      %v1774 = vpop.f32.mrb[0].mxu0
      %v1775 = vpop.f32.mrb[0].mxu0
      %v1776 = vadd.f32 0.0, %v1775
      %v1777 = vpop.f32.mrb[0].mxu0
      %1778 = vmatprep.mubr.bf16.mxu0 0
      %1779 = vmatmul.mubr.bf16.gmra.mrb[0].mxu0 %v1057
      %v1780 = vpop.f32.mrb[0].mxu0
      %v1781 = vadd.f32 0.0, %v1780
      %v1782 = vpop.f32.mrb[0].mxu0
      %v1783 = vpop.f32.mrb[0].mxu0
      %v1784 = vadd.f32 0.0, %v1783
      %v1785 = vpop.f32.mrb[0].mxu0
      %1786 = vmatprep.mubr.bf16.mxu0 0
      %1787 = vmatmul.mubr.bf16.gmra.mrb[0].mxu0 %v1058
      %v1788 = vpop.f32.mrb[0].mxu0
      %v1789 = vadd.f32 0.0, %v1788
      %v1790 = vpop.f32.mrb[0].mxu0
      %v1791 = vpop.f32.mrb[0].mxu0
      %v1792 = vadd.f32 0.0, %v1791
      %v1793 = vpop.f32.mrb[0].mxu0
      %1794 = vmatprep.mubr.bf16.mxu0 0
      %1795 = vmatmul.mubr.bf16.gmra.mrb[0].mxu0 %v1059
      %v1796 = vpop.f32.mrb[0].mxu0
      %v1797 = vadd.f32 0.0, %v1796
      %v1798 = vpop.f32.mrb[0].mxu0
      %v1799 = vpop.f32.mrb[0].mxu0
      %v1800 = vadd.f32 0.0, %v1799
      %v1801 = vpop.f32.mrb[0].mxu0
      %1802 = vmatprep.mubr.bf16.mxu0 0
      %1803 = vmatmul.mubr.bf16.gmra.mrb[0].mxu0 %v1060
      %v1804 = vpop.f32.mrb[0].mxu0
      %v1805 = vadd.f32 0.0, %v1804
      %v1806 = vpop.f32.mrb[0].mxu0
      %v1807 = vpop.f32.mrb[0].mxu0
      %v1808 = vadd.f32 0.0, %v1807
      %v1809 = vpop.f32.mrb[0].mxu0
      %1810 = vmatprep.mubr.bf16.mxu0 0
      %1811 = vmatmul.mubr.bf16.gmra.mrb[0].mxu0 %v1061
      %v1812 = vpop.f32.mrb[0].mxu0
      %v1813 = vadd.f32 0.0, %v1812
      %v1814 = vpop.f32.mrb[0].mxu0
      %v1815 = vpop.f32.mrb[0].mxu0
      %v1816 = vadd.f32 0.0, %v1815
      %v1817 = vpop.f32.mrb[0].mxu0
      %1818 = vmatprep.mubr.bf16.mxu0 0
      %1819 = vmatmul.mubr.bf16.gmra.mrb[0].mxu0 %v1062
      %v1820 = vpop.f32.mrb[0].mxu0
      %v1821 = vadd.f32 0.0, %v1820
      %v1822 = vpop.f32.mrb[0].mxu0
      %v1823 = vpop.f32.mrb[0].mxu0
      %v1824 = vadd.f32 0.0, %v1823
      %v1825 = vpop.f32.mrb[0].mxu0
      %1826 = vmatprep.mubr.bf16.mxu0 0
      %1827 = vmatmul.mubr.bf16.gmra.mrb[0].mxu0 %v1063
      %v1828 = vpop.f32.mrb[0].mxu0
      %v1829 = vadd.f32 0.0, %v1828
      %v1830 = vpop.f32.mrb[0].mxu0
      %v1831 = vpop.f32.mrb[0].mxu0
      %v1832 = vadd.f32 0.0, %v1831
      %v1833 = vpop.f32.mrb[0].mxu0
      %1834 = vmatprep.mubr.bf16.mxu0 0
      %1835 = vmatmul.mubr.bf16.gmra.mrb[0].mxu0 %v1064
      %v1836 = vpop.f32.mrb[0].mxu0
      %v1837 = vadd.f32 0.0, %v1836
      %v1838 = vpop.f32.mrb[0].mxu0
      %v1839 = vpop.f32.mrb[0].mxu0
      %v1840 = vadd.f32 0.0, %v1839
      %v1841 = vpop.f32.mrb[0].mxu0
      %1842 = vmatprep.mubr.bf16.mxu0 0
      %1843 = vmatmul.mubr.bf16.gmra.mrb[0].mxu0 %v1065
      %v1844 = vpop.f32.mrb[0].mxu0
      %v1845 = vadd.f32 0.0, %v1844
      %v1846 = vpop.f32.mrb[0].mxu0
      %v1847 = vpop.f32.mrb[0].mxu0
      %v1848 = vadd.f32 0.0, %v1847
      %v1849 = vpop.f32.mrb[0].mxu0
      %1850 = vmatprep.mubr.bf16.mxu0 0
      %1851 = vmatmul.mubr.bf16.gmra.mrb[0].mxu0 %v1066
      %v1852 = vpop.f32.mrb[0].mxu0
      %v1853 = vadd.f32 0.0, %v1852
      %v1854 = vpop.f32.mrb[0].mxu0
      %v1855 = vpop.f32.mrb[0].mxu0
      %v1856 = vadd.f32 0.0, %v1855
      %v1857 = vpop.f32.mrb[0].mxu0
      %1858 = vmatprep.mubr.bf16.mxu0 0
      %1859 = vmatmul.mubr.bf16.gmra.mrb[0].mxu0 %v1067
      %v1860 = vpop.f32.mrb[0].mxu0
      %v1861 = vadd.f32 0.0, %v1860
      %v1862 = vpop.f32.mrb[0].mxu0
      %v1863 = vpop.f32.mrb[0].mxu0
      %v1864 = vadd.f32 0.0, %v1863
      %v1865 = vpop.f32.mrb[0].mxu0
      %1866 = vmatprep.mubr.bf16.mxu0 0
      %1867 = vmatmul.mubr.bf16.gmra.mrb[0].mxu0 %v1068
      %v1868 = vpop.f32.mrb[0].mxu0
      %v1869 = vadd.f32 0.0, %v1868
      %v1870 = vpop.f32.mrb[0].mxu0
      %v1871 = vpop.f32.mrb[0].mxu0
      %v1872 = vadd.f32 0.0, %v1871
      %v1873 = vpop.f32.mrb[0].mxu0
      %1874 = vmatprep.mubr.bf16.mxu0 0
      %1875 = vmatmul.mubr.bf16.gmra.mrb[0].mxu0 %v1069
      %v1876 = vpop.f32.mrb[0].mxu0
      %v1877 = vadd.f32 0.0, %v1876
      %v1878 = vpop.f32.mrb[0].mxu0
      %v1879 = vpop.f32.mrb[0].mxu0
      %v1880 = vadd.f32 0.0, %v1879
      %v1881 = vpop.f32.mrb[0].mxu0
      %1882 = vmatprep.mubr.bf16.mxu0 0
      %1883 = vmatmul.mubr.bf16.gmra.mrb[0].mxu0 %v1070
      %v1884 = vpop.f32.mrb[0].mxu0
      %v1885 = vadd.f32 0.0, %v1884
      %v1886 = vpop.f32.mrb[0].mxu0
      %v1887 = vpop.f32.mrb[0].mxu0
      %v1888 = vadd.f32 0.0, %v1887
      %v1889 = vpop.f32.mrb[0].mxu0
      %1890 = vdwg.mxu0
      %v1891 = vrot.slane %v1268, 1
      %v1892 = vrot.slane %v1272, 1
      %v1893 = vrot.slane %v1278, 1
      %v1894 = vrot.slane %v1282, 1
      %v1895 = vrot.slane %v1288, 1
      %v1896 = vrot.slane %v1292, 1
      %v1897 = vrot.slane %v1298, 1
      %v1898 = vrot.slane %v1302, 1
      %v1899 = vrot.slane %v1308, 1
      %v1900 = vrot.slane %v1312, 1
      %v1901 = vrot.slane %v1318, 1
      %v1902 = vrot.slane %v1322, 1
      %v1903 = vrot.slane %v1328, 1
      %v1904 = vrot.slane %v1332, 1
      %v1905 = vrot.slane %v1338, 1
      %v1906 = vrot.slane %v1342, 1
      %v1907 = vrot.slane %v1348, 1
      %v1908 = vrot.slane %v1352, 1
      %v1909 = vrot.slane %v1358, 1
      %v1910 = vrot.slane %v1362, 1
      %v1911 = vrot.slane %v1368, 1
      %v1912 = vrot.slane %v1372, 1
      %v1913 = vrot.slane %v1378, 1
      %v1914 = vrot.slane %v1382, 1
      %v1915 = vrot.slane %v1388, 1
      %v1916 = vrot.slane %v1392, 1
      %v1917 = vrot.slane %v1398, 1
      %v1918 = vrot.slane %v1402, 1
      %v1919 = vrot.slane %v1408, 1
      %v1920 = vrot.slane %v1412, 1
      %v1921 = vrot.slane %v1418, 1
      %v1922 = vrot.slane %v1422, 1
      %v1923 = vrot.slane %v1428, 1
      %v1924 = vrot.slane %v1432, 1
      %v1925 = vrot.slane %v1438, 1
      %v1926 = vrot.slane %v1442, 1
      %v1927 = vrot.slane %v1448, 1
      %v1928 = vrot.slane %v1452, 1
      %v1929 = vrot.slane %v1458, 1
      %v1930 = vrot.slane %v1462, 1
      %v1931 = vrot.slane %v1468, 1
      %v1932 = vrot.slane %v1472, 1
      %v1933 = vrot.slane %v1478, 1
      %v1934 = vrot.slane %v1482, 1
      %v1935 = vrot.slane %v1488, 1
      %v1936 = vrot.slane %v1492, 1
      %v1937 = vrot.slane %v1498, 1
      %v1938 = vrot.slane %v1502, 1
      %v1939 = vrot.slane %v1508, 1
      %v1940 = vrot.slane %v1512, 1
      %v1941 = vrot.slane %v1518, 1
      %v1942 = vrot.slane %v1522, 1
      %v1943 = vrot.slane %v1528, 1
      %v1944 = vrot.slane %v1532, 1
      %v1945 = vrot.slane %v1538, 1
      %v1946 = vrot.slane %v1542, 1
      %v1947 = vrot.slane %v1548, 1
      %v1948 = vrot.slane %v1552, 1
      %v1949 = vrot.slane %v1558, 1
      %v1950 = vrot.slane %v1562, 1
      %v1951 = vrot.slane %v1568, 1
      %v1952 = vrot.slane %v1572, 1
      %v1953 = vrot.slane %v1578, 1
      %v1954 = vrot.slane %v1582, 1
      %v1955 = vrot.slane %v1588, 1
      %v1956 = vrot.slane %v1592, 1
      %v1957 = vlaneseq
      %v1958 = vshrl.u32 %v1957, 7
      %vm1959 = vcmp.lt.s32.totalorder %v1958, 7
      %v1960 = vsel %vm1959, %v1955, %v1956
      %v1961 = vsel %vm1959, %v1954, %v1955
      %v1962 = vsel %vm1959, %v1953, %v1954
      %v1963 = vsel %vm1959, %v1952, %v1953
      %v1964 = vsel %vm1959, %v1951, %v1952
      %v1965 = vsel %vm1959, %v1950, %v1951
      %v1966 = vsel %vm1959, %v1949, %v1950
      %v1967 = vsel %vm1959, %v1948, %v1949
      %v1968 = vsel %vm1959, %v1947, %v1948
      %v1969 = vsel %vm1959, %v1946, %v1947
      %v1970 = vsel %vm1959, %v1945, %v1946
      %v1971 = vsel %vm1959, %v1944, %v1945
      %v1972 = vsel %vm1959, %v1943, %v1944
      %v1973 = vsel %vm1959, %v1942, %v1943
      %v1974 = vsel %vm1959, %v1941, %v1942
      %v1975 = vsel %vm1959, %v1940, %v1941
      %v1976 = vsel %vm1959, %v1939, %v1940
      %v1977 = vsel %vm1959, %v1938, %v1939
      %v1978 = vsel %vm1959, %v1937, %v1938
      %v1979 = vsel %vm1959, %v1936, %v1937
      %v1980 = vsel %vm1959, %v1935, %v1936
      %v1981 = vsel %vm1959, %v1934, %v1935
      %v1982 = vsel %vm1959, %v1933, %v1934
      %v1983 = vsel %vm1959, %v1932, %v1933
      %v1984 = vsel %vm1959, %v1931, %v1932
      %v1985 = vsel %vm1959, %v1930, %v1931
      %v1986 = vsel %vm1959, %v1929, %v1930
      %v1987 = vsel %vm1959, %v1928, %v1929
      %v1988 = vsel %vm1959, %v1927, %v1928
      %v1989 = vsel %vm1959, %v1926, %v1927
      %v1990 = vsel %vm1959, %v1925, %v1926
      %v1991 = vsel %vm1959, %v1924, %v1925
      %v1992 = vsel %vm1959, %v1923, %v1924
      %v1993 = vsel %vm1959, %v1922, %v1923
      %v1994 = vsel %vm1959, %v1921, %v1922
      %v1995 = vsel %vm1959, %v1920, %v1921
      %v1996 = vsel %vm1959, %v1919, %v1920
      %v1997 = vsel %vm1959, %v1918, %v1919
      %v1998 = vsel %vm1959, %v1917, %v1918
      %v1999 = vsel %vm1959, %v1916, %v1917
      %v2000 = vsel %vm1959, %v1915, %v1916
      %v2001 = vsel %vm1959, %v1914, %v1915
      %v2002 = vsel %vm1959, %v1913, %v1914
      %v2003 = vsel %vm1959, %v1912, %v1913
      %v2004 = vsel %vm1959, %v1911, %v1912
      %v2005 = vsel %vm1959, %v1910, %v1911
      %v2006 = vsel %vm1959, %v1909, %v1910
      %v2007 = vsel %vm1959, %v1908, %v1909
      %v2008 = vsel %vm1959, %v1907, %v1908
      %v2009 = vsel %vm1959, %v1906, %v1907
      %v2010 = vsel %vm1959, %v1905, %v1906
      %v2011 = vsel %vm1959, %v1904, %v1905
      %v2012 = vsel %vm1959, %v1903, %v1904
      %v2013 = vsel %vm1959, %v1902, %v1903
      %v2014 = vsel %vm1959, %v1901, %v1902
      %v2015 = vsel %vm1959, %v1900, %v1901
      %v2016 = vsel %vm1959, %v1899, %v1900
      %v2017 = vsel %vm1959, %v1898, %v1899
      %v2018 = vsel %vm1959, %v1897, %v1898
      %v2019 = vsel %vm1959, %v1896, %v1897
      %v2020 = vsel %vm1959, %v1895, %v1896
      %v2021 = vsel %vm1959, %v1894, %v1895
      %v2022 = vsel %vm1959, %v1893, %v1894
      %v2023 = vsel %vm1959, %v1892, %v1893
      %v2024 = vsel %vm1959, %v1891, %v1892
      %v2025 = vsel %vm1959, %v1956, %v1891
      %v2026 = vadd.f32 %v1266, %v2024
      %v2027 = vadd.f32 %v1270, %v2023
      %v2028 = vadd.f32 %v1276, %v2022
      %v2029 = vadd.f32 %v1280, %v2021
      %v2030 = vadd.f32 %v1286, %v2020
      %v2031 = vadd.f32 %v1290, %v2019
      %v2032 = vadd.f32 %v1296, %v2018
      %v2033 = vadd.f32 %v1300, %v2017
      %v2034 = vadd.f32 %v1306, %v2016
      %v2035 = vadd.f32 %v1310, %v2015
      %v2036 = vadd.f32 %v1316, %v2014
      %v2037 = vadd.f32 %v1320, %v2013
      %v2038 = vadd.f32 %v1326, %v2012
      %v2039 = vadd.f32 %v1330, %v2011
      %v2040 = vadd.f32 %v1336, %v2010
      %v2041 = vadd.f32 %v1340, %v2009
      %v2042 = vadd.f32 %v1346, %v2008
      %v2043 = vadd.f32 %v1350, %v2007
      %v2044 = vadd.f32 %v1356, %v2006
      %v2045 = vadd.f32 %v1360, %v2005
      %v2046 = vadd.f32 %v1366, %v2004
      %v2047 = vadd.f32 %v1370, %v2003
      %v2048 = vadd.f32 %v1376, %v2002
      %v2049 = vadd.f32 %v1380, %v2001
      %v2050 = vadd.f32 %v1386, %v2000
      %v2051 = vadd.f32 %v1390, %v1999
      %v2052 = vadd.f32 %v1396, %v1998
      %v2053 = vadd.f32 %v1400, %v1997
      %v2054 = vadd.f32 %v1406, %v1996
      %v2055 = vadd.f32 %v1410, %v1995
      %v2056 = vadd.f32 %v1416, %v1994
      %v2057 = vadd.f32 %v1420, %v1993
      %v2058 = vadd.f32 %v1426, %v1992
      %v2059 = vadd.f32 %v1430, %v1991
      %v2060 = vadd.f32 %v1436, %v1990
      %v2061 = vadd.f32 %v1440, %v1989
      %v2062 = vadd.f32 %v1446, %v1988
      %v2063 = vadd.f32 %v1450, %v1987
      %v2064 = vadd.f32 %v1456, %v1986
      %v2065 = vadd.f32 %v1460, %v1985
      %v2066 = vadd.f32 %v1466, %v1984
      %v2067 = vadd.f32 %v1470, %v1983
      %v2068 = vadd.f32 %v1476, %v1982
      %v2069 = vadd.f32 %v1480, %v1981
      %v2070 = vadd.f32 %v1486, %v1980
      %v2071 = vadd.f32 %v1490, %v1979
      %v2072 = vadd.f32 %v1496, %v1978
      %v2073 = vadd.f32 %v1500, %v1977
      %v2074 = vadd.f32 %v1506, %v1976
      %v2075 = vadd.f32 %v1510, %v1975
      %v2076 = vadd.f32 %v1516, %v1974
      %v2077 = vadd.f32 %v1520, %v1973
      %v2078 = vadd.f32 %v1526, %v1972
      %v2079 = vadd.f32 %v1530, %v1971
      %v2080 = vadd.f32 %v1536, %v1970
      %v2081 = vadd.f32 %v1540, %v1969
      %v2082 = vadd.f32 %v1546, %v1968
      %v2083 = vadd.f32 %v1550, %v1967
      %v2084 = vadd.f32 %v1556, %v1966
      %v2085 = vadd.f32 %v1560, %v1965
      %v2086 = vadd.f32 %v1566, %v1964
      %v2087 = vadd.f32 %v1570, %v1963
      %v2088 = vadd.f32 %v1576, %v1962
      %v2089 = vadd.f32 %v1580, %v1961
      %v2090 = vadd.f32 %v1586, %v1960
      %v2091 = vadd.f32 %v1590, %v2025
      %v2092 = vrot.slane %v1629, 2
      %v2093 = vrot.slane %v1632, 2
      %v2094 = vrot.slane %v1637, 2
      %v2095 = vrot.slane %v1640, 2
      %v2096 = vrot.slane %v1645, 2
      %v2097 = vrot.slane %v1648, 2
      %v2098 = vrot.slane %v1653, 2
      %v2099 = vrot.slane %v1656, 2
      %v2100 = vrot.slane %v1661, 2
      %v2101 = vrot.slane %v1664, 2
      %v2102 = vrot.slane %v1669, 2
      %v2103 = vrot.slane %v1672, 2
      %v2104 = vrot.slane %v1677, 2
      %v2105 = vrot.slane %v1680, 2
      %v2106 = vrot.slane %v1685, 2
      %v2107 = vrot.slane %v1688, 2
      %v2108 = vrot.slane %v1693, 2
      %v2109 = vrot.slane %v1696, 2
      %v2110 = vrot.slane %v1701, 2
      %v2111 = vrot.slane %v1704, 2
      %v2112 = vrot.slane %v1709, 2
      %v2113 = vrot.slane %v1712, 2
      %v2114 = vrot.slane %v1717, 2
      %v2115 = vrot.slane %v1720, 2
      %v2116 = vrot.slane %v1725, 2
      %v2117 = vrot.slane %v1728, 2
      %v2118 = vrot.slane %v1733, 2
      %v2119 = vrot.slane %v1736, 2
      %v2120 = vrot.slane %v1741, 2
      %v2121 = vrot.slane %v1744, 2
      %v2122 = vrot.slane %v1749, 2
      %v2123 = vrot.slane %v1752, 2
      %v2124 = vrot.slane %v1757, 2
      %v2125 = vrot.slane %v1760, 2
      %v2126 = vrot.slane %v1765, 2
      %v2127 = vrot.slane %v1768, 2
      %v2128 = vrot.slane %v1773, 2
      %v2129 = vrot.slane %v1776, 2
      %v2130 = vrot.slane %v1781, 2
      %v2131 = vrot.slane %v1784, 2
      %v2132 = vrot.slane %v1789, 2
      %v2133 = vrot.slane %v1792, 2
      %v2134 = vrot.slane %v1797, 2
      %v2135 = vrot.slane %v1800, 2
      %v2136 = vrot.slane %v1805, 2
      %v2137 = vrot.slane %v1808, 2
      %v2138 = vrot.slane %v1813, 2
      %v2139 = vrot.slane %v1816, 2
      %v2140 = vrot.slane %v1821, 2
      %v2141 = vrot.slane %v1824, 2
      %v2142 = vrot.slane %v1829, 2
      %v2143 = vrot.slane %v1832, 2
      %v2144 = vrot.slane %v1837, 2
      %v2145 = vrot.slane %v1840, 2
      %v2146 = vrot.slane %v1845, 2
      %v2147 = vrot.slane %v1848, 2
      %v2148 = vrot.slane %v1853, 2
      %v2149 = vrot.slane %v1856, 2
      %v2150 = vrot.slane %v1861, 2
      %v2151 = vrot.slane %v1864, 2
      %v2152 = vrot.slane %v1869, 2
      %v2153 = vrot.slane %v1872, 2
      %v2154 = vrot.slane %v1877, 2
      %v2155 = vrot.slane %v1880, 2
      %v2156 = vrot.slane %v1885, 2
      %v2157 = vrot.slane %v1888, 2
      %vm2158 = vcmp.lt.s32.totalorder %v1958, 6
      %v2159 = vsel %vm2158, %v2156, %v2157
      %v2160 = vsel %vm2158, %v2155, %v2156
      %v2161 = vsel %vm2158, %v2154, %v2155
      %v2162 = vsel %vm2158, %v2153, %v2154
      %v2163 = vsel %vm2158, %v2152, %v2153
      %v2164 = vsel %vm2158, %v2151, %v2152
      %v2165 = vsel %vm2158, %v2150, %v2151
      %v2166 = vsel %vm2158, %v2149, %v2150
      %v2167 = vsel %vm2158, %v2148, %v2149
      %v2168 = vsel %vm2158, %v2147, %v2148
      %v2169 = vsel %vm2158, %v2146, %v2147
      %v2170 = vsel %vm2158, %v2145, %v2146
      %v2171 = vsel %vm2158, %v2144, %v2145
      %v2172 = vsel %vm2158, %v2143, %v2144
      %v2173 = vsel %vm2158, %v2142, %v2143
      %v2174 = vsel %vm2158, %v2141, %v2142
      %v2175 = vsel %vm2158, %v2140, %v2141
      %v2176 = vsel %vm2158, %v2139, %v2140
      %v2177 = vsel %vm2158, %v2138, %v2139
      %v2178 = vsel %vm2158, %v2137, %v2138
      %v2179 = vsel %vm2158, %v2136, %v2137
      %v2180 = vsel %vm2158, %v2135, %v2136
      %v2181 = vsel %vm2158, %v2134, %v2135
      %v2182 = vsel %vm2158, %v2133, %v2134
      %v2183 = vsel %vm2158, %v2132, %v2133
      %v2184 = vsel %vm2158, %v2131, %v2132
      %v2185 = vsel %vm2158, %v2130, %v2131
      %v2186 = vsel %vm2158, %v2129, %v2130
      %v2187 = vsel %vm2158, %v2128, %v2129
      %v2188 = vsel %vm2158, %v2127, %v2128
      %v2189 = vsel %vm2158, %v2126, %v2127
      %v2190 = vsel %vm2158, %v2125, %v2126
      %v2191 = vsel %vm2158, %v2124, %v2125
      %v2192 = vsel %vm2158, %v2123, %v2124
      %v2193 = vsel %vm2158, %v2122, %v2123
      %v2194 = vsel %vm2158, %v2121, %v2122
      %v2195 = vsel %vm2158, %v2120, %v2121
      %v2196 = vsel %vm2158, %v2119, %v2120
      %v2197 = vsel %vm2158, %v2118, %v2119
      %v2198 = vsel %vm2158, %v2117, %v2118
      %v2199 = vsel %vm2158, %v2116, %v2117
      %v2200 = vsel %vm2158, %v2115, %v2116
      %v2201 = vsel %vm2158, %v2114, %v2115
      %v2202 = vsel %vm2158, %v2113, %v2114
      %v2203 = vsel %vm2158, %v2112, %v2113
      %v2204 = vsel %vm2158, %v2111, %v2112
      %v2205 = vsel %vm2158, %v2110, %v2111
      %v2206 = vsel %vm2158, %v2109, %v2110
      %v2207 = vsel %vm2158, %v2108, %v2109
      %v2208 = vsel %vm2158, %v2107, %v2108
      %v2209 = vsel %vm2158, %v2106, %v2107
      %v2210 = vsel %vm2158, %v2105, %v2106
      %v2211 = vsel %vm2158, %v2104, %v2105
      %v2212 = vsel %vm2158, %v2103, %v2104
      %v2213 = vsel %vm2158, %v2102, %v2103
      %v2214 = vsel %vm2158, %v2101, %v2102
      %v2215 = vsel %vm2158, %v2100, %v2101
      %v2216 = vsel %vm2158, %v2099, %v2100
      %v2217 = vsel %vm2158, %v2098, %v2099
      %v2218 = vsel %vm2158, %v2097, %v2098
      %v2219 = vsel %vm2158, %v2096, %v2097
      %v2220 = vsel %vm2158, %v2095, %v2096
      %v2221 = vsel %vm2158, %v2094, %v2095
      %v2222 = vsel %vm2158, %v2093, %v2094
      %v2223 = vsel %vm2158, %v2092, %v2093
      %v2224 = vsel %vm2158, %v2157, %v2092
      %v2225 = vadd.f32 %v2026, %v2223
      %v2226 = vadd.f32 %v2027, %v2222
      %v2227 = vadd.f32 %v2028, %v2221
      %v2228 = vadd.f32 %v2029, %v2220
      %v2229 = vadd.f32 %v2030, %v2219
      %v2230 = vadd.f32 %v2031, %v2218
      %v2231 = vadd.f32 %v2032, %v2217
      %v2232 = vadd.f32 %v2033, %v2216
      %v2233 = vadd.f32 %v2034, %v2215
      %v2234 = vadd.f32 %v2035, %v2214
      %v2235 = vadd.f32 %v2036, %v2213
      %v2236 = vadd.f32 %v2037, %v2212
      %v2237 = vadd.f32 %v2038, %v2211
      %v2238 = vadd.f32 %v2039, %v2210
      %v2239 = vadd.f32 %v2040, %v2209
      %v2240 = vadd.f32 %v2041, %v2208
      %v2241 = vadd.f32 %v2042, %v2207
      %v2242 = vadd.f32 %v2043, %v2206
      %v2243 = vadd.f32 %v2044, %v2205
      %v2244 = vadd.f32 %v2045, %v2204
      %v2245 = vadd.f32 %v2046, %v2203
      %v2246 = vadd.f32 %v2047, %v2202
      %v2247 = vadd.f32 %v2048, %v2201
      %v2248 = vadd.f32 %v2049, %v2200
      %v2249 = vadd.f32 %v2050, %v2199
      %v2250 = vadd.f32 %v2051, %v2198
      %v2251 = vadd.f32 %v2052, %v2197
      %v2252 = vadd.f32 %v2053, %v2196
      %v2253 = vadd.f32 %v2054, %v2195
      %v2254 = vadd.f32 %v2055, %v2194
      %v2255 = vadd.f32 %v2056, %v2193
      %v2256 = vadd.f32 %v2057, %v2192
      %v2257 = vadd.f32 %v2058, %v2191
      %v2258 = vadd.f32 %v2059, %v2190
      %v2259 = vadd.f32 %v2060, %v2189
      %v2260 = vadd.f32 %v2061, %v2188
      %v2261 = vadd.f32 %v2062, %v2187
      %v2262 = vadd.f32 %v2063, %v2186
      %v2263 = vadd.f32 %v2064, %v2185
      %v2264 = vadd.f32 %v2065, %v2184
      %v2265 = vadd.f32 %v2066, %v2183
      %v2266 = vadd.f32 %v2067, %v2182
      %v2267 = vadd.f32 %v2068, %v2181
      %v2268 = vadd.f32 %v2069, %v2180
      %v2269 = vadd.f32 %v2070, %v2179
      %v2270 = vadd.f32 %v2071, %v2178
      %v2271 = vadd.f32 %v2072, %v2177
      %v2272 = vadd.f32 %v2073, %v2176
      %v2273 = vadd.f32 %v2074, %v2175
      %v2274 = vadd.f32 %v2075, %v2174
      %v2275 = vadd.f32 %v2076, %v2173
      %v2276 = vadd.f32 %v2077, %v2172
      %v2277 = vadd.f32 %v2078, %v2171
      %v2278 = vadd.f32 %v2079, %v2170
      %v2279 = vadd.f32 %v2080, %v2169
      %v2280 = vadd.f32 %v2081, %v2168
      %v2281 = vadd.f32 %v2082, %v2167
      %v2282 = vadd.f32 %v2083, %v2166
      %v2283 = vadd.f32 %v2084, %v2165
      %v2284 = vadd.f32 %v2085, %v2164
      %v2285 = vadd.f32 %v2086, %v2163
      %v2286 = vadd.f32 %v2087, %v2162
      %v2287 = vadd.f32 %v2088, %v2161
      %v2288 = vadd.f32 %v2089, %v2160
      %v2289 = vadd.f32 %v2090, %v2159
      %v2290 = vadd.f32 %v2091, %v2224
      %v2291 = vld [vmem:[%s5] sm:$0x1]
      %v2293 = vlaneseq
      %v2294 = vshrl.u32 %v2293, 7
      %v2295 = vsub.s32 0, %v2294
      %v2296 = vrot.slane %v2291, %v2295
      %v2298 = vadd.f32 %v2225, %v2296
      %v2299 = vadd.f32 %v2226, %v2296
      %v2300 = vadd.f32 %v2227, %v2296
      %v2301 = vadd.f32 %v2228, %v2296
      %v2302 = vadd.f32 %v2229, %v2296
      %v2303 = vadd.f32 %v2230, %v2296
      %v2304 = vadd.f32 %v2231, %v2296
      %v2305 = vadd.f32 %v2232, %v2296
      %v2306 = vadd.f32 %v2233, %v2296
      %v2307 = vadd.f32 %v2234, %v2296
      %v2308 = vadd.f32 %v2235, %v2296
      %v2309 = vadd.f32 %v2236, %v2296
      %v2310 = vadd.f32 %v2237, %v2296
      %v2311 = vadd.f32 %v2238, %v2296
      %v2312 = vadd.f32 %v2239, %v2296
      %v2313 = vadd.f32 %v2240, %v2296
      %v2314 = vadd.f32 %v2241, %v2296
      %v2315 = vadd.f32 %v2242, %v2296
      %v2316 = vadd.f32 %v2243, %v2296
      %v2317 = vadd.f32 %v2244, %v2296
      %v2318 = vadd.f32 %v2245, %v2296
      %v2319 = vadd.f32 %v2246, %v2296
      %v2320 = vadd.f32 %v2247, %v2296
      %v2321 = vadd.f32 %v2248, %v2296
      %v2322 = vadd.f32 %v2249, %v2296
      %v2323 = vadd.f32 %v2250, %v2296
      %v2324 = vadd.f32 %v2251, %v2296
      %v2325 = vadd.f32 %v2252, %v2296
      %v2326 = vadd.f32 %v2253, %v2296
      %v2327 = vadd.f32 %v2254, %v2296
      %v2328 = vadd.f32 %v2255, %v2296
      %v2329 = vadd.f32 %v2256, %v2296
      %v2330 = vadd.f32 %v2257, %v2296
      %v2331 = vadd.f32 %v2258, %v2296
      %v2332 = vadd.f32 %v2259, %v2296
      %v2333 = vadd.f32 %v2260, %v2296
      %v2334 = vadd.f32 %v2261, %v2296
      %v2335 = vadd.f32 %v2262, %v2296
      %v2336 = vadd.f32 %v2263, %v2296
      %v2337 = vadd.f32 %v2264, %v2296
      %v2338 = vadd.f32 %v2265, %v2296
      %v2339 = vadd.f32 %v2266, %v2296
      %v2340 = vadd.f32 %v2267, %v2296
      %v2341 = vadd.f32 %v2268, %v2296
      %v2342 = vadd.f32 %v2269, %v2296
      %v2343 = vadd.f32 %v2270, %v2296
      %v2344 = vadd.f32 %v2271, %v2296
      %v2345 = vadd.f32 %v2272, %v2296
      %v2346 = vadd.f32 %v2273, %v2296
      %v2347 = vadd.f32 %v2274, %v2296
      %v2348 = vadd.f32 %v2275, %v2296
      %v2349 = vadd.f32 %v2276, %v2296
      %v2350 = vadd.f32 %v2277, %v2296
      %v2351 = vadd.f32 %v2278, %v2296
      %v2352 = vadd.f32 %v2279, %v2296
      %v2353 = vadd.f32 %v2280, %v2296
      %v2354 = vadd.f32 %v2281, %v2296
      %v2355 = vadd.f32 %v2282, %v2296
      %v2356 = vadd.f32 %v2283, %v2296
      %v2357 = vadd.f32 %v2284, %v2296
      %v2358 = vadd.f32 %v2285, %v2296
      %v2359 = vadd.f32 %v2286, %v2296
      %v2360 = vadd.f32 %v2287, %v2296
      %v2361 = vadd.f32 %v2288, %v2296
      %v2362 = vadd.f32 %v2289, %v2296
      %v2363 = vadd.f32 %v2290, %v2296
      %v2364 = vmax.f32 %v2298, 0.0
      %v2365 = vmax.f32 %v2299, 0.0
      %v2366 = vmax.f32 %v2300, 0.0
      %v2367 = vmax.f32 %v2301, 0.0
      %v2368 = vmax.f32 %v2302, 0.0
      %v2369 = vmax.f32 %v2303, 0.0
      %v2370 = vmax.f32 %v2304, 0.0
      %v2371 = vmax.f32 %v2305, 0.0
      %v2372 = vmax.f32 %v2306, 0.0
      %v2373 = vmax.f32 %v2307, 0.0
      %v2374 = vmax.f32 %v2308, 0.0
      %v2375 = vmax.f32 %v2309, 0.0
      %v2376 = vmax.f32 %v2310, 0.0
      %v2377 = vmax.f32 %v2311, 0.0
      %v2378 = vmax.f32 %v2312, 0.0
      %v2379 = vmax.f32 %v2313, 0.0
      %v2380 = vmax.f32 %v2314, 0.0
      %v2381 = vmax.f32 %v2315, 0.0
      %v2382 = vmax.f32 %v2316, 0.0
      %v2383 = vmax.f32 %v2317, 0.0
      %v2384 = vmax.f32 %v2318, 0.0
      %v2385 = vmax.f32 %v2319, 0.0
      %v2386 = vmax.f32 %v2320, 0.0
      %v2387 = vmax.f32 %v2321, 0.0
      %v2388 = vmax.f32 %v2322, 0.0
      %v2389 = vmax.f32 %v2323, 0.0
      %v2390 = vmax.f32 %v2324, 0.0
      %v2391 = vmax.f32 %v2325, 0.0
      %v2392 = vmax.f32 %v2326, 0.0
      %v2393 = vmax.f32 %v2327, 0.0
      %v2394 = vmax.f32 %v2328, 0.0
      %v2395 = vmax.f32 %v2329, 0.0
      %v2396 = vmax.f32 %v2330, 0.0
      %v2397 = vmax.f32 %v2331, 0.0
      %v2398 = vmax.f32 %v2332, 0.0
      %v2399 = vmax.f32 %v2333, 0.0
      %v2400 = vmax.f32 %v2334, 0.0
      %v2401 = vmax.f32 %v2335, 0.0
      %v2402 = vmax.f32 %v2336, 0.0
      %v2403 = vmax.f32 %v2337, 0.0
      %v2404 = vmax.f32 %v2338, 0.0
      %v2405 = vmax.f32 %v2339, 0.0
      %v2406 = vmax.f32 %v2340, 0.0
      %v2407 = vmax.f32 %v2341, 0.0
      %v2408 = vmax.f32 %v2342, 0.0
      %v2409 = vmax.f32 %v2343, 0.0
      %v2410 = vmax.f32 %v2344, 0.0
      %v2411 = vmax.f32 %v2345, 0.0
      %v2412 = vmax.f32 %v2346, 0.0
      %v2413 = vmax.f32 %v2347, 0.0
      %v2414 = vmax.f32 %v2348, 0.0
      %v2415 = vmax.f32 %v2349, 0.0
      %v2416 = vmax.f32 %v2350, 0.0
      %v2417 = vmax.f32 %v2351, 0.0
      %v2418 = vmax.f32 %v2352, 0.0
      %v2419 = vmax.f32 %v2353, 0.0
      %v2420 = vmax.f32 %v2354, 0.0
      %v2421 = vmax.f32 %v2355, 0.0
      %v2422 = vmax.f32 %v2356, 0.0
      %v2423 = vmax.f32 %v2357, 0.0
      %v2424 = vmax.f32 %v2358, 0.0
      %v2425 = vmax.f32 %v2359, 0.0
      %v2426 = vmax.f32 %v2360, 0.0
      %v2427 = vmax.f32 %v2361, 0.0
      %v2428 = vmax.f32 %v2362, 0.0
      %v2429 = vmax.f32 %v2363, 0.0
      %s2430 = smul.u32 %s19, 512
      %s2431 = ssub.s32 %s2430, 1
      %v2432 = vadd.s32 %v1958, 8
      %v2433 = vadd.s32 %v1958, 16
      %v2434 = vadd.s32 %v1958, 24
      %v2435 = vadd.s32 %v1958, 32
      %v2436 = vadd.s32 %v1958, 40
      %v2437 = vadd.s32 %v1958, 48
      %v2438 = vadd.s32 %v1958, 56
      %v2439 = vadd.s32 %v1958, 64
      %v2440 = vadd.s32 %v1958, 72
      %v2441 = vadd.s32 %v1958, 80
      %v2442 = vadd.s32 %v1958, 88
      %v2443 = vadd.s32 %v1958, 96
      %v2444 = vadd.s32 %v1958, 104
      %v2445 = vadd.s32 %v1958, 112
      %v2446 = vadd.s32 %v1958, 120
      %v2447 = vadd.s32 %v1958, 128
      %v2448 = vadd.s32 %v1958, 136
      %v2449 = vadd.s32 %v1958, 144
      %v2450 = vadd.s32 %v1958, 152
      %v2451 = vadd.s32 %v1958, 160
      %v2452 = vadd.s32 %v1958, 168
      %v2453 = vadd.s32 %v1958, 176
      %v2454 = vadd.s32 %v1958, 184
      %v2455 = vadd.s32 %v1958, 192
      %v2456 = vadd.s32 %v1958, 200
      %v2457 = vadd.s32 %v1958, 208
      %v2458 = vadd.s32 %v1958, 216
      %v2459 = vadd.s32 %v1958, 224
      %v2460 = vadd.s32 %v1958, 232
      %v2461 = vadd.s32 %v1958, 240
      %v2462 = vadd.s32 %v1958, 248
      %v2463 = vadd.s32 %v1958, 256
      %v2464 = vadd.s32 %v1958, 264
      %v2465 = vadd.s32 %v1958, 272
      %v2466 = vadd.s32 %v1958, 280
      %v2467 = vadd.s32 %v1958, 288
      %v2468 = vadd.s32 %v1958, 296
      %v2469 = vadd.s32 %v1958, 304
      %v2470 = vadd.s32 %v1958, 312
      %v2471 = vadd.s32 %v1958, 320
      %v2472 = vadd.s32 %v1958, 328
      %v2473 = vadd.s32 %v1958, 336
      %v2474 = vadd.s32 %v1958, 344
      %v2475 = vadd.s32 %v1958, 352
      %v2476 = vadd.s32 %v1958, 360
      %v2477 = vadd.s32 %v1958, 368
      %v2478 = vadd.s32 %v1958, 376
      %v2479 = vadd.s32 %v1958, 384
      %v2480 = vadd.s32 %v1958, 392
      %v2481 = vadd.s32 %v1958, 400
      %v2482 = vadd.s32 %v1958, 408
      %v2483 = vadd.s32 %v1958, 416
      %v2484 = vadd.s32 %v1958, 424
      %v2485 = vadd.s32 %v1958, 432
      %v2486 = vadd.s32 %v1958, 440
      %v2487 = vadd.s32 %v1958, 448
      %v2488 = vadd.s32 %v1958, 456
      %v2489 = vadd.s32 %v1958, 464
      %v2490 = vadd.s32 %v1958, 472
      %v2491 = vadd.s32 %v1958, 480
      %v2492 = vadd.s32 %v1958, 488
      %v2493 = vadd.s32 %v1958, 496
      %v2494 = vadd.s32 %v1958, 504
      %v2495 = vadd.s32 %v1958, 512
      %v2496 = vadd.s32 %v1958, 520
      %v2497 = vstv %s2431
      %v2498 = vadd.s32 %v2497, %v1958
      %v2499 = vadd.s32 %v2497, %v2432
      %v2500 = vadd.s32 %v2497, %v2433
      %v2501 = vadd.s32 %v2497, %v2434
      %v2502 = vadd.s32 %v2497, %v2435
      %v2503 = vadd.s32 %v2497, %v2436
      %v2504 = vadd.s32 %v2497, %v2437
      %v2505 = vadd.s32 %v2497, %v2438
      %v2506 = vadd.s32 %v2497, %v2439
      %v2507 = vadd.s32 %v2497, %v2440
      %v2508 = vadd.s32 %v2497, %v2441
      %v2509 = vadd.s32 %v2497, %v2442
      %v2510 = vadd.s32 %v2497, %v2443
      %v2511 = vadd.s32 %v2497, %v2444
      %v2512 = vadd.s32 %v2497, %v2445
      %v2513 = vadd.s32 %v2497, %v2446
      %v2514 = vadd.s32 %v2497, %v2447
      %v2515 = vadd.s32 %v2497, %v2448
      %v2516 = vadd.s32 %v2497, %v2449
      %v2517 = vadd.s32 %v2497, %v2450
      %v2518 = vadd.s32 %v2497, %v2451
      %v2519 = vadd.s32 %v2497, %v2452
      %v2520 = vadd.s32 %v2497, %v2453
      %v2521 = vadd.s32 %v2497, %v2454
      %v2522 = vadd.s32 %v2497, %v2455
      %v2523 = vadd.s32 %v2497, %v2456
      %v2524 = vadd.s32 %v2497, %v2457
      %v2525 = vadd.s32 %v2497, %v2458
      %v2526 = vadd.s32 %v2497, %v2459
      %v2527 = vadd.s32 %v2497, %v2460
      %v2528 = vadd.s32 %v2497, %v2461
      %v2529 = vadd.s32 %v2497, %v2462
      %v2530 = vadd.s32 %v2497, %v2463
      %v2531 = vadd.s32 %v2497, %v2464
      %v2532 = vadd.s32 %v2497, %v2465
      %v2533 = vadd.s32 %v2497, %v2466
      %v2534 = vadd.s32 %v2497, %v2467
      %v2535 = vadd.s32 %v2497, %v2468
      %v2536 = vadd.s32 %v2497, %v2469
      %v2537 = vadd.s32 %v2497, %v2470
      %v2538 = vadd.s32 %v2497, %v2471
      %v2539 = vadd.s32 %v2497, %v2472
      %v2540 = vadd.s32 %v2497, %v2473
      %v2541 = vadd.s32 %v2497, %v2474
      %v2542 = vadd.s32 %v2497, %v2475
      %v2543 = vadd.s32 %v2497, %v2476
      %v2544 = vadd.s32 %v2497, %v2477
      %v2545 = vadd.s32 %v2497, %v2478
      %v2546 = vadd.s32 %v2497, %v2479
      %v2547 = vadd.s32 %v2497, %v2480
      %v2548 = vadd.s32 %v2497, %v2481
      %v2549 = vadd.s32 %v2497, %v2482
      %v2550 = vadd.s32 %v2497, %v2483
      %v2551 = vadd.s32 %v2497, %v2484
      %v2552 = vadd.s32 %v2497, %v2485
      %v2553 = vadd.s32 %v2497, %v2486
      %v2554 = vadd.s32 %v2497, %v2487
      %v2555 = vadd.s32 %v2497, %v2488
      %v2556 = vadd.s32 %v2497, %v2489
      %v2557 = vadd.s32 %v2497, %v2490
      %v2558 = vadd.s32 %v2497, %v2491
      %v2559 = vadd.s32 %v2497, %v2492
      %v2560 = vadd.s32 %v2497, %v2493
      %v2561 = vadd.s32 %v2497, %v2494
      %v2562 = vadd.s32 %v2497, %v2495
      %v2563 = vadd.s32 %v2497, %v2496
      %vm2564 = vcmp.ge.s32.totalorder %v2498, 0
      %vm2565 = vcmp.ge.s32.totalorder %v2499, 0
      %vm2566 = vcmp.ge.s32.totalorder %v2500, 0
      %vm2567 = vcmp.ge.s32.totalorder %v2501, 0
      %vm2568 = vcmp.ge.s32.totalorder %v2502, 0
      %vm2569 = vcmp.ge.s32.totalorder %v2503, 0
      %vm2570 = vcmp.ge.s32.totalorder %v2504, 0
      %vm2571 = vcmp.ge.s32.totalorder %v2505, 0
      %vm2572 = vcmp.ge.s32.totalorder %v2506, 0
      %vm2573 = vcmp.ge.s32.totalorder %v2507, 0
      %vm2574 = vcmp.ge.s32.totalorder %v2508, 0
      %vm2575 = vcmp.ge.s32.totalorder %v2509, 0
      %vm2576 = vcmp.ge.s32.totalorder %v2510, 0
      %vm2577 = vcmp.ge.s32.totalorder %v2511, 0
      %vm2578 = vcmp.ge.s32.totalorder %v2512, 0
      %vm2579 = vcmp.ge.s32.totalorder %v2513, 0
      %vm2580 = vcmp.ge.s32.totalorder %v2514, 0
      %vm2581 = vcmp.ge.s32.totalorder %v2515, 0
      %vm2582 = vcmp.ge.s32.totalorder %v2516, 0
      %vm2583 = vcmp.ge.s32.totalorder %v2517, 0
      %vm2584 = vcmp.ge.s32.totalorder %v2518, 0
      %vm2585 = vcmp.ge.s32.totalorder %v2519, 0
      %vm2586 = vcmp.ge.s32.totalorder %v2520, 0
      %vm2587 = vcmp.ge.s32.totalorder %v2521, 0
      %vm2588 = vcmp.ge.s32.totalorder %v2522, 0
      %vm2589 = vcmp.ge.s32.totalorder %v2523, 0
      %vm2590 = vcmp.ge.s32.totalorder %v2524, 0
      %vm2591 = vcmp.ge.s32.totalorder %v2525, 0
      %vm2592 = vcmp.ge.s32.totalorder %v2526, 0
      %vm2593 = vcmp.ge.s32.totalorder %v2527, 0
      %vm2594 = vcmp.ge.s32.totalorder %v2528, 0
      %vm2595 = vcmp.ge.s32.totalorder %v2529, 0
      %vm2596 = vcmp.ge.s32.totalorder %v2530, 0
      %vm2597 = vcmp.ge.s32.totalorder %v2531, 0
      %vm2598 = vcmp.ge.s32.totalorder %v2532, 0
      %vm2599 = vcmp.ge.s32.totalorder %v2533, 0
      %vm2600 = vcmp.ge.s32.totalorder %v2534, 0
      %vm2601 = vcmp.ge.s32.totalorder %v2535, 0
      %vm2602 = vcmp.ge.s32.totalorder %v2536, 0
      %vm2603 = vcmp.ge.s32.totalorder %v2537, 0
      %vm2604 = vcmp.ge.s32.totalorder %v2538, 0
      %vm2605 = vcmp.ge.s32.totalorder %v2539, 0
      %vm2606 = vcmp.ge.s32.totalorder %v2540, 0
      %vm2607 = vcmp.ge.s32.totalorder %v2541, 0
      %vm2608 = vcmp.ge.s32.totalorder %v2542, 0
      %vm2609 = vcmp.ge.s32.totalorder %v2543, 0
      %vm2610 = vcmp.ge.s32.totalorder %v2544, 0
      %vm2611 = vcmp.ge.s32.totalorder %v2545, 0
      %vm2612 = vcmp.ge.s32.totalorder %v2546, 0
      %vm2613 = vcmp.ge.s32.totalorder %v2547, 0
      %vm2614 = vcmp.ge.s32.totalorder %v2548, 0
      %vm2615 = vcmp.ge.s32.totalorder %v2549, 0
      %vm2616 = vcmp.ge.s32.totalorder %v2550, 0
      %vm2617 = vcmp.ge.s32.totalorder %v2551, 0
      %vm2618 = vcmp.ge.s32.totalorder %v2552, 0
      %vm2619 = vcmp.ge.s32.totalorder %v2553, 0
      %vm2620 = vcmp.ge.s32.totalorder %v2554, 0
      %vm2621 = vcmp.ge.s32.totalorder %v2555, 0
      %vm2622 = vcmp.ge.s32.totalorder %v2556, 0
      %vm2623 = vcmp.ge.s32.totalorder %v2557, 0
      %vm2624 = vcmp.ge.s32.totalorder %v2558, 0
      %vm2625 = vcmp.ge.s32.totalorder %v2559, 0
      %vm2626 = vcmp.ge.s32.totalorder %v2560, 0
      %vm2627 = vcmp.ge.s32.totalorder %v2561, 0
      %vm2628 = vcmp.ge.s32.totalorder %v2562, 0
      %vm2629 = vcmp.ge.s32.totalorder %v2563, 0
      %vm2630 = vcmp.lt.s32.totalorder %v2498, 2000
      %vm2631 = vcmp.lt.s32.totalorder %v2499, 2000
      %vm2632 = vcmp.lt.s32.totalorder %v2500, 2000
      %vm2633 = vcmp.lt.s32.totalorder %v2501, 2000
      %vm2634 = vcmp.lt.s32.totalorder %v2502, 2000
      %vm2635 = vcmp.lt.s32.totalorder %v2503, 2000
      %vm2636 = vcmp.lt.s32.totalorder %v2504, 2000
      %vm2637 = vcmp.lt.s32.totalorder %v2505, 2000
      %vm2638 = vcmp.lt.s32.totalorder %v2506, 2000
      %vm2639 = vcmp.lt.s32.totalorder %v2507, 2000
      %vm2640 = vcmp.lt.s32.totalorder %v2508, 2000
      %vm2641 = vcmp.lt.s32.totalorder %v2509, 2000
      %vm2642 = vcmp.lt.s32.totalorder %v2510, 2000
      %vm2643 = vcmp.lt.s32.totalorder %v2511, 2000
      %vm2644 = vcmp.lt.s32.totalorder %v2512, 2000
      %vm2645 = vcmp.lt.s32.totalorder %v2513, 2000
      %vm2646 = vcmp.lt.s32.totalorder %v2514, 2000
      %vm2647 = vcmp.lt.s32.totalorder %v2515, 2000
      %vm2648 = vcmp.lt.s32.totalorder %v2516, 2000
      %vm2649 = vcmp.lt.s32.totalorder %v2517, 2000
      %vm2650 = vcmp.lt.s32.totalorder %v2518, 2000
      %vm2651 = vcmp.lt.s32.totalorder %v2519, 2000
      %vm2652 = vcmp.lt.s32.totalorder %v2520, 2000
      %vm2653 = vcmp.lt.s32.totalorder %v2521, 2000
      %vm2654 = vcmp.lt.s32.totalorder %v2522, 2000
      %vm2655 = vcmp.lt.s32.totalorder %v2523, 2000
      %vm2656 = vcmp.lt.s32.totalorder %v2524, 2000
      %vm2657 = vcmp.lt.s32.totalorder %v2525, 2000
      %vm2658 = vcmp.lt.s32.totalorder %v2526, 2000
      %vm2659 = vcmp.lt.s32.totalorder %v2527, 2000
      %vm2660 = vcmp.lt.s32.totalorder %v2528, 2000
      %vm2661 = vcmp.lt.s32.totalorder %v2529, 2000
      %vm2662 = vcmp.lt.s32.totalorder %v2530, 2000
      %vm2663 = vcmp.lt.s32.totalorder %v2531, 2000
      %vm2664 = vcmp.lt.s32.totalorder %v2532, 2000
      %vm2665 = vcmp.lt.s32.totalorder %v2533, 2000
      %vm2666 = vcmp.lt.s32.totalorder %v2534, 2000
      %vm2667 = vcmp.lt.s32.totalorder %v2535, 2000
      %vm2668 = vcmp.lt.s32.totalorder %v2536, 2000
      %vm2669 = vcmp.lt.s32.totalorder %v2537, 2000
      %vm2670 = vcmp.lt.s32.totalorder %v2538, 2000
      %vm2671 = vcmp.lt.s32.totalorder %v2539, 2000
      %vm2672 = vcmp.lt.s32.totalorder %v2540, 2000
      %vm2673 = vcmp.lt.s32.totalorder %v2541, 2000
      %vm2674 = vcmp.lt.s32.totalorder %v2542, 2000
      %vm2675 = vcmp.lt.s32.totalorder %v2543, 2000
      %vm2676 = vcmp.lt.s32.totalorder %v2544, 2000
      %vm2677 = vcmp.lt.s32.totalorder %v2545, 2000
      %vm2678 = vcmp.lt.s32.totalorder %v2546, 2000
      %vm2679 = vcmp.lt.s32.totalorder %v2547, 2000
      %vm2680 = vcmp.lt.s32.totalorder %v2548, 2000
      %vm2681 = vcmp.lt.s32.totalorder %v2549, 2000
      %vm2682 = vcmp.lt.s32.totalorder %v2550, 2000
      %vm2683 = vcmp.lt.s32.totalorder %v2551, 2000
      %vm2684 = vcmp.lt.s32.totalorder %v2552, 2000
      %vm2685 = vcmp.lt.s32.totalorder %v2553, 2000
      %vm2686 = vcmp.lt.s32.totalorder %v2554, 2000
      %vm2687 = vcmp.lt.s32.totalorder %v2555, 2000
      %vm2688 = vcmp.lt.s32.totalorder %v2556, 2000
      %vm2689 = vcmp.lt.s32.totalorder %v2557, 2000
      %vm2690 = vcmp.lt.s32.totalorder %v2558, 2000
      %vm2691 = vcmp.lt.s32.totalorder %v2559, 2000
      %vm2692 = vcmp.lt.s32.totalorder %v2560, 2000
      %vm2693 = vcmp.lt.s32.totalorder %v2561, 2000
      %vm2694 = vcmp.lt.s32.totalorder %v2562, 2000
      %vm2695 = vcmp.lt.s32.totalorder %v2563, 2000
      %vm2696 = vmand %vm2564, %vm2630
      %vm2697 = vmand %vm2565, %vm2631
      %vm2698 = vmand %vm2566, %vm2632
      %vm2699 = vmand %vm2567, %vm2633
      %vm2700 = vmand %vm2568, %vm2634
      %vm2701 = vmand %vm2569, %vm2635
      %vm2702 = vmand %vm2570, %vm2636
      %vm2703 = vmand %vm2571, %vm2637
      %vm2704 = vmand %vm2572, %vm2638
      %vm2705 = vmand %vm2573, %vm2639
      %vm2706 = vmand %vm2574, %vm2640
      %vm2707 = vmand %vm2575, %vm2641
      %vm2708 = vmand %vm2576, %vm2642
      %vm2709 = vmand %vm2577, %vm2643
      %vm2710 = vmand %vm2578, %vm2644
      %vm2711 = vmand %vm2579, %vm2645
      %vm2712 = vmand %vm2580, %vm2646
      %vm2713 = vmand %vm2581, %vm2647
      %vm2714 = vmand %vm2582, %vm2648
      %vm2715 = vmand %vm2583, %vm2649
      %vm2716 = vmand %vm2584, %vm2650
      %vm2717 = vmand %vm2585, %vm2651
      %vm2718 = vmand %vm2586, %vm2652
      %vm2719 = vmand %vm2587, %vm2653
      %vm2720 = vmand %vm2588, %vm2654
      %vm2721 = vmand %vm2589, %vm2655
      %vm2722 = vmand %vm2590, %vm2656
      %vm2723 = vmand %vm2591, %vm2657
      %vm2724 = vmand %vm2592, %vm2658
      %vm2725 = vmand %vm2593, %vm2659
      %vm2726 = vmand %vm2594, %vm2660
      %vm2727 = vmand %vm2595, %vm2661
      %vm2728 = vmand %vm2596, %vm2662
      %vm2729 = vmand %vm2597, %vm2663
      %vm2730 = vmand %vm2598, %vm2664
      %vm2731 = vmand %vm2599, %vm2665
      %vm2732 = vmand %vm2600, %vm2666
      %vm2733 = vmand %vm2601, %vm2667
      %vm2734 = vmand %vm2602, %vm2668
      %vm2735 = vmand %vm2603, %vm2669
      %vm2736 = vmand %vm2604, %vm2670
      %vm2737 = vmand %vm2605, %vm2671
      %vm2738 = vmand %vm2606, %vm2672
      %vm2739 = vmand %vm2607, %vm2673
      %vm2740 = vmand %vm2608, %vm2674
      %vm2741 = vmand %vm2609, %vm2675
      %vm2742 = vmand %vm2610, %vm2676
      %vm2743 = vmand %vm2611, %vm2677
      %vm2744 = vmand %vm2612, %vm2678
      %vm2745 = vmand %vm2613, %vm2679
      %vm2746 = vmand %vm2614, %vm2680
      %vm2747 = vmand %vm2615, %vm2681
      %vm2748 = vmand %vm2616, %vm2682
      %vm2749 = vmand %vm2617, %vm2683
      %vm2750 = vmand %vm2618, %vm2684
      %vm2751 = vmand %vm2619, %vm2685
      %vm2752 = vmand %vm2620, %vm2686
      %vm2753 = vmand %vm2621, %vm2687
      %vm2754 = vmand %vm2622, %vm2688
      %vm2755 = vmand %vm2623, %vm2689
      %vm2756 = vmand %vm2624, %vm2690
      %vm2757 = vmand %vm2625, %vm2691
      %vm2758 = vmand %vm2626, %vm2692
      %vm2759 = vmand %vm2627, %vm2693
      %vm2760 = vmand %vm2628, %vm2694
      %vm2761 = vmand %vm2629, %vm2695
      %v2762 = vsel %vm2696, 1, 0
      %v2763 = vsel %vm2697, 1, 0
      %v2764 = vsel %vm2698, 1, 0
      %v2765 = vsel %vm2699, 1, 0
      %v2766 = vsel %vm2700, 1, 0
      %v2767 = vsel %vm2701, 1, 0
      %v2768 = vsel %vm2702, 1, 0
      %v2769 = vsel %vm2703, 1, 0
      %v2770 = vsel %vm2704, 1, 0
      %v2771 = vsel %vm2705, 1, 0
      %v2772 = vsel %vm2706, 1, 0
      %v2773 = vsel %vm2707, 1, 0
      %v2774 = vsel %vm2708, 1, 0
      %v2775 = vsel %vm2709, 1, 0
      %v2776 = vsel %vm2710, 1, 0
      %v2777 = vsel %vm2711, 1, 0
      %v2778 = vsel %vm2712, 1, 0
      %v2779 = vsel %vm2713, 1, 0
      %v2780 = vsel %vm2714, 1, 0
      %v2781 = vsel %vm2715, 1, 0
      %v2782 = vsel %vm2716, 1, 0
      %v2783 = vsel %vm2717, 1, 0
      %v2784 = vsel %vm2718, 1, 0
      %v2785 = vsel %vm2719, 1, 0
      %v2786 = vsel %vm2720, 1, 0
      %v2787 = vsel %vm2721, 1, 0
      %v2788 = vsel %vm2722, 1, 0
      %v2789 = vsel %vm2723, 1, 0
      %v2790 = vsel %vm2724, 1, 0
      %v2791 = vsel %vm2725, 1, 0
      %v2792 = vsel %vm2726, 1, 0
      %v2793 = vsel %vm2727, 1, 0
      %v2794 = vsel %vm2728, 1, 0
      %v2795 = vsel %vm2729, 1, 0
      %v2796 = vsel %vm2730, 1, 0
      %v2797 = vsel %vm2731, 1, 0
      %v2798 = vsel %vm2732, 1, 0
      %v2799 = vsel %vm2733, 1, 0
      %v2800 = vsel %vm2734, 1, 0
      %v2801 = vsel %vm2735, 1, 0
      %v2802 = vsel %vm2736, 1, 0
      %v2803 = vsel %vm2737, 1, 0
      %v2804 = vsel %vm2738, 1, 0
      %v2805 = vsel %vm2739, 1, 0
      %v2806 = vsel %vm2740, 1, 0
      %v2807 = vsel %vm2741, 1, 0
      %v2808 = vsel %vm2742, 1, 0
      %v2809 = vsel %vm2743, 1, 0
      %v2810 = vsel %vm2744, 1, 0
      %v2811 = vsel %vm2745, 1, 0
      %v2812 = vsel %vm2746, 1, 0
      %v2813 = vsel %vm2747, 1, 0
      %v2814 = vsel %vm2748, 1, 0
      %v2815 = vsel %vm2749, 1, 0
      %v2816 = vsel %vm2750, 1, 0
      %v2817 = vsel %vm2751, 1, 0
      %v2818 = vsel %vm2752, 1, 0
      %v2819 = vsel %vm2753, 1, 0
      %v2820 = vsel %vm2754, 1, 0
      %v2821 = vsel %vm2755, 1, 0
      %v2822 = vsel %vm2756, 1, 0
      %v2823 = vsel %vm2757, 1, 0
      %v2824 = vsel %vm2758, 1, 0
      %v2825 = vsel %vm2759, 1, 0
      %v2826 = vsel %vm2760, 1, 0
      %v2827 = vsel %vm2761, 1, 0
      %vm2828 = vcmp.eq.s32.totalorder %v2762, 1
      %vm2829 = vcmp.eq.s32.totalorder %v2763, 1
      %vm2830 = vcmp.eq.s32.totalorder %v2764, 1
      %vm2831 = vcmp.eq.s32.totalorder %v2765, 1
      %vm2832 = vcmp.eq.s32.totalorder %v2766, 1
      %vm2833 = vcmp.eq.s32.totalorder %v2767, 1
      %vm2834 = vcmp.eq.s32.totalorder %v2768, 1
      %vm2835 = vcmp.eq.s32.totalorder %v2769, 1
      %vm2836 = vcmp.eq.s32.totalorder %v2770, 1
      %vm2837 = vcmp.eq.s32.totalorder %v2771, 1
      %vm2838 = vcmp.eq.s32.totalorder %v2772, 1
      %vm2839 = vcmp.eq.s32.totalorder %v2773, 1
      %vm2840 = vcmp.eq.s32.totalorder %v2774, 1
      %vm2841 = vcmp.eq.s32.totalorder %v2775, 1
      %vm2842 = vcmp.eq.s32.totalorder %v2776, 1
      %vm2843 = vcmp.eq.s32.totalorder %v2777, 1
      %vm2844 = vcmp.eq.s32.totalorder %v2778, 1
      %vm2845 = vcmp.eq.s32.totalorder %v2779, 1
      %vm2846 = vcmp.eq.s32.totalorder %v2780, 1
      %vm2847 = vcmp.eq.s32.totalorder %v2781, 1
      %vm2848 = vcmp.eq.s32.totalorder %v2782, 1
      %vm2849 = vcmp.eq.s32.totalorder %v2783, 1
      %vm2850 = vcmp.eq.s32.totalorder %v2784, 1
      %vm2851 = vcmp.eq.s32.totalorder %v2785, 1
      %vm2852 = vcmp.eq.s32.totalorder %v2786, 1
      %vm2853 = vcmp.eq.s32.totalorder %v2787, 1
      %vm2854 = vcmp.eq.s32.totalorder %v2788, 1
      %vm2855 = vcmp.eq.s32.totalorder %v2789, 1
      %vm2856 = vcmp.eq.s32.totalorder %v2790, 1
      %vm2857 = vcmp.eq.s32.totalorder %v2791, 1
      %vm2858 = vcmp.eq.s32.totalorder %v2792, 1
      %vm2859 = vcmp.eq.s32.totalorder %v2793, 1
      %vm2860 = vcmp.eq.s32.totalorder %v2794, 1
      %vm2861 = vcmp.eq.s32.totalorder %v2795, 1
      %vm2862 = vcmp.eq.s32.totalorder %v2796, 1
      %vm2863 = vcmp.eq.s32.totalorder %v2797, 1
      %vm2864 = vcmp.eq.s32.totalorder %v2798, 1
      %vm2865 = vcmp.eq.s32.totalorder %v2799, 1
      %vm2866 = vcmp.eq.s32.totalorder %v2800, 1
      %vm2867 = vcmp.eq.s32.totalorder %v2801, 1
      %vm2868 = vcmp.eq.s32.totalorder %v2802, 1
      %vm2869 = vcmp.eq.s32.totalorder %v2803, 1
      %vm2870 = vcmp.eq.s32.totalorder %v2804, 1
      %vm2871 = vcmp.eq.s32.totalorder %v2805, 1
      %vm2872 = vcmp.eq.s32.totalorder %v2806, 1
      %vm2873 = vcmp.eq.s32.totalorder %v2807, 1
      %vm2874 = vcmp.eq.s32.totalorder %v2808, 1
      %vm2875 = vcmp.eq.s32.totalorder %v2809, 1
      %vm2876 = vcmp.eq.s32.totalorder %v2810, 1
      %vm2877 = vcmp.eq.s32.totalorder %v2811, 1
      %vm2878 = vcmp.eq.s32.totalorder %v2812, 1
      %vm2879 = vcmp.eq.s32.totalorder %v2813, 1
      %vm2880 = vcmp.eq.s32.totalorder %v2814, 1
      %vm2881 = vcmp.eq.s32.totalorder %v2815, 1
      %vm2882 = vcmp.eq.s32.totalorder %v2816, 1
      %vm2883 = vcmp.eq.s32.totalorder %v2817, 1
      %vm2884 = vcmp.eq.s32.totalorder %v2818, 1
      %vm2885 = vcmp.eq.s32.totalorder %v2819, 1
      %vm2886 = vcmp.eq.s32.totalorder %v2820, 1
      %vm2887 = vcmp.eq.s32.totalorder %v2821, 1
      %vm2888 = vcmp.eq.s32.totalorder %v2822, 1
      %vm2889 = vcmp.eq.s32.totalorder %v2823, 1
      %vm2890 = vcmp.eq.s32.totalorder %v2824, 1
      %vm2891 = vcmp.eq.s32.totalorder %v2825, 1
      %vm2892 = vcmp.eq.s32.totalorder %v2826, 1
      %vm2893 = vcmp.eq.s32.totalorder %v2827, 1
      %v2894 = vsel %vm2828, %v2364, 0.0
      %v2895 = vsel %vm2829, %v2365, 0.0
      %v2896 = vsel %vm2830, %v2366, 0.0
      %v2897 = vsel %vm2831, %v2367, 0.0
      %v2898 = vsel %vm2832, %v2368, 0.0
      %v2899 = vsel %vm2833, %v2369, 0.0
      %v2900 = vsel %vm2834, %v2370, 0.0
      %v2901 = vsel %vm2835, %v2371, 0.0
      %v2902 = vsel %vm2836, %v2372, 0.0
      %v2903 = vsel %vm2837, %v2373, 0.0
      %v2904 = vsel %vm2838, %v2374, 0.0
      %v2905 = vsel %vm2839, %v2375, 0.0
      %v2906 = vsel %vm2840, %v2376, 0.0
      %v2907 = vsel %vm2841, %v2377, 0.0
      %v2908 = vsel %vm2842, %v2378, 0.0
      %v2909 = vsel %vm2843, %v2379, 0.0
      %v2910 = vsel %vm2844, %v2380, 0.0
      %v2911 = vsel %vm2845, %v2381, 0.0
      %v2912 = vsel %vm2846, %v2382, 0.0
      %v2913 = vsel %vm2847, %v2383, 0.0
      %v2914 = vsel %vm2848, %v2384, 0.0
      %v2915 = vsel %vm2849, %v2385, 0.0
      %v2916 = vsel %vm2850, %v2386, 0.0
      %v2917 = vsel %vm2851, %v2387, 0.0
      %v2918 = vsel %vm2852, %v2388, 0.0
      %v2919 = vsel %vm2853, %v2389, 0.0
      %v2920 = vsel %vm2854, %v2390, 0.0
      %v2921 = vsel %vm2855, %v2391, 0.0
      %v2922 = vsel %vm2856, %v2392, 0.0
      %v2923 = vsel %vm2857, %v2393, 0.0
      %v2924 = vsel %vm2858, %v2394, 0.0
      %v2925 = vsel %vm2859, %v2395, 0.0
      %v2926 = vsel %vm2860, %v2396, 0.0
      %v2927 = vsel %vm2861, %v2397, 0.0
      %v2928 = vsel %vm2862, %v2398, 0.0
      %v2929 = vsel %vm2863, %v2399, 0.0
      %v2930 = vsel %vm2864, %v2400, 0.0
      %v2931 = vsel %vm2865, %v2401, 0.0
      %v2932 = vsel %vm2866, %v2402, 0.0
      %v2933 = vsel %vm2867, %v2403, 0.0
      %v2934 = vsel %vm2868, %v2404, 0.0
      %v2935 = vsel %vm2869, %v2405, 0.0
      %v2936 = vsel %vm2870, %v2406, 0.0
      %v2937 = vsel %vm2871, %v2407, 0.0
      %v2938 = vsel %vm2872, %v2408, 0.0
      %v2939 = vsel %vm2873, %v2409, 0.0
      %v2940 = vsel %vm2874, %v2410, 0.0
      %v2941 = vsel %vm2875, %v2411, 0.0
      %v2942 = vsel %vm2876, %v2412, 0.0
      %v2943 = vsel %vm2877, %v2413, 0.0
      %v2944 = vsel %vm2878, %v2414, 0.0
      %v2945 = vsel %vm2879, %v2415, 0.0
      %v2946 = vsel %vm2880, %v2416, 0.0
      %v2947 = vsel %vm2881, %v2417, 0.0
      %v2948 = vsel %vm2882, %v2418, 0.0
      %v2949 = vsel %vm2883, %v2419, 0.0
      %v2950 = vsel %vm2884, %v2420, 0.0
      %v2951 = vsel %vm2885, %v2421, 0.0
      %v2952 = vsel %vm2886, %v2422, 0.0
      %v2953 = vsel %vm2887, %v2423, 0.0
      %v2954 = vsel %vm2888, %v2424, 0.0
      %v2955 = vsel %vm2889, %v2425, 0.0
      %v2956 = vsel %vm2890, %v2426, 0.0
      %v2957 = vsel %vm2891, %v2427, 0.0
      %v2958 = vsel %vm2892, %v2428, 0.0
      %v2959 = vsel %vm2893, %v2429, 0.0
      %v2960 = vpack.c.bf16 %v2895, %v2894
      %v2961 = vpack.c.bf16 %v2897, %v2896
      %v2962 = vpack.c.bf16 %v2899, %v2898
      %v2963 = vpack.c.bf16 %v2901, %v2900
      %v2964 = vpack.c.bf16 %v2903, %v2902
      %v2965 = vpack.c.bf16 %v2905, %v2904
      %v2966 = vpack.c.bf16 %v2907, %v2906
      %v2967 = vpack.c.bf16 %v2909, %v2908
      %v2968 = vpack.c.bf16 %v2911, %v2910
      %v2969 = vpack.c.bf16 %v2913, %v2912
      %v2970 = vpack.c.bf16 %v2915, %v2914
      %v2971 = vpack.c.bf16 %v2917, %v2916
      %v2972 = vpack.c.bf16 %v2919, %v2918
      %v2973 = vpack.c.bf16 %v2921, %v2920
      %v2974 = vpack.c.bf16 %v2923, %v2922
      %v2975 = vpack.c.bf16 %v2925, %v2924
      %v2976 = vpack.c.bf16 %v2927, %v2926
      %v2977 = vpack.c.bf16 %v2929, %v2928
      %v2978 = vpack.c.bf16 %v2931, %v2930
      %v2979 = vpack.c.bf16 %v2933, %v2932
      %v2980 = vpack.c.bf16 %v2935, %v2934
      %v2981 = vpack.c.bf16 %v2937, %v2936
      %v2982 = vpack.c.bf16 %v2939, %v2938
      %v2983 = vpack.c.bf16 %v2941, %v2940
      %v2984 = vpack.c.bf16 %v2943, %v2942
      %v2985 = vpack.c.bf16 %v2945, %v2944
      %v2986 = vpack.c.bf16 %v2947, %v2946
      %v2987 = vpack.c.bf16 %v2949, %v2948
      %v2988 = vpack.c.bf16 %v2951, %v2950
      %v2989 = vpack.c.bf16 %v2953, %v2952
      %v2990 = vpack.c.bf16 %v2955, %v2954
      %v2991 = vpack.c.bf16 %v2957, %v2956
      %v2992 = vpack.c.bf16 %v2959, %v2958
      %v2993 = vld [vmem:[%s6] sm:$0xff]
      %v2994 = vld [vmem:[%s6 + $0x8] sm:$0xf]
      %v2995 = vld [vmem:[%s6 + $0xc] sm:$0xff]
      %v2996 = vld [vmem:[%s6 + $0x14] sm:$0xf]
      %v2997 = vld [vmem:[%s6 + $0x18] sm:$0xff]
      %v2998 = vld [vmem:[%s6 + $0x20] sm:$0xf]
      %v2999 = vld [vmem:[%s6 + $0x24] sm:$0xff]
      %v3000 = vld [vmem:[%s6 + $0x2c] sm:$0xf]
      %v3001 = vld [vmem:[%s6 + $0x30] sm:$0xff]
      %v3002 = vld [vmem:[%s6 + $0x38] sm:$0xf]
      %v3003 = vld [vmem:[%s6 + $0x3c] sm:$0xff]
      %v3004 = vld [vmem:[%s6 + $0x44] sm:$0xf]
      %v3005 = vld [vmem:[%s6 + $0x48] sm:$0xff]
      %v3006 = vld [vmem:[%s6 + $0x50] sm:$0xf]
      %v3007 = vld [vmem:[%s6 + $0x54] sm:$0xff]
      %v3008 = vld [vmem:[%s6 + $0x5c] sm:$0xf]
      %v3009 = vld [vmem:[%s6 + $0x60] sm:$0xff]
      %v3010 = vld [vmem:[%s6 + $0x68] sm:$0xf]
      %v3011 = vld [vmem:[%s6 + $0x6c] sm:$0xff]
      %v3012 = vld [vmem:[%s6 + $0x74] sm:$0xf]
      %v3013 = vld [vmem:[%s6 + $0x78] sm:$0xff]
      %v3014 = vld [vmem:[%s6 + $0x80] sm:$0xf]
      %v3015 = vld [vmem:[%s6 + $0x84] sm:$0xff]
      %v3016 = vld [vmem:[%s6 + $0x8c] sm:$0xf]
      %v3017 = vld [vmem:[%s6 + $0x90] sm:$0xff]
      %v3018 = vld [vmem:[%s6 + $0x98] sm:$0xf]
      %v3019 = vld [vmem:[%s6 + $0x9c] sm:$0xff]
      %v3020 = vld [vmem:[%s6 + $0xa4] sm:$0xf]
      %v3021 = vld [vmem:[%s6 + $0xa8] sm:$0xff]
      %v3022 = vld [vmem:[%s6 + $0xb0] sm:$0xf]
      %v3023 = vld [vmem:[%s6 + $0xb4] sm:$0xff]
      %v3024 = vld [vmem:[%s6 + $0xbc] sm:$0xf]
      %v3057 = vunpack.c.l.b16 %v2993
      %v3058 = vunpack.c.h.b16 %v2993
      %v3059 = vunpack.c.l.b16 %v2994
      %v3060 = vunpack.c.l.b16 %v2995
      %v3061 = vunpack.c.h.b16 %v2995
      %v3062 = vunpack.c.l.b16 %v2996
      %v3063 = vunpack.c.l.b16 %v2997
      %v3064 = vunpack.c.h.b16 %v2997
      %v3065 = vunpack.c.l.b16 %v2998
      %v3066 = vunpack.c.l.b16 %v2999
      %v3067 = vunpack.c.h.b16 %v2999
      %v3068 = vunpack.c.l.b16 %v3000
      %v3069 = vunpack.c.l.b16 %v3001
      %v3070 = vunpack.c.h.b16 %v3001
      %v3071 = vunpack.c.l.b16 %v3002
      %v3072 = vunpack.c.l.b16 %v3003
      %v3073 = vunpack.c.h.b16 %v3003
      %v3074 = vunpack.c.l.b16 %v3004
      %v3075 = vunpack.c.l.b16 %v3005
      %v3076 = vunpack.c.h.b16 %v3005
      %v3077 = vunpack.c.l.b16 %v3006
      %v3078 = vunpack.c.l.b16 %v3007
      %v3079 = vunpack.c.h.b16 %v3007
      %v3080 = vunpack.c.l.b16 %v3008
      %v3081 = vunpack.c.l.b16 %v3009
      %v3082 = vunpack.c.h.b16 %v3009
      %v3083 = vunpack.c.l.b16 %v3010
      %v3084 = vunpack.c.l.b16 %v3011
      %v3085 = vunpack.c.h.b16 %v3011
      %v3086 = vunpack.c.l.b16 %v3012
      %v3087 = vunpack.c.l.b16 %v3013
      %v3088 = vunpack.c.h.b16 %v3013
      %v3089 = vunpack.c.l.b16 %v3014
      %v3090 = vunpack.c.l.b16 %v3015
      %v3091 = vunpack.c.h.b16 %v3015
      %v3092 = vunpack.c.l.b16 %v3016
      %v3093 = vunpack.c.l.b16 %v3017
      %v3094 = vunpack.c.h.b16 %v3017
      %v3095 = vunpack.c.l.b16 %v3018
      %v3096 = vunpack.c.l.b16 %v3019
      %v3097 = vunpack.c.h.b16 %v3019
      %v3098 = vunpack.c.l.b16 %v3020
      %v3099 = vunpack.c.l.b16 %v3021
      %v3100 = vunpack.c.h.b16 %v3021
      %v3101 = vunpack.c.l.b16 %v3022
      %v3102 = vunpack.c.l.b16 %v3023
      %v3103 = vunpack.c.h.b16 %v3023
      %v3104 = vunpack.c.l.b16 %v3024
      %v3105 = vpack.c.b16 %v3060, %v3057
      %v3106 = vpack.c.b16 %v3061, %v3058
      %v3107 = vpack.c.b16 %v3062, %v3059
      %v3108 = vpack.c.b16 %v3066, %v3063
      %v3109 = vpack.c.b16 %v3067, %v3064
      %v3110 = vpack.c.b16 %v3068, %v3065
      %v3111 = vpack.c.b16 %v3072, %v3069
      %v3112 = vpack.c.b16 %v3073, %v3070
      %v3113 = vpack.c.b16 %v3074, %v3071
      %v3114 = vpack.c.b16 %v3078, %v3075
      %v3115 = vpack.c.b16 %v3079, %v3076
      %v3116 = vpack.c.b16 %v3080, %v3077
      %v3117 = vpack.c.b16 %v3084, %v3081
      %v3118 = vpack.c.b16 %v3085, %v3082
      %v3119 = vpack.c.b16 %v3086, %v3083
      %v3120 = vpack.c.b16 %v3090, %v3087
      %v3121 = vpack.c.b16 %v3091, %v3088
      %v3122 = vpack.c.b16 %v3092, %v3089
      %v3123 = vpack.c.b16 %v3096, %v3093
      %v3124 = vpack.c.b16 %v3097, %v3094
      %v3125 = vpack.c.b16 %v3098, %v3095
      %v3126 = vpack.c.b16 %v3102, %v3099
      %v3127 = vpack.c.b16 %v3103, %v3100
      %v3128 = vpack.c.b16 %v3104, %v3101
      %3153 = vmatprep.subr.bf16.mxu0 %v3106
      %3154 = vmatpush1.bf16.msra.mxu0 %v3105
      %3155 = vmatprep.subr.bf16.mxu0 %v3109
      %3156 = vmatpush1.bf16.msra.mxu0 %v3108
      %3157 = vmatprep.subr.bf16.mxu0 %v3112
      %3158 = vmatpush1.bf16.msra.mxu0 %v3111
      %3159 = vmatprep.subr.bf16.mxu0 %v3115
      %3160 = vmatpush1.bf16.msra.mxu0 %v3114
      %3161 = vmatprep.subr.bf16.mxu0 %v3118
      %3162 = vmatpush1.bf16.msra.mxu0 %v3117
      %3163 = vmatprep.subr.bf16.mxu0 %v3121
      %3164 = vmatpush1.bf16.msra.mxu0 %v3120
      %3165 = vmatprep.subr.bf16.mxu0 %v3124
      %3166 = vmatpush1.bf16.msra.mxu0 %v3123
      %3167 = vmatprep.subr.bf16.mxu0 %v3127
      %3168 = vmatpush1.bf16.msra.mxu0 %v3126
      %3169 = vmatprep.subr.bf16.mxu0 0
      %3170 = vmatpush1.bf16.msra.mxu0 0
      %3171 = vmatprep.subr.bf16.mxu0 0
      %3172 = vmatpush1.bf16.msra.mxu0 0
      %3173 = vmatprep.subr.bf16.mxu0 0
      %3174 = vmatpush1.bf16.msra.mxu0 0
      %3175 = vmatprep.subr.bf16.mxu0 0
      %3176 = vmatpush1.bf16.msra.mxu0 0
      %3177 = vmatprep.subr.bf16.mxu0 0
      %3178 = vmatpush1.bf16.msra.mxu0 0
      %3179 = vmatprep.subr.bf16.mxu0 0
      %3180 = vmatpush1.bf16.msra.mxu0 0
      %3181 = vmatprep.subr.bf16.mxu0 0
      %3182 = vmatpush1.bf16.msra.mxu0 0
      %3183 = vmatprep.subr.bf16.mxu0 0
      %3184 = vmatpush1.bf16.msra.mxu0 0
      %3185 = vmatprep.mubr.bf16.mxu0 0
      %3186 = vmatmul.mubr.bf16.gmra.mrb[0].mxu0 %v2960
      %v3187 = vpop.f32.mrb[0].mxu0
      %v3188 = vadd.f32 0.0, %v3187
      %v3189 = vpop.f32.mrb[0].mxu0
      %v3190 = vadd.f32 0.0, %v3189
      %v3191 = vpop.f32.mrb[0].mxu0
      %v3192 = vadd.f32 0.0, %v3191
      %v3193 = vpop.f32.mrb[0].mxu0
      %v3194 = vadd.f32 0.0, %v3193
      %3195 = vmatprep.mubr.bf16.mxu0 0
      %3196 = vmatmul.mubr.bf16.gmra.mrb[0].mxu0 %v2961
      %v3197 = vpop.f32.mrb[0].mxu0
      %v3198 = vadd.f32 0.0, %v3197
      %v3199 = vpop.f32.mrb[0].mxu0
      %v3200 = vadd.f32 0.0, %v3199
      %v3201 = vpop.f32.mrb[0].mxu0
      %v3202 = vadd.f32 0.0, %v3201
      %v3203 = vpop.f32.mrb[0].mxu0
      %v3204 = vadd.f32 0.0, %v3203
      %3205 = vmatprep.mubr.bf16.mxu0 0
      %3206 = vmatmul.mubr.bf16.gmra.mrb[0].mxu0 %v2962
      %v3207 = vpop.f32.mrb[0].mxu0
      %v3208 = vadd.f32 0.0, %v3207
      %v3209 = vpop.f32.mrb[0].mxu0
      %v3210 = vadd.f32 0.0, %v3209
      %v3211 = vpop.f32.mrb[0].mxu0
      %v3212 = vadd.f32 0.0, %v3211
      %v3213 = vpop.f32.mrb[0].mxu0
      %v3214 = vadd.f32 0.0, %v3213
      %3215 = vmatprep.mubr.bf16.mxu0 0
      %3216 = vmatmul.mubr.bf16.gmra.mrb[0].mxu0 %v2963
      %v3217 = vpop.f32.mrb[0].mxu0
      %v3218 = vadd.f32 0.0, %v3217
      %v3219 = vpop.f32.mrb[0].mxu0
      %v3220 = vadd.f32 0.0, %v3219
      %v3221 = vpop.f32.mrb[0].mxu0
      %v3222 = vadd.f32 0.0, %v3221
      %v3223 = vpop.f32.mrb[0].mxu0
      %v3224 = vadd.f32 0.0, %v3223
      %3225 = vmatprep.mubr.bf16.mxu0 0
      %3226 = vmatmul.mubr.bf16.gmra.mrb[0].mxu0 %v2964
      %v3227 = vpop.f32.mrb[0].mxu0
      %v3228 = vadd.f32 0.0, %v3227
      %v3229 = vpop.f32.mrb[0].mxu0
      %v3230 = vadd.f32 0.0, %v3229
      %v3231 = vpop.f32.mrb[0].mxu0
      %v3232 = vadd.f32 0.0, %v3231
      %v3233 = vpop.f32.mrb[0].mxu0
      %v3234 = vadd.f32 0.0, %v3233
      %3235 = vmatprep.mubr.bf16.mxu0 0
      %3236 = vmatmul.mubr.bf16.gmra.mrb[0].mxu0 %v2965
      %v3237 = vpop.f32.mrb[0].mxu0
      %v3238 = vadd.f32 0.0, %v3237
      %v3239 = vpop.f32.mrb[0].mxu0
      %v3240 = vadd.f32 0.0, %v3239
      %v3241 = vpop.f32.mrb[0].mxu0
      %v3242 = vadd.f32 0.0, %v3241
      %v3243 = vpop.f32.mrb[0].mxu0
      %v3244 = vadd.f32 0.0, %v3243
      %3245 = vmatprep.mubr.bf16.mxu0 0
      %3246 = vmatmul.mubr.bf16.gmra.mrb[0].mxu0 %v2966
      %v3247 = vpop.f32.mrb[0].mxu0
      %v3248 = vadd.f32 0.0, %v3247
      %v3249 = vpop.f32.mrb[0].mxu0
      %v3250 = vadd.f32 0.0, %v3249
      %v3251 = vpop.f32.mrb[0].mxu0
      %v3252 = vadd.f32 0.0, %v3251
      %v3253 = vpop.f32.mrb[0].mxu0
      %v3254 = vadd.f32 0.0, %v3253
      %3255 = vmatprep.mubr.bf16.mxu0 0
      %3256 = vmatmul.mubr.bf16.gmra.mrb[0].mxu0 %v2967
      %v3257 = vpop.f32.mrb[0].mxu0
      %v3258 = vadd.f32 0.0, %v3257
      %v3259 = vpop.f32.mrb[0].mxu0
      %v3260 = vadd.f32 0.0, %v3259
      %v3261 = vpop.f32.mrb[0].mxu0
      %v3262 = vadd.f32 0.0, %v3261
      %v3263 = vpop.f32.mrb[0].mxu0
      %v3264 = vadd.f32 0.0, %v3263
      %3265 = vmatprep.mubr.bf16.mxu0 0
      %3266 = vmatmul.mubr.bf16.gmra.mrb[0].mxu0 %v2968
      %v3267 = vpop.f32.mrb[0].mxu0
      %v3268 = vadd.f32 0.0, %v3267
      %v3269 = vpop.f32.mrb[0].mxu0
      %v3270 = vadd.f32 0.0, %v3269
      %v3271 = vpop.f32.mrb[0].mxu0
      %v3272 = vadd.f32 0.0, %v3271
      %v3273 = vpop.f32.mrb[0].mxu0
      %v3274 = vadd.f32 0.0, %v3273
      %3275 = vmatprep.mubr.bf16.mxu0 0
      %3276 = vmatmul.mubr.bf16.gmra.mrb[0].mxu0 %v2969
      %v3277 = vpop.f32.mrb[0].mxu0
      %v3278 = vadd.f32 0.0, %v3277
      %v3279 = vpop.f32.mrb[0].mxu0
      %v3280 = vadd.f32 0.0, %v3279
      %v3281 = vpop.f32.mrb[0].mxu0
      %v3282 = vadd.f32 0.0, %v3281
      %v3283 = vpop.f32.mrb[0].mxu0
      %v3284 = vadd.f32 0.0, %v3283
      %3285 = vmatprep.mubr.bf16.mxu0 0
      %3286 = vmatmul.mubr.bf16.gmra.mrb[0].mxu0 %v2970
      %v3287 = vpop.f32.mrb[0].mxu0
      %v3288 = vadd.f32 0.0, %v3287
      %v3289 = vpop.f32.mrb[0].mxu0
      %v3290 = vadd.f32 0.0, %v3289
      %v3291 = vpop.f32.mrb[0].mxu0
      %v3292 = vadd.f32 0.0, %v3291
      %v3293 = vpop.f32.mrb[0].mxu0
      %v3294 = vadd.f32 0.0, %v3293
      %3295 = vmatprep.mubr.bf16.mxu0 0
      %3296 = vmatmul.mubr.bf16.gmra.mrb[0].mxu0 %v2971
      %v3297 = vpop.f32.mrb[0].mxu0
      %v3298 = vadd.f32 0.0, %v3297
      %v3299 = vpop.f32.mrb[0].mxu0
      %v3300 = vadd.f32 0.0, %v3299
      %v3301 = vpop.f32.mrb[0].mxu0
      %v3302 = vadd.f32 0.0, %v3301
      %v3303 = vpop.f32.mrb[0].mxu0
      %v3304 = vadd.f32 0.0, %v3303
      %3305 = vmatprep.mubr.bf16.mxu0 0
      %3306 = vmatmul.mubr.bf16.gmra.mrb[0].mxu0 %v2972
      %v3307 = vpop.f32.mrb[0].mxu0
      %v3308 = vadd.f32 0.0, %v3307
      %v3309 = vpop.f32.mrb[0].mxu0
      %v3310 = vadd.f32 0.0, %v3309
      %v3311 = vpop.f32.mrb[0].mxu0
      %v3312 = vadd.f32 0.0, %v3311
      %v3313 = vpop.f32.mrb[0].mxu0
      %v3314 = vadd.f32 0.0, %v3313
      %3315 = vmatprep.mubr.bf16.mxu0 0
      %3316 = vmatmul.mubr.bf16.gmra.mrb[0].mxu0 %v2973
      %v3317 = vpop.f32.mrb[0].mxu0
      %v3318 = vadd.f32 0.0, %v3317
      %v3319 = vpop.f32.mrb[0].mxu0
      %v3320 = vadd.f32 0.0, %v3319
      %v3321 = vpop.f32.mrb[0].mxu0
      %v3322 = vadd.f32 0.0, %v3321
      %v3323 = vpop.f32.mrb[0].mxu0
      %v3324 = vadd.f32 0.0, %v3323
      %3325 = vmatprep.mubr.bf16.mxu0 0
      %3326 = vmatmul.mubr.bf16.gmra.mrb[0].mxu0 %v2974
      %v3327 = vpop.f32.mrb[0].mxu0
      %v3328 = vadd.f32 0.0, %v3327
      %v3329 = vpop.f32.mrb[0].mxu0
      %v3330 = vadd.f32 0.0, %v3329
      %v3331 = vpop.f32.mrb[0].mxu0
      %v3332 = vadd.f32 0.0, %v3331
      %v3333 = vpop.f32.mrb[0].mxu0
      %v3334 = vadd.f32 0.0, %v3333
      %3335 = vmatprep.mubr.bf16.mxu0 0
      %3336 = vmatmul.mubr.bf16.gmra.mrb[0].mxu0 %v2975
      %v3337 = vpop.f32.mrb[0].mxu0
      %v3338 = vadd.f32 0.0, %v3337
      %v3339 = vpop.f32.mrb[0].mxu0
      %v3340 = vadd.f32 0.0, %v3339
      %v3341 = vpop.f32.mrb[0].mxu0
      %v3342 = vadd.f32 0.0, %v3341
      %v3343 = vpop.f32.mrb[0].mxu0
      %v3344 = vadd.f32 0.0, %v3343
      %3345 = vmatprep.mubr.bf16.mxu0 0
      %3346 = vmatmul.mubr.bf16.gmra.mrb[0].mxu0 %v2976
      %v3347 = vpop.f32.mrb[0].mxu0
      %v3348 = vadd.f32 0.0, %v3347
      %v3349 = vpop.f32.mrb[0].mxu0
      %v3350 = vadd.f32 0.0, %v3349
      %v3351 = vpop.f32.mrb[0].mxu0
      %v3352 = vadd.f32 0.0, %v3351
      %v3353 = vpop.f32.mrb[0].mxu0
      %v3354 = vadd.f32 0.0, %v3353
      %3355 = vmatprep.mubr.bf16.mxu0 0
      %3356 = vmatmul.mubr.bf16.gmra.mrb[0].mxu0 %v2977
      %v3357 = vpop.f32.mrb[0].mxu0
      %v3358 = vadd.f32 0.0, %v3357
      %v3359 = vpop.f32.mrb[0].mxu0
      %v3360 = vadd.f32 0.0, %v3359
      %v3361 = vpop.f32.mrb[0].mxu0
      %v3362 = vadd.f32 0.0, %v3361
      %v3363 = vpop.f32.mrb[0].mxu0
      %v3364 = vadd.f32 0.0, %v3363
      %3365 = vmatprep.mubr.bf16.mxu0 0
      %3366 = vmatmul.mubr.bf16.gmra.mrb[0].mxu0 %v2978
      %v3367 = vpop.f32.mrb[0].mxu0
      %v3368 = vadd.f32 0.0, %v3367
      %v3369 = vpop.f32.mrb[0].mxu0
      %v3370 = vadd.f32 0.0, %v3369
      %v3371 = vpop.f32.mrb[0].mxu0
      %v3372 = vadd.f32 0.0, %v3371
      %v3373 = vpop.f32.mrb[0].mxu0
      %v3374 = vadd.f32 0.0, %v3373
      %3375 = vmatprep.mubr.bf16.mxu0 0
      %3376 = vmatmul.mubr.bf16.gmra.mrb[0].mxu0 %v2979
      %v3377 = vpop.f32.mrb[0].mxu0
      %v3378 = vadd.f32 0.0, %v3377
      %v3379 = vpop.f32.mrb[0].mxu0
      %v3380 = vadd.f32 0.0, %v3379
      %v3381 = vpop.f32.mrb[0].mxu0
      %v3382 = vadd.f32 0.0, %v3381
      %v3383 = vpop.f32.mrb[0].mxu0
      %v3384 = vadd.f32 0.0, %v3383
      %3385 = vmatprep.mubr.bf16.mxu0 0
      %3386 = vmatmul.mubr.bf16.gmra.mrb[0].mxu0 %v2980
      %v3387 = vpop.f32.mrb[0].mxu0
      %v3388 = vadd.f32 0.0, %v3387
      %v3389 = vpop.f32.mrb[0].mxu0
      %v3390 = vadd.f32 0.0, %v3389
      %v3391 = vpop.f32.mrb[0].mxu0
      %v3392 = vadd.f32 0.0, %v3391
      %v3393 = vpop.f32.mrb[0].mxu0
      %v3394 = vadd.f32 0.0, %v3393
      %3395 = vmatprep.mubr.bf16.mxu0 0
      %3396 = vmatmul.mubr.bf16.gmra.mrb[0].mxu0 %v2981
      %v3397 = vpop.f32.mrb[0].mxu0
      %v3398 = vadd.f32 0.0, %v3397
      %v3399 = vpop.f32.mrb[0].mxu0
      %v3400 = vadd.f32 0.0, %v3399
      %v3401 = vpop.f32.mrb[0].mxu0
      %v3402 = vadd.f32 0.0, %v3401
      %v3403 = vpop.f32.mrb[0].mxu0
      %v3404 = vadd.f32 0.0, %v3403
      %3405 = vmatprep.mubr.bf16.mxu0 0
      %3406 = vmatmul.mubr.bf16.gmra.mrb[0].mxu0 %v2982
      %v3407 = vpop.f32.mrb[0].mxu0
      %v3408 = vadd.f32 0.0, %v3407
      %v3409 = vpop.f32.mrb[0].mxu0
      %v3410 = vadd.f32 0.0, %v3409
      %v3411 = vpop.f32.mrb[0].mxu0
      %v3412 = vadd.f32 0.0, %v3411
      %v3413 = vpop.f32.mrb[0].mxu0
      %v3414 = vadd.f32 0.0, %v3413
      %3415 = vmatprep.mubr.bf16.mxu0 0
      %3416 = vmatmul.mubr.bf16.gmra.mrb[0].mxu0 %v2983
      %v3417 = vpop.f32.mrb[0].mxu0
      %v3418 = vadd.f32 0.0, %v3417
      %v3419 = vpop.f32.mrb[0].mxu0
      %v3420 = vadd.f32 0.0, %v3419
      %v3421 = vpop.f32.mrb[0].mxu0
      %v3422 = vadd.f32 0.0, %v3421
      %v3423 = vpop.f32.mrb[0].mxu0
      %v3424 = vadd.f32 0.0, %v3423
      %3425 = vmatprep.mubr.bf16.mxu0 0
      %3426 = vmatmul.mubr.bf16.gmra.mrb[0].mxu0 %v2984
      %v3427 = vpop.f32.mrb[0].mxu0
      %v3428 = vadd.f32 0.0, %v3427
      %v3429 = vpop.f32.mrb[0].mxu0
      %v3430 = vadd.f32 0.0, %v3429
      %v3431 = vpop.f32.mrb[0].mxu0
      %v3432 = vadd.f32 0.0, %v3431
      %v3433 = vpop.f32.mrb[0].mxu0
      %v3434 = vadd.f32 0.0, %v3433
      %3435 = vmatprep.mubr.bf16.mxu0 0
      %3436 = vmatmul.mubr.bf16.gmra.mrb[0].mxu0 %v2985
      %v3437 = vpop.f32.mrb[0].mxu0
      %v3438 = vadd.f32 0.0, %v3437
      %v3439 = vpop.f32.mrb[0].mxu0
      %v3440 = vadd.f32 0.0, %v3439
      %v3441 = vpop.f32.mrb[0].mxu0
      %v3442 = vadd.f32 0.0, %v3441
      %v3443 = vpop.f32.mrb[0].mxu0
      %v3444 = vadd.f32 0.0, %v3443
      %3445 = vmatprep.mubr.bf16.mxu0 0
      %3446 = vmatmul.mubr.bf16.gmra.mrb[0].mxu0 %v2986
      %v3447 = vpop.f32.mrb[0].mxu0
      %v3448 = vadd.f32 0.0, %v3447
      %v3449 = vpop.f32.mrb[0].mxu0
      %v3450 = vadd.f32 0.0, %v3449
      %v3451 = vpop.f32.mrb[0].mxu0
      %v3452 = vadd.f32 0.0, %v3451
      %v3453 = vpop.f32.mrb[0].mxu0
      %v3454 = vadd.f32 0.0, %v3453
      %3455 = vmatprep.mubr.bf16.mxu0 0
      %3456 = vmatmul.mubr.bf16.gmra.mrb[0].mxu0 %v2987
      %v3457 = vpop.f32.mrb[0].mxu0
      %v3458 = vadd.f32 0.0, %v3457
      %v3459 = vpop.f32.mrb[0].mxu0
      %v3460 = vadd.f32 0.0, %v3459
      %v3461 = vpop.f32.mrb[0].mxu0
      %v3462 = vadd.f32 0.0, %v3461
      %v3463 = vpop.f32.mrb[0].mxu0
      %v3464 = vadd.f32 0.0, %v3463
      %3465 = vmatprep.mubr.bf16.mxu0 0
      %3466 = vmatmul.mubr.bf16.gmra.mrb[0].mxu0 %v2988
      %v3467 = vpop.f32.mrb[0].mxu0
      %v3468 = vadd.f32 0.0, %v3467
      %v3469 = vpop.f32.mrb[0].mxu0
      %v3470 = vadd.f32 0.0, %v3469
      %v3471 = vpop.f32.mrb[0].mxu0
      %v3472 = vadd.f32 0.0, %v3471
      %v3473 = vpop.f32.mrb[0].mxu0
      %v3474 = vadd.f32 0.0, %v3473
      %3475 = vmatprep.mubr.bf16.mxu0 0
      %3476 = vmatmul.mubr.bf16.gmra.mrb[0].mxu0 %v2989
      %v3477 = vpop.f32.mrb[0].mxu0
      %v3478 = vadd.f32 0.0, %v3477
      %v3479 = vpop.f32.mrb[0].mxu0
      %v3480 = vadd.f32 0.0, %v3479
      %v3481 = vpop.f32.mrb[0].mxu0
      %v3482 = vadd.f32 0.0, %v3481
      %v3483 = vpop.f32.mrb[0].mxu0
      %v3484 = vadd.f32 0.0, %v3483
      %3485 = vmatprep.mubr.bf16.mxu0 0
      %3486 = vmatmul.mubr.bf16.gmra.mrb[0].mxu0 %v2990
      %v3487 = vpop.f32.mrb[0].mxu0
      %v3488 = vadd.f32 0.0, %v3487
      %v3489 = vpop.f32.mrb[0].mxu0
      %v3490 = vadd.f32 0.0, %v3489
      %v3491 = vpop.f32.mrb[0].mxu0
      %v3492 = vadd.f32 0.0, %v3491
      %v3493 = vpop.f32.mrb[0].mxu0
      %v3494 = vadd.f32 0.0, %v3493
      %3495 = vmatprep.mubr.bf16.mxu0 0
      %3496 = vmatmul.mubr.bf16.gmra.mrb[0].mxu0 %v2991
      %v3497 = vpop.f32.mrb[0].mxu0
      %v3498 = vadd.f32 0.0, %v3497
      %v3499 = vpop.f32.mrb[0].mxu0
      %v3500 = vadd.f32 0.0, %v3499
      %v3501 = vpop.f32.mrb[0].mxu0
      %v3502 = vadd.f32 0.0, %v3501
      %v3503 = vpop.f32.mrb[0].mxu0
      %v3504 = vadd.f32 0.0, %v3503
      %3505 = vmatprep.mubr.bf16.mxu0 0
      %3506 = vmatmul.mubr.bf16.gmra.mrb[0].mxu0 %v2992
      %v3507 = vpop.f32.mrb[0].mxu0
      %v3508 = vpop.f32.mrb[0].mxu0
      %v3509 = vadd.f32 0.0, %v3508
      %v3510 = vpop.f32.mrb[0].mxu0
      %v3511 = vpop.f32.mrb[0].mxu0
      %3512 = vdwg.mxu0
      %3513 = vmatprep.subr.bf16.mxu0 0
      %3514 = vmatpush1.bf16.msra.mxu0 %v3107
      %3515 = vmatprep.subr.bf16.mxu0 0
      %3516 = vmatpush1.bf16.msra.mxu0 %v3110
      %3517 = vmatprep.subr.bf16.mxu0 0
      %3518 = vmatpush1.bf16.msra.mxu0 %v3113
      %3519 = vmatprep.subr.bf16.mxu0 0
      %3520 = vmatpush1.bf16.msra.mxu0 %v3116
      %3521 = vmatprep.subr.bf16.mxu0 0
      %3522 = vmatpush1.bf16.msra.mxu0 %v3119
      %3523 = vmatprep.subr.bf16.mxu0 0
      %3524 = vmatpush1.bf16.msra.mxu0 %v3122
      %3525 = vmatprep.subr.bf16.mxu0 0
      %3526 = vmatpush1.bf16.msra.mxu0 %v3125
      %3527 = vmatprep.subr.bf16.mxu0 0
      %3528 = vmatpush1.bf16.msra.mxu0 %v3128
      %3529 = vmatprep.subr.bf16.mxu0 0
      %3530 = vmatpush1.bf16.msra.mxu0 0
      %3531 = vmatprep.subr.bf16.mxu0 0
      %3532 = vmatpush1.bf16.msra.mxu0 0
      %3533 = vmatprep.subr.bf16.mxu0 0
      %3534 = vmatpush1.bf16.msra.mxu0 0
      %3535 = vmatprep.subr.bf16.mxu0 0
      %3536 = vmatpush1.bf16.msra.mxu0 0
      %3537 = vmatprep.subr.bf16.mxu0 0
      %3538 = vmatpush1.bf16.msra.mxu0 0
      %3539 = vmatprep.subr.bf16.mxu0 0
      %3540 = vmatpush1.bf16.msra.mxu0 0
      %3541 = vmatprep.subr.bf16.mxu0 0
      %3542 = vmatpush1.bf16.msra.mxu0 0
      %3543 = vmatprep.subr.bf16.mxu0 0
      %3544 = vmatpush1.bf16.msra.mxu0 0
      %3545 = vmatprep.mubr.bf16.mxu0 0
      %3546 = vmatmul.mubr.bf16.gmra.mrb[0].mxu0 %v2960
      %v3547 = vpop.f32.mrb[0].mxu0
      %v3548 = vadd.f32 0.0, %v3547
      %v3549 = vpop.f32.mrb[0].mxu0
      %v3550 = vpop.f32.mrb[0].mxu0
      %v3551 = vadd.f32 0.0, %v3550
      %v3552 = vpop.f32.mrb[0].mxu0
      %3553 = vmatprep.mubr.bf16.mxu0 0
      %3554 = vmatmul.mubr.bf16.gmra.mrb[0].mxu0 %v2961
      %v3555 = vpop.f32.mrb[0].mxu0
      %v3556 = vadd.f32 0.0, %v3555
      %v3557 = vpop.f32.mrb[0].mxu0
      %v3558 = vpop.f32.mrb[0].mxu0
      %v3559 = vadd.f32 0.0, %v3558
      %v3560 = vpop.f32.mrb[0].mxu0
      %3561 = vmatprep.mubr.bf16.mxu0 0
      %3562 = vmatmul.mubr.bf16.gmra.mrb[0].mxu0 %v2962
      %v3563 = vpop.f32.mrb[0].mxu0
      %v3564 = vadd.f32 0.0, %v3563
      %v3565 = vpop.f32.mrb[0].mxu0
      %v3566 = vpop.f32.mrb[0].mxu0
      %v3567 = vadd.f32 0.0, %v3566
      %v3568 = vpop.f32.mrb[0].mxu0
      %3569 = vmatprep.mubr.bf16.mxu0 0
      %3570 = vmatmul.mubr.bf16.gmra.mrb[0].mxu0 %v2963
      %v3571 = vpop.f32.mrb[0].mxu0
      %v3572 = vadd.f32 0.0, %v3571
      %v3573 = vpop.f32.mrb[0].mxu0
      %v3574 = vpop.f32.mrb[0].mxu0
      %v3575 = vadd.f32 0.0, %v3574
      %v3576 = vpop.f32.mrb[0].mxu0
      %3577 = vmatprep.mubr.bf16.mxu0 0
      %3578 = vmatmul.mubr.bf16.gmra.mrb[0].mxu0 %v2964
      %v3579 = vpop.f32.mrb[0].mxu0
      %v3580 = vadd.f32 0.0, %v3579
      %v3581 = vpop.f32.mrb[0].mxu0
      %v3582 = vpop.f32.mrb[0].mxu0
      %v3583 = vadd.f32 0.0, %v3582
      %v3584 = vpop.f32.mrb[0].mxu0
      %3585 = vmatprep.mubr.bf16.mxu0 0
      %3586 = vmatmul.mubr.bf16.gmra.mrb[0].mxu0 %v2965
      %v3587 = vpop.f32.mrb[0].mxu0
      %v3588 = vadd.f32 0.0, %v3587
      %v3589 = vpop.f32.mrb[0].mxu0
      %v3590 = vpop.f32.mrb[0].mxu0
      %v3591 = vadd.f32 0.0, %v3590
      %v3592 = vpop.f32.mrb[0].mxu0
      %3593 = vmatprep.mubr.bf16.mxu0 0
      %3594 = vmatmul.mubr.bf16.gmra.mrb[0].mxu0 %v2966
      %v3595 = vpop.f32.mrb[0].mxu0
      %v3596 = vadd.f32 0.0, %v3595
      %v3597 = vpop.f32.mrb[0].mxu0
      %v3598 = vpop.f32.mrb[0].mxu0
      %v3599 = vadd.f32 0.0, %v3598
      %v3600 = vpop.f32.mrb[0].mxu0
      %3601 = vmatprep.mubr.bf16.mxu0 0
      %3602 = vmatmul.mubr.bf16.gmra.mrb[0].mxu0 %v2967
      %v3603 = vpop.f32.mrb[0].mxu0
      %v3604 = vadd.f32 0.0, %v3603
      %v3605 = vpop.f32.mrb[0].mxu0
      %v3606 = vpop.f32.mrb[0].mxu0
      %v3607 = vadd.f32 0.0, %v3606
      %v3608 = vpop.f32.mrb[0].mxu0
      %3609 = vmatprep.mubr.bf16.mxu0 0
      %3610 = vmatmul.mubr.bf16.gmra.mrb[0].mxu0 %v2968
      %v3611 = vpop.f32.mrb[0].mxu0
      %v3612 = vadd.f32 0.0, %v3611
      %v3613 = vpop.f32.mrb[0].mxu0
      %v3614 = vpop.f32.mrb[0].mxu0
      %v3615 = vadd.f32 0.0, %v3614
      %v3616 = vpop.f32.mrb[0].mxu0
      %3617 = vmatprep.mubr.bf16.mxu0 0
      %3618 = vmatmul.mubr.bf16.gmra.mrb[0].mxu0 %v2969
      %v3619 = vpop.f32.mrb[0].mxu0
      %v3620 = vadd.f32 0.0, %v3619
      %v3621 = vpop.f32.mrb[0].mxu0
      %v3622 = vpop.f32.mrb[0].mxu0
      %v3623 = vadd.f32 0.0, %v3622
      %v3624 = vpop.f32.mrb[0].mxu0
      %3625 = vmatprep.mubr.bf16.mxu0 0
      %3626 = vmatmul.mubr.bf16.gmra.mrb[0].mxu0 %v2970
      %v3627 = vpop.f32.mrb[0].mxu0
      %v3628 = vadd.f32 0.0, %v3627
      %v3629 = vpop.f32.mrb[0].mxu0
      %v3630 = vpop.f32.mrb[0].mxu0
      %v3631 = vadd.f32 0.0, %v3630
      %v3632 = vpop.f32.mrb[0].mxu0
      %3633 = vmatprep.mubr.bf16.mxu0 0
      %3634 = vmatmul.mubr.bf16.gmra.mrb[0].mxu0 %v2971
      %v3635 = vpop.f32.mrb[0].mxu0
      %v3636 = vadd.f32 0.0, %v3635
      %v3637 = vpop.f32.mrb[0].mxu0
      %v3638 = vpop.f32.mrb[0].mxu0
      %v3639 = vadd.f32 0.0, %v3638
      %v3640 = vpop.f32.mrb[0].mxu0
      %3641 = vmatprep.mubr.bf16.mxu0 0
      %3642 = vmatmul.mubr.bf16.gmra.mrb[0].mxu0 %v2972
      %v3643 = vpop.f32.mrb[0].mxu0
      %v3644 = vadd.f32 0.0, %v3643
      %v3645 = vpop.f32.mrb[0].mxu0
      %v3646 = vpop.f32.mrb[0].mxu0
      %v3647 = vadd.f32 0.0, %v3646
      %v3648 = vpop.f32.mrb[0].mxu0
      %3649 = vmatprep.mubr.bf16.mxu0 0
      %3650 = vmatmul.mubr.bf16.gmra.mrb[0].mxu0 %v2973
      %v3651 = vpop.f32.mrb[0].mxu0
      %v3652 = vadd.f32 0.0, %v3651
      %v3653 = vpop.f32.mrb[0].mxu0
      %v3654 = vpop.f32.mrb[0].mxu0
      %v3655 = vadd.f32 0.0, %v3654
      %v3656 = vpop.f32.mrb[0].mxu0
      %3657 = vmatprep.mubr.bf16.mxu0 0
      %3658 = vmatmul.mubr.bf16.gmra.mrb[0].mxu0 %v2974
      %v3659 = vpop.f32.mrb[0].mxu0
      %v3660 = vadd.f32 0.0, %v3659
      %v3661 = vpop.f32.mrb[0].mxu0
      %v3662 = vpop.f32.mrb[0].mxu0
      %v3663 = vadd.f32 0.0, %v3662
      %v3664 = vpop.f32.mrb[0].mxu0
      %3665 = vmatprep.mubr.bf16.mxu0 0
      %3666 = vmatmul.mubr.bf16.gmra.mrb[0].mxu0 %v2975
      %v3667 = vpop.f32.mrb[0].mxu0
      %v3668 = vadd.f32 0.0, %v3667
      %v3669 = vpop.f32.mrb[0].mxu0
      %v3670 = vpop.f32.mrb[0].mxu0
      %v3671 = vadd.f32 0.0, %v3670
      %v3672 = vpop.f32.mrb[0].mxu0
      %3673 = vmatprep.mubr.bf16.mxu0 0
      %3674 = vmatmul.mubr.bf16.gmra.mrb[0].mxu0 %v2976
      %v3675 = vpop.f32.mrb[0].mxu0
      %v3676 = vadd.f32 0.0, %v3675
      %v3677 = vpop.f32.mrb[0].mxu0
      %v3678 = vpop.f32.mrb[0].mxu0
      %v3679 = vadd.f32 0.0, %v3678
      %v3680 = vpop.f32.mrb[0].mxu0
      %3681 = vmatprep.mubr.bf16.mxu0 0
      %3682 = vmatmul.mubr.bf16.gmra.mrb[0].mxu0 %v2977
      %v3683 = vpop.f32.mrb[0].mxu0
      %v3684 = vadd.f32 0.0, %v3683
      %v3685 = vpop.f32.mrb[0].mxu0
      %v3686 = vpop.f32.mrb[0].mxu0
      %v3687 = vadd.f32 0.0, %v3686
      %v3688 = vpop.f32.mrb[0].mxu0
      %3689 = vmatprep.mubr.bf16.mxu0 0
      %3690 = vmatmul.mubr.bf16.gmra.mrb[0].mxu0 %v2978
      %v3691 = vpop.f32.mrb[0].mxu0
      %v3692 = vadd.f32 0.0, %v3691
      %v3693 = vpop.f32.mrb[0].mxu0
      %v3694 = vpop.f32.mrb[0].mxu0
      %v3695 = vadd.f32 0.0, %v3694
      %v3696 = vpop.f32.mrb[0].mxu0
      %3697 = vmatprep.mubr.bf16.mxu0 0
      %3698 = vmatmul.mubr.bf16.gmra.mrb[0].mxu0 %v2979
      %v3699 = vpop.f32.mrb[0].mxu0
      %v3700 = vadd.f32 0.0, %v3699
      %v3701 = vpop.f32.mrb[0].mxu0
      %v3702 = vpop.f32.mrb[0].mxu0
      %v3703 = vadd.f32 0.0, %v3702
      %v3704 = vpop.f32.mrb[0].mxu0
      %3705 = vmatprep.mubr.bf16.mxu0 0
      %3706 = vmatmul.mubr.bf16.gmra.mrb[0].mxu0 %v2980
      %v3707 = vpop.f32.mrb[0].mxu0
      %v3708 = vadd.f32 0.0, %v3707
      %v3709 = vpop.f32.mrb[0].mxu0
      %v3710 = vpop.f32.mrb[0].mxu0
      %v3711 = vadd.f32 0.0, %v3710
      %v3712 = vpop.f32.mrb[0].mxu0
      %3713 = vmatprep.mubr.bf16.mxu0 0
      %3714 = vmatmul.mubr.bf16.gmra.mrb[0].mxu0 %v2981
      %v3715 = vpop.f32.mrb[0].mxu0
      %v3716 = vadd.f32 0.0, %v3715
      %v3717 = vpop.f32.mrb[0].mxu0
      %v3718 = vpop.f32.mrb[0].mxu0
      %v3719 = vadd.f32 0.0, %v3718
      %v3720 = vpop.f32.mrb[0].mxu0
      %3721 = vmatprep.mubr.bf16.mxu0 0
      %3722 = vmatmul.mubr.bf16.gmra.mrb[0].mxu0 %v2982
      %v3723 = vpop.f32.mrb[0].mxu0
      %v3724 = vadd.f32 0.0, %v3723
      %v3725 = vpop.f32.mrb[0].mxu0
      %v3726 = vpop.f32.mrb[0].mxu0
      %v3727 = vadd.f32 0.0, %v3726
      %v3728 = vpop.f32.mrb[0].mxu0
      %3729 = vmatprep.mubr.bf16.mxu0 0
      %3730 = vmatmul.mubr.bf16.gmra.mrb[0].mxu0 %v2983
      %v3731 = vpop.f32.mrb[0].mxu0
      %v3732 = vadd.f32 0.0, %v3731
      %v3733 = vpop.f32.mrb[0].mxu0
      %v3734 = vpop.f32.mrb[0].mxu0
      %v3735 = vadd.f32 0.0, %v3734
      %v3736 = vpop.f32.mrb[0].mxu0
      %3737 = vmatprep.mubr.bf16.mxu0 0
      %3738 = vmatmul.mubr.bf16.gmra.mrb[0].mxu0 %v2984
      %v3739 = vpop.f32.mrb[0].mxu0
      %v3740 = vadd.f32 0.0, %v3739
      %v3741 = vpop.f32.mrb[0].mxu0
      %v3742 = vpop.f32.mrb[0].mxu0
      %v3743 = vadd.f32 0.0, %v3742
      %v3744 = vpop.f32.mrb[0].mxu0
      %3745 = vmatprep.mubr.bf16.mxu0 0
      %3746 = vmatmul.mubr.bf16.gmra.mrb[0].mxu0 %v2985
      %v3747 = vpop.f32.mrb[0].mxu0
      %v3748 = vadd.f32 0.0, %v3747
      %v3749 = vpop.f32.mrb[0].mxu0
      %v3750 = vpop.f32.mrb[0].mxu0
      %v3751 = vadd.f32 0.0, %v3750
      %v3752 = vpop.f32.mrb[0].mxu0
      %3753 = vmatprep.mubr.bf16.mxu0 0
      %3754 = vmatmul.mubr.bf16.gmra.mrb[0].mxu0 %v2986
      %v3755 = vpop.f32.mrb[0].mxu0
      %v3756 = vadd.f32 0.0, %v3755
      %v3757 = vpop.f32.mrb[0].mxu0
      %v3758 = vpop.f32.mrb[0].mxu0
      %v3759 = vadd.f32 0.0, %v3758
      %v3760 = vpop.f32.mrb[0].mxu0
      %3761 = vmatprep.mubr.bf16.mxu0 0
      %3762 = vmatmul.mubr.bf16.gmra.mrb[0].mxu0 %v2987
      %v3763 = vpop.f32.mrb[0].mxu0
      %v3764 = vadd.f32 0.0, %v3763
      %v3765 = vpop.f32.mrb[0].mxu0
      %v3766 = vpop.f32.mrb[0].mxu0
      %v3767 = vadd.f32 0.0, %v3766
      %v3768 = vpop.f32.mrb[0].mxu0
      %3769 = vmatprep.mubr.bf16.mxu0 0
      %3770 = vmatmul.mubr.bf16.gmra.mrb[0].mxu0 %v2988
      %v3771 = vpop.f32.mrb[0].mxu0
      %v3772 = vadd.f32 0.0, %v3771
      %v3773 = vpop.f32.mrb[0].mxu0
      %v3774 = vpop.f32.mrb[0].mxu0
      %v3775 = vadd.f32 0.0, %v3774
      %v3776 = vpop.f32.mrb[0].mxu0
      %3777 = vmatprep.mubr.bf16.mxu0 0
      %3778 = vmatmul.mubr.bf16.gmra.mrb[0].mxu0 %v2989
      %v3779 = vpop.f32.mrb[0].mxu0
      %v3780 = vadd.f32 0.0, %v3779
      %v3781 = vpop.f32.mrb[0].mxu0
      %v3782 = vpop.f32.mrb[0].mxu0
      %v3783 = vadd.f32 0.0, %v3782
      %v3784 = vpop.f32.mrb[0].mxu0
      %3785 = vmatprep.mubr.bf16.mxu0 0
      %3786 = vmatmul.mubr.bf16.gmra.mrb[0].mxu0 %v2990
      %v3787 = vpop.f32.mrb[0].mxu0
      %v3788 = vadd.f32 0.0, %v3787
      %v3789 = vpop.f32.mrb[0].mxu0
      %v3790 = vpop.f32.mrb[0].mxu0
      %v3791 = vadd.f32 0.0, %v3790
      %v3792 = vpop.f32.mrb[0].mxu0
      %3793 = vmatprep.mubr.bf16.mxu0 0
      %3794 = vmatmul.mubr.bf16.gmra.mrb[0].mxu0 %v2991
      %v3795 = vpop.f32.mrb[0].mxu0
      %v3796 = vadd.f32 0.0, %v3795
      %v3797 = vpop.f32.mrb[0].mxu0
      %v3798 = vpop.f32.mrb[0].mxu0
      %v3799 = vadd.f32 0.0, %v3798
      %v3800 = vpop.f32.mrb[0].mxu0
      %3801 = vmatprep.mubr.bf16.mxu0 0
      %3802 = vmatmul.mubr.bf16.gmra.mrb[0].mxu0 %v2992
      %v3803 = vpop.f32.mrb[0].mxu0
      %v3804 = vadd.f32 0.0, %v3803
      %v3805 = vpop.f32.mrb[0].mxu0
      %v3806 = vpop.f32.mrb[0].mxu0
      %v3807 = vpop.f32.mrb[0].mxu0
      %3808 = vdwg.mxu0
      %v3809 = vrot.slane %v3190, 1
      %v3810 = vrot.slane %v3194, 1
      %v3811 = vrot.slane %v3200, 1
      %v3812 = vrot.slane %v3204, 1
      %v3813 = vrot.slane %v3210, 1
      %v3814 = vrot.slane %v3214, 1
      %v3815 = vrot.slane %v3220, 1
      %v3816 = vrot.slane %v3224, 1
      %v3817 = vrot.slane %v3230, 1
      %v3818 = vrot.slane %v3234, 1
      %v3819 = vrot.slane %v3240, 1
      %v3820 = vrot.slane %v3244, 1
      %v3821 = vrot.slane %v3250, 1
      %v3822 = vrot.slane %v3254, 1
      %v3823 = vrot.slane %v3260, 1
      %v3824 = vrot.slane %v3264, 1
      %v3825 = vrot.slane %v3270, 1
      %v3826 = vrot.slane %v3274, 1
      %v3827 = vrot.slane %v3280, 1
      %v3828 = vrot.slane %v3284, 1
      %v3829 = vrot.slane %v3290, 1
      %v3830 = vrot.slane %v3294, 1
      %v3831 = vrot.slane %v3300, 1
      %v3832 = vrot.slane %v3304, 1
      %v3833 = vrot.slane %v3310, 1
      %v3834 = vrot.slane %v3314, 1
      %v3835 = vrot.slane %v3320, 1
      %v3836 = vrot.slane %v3324, 1
      %v3837 = vrot.slane %v3330, 1
      %v3838 = vrot.slane %v3334, 1
      %v3839 = vrot.slane %v3340, 1
      %v3840 = vrot.slane %v3344, 1
      %v3841 = vrot.slane %v3350, 1
      %v3842 = vrot.slane %v3354, 1
      %v3843 = vrot.slane %v3360, 1
      %v3844 = vrot.slane %v3364, 1
      %v3845 = vrot.slane %v3370, 1
      %v3846 = vrot.slane %v3374, 1
      %v3847 = vrot.slane %v3380, 1
      %v3848 = vrot.slane %v3384, 1
      %v3849 = vrot.slane %v3390, 1
      %v3850 = vrot.slane %v3394, 1
      %v3851 = vrot.slane %v3400, 1
      %v3852 = vrot.slane %v3404, 1
      %v3853 = vrot.slane %v3410, 1
      %v3854 = vrot.slane %v3414, 1
      %v3855 = vrot.slane %v3420, 1
      %v3856 = vrot.slane %v3424, 1
      %v3857 = vrot.slane %v3430, 1
      %v3858 = vrot.slane %v3434, 1
      %v3859 = vrot.slane %v3440, 1
      %v3860 = vrot.slane %v3444, 1
      %v3861 = vrot.slane %v3450, 1
      %v3862 = vrot.slane %v3454, 1
      %v3863 = vrot.slane %v3460, 1
      %v3864 = vrot.slane %v3464, 1
      %v3865 = vrot.slane %v3470, 1
      %v3866 = vrot.slane %v3474, 1
      %v3867 = vrot.slane %v3480, 1
      %v3868 = vrot.slane %v3484, 1
      %v3869 = vrot.slane %v3490, 1
      %v3870 = vrot.slane %v3494, 1
      %v3871 = vrot.slane %v3500, 1
      %v3872 = vrot.slane %v3504, 1
      %v3873 = vrot.slane %v3509, 1
      %v3874 = vsel %vm1959, %v3872, %v3873
      %v3875 = vsel %vm1959, %v3871, %v3872
      %v3876 = vsel %vm1959, %v3870, %v3871
      %v3877 = vsel %vm1959, %v3869, %v3870
      %v3878 = vsel %vm1959, %v3868, %v3869
      %v3879 = vsel %vm1959, %v3867, %v3868
      %v3880 = vsel %vm1959, %v3866, %v3867
      %v3881 = vsel %vm1959, %v3865, %v3866
      %v3882 = vsel %vm1959, %v3864, %v3865
      %v3883 = vsel %vm1959, %v3863, %v3864
      %v3884 = vsel %vm1959, %v3862, %v3863
      %v3885 = vsel %vm1959, %v3861, %v3862
      %v3886 = vsel %vm1959, %v3860, %v3861
      %v3887 = vsel %vm1959, %v3859, %v3860
      %v3888 = vsel %vm1959, %v3858, %v3859
      %v3889 = vsel %vm1959, %v3857, %v3858
      %v3890 = vsel %vm1959, %v3856, %v3857
      %v3891 = vsel %vm1959, %v3855, %v3856
      %v3892 = vsel %vm1959, %v3854, %v3855
      %v3893 = vsel %vm1959, %v3853, %v3854
      %v3894 = vsel %vm1959, %v3852, %v3853
      %v3895 = vsel %vm1959, %v3851, %v3852
      %v3896 = vsel %vm1959, %v3850, %v3851
      %v3897 = vsel %vm1959, %v3849, %v3850
      %v3898 = vsel %vm1959, %v3848, %v3849
      %v3899 = vsel %vm1959, %v3847, %v3848
      %v3900 = vsel %vm1959, %v3846, %v3847
      %v3901 = vsel %vm1959, %v3845, %v3846
      %v3902 = vsel %vm1959, %v3844, %v3845
      %v3903 = vsel %vm1959, %v3843, %v3844
      %v3904 = vsel %vm1959, %v3842, %v3843
      %v3905 = vsel %vm1959, %v3841, %v3842
      %v3906 = vsel %vm1959, %v3840, %v3841
      %v3907 = vsel %vm1959, %v3839, %v3840
      %v3908 = vsel %vm1959, %v3838, %v3839
      %v3909 = vsel %vm1959, %v3837, %v3838
      %v3910 = vsel %vm1959, %v3836, %v3837
      %v3911 = vsel %vm1959, %v3835, %v3836
      %v3912 = vsel %vm1959, %v3834, %v3835
      %v3913 = vsel %vm1959, %v3833, %v3834
      %v3914 = vsel %vm1959, %v3832, %v3833
      %v3915 = vsel %vm1959, %v3831, %v3832
      %v3916 = vsel %vm1959, %v3830, %v3831
      %v3917 = vsel %vm1959, %v3829, %v3830
      %v3918 = vsel %vm1959, %v3828, %v3829
      %v3919 = vsel %vm1959, %v3827, %v3828
      %v3920 = vsel %vm1959, %v3826, %v3827
      %v3921 = vsel %vm1959, %v3825, %v3826
      %v3922 = vsel %vm1959, %v3824, %v3825
      %v3923 = vsel %vm1959, %v3823, %v3824
      %v3924 = vsel %vm1959, %v3822, %v3823
      %v3925 = vsel %vm1959, %v3821, %v3822
      %v3926 = vsel %vm1959, %v3820, %v3821
      %v3927 = vsel %vm1959, %v3819, %v3820
      %v3928 = vsel %vm1959, %v3818, %v3819
      %v3929 = vsel %vm1959, %v3817, %v3818
      %v3930 = vsel %vm1959, %v3816, %v3817
      %v3931 = vsel %vm1959, %v3815, %v3816
      %v3932 = vsel %vm1959, %v3814, %v3815
      %v3933 = vsel %vm1959, %v3813, %v3814
      %v3934 = vsel %vm1959, %v3812, %v3813
      %v3935 = vsel %vm1959, %v3811, %v3812
      %v3936 = vsel %vm1959, %v3810, %v3811
      %v3937 = vsel %vm1959, %v3809, %v3810
      %v3938 = vadd.f32 %v3188, %v3937
      %v3939 = vadd.f32 %v3192, %v3936
      %v3940 = vadd.f32 %v3198, %v3935
      %v3941 = vadd.f32 %v3202, %v3934
      %v3942 = vadd.f32 %v3208, %v3933
      %v3943 = vadd.f32 %v3212, %v3932
      %v3944 = vadd.f32 %v3218, %v3931
      %v3945 = vadd.f32 %v3222, %v3930
      %v3946 = vadd.f32 %v3228, %v3929
      %v3947 = vadd.f32 %v3232, %v3928
      %v3948 = vadd.f32 %v3238, %v3927
      %v3949 = vadd.f32 %v3242, %v3926
      %v3950 = vadd.f32 %v3248, %v3925
      %v3951 = vadd.f32 %v3252, %v3924
      %v3952 = vadd.f32 %v3258, %v3923
      %v3953 = vadd.f32 %v3262, %v3922
      %v3954 = vadd.f32 %v3268, %v3921
      %v3955 = vadd.f32 %v3272, %v3920
      %v3956 = vadd.f32 %v3278, %v3919
      %v3957 = vadd.f32 %v3282, %v3918
      %v3958 = vadd.f32 %v3288, %v3917
      %v3959 = vadd.f32 %v3292, %v3916
      %v3960 = vadd.f32 %v3298, %v3915
      %v3961 = vadd.f32 %v3302, %v3914
      %v3962 = vadd.f32 %v3308, %v3913
      %v3963 = vadd.f32 %v3312, %v3912
      %v3964 = vadd.f32 %v3318, %v3911
      %v3965 = vadd.f32 %v3322, %v3910
      %v3966 = vadd.f32 %v3328, %v3909
      %v3967 = vadd.f32 %v3332, %v3908
      %v3968 = vadd.f32 %v3338, %v3907
      %v3969 = vadd.f32 %v3342, %v3906
      %v3970 = vadd.f32 %v3348, %v3905
      %v3971 = vadd.f32 %v3352, %v3904
      %v3972 = vadd.f32 %v3358, %v3903
      %v3973 = vadd.f32 %v3362, %v3902
      %v3974 = vadd.f32 %v3368, %v3901
      %v3975 = vadd.f32 %v3372, %v3900
      %v3976 = vadd.f32 %v3378, %v3899
      %v3977 = vadd.f32 %v3382, %v3898
      %v3978 = vadd.f32 %v3388, %v3897
      %v3979 = vadd.f32 %v3392, %v3896
      %v3980 = vadd.f32 %v3398, %v3895
      %v3981 = vadd.f32 %v3402, %v3894
      %v3982 = vadd.f32 %v3408, %v3893
      %v3983 = vadd.f32 %v3412, %v3892
      %v3984 = vadd.f32 %v3418, %v3891
      %v3985 = vadd.f32 %v3422, %v3890
      %v3986 = vadd.f32 %v3428, %v3889
      %v3987 = vadd.f32 %v3432, %v3888
      %v3988 = vadd.f32 %v3438, %v3887
      %v3989 = vadd.f32 %v3442, %v3886
      %v3990 = vadd.f32 %v3448, %v3885
      %v3991 = vadd.f32 %v3452, %v3884
      %v3992 = vadd.f32 %v3458, %v3883
      %v3993 = vadd.f32 %v3462, %v3882
      %v3994 = vadd.f32 %v3468, %v3881
      %v3995 = vadd.f32 %v3472, %v3880
      %v3996 = vadd.f32 %v3478, %v3879
      %v3997 = vadd.f32 %v3482, %v3878
      %v3998 = vadd.f32 %v3488, %v3877
      %v3999 = vadd.f32 %v3492, %v3876
      %v4000 = vadd.f32 %v3498, %v3875
      %v4001 = vadd.f32 %v3502, %v3874
      %v4002 = vrot.slane %v3548, 2
      %v4003 = vrot.slane %v3551, 2
      %v4004 = vrot.slane %v3556, 2
      %v4005 = vrot.slane %v3559, 2
      %v4006 = vrot.slane %v3564, 2
      %v4007 = vrot.slane %v3567, 2
      %v4008 = vrot.slane %v3572, 2
      %v4009 = vrot.slane %v3575, 2
      %v4010 = vrot.slane %v3580, 2
      %v4011 = vrot.slane %v3583, 2
      %v4012 = vrot.slane %v3588, 2
      %v4013 = vrot.slane %v3591, 2
      %v4014 = vrot.slane %v3596, 2
      %v4015 = vrot.slane %v3599, 2
      %v4016 = vrot.slane %v3604, 2
      %v4017 = vrot.slane %v3607, 2
      %v4018 = vrot.slane %v3612, 2
      %v4019 = vrot.slane %v3615, 2
      %v4020 = vrot.slane %v3620, 2
      %v4021 = vrot.slane %v3623, 2
      %v4022 = vrot.slane %v3628, 2
      %v4023 = vrot.slane %v3631, 2
      %v4024 = vrot.slane %v3636, 2
      %v4025 = vrot.slane %v3639, 2
      %v4026 = vrot.slane %v3644, 2
      %v4027 = vrot.slane %v3647, 2
      %v4028 = vrot.slane %v3652, 2
      %v4029 = vrot.slane %v3655, 2
      %v4030 = vrot.slane %v3660, 2
      %v4031 = vrot.slane %v3663, 2
      %v4032 = vrot.slane %v3668, 2
      %v4033 = vrot.slane %v3671, 2
      %v4034 = vrot.slane %v3676, 2
      %v4035 = vrot.slane %v3679, 2
      %v4036 = vrot.slane %v3684, 2
      %v4037 = vrot.slane %v3687, 2
      %v4038 = vrot.slane %v3692, 2
      %v4039 = vrot.slane %v3695, 2
      %v4040 = vrot.slane %v3700, 2
      %v4041 = vrot.slane %v3703, 2
      %v4042 = vrot.slane %v3708, 2
      %v4043 = vrot.slane %v3711, 2
      %v4044 = vrot.slane %v3716, 2
      %v4045 = vrot.slane %v3719, 2
      %v4046 = vrot.slane %v3724, 2
      %v4047 = vrot.slane %v3727, 2
      %v4048 = vrot.slane %v3732, 2
      %v4049 = vrot.slane %v3735, 2
      %v4050 = vrot.slane %v3740, 2
      %v4051 = vrot.slane %v3743, 2
      %v4052 = vrot.slane %v3748, 2
      %v4053 = vrot.slane %v3751, 2
      %v4054 = vrot.slane %v3756, 2
      %v4055 = vrot.slane %v3759, 2
      %v4056 = vrot.slane %v3764, 2
      %v4057 = vrot.slane %v3767, 2
      %v4058 = vrot.slane %v3772, 2
      %v4059 = vrot.slane %v3775, 2
      %v4060 = vrot.slane %v3780, 2
      %v4061 = vrot.slane %v3783, 2
      %v4062 = vrot.slane %v3788, 2
      %v4063 = vrot.slane %v3791, 2
      %v4064 = vrot.slane %v3796, 2
      %v4065 = vrot.slane %v3799, 2
      %v4066 = vrot.slane %v3804, 2
      %v4067 = vsel %vm2158, %v4065, %v4066
      %v4068 = vsel %vm2158, %v4064, %v4065
      %v4069 = vsel %vm2158, %v4063, %v4064
      %v4070 = vsel %vm2158, %v4062, %v4063
      %v4071 = vsel %vm2158, %v4061, %v4062
      %v4072 = vsel %vm2158, %v4060, %v4061
      %v4073 = vsel %vm2158, %v4059, %v4060
      %v4074 = vsel %vm2158, %v4058, %v4059
      %v4075 = vsel %vm2158, %v4057, %v4058
      %v4076 = vsel %vm2158, %v4056, %v4057
      %v4077 = vsel %vm2158, %v4055, %v4056
      %v4078 = vsel %vm2158, %v4054, %v4055
      %v4079 = vsel %vm2158, %v4053, %v4054
      %v4080 = vsel %vm2158, %v4052, %v4053
      %v4081 = vsel %vm2158, %v4051, %v4052
      %v4082 = vsel %vm2158, %v4050, %v4051
      %v4083 = vsel %vm2158, %v4049, %v4050
      %v4084 = vsel %vm2158, %v4048, %v4049
      %v4085 = vsel %vm2158, %v4047, %v4048
      %v4086 = vsel %vm2158, %v4046, %v4047
      %v4087 = vsel %vm2158, %v4045, %v4046
      %v4088 = vsel %vm2158, %v4044, %v4045
      %v4089 = vsel %vm2158, %v4043, %v4044
      %v4090 = vsel %vm2158, %v4042, %v4043
      %v4091 = vsel %vm2158, %v4041, %v4042
      %v4092 = vsel %vm2158, %v4040, %v4041
      %v4093 = vsel %vm2158, %v4039, %v4040
      %v4094 = vsel %vm2158, %v4038, %v4039
      %v4095 = vsel %vm2158, %v4037, %v4038
      %v4096 = vsel %vm2158, %v4036, %v4037
      %v4097 = vsel %vm2158, %v4035, %v4036
      %v4098 = vsel %vm2158, %v4034, %v4035
      %v4099 = vsel %vm2158, %v4033, %v4034
      %v4100 = vsel %vm2158, %v4032, %v4033
      %v4101 = vsel %vm2158, %v4031, %v4032
      %v4102 = vsel %vm2158, %v4030, %v4031
      %v4103 = vsel %vm2158, %v4029, %v4030
      %v4104 = vsel %vm2158, %v4028, %v4029
      %v4105 = vsel %vm2158, %v4027, %v4028
      %v4106 = vsel %vm2158, %v4026, %v4027
      %v4107 = vsel %vm2158, %v4025, %v4026
      %v4108 = vsel %vm2158, %v4024, %v4025
      %v4109 = vsel %vm2158, %v4023, %v4024
      %v4110 = vsel %vm2158, %v4022, %v4023
      %v4111 = vsel %vm2158, %v4021, %v4022
      %v4112 = vsel %vm2158, %v4020, %v4021
      %v4113 = vsel %vm2158, %v4019, %v4020
      %v4114 = vsel %vm2158, %v4018, %v4019
      %v4115 = vsel %vm2158, %v4017, %v4018
      %v4116 = vsel %vm2158, %v4016, %v4017
      %v4117 = vsel %vm2158, %v4015, %v4016
      %v4118 = vsel %vm2158, %v4014, %v4015
      %v4119 = vsel %vm2158, %v4013, %v4014
      %v4120 = vsel %vm2158, %v4012, %v4013
      %v4121 = vsel %vm2158, %v4011, %v4012
      %v4122 = vsel %vm2158, %v4010, %v4011
      %v4123 = vsel %vm2158, %v4009, %v4010
      %v4124 = vsel %vm2158, %v4008, %v4009
      %v4125 = vsel %vm2158, %v4007, %v4008
      %v4126 = vsel %vm2158, %v4006, %v4007
      %v4127 = vsel %vm2158, %v4005, %v4006
      %v4128 = vsel %vm2158, %v4004, %v4005
      %v4129 = vsel %vm2158, %v4003, %v4004
      %v4130 = vsel %vm2158, %v4002, %v4003
      %v4131 = vadd.f32 %v3938, %v4130
      %v4132 = vadd.f32 %v3939, %v4129
      %v4133 = vadd.f32 %v3940, %v4128
      %v4134 = vadd.f32 %v3941, %v4127
      %v4135 = vadd.f32 %v3942, %v4126
      %v4136 = vadd.f32 %v3943, %v4125
      %v4137 = vadd.f32 %v3944, %v4124
      %v4138 = vadd.f32 %v3945, %v4123
      %v4139 = vadd.f32 %v3946, %v4122
      %v4140 = vadd.f32 %v3947, %v4121
      %v4141 = vadd.f32 %v3948, %v4120
      %v4142 = vadd.f32 %v3949, %v4119
      %v4143 = vadd.f32 %v3950, %v4118
      %v4144 = vadd.f32 %v3951, %v4117
      %v4145 = vadd.f32 %v3952, %v4116
      %v4146 = vadd.f32 %v3953, %v4115
      %v4147 = vadd.f32 %v3954, %v4114
      %v4148 = vadd.f32 %v3955, %v4113
      %v4149 = vadd.f32 %v3956, %v4112
      %v4150 = vadd.f32 %v3957, %v4111
      %v4151 = vadd.f32 %v3958, %v4110
      %v4152 = vadd.f32 %v3959, %v4109
      %v4153 = vadd.f32 %v3960, %v4108
      %v4154 = vadd.f32 %v3961, %v4107
      %v4155 = vadd.f32 %v3962, %v4106
      %v4156 = vadd.f32 %v3963, %v4105
      %v4157 = vadd.f32 %v3964, %v4104
      %v4158 = vadd.f32 %v3965, %v4103
      %v4159 = vadd.f32 %v3966, %v4102
      %v4160 = vadd.f32 %v3967, %v4101
      %v4161 = vadd.f32 %v3968, %v4100
      %v4162 = vadd.f32 %v3969, %v4099
      %v4163 = vadd.f32 %v3970, %v4098
      %v4164 = vadd.f32 %v3971, %v4097
      %v4165 = vadd.f32 %v3972, %v4096
      %v4166 = vadd.f32 %v3973, %v4095
      %v4167 = vadd.f32 %v3974, %v4094
      %v4168 = vadd.f32 %v3975, %v4093
      %v4169 = vadd.f32 %v3976, %v4092
      %v4170 = vadd.f32 %v3977, %v4091
      %v4171 = vadd.f32 %v3978, %v4090
      %v4172 = vadd.f32 %v3979, %v4089
      %v4173 = vadd.f32 %v3980, %v4088
      %v4174 = vadd.f32 %v3981, %v4087
      %v4175 = vadd.f32 %v3982, %v4086
      %v4176 = vadd.f32 %v3983, %v4085
      %v4177 = vadd.f32 %v3984, %v4084
      %v4178 = vadd.f32 %v3985, %v4083
      %v4179 = vadd.f32 %v3986, %v4082
      %v4180 = vadd.f32 %v3987, %v4081
      %v4181 = vadd.f32 %v3988, %v4080
      %v4182 = vadd.f32 %v3989, %v4079
      %v4183 = vadd.f32 %v3990, %v4078
      %v4184 = vadd.f32 %v3991, %v4077
      %v4185 = vadd.f32 %v3992, %v4076
      %v4186 = vadd.f32 %v3993, %v4075
      %v4187 = vadd.f32 %v3994, %v4074
      %v4188 = vadd.f32 %v3995, %v4073
      %v4189 = vadd.f32 %v3996, %v4072
      %v4190 = vadd.f32 %v3997, %v4071
      %v4191 = vadd.f32 %v3998, %v4070
      %v4192 = vadd.f32 %v3999, %v4069
      %v4193 = vadd.f32 %v4000, %v4068
      %v4194 = vadd.f32 %v4001, %v4067
      %v4195 = vld [vmem:[%s7] sm:$0x1]
      %v4197 = vlaneseq
      %v4198 = vshrl.u32 %v4197, 7
      %v4199 = vsub.s32 0, %v4198
      %v4200 = vrot.slane %v4195, %v4199
      %v4202 = vadd.f32 %v4131, %v4200
      %v4203 = vadd.f32 %v4132, %v4200
      %v4204 = vadd.f32 %v4133, %v4200
      %v4205 = vadd.f32 %v4134, %v4200
      %v4206 = vadd.f32 %v4135, %v4200
      %v4207 = vadd.f32 %v4136, %v4200
      %v4208 = vadd.f32 %v4137, %v4200
      %v4209 = vadd.f32 %v4138, %v4200
      %v4210 = vadd.f32 %v4139, %v4200
      %v4211 = vadd.f32 %v4140, %v4200
      %v4212 = vadd.f32 %v4141, %v4200
      %v4213 = vadd.f32 %v4142, %v4200
      %v4214 = vadd.f32 %v4143, %v4200
      %v4215 = vadd.f32 %v4144, %v4200
      %v4216 = vadd.f32 %v4145, %v4200
      %v4217 = vadd.f32 %v4146, %v4200
      %v4218 = vadd.f32 %v4147, %v4200
      %v4219 = vadd.f32 %v4148, %v4200
      %v4220 = vadd.f32 %v4149, %v4200
      %v4221 = vadd.f32 %v4150, %v4200
      %v4222 = vadd.f32 %v4151, %v4200
      %v4223 = vadd.f32 %v4152, %v4200
      %v4224 = vadd.f32 %v4153, %v4200
      %v4225 = vadd.f32 %v4154, %v4200
      %v4226 = vadd.f32 %v4155, %v4200
      %v4227 = vadd.f32 %v4156, %v4200
      %v4228 = vadd.f32 %v4157, %v4200
      %v4229 = vadd.f32 %v4158, %v4200
      %v4230 = vadd.f32 %v4159, %v4200
      %v4231 = vadd.f32 %v4160, %v4200
      %v4232 = vadd.f32 %v4161, %v4200
      %v4233 = vadd.f32 %v4162, %v4200
      %v4234 = vadd.f32 %v4163, %v4200
      %v4235 = vadd.f32 %v4164, %v4200
      %v4236 = vadd.f32 %v4165, %v4200
      %v4237 = vadd.f32 %v4166, %v4200
      %v4238 = vadd.f32 %v4167, %v4200
      %v4239 = vadd.f32 %v4168, %v4200
      %v4240 = vadd.f32 %v4169, %v4200
      %v4241 = vadd.f32 %v4170, %v4200
      %v4242 = vadd.f32 %v4171, %v4200
      %v4243 = vadd.f32 %v4172, %v4200
      %v4244 = vadd.f32 %v4173, %v4200
      %v4245 = vadd.f32 %v4174, %v4200
      %v4246 = vadd.f32 %v4175, %v4200
      %v4247 = vadd.f32 %v4176, %v4200
      %v4248 = vadd.f32 %v4177, %v4200
      %v4249 = vadd.f32 %v4178, %v4200
      %v4250 = vadd.f32 %v4179, %v4200
      %v4251 = vadd.f32 %v4180, %v4200
      %v4252 = vadd.f32 %v4181, %v4200
      %v4253 = vadd.f32 %v4182, %v4200
      %v4254 = vadd.f32 %v4183, %v4200
      %v4255 = vadd.f32 %v4184, %v4200
      %v4256 = vadd.f32 %v4185, %v4200
      %v4257 = vadd.f32 %v4186, %v4200
      %v4258 = vadd.f32 %v4187, %v4200
      %v4259 = vadd.f32 %v4188, %v4200
      %v4260 = vadd.f32 %v4189, %v4200
      %v4261 = vadd.f32 %v4190, %v4200
      %v4262 = vadd.f32 %v4191, %v4200
      %v4263 = vadd.f32 %v4192, %v4200
      %v4264 = vadd.f32 %v4193, %v4200
      %v4265 = vadd.f32 %v4194, %v4200
      %v4266 = vpack.c.bf16 %v4203, %v4202
      %v4267 = vpack.c.bf16 %v4205, %v4204
      %v4268 = vpack.c.bf16 %v4207, %v4206
      %v4269 = vpack.c.bf16 %v4209, %v4208
      %v4270 = vpack.c.bf16 %v4211, %v4210
      %v4271 = vpack.c.bf16 %v4213, %v4212
      %v4272 = vpack.c.bf16 %v4215, %v4214
      %v4273 = vpack.c.bf16 %v4217, %v4216
      %v4274 = vpack.c.bf16 %v4219, %v4218
      %v4275 = vpack.c.bf16 %v4221, %v4220
      %v4276 = vpack.c.bf16 %v4223, %v4222
      %v4277 = vpack.c.bf16 %v4225, %v4224
      %v4278 = vpack.c.bf16 %v4227, %v4226
      %v4279 = vpack.c.bf16 %v4229, %v4228
      %v4280 = vpack.c.bf16 %v4231, %v4230
      %v4281 = vpack.c.bf16 %v4233, %v4232
      %v4282 = vpack.c.bf16 %v4235, %v4234
      %v4283 = vpack.c.bf16 %v4237, %v4236
      %v4284 = vpack.c.bf16 %v4239, %v4238
      %v4285 = vpack.c.bf16 %v4241, %v4240
      %v4286 = vpack.c.bf16 %v4243, %v4242
      %v4287 = vpack.c.bf16 %v4245, %v4244
      %v4288 = vpack.c.bf16 %v4247, %v4246
      %v4289 = vpack.c.bf16 %v4249, %v4248
      %v4290 = vpack.c.bf16 %v4251, %v4250
      %v4291 = vpack.c.bf16 %v4253, %v4252
      %v4292 = vpack.c.bf16 %v4255, %v4254
      %v4293 = vpack.c.bf16 %v4257, %v4256
      %v4294 = vpack.c.bf16 %v4259, %v4258
      %v4295 = vpack.c.bf16 %v4261, %v4260
      %v4296 = vpack.c.bf16 %v4263, %v4262
      %v4297 = vpack.c.bf16 %v4265, %v4264
      %v4330 = vunpack.c.l.b16 %v4266
      %v4331 = vunpack.c.h.b16 %v4266
      %v4332 = vunpack.c.l.b16 %v4267
      %v4333 = vunpack.c.h.b16 %v4267
      %v4334 = vunpack.c.l.b16 %v4268
      %v4335 = vunpack.c.h.b16 %v4268
      %v4336 = vunpack.c.l.b16 %v4269
      %v4337 = vunpack.c.h.b16 %v4269
      %v4338 = vunpack.c.l.b16 %v4270
      %v4339 = vunpack.c.h.b16 %v4270
      %v4340 = vunpack.c.l.b16 %v4271
      %v4341 = vunpack.c.h.b16 %v4271
      %v4342 = vunpack.c.l.b16 %v4272
      %v4343 = vunpack.c.h.b16 %v4272
      %v4344 = vunpack.c.l.b16 %v4273
      %v4345 = vunpack.c.h.b16 %v4273
      %v4346 = vunpack.c.l.b16 %v4274
      %v4347 = vunpack.c.h.b16 %v4274
      %v4348 = vunpack.c.l.b16 %v4275
      %v4349 = vunpack.c.h.b16 %v4275
      %v4350 = vunpack.c.l.b16 %v4276
      %v4351 = vunpack.c.h.b16 %v4276
      %v4352 = vunpack.c.l.b16 %v4277
      %v4353 = vunpack.c.h.b16 %v4277
      %v4354 = vunpack.c.l.b16 %v4278
      %v4355 = vunpack.c.h.b16 %v4278
      %v4356 = vunpack.c.l.b16 %v4279
      %v4357 = vunpack.c.h.b16 %v4279
      %v4358 = vunpack.c.l.b16 %v4280
      %v4359 = vunpack.c.h.b16 %v4280
      %v4360 = vunpack.c.l.b16 %v4281
      %v4361 = vunpack.c.h.b16 %v4281
      %v4362 = vunpack.c.l.b16 %v4282
      %v4363 = vunpack.c.h.b16 %v4282
      %v4364 = vunpack.c.l.b16 %v4283
      %v4365 = vunpack.c.h.b16 %v4283
      %v4366 = vunpack.c.l.b16 %v4284
      %v4367 = vunpack.c.h.b16 %v4284
      %v4368 = vunpack.c.l.b16 %v4285
      %v4369 = vunpack.c.h.b16 %v4285
      %v4370 = vunpack.c.l.b16 %v4286
      %v4371 = vunpack.c.h.b16 %v4286
      %v4372 = vunpack.c.l.b16 %v4287
      %v4373 = vunpack.c.h.b16 %v4287
      %v4374 = vunpack.c.l.b16 %v4288
      %v4375 = vunpack.c.h.b16 %v4288
      %v4376 = vunpack.c.l.b16 %v4289
      %v4377 = vunpack.c.h.b16 %v4289
      %v4378 = vunpack.c.l.b16 %v4290
      %v4379 = vunpack.c.h.b16 %v4290
      %v4380 = vunpack.c.l.b16 %v4291
      %v4381 = vunpack.c.h.b16 %v4291
      %v4382 = vunpack.c.l.b16 %v4292
      %v4383 = vunpack.c.h.b16 %v4292
      %v4384 = vunpack.c.l.b16 %v4293
      %v4385 = vunpack.c.h.b16 %v4293
      %v4386 = vunpack.c.l.b16 %v4294
      %v4387 = vunpack.c.h.b16 %v4294
      %v4388 = vunpack.c.l.b16 %v4295
      %v4389 = vunpack.c.h.b16 %v4295
      %v4390 = vunpack.c.l.b16 %v4296
      %v4391 = vunpack.c.h.b16 %v4296
      %v4392 = vunpack.c.l.b16 %v4297
      %v4393 = vunpack.c.h.b16 %v4297
      %v4394 = vpack.c.b16 %v4330, %v4330
      %v4395 = vpack.c.b16 %v4331, %v4331
      %v4396 = vpack.c.b16 %v4332, %v4332
      %v4397 = vpack.c.b16 %v4333, %v4333
      %v4398 = vpack.c.b16 %v4334, %v4334
      %v4399 = vpack.c.b16 %v4335, %v4335
      %v4400 = vpack.c.b16 %v4336, %v4336
      %v4401 = vpack.c.b16 %v4337, %v4337
      %v4402 = vpack.c.b16 %v4338, %v4338
      %v4403 = vpack.c.b16 %v4339, %v4339
      %v4404 = vpack.c.b16 %v4340, %v4340
      %v4405 = vpack.c.b16 %v4341, %v4341
      %v4406 = vpack.c.b16 %v4342, %v4342
      %v4407 = vpack.c.b16 %v4343, %v4343
      %v4408 = vpack.c.b16 %v4344, %v4344
      %v4409 = vpack.c.b16 %v4345, %v4345
      %v4410 = vpack.c.b16 %v4346, %v4346
      %v4411 = vpack.c.b16 %v4347, %v4347
      %v4412 = vpack.c.b16 %v4348, %v4348
      %v4413 = vpack.c.b16 %v4349, %v4349
      %v4414 = vpack.c.b16 %v4350, %v4350
      %v4415 = vpack.c.b16 %v4351, %v4351
      %v4416 = vpack.c.b16 %v4352, %v4352
      %v4417 = vpack.c.b16 %v4353, %v4353
      %v4418 = vpack.c.b16 %v4354, %v4354
      %v4419 = vpack.c.b16 %v4355, %v4355
      %v4420 = vpack.c.b16 %v4356, %v4356
      %v4421 = vpack.c.b16 %v4357, %v4357
      %v4422 = vpack.c.b16 %v4358, %v4358
      %v4423 = vpack.c.b16 %v4359, %v4359
      %v4424 = vpack.c.b16 %v4360, %v4360
      %v4425 = vpack.c.b16 %v4361, %v4361
      %v4426 = vpack.c.b16 %v4362, %v4362
      %v4427 = vpack.c.b16 %v4363, %v4363
      %v4428 = vpack.c.b16 %v4364, %v4364
      %v4429 = vpack.c.b16 %v4365, %v4365
      %v4430 = vpack.c.b16 %v4366, %v4366
      %v4431 = vpack.c.b16 %v4367, %v4367
      %v4432 = vpack.c.b16 %v4368, %v4368
      %v4433 = vpack.c.b16 %v4369, %v4369
      %v4434 = vpack.c.b16 %v4370, %v4370
      %v4435 = vpack.c.b16 %v4371, %v4371
      %v4436 = vpack.c.b16 %v4372, %v4372
      %v4437 = vpack.c.b16 %v4373, %v4373
      %v4438 = vpack.c.b16 %v4374, %v4374
      %v4439 = vpack.c.b16 %v4375, %v4375
      %v4440 = vpack.c.b16 %v4376, %v4376
      %v4441 = vpack.c.b16 %v4377, %v4377
      %v4442 = vpack.c.b16 %v4378, %v4378
      %v4443 = vpack.c.b16 %v4379, %v4379
      %v4444 = vpack.c.b16 %v4380, %v4380
      %v4445 = vpack.c.b16 %v4381, %v4381
      %v4446 = vpack.c.b16 %v4382, %v4382
      %v4447 = vpack.c.b16 %v4383, %v4383
      %v4448 = vpack.c.b16 %v4384, %v4384
      %v4449 = vpack.c.b16 %v4385, %v4385
      %v4450 = vpack.c.b16 %v4386, %v4386
      %v4451 = vpack.c.b16 %v4387, %v4387
      %v4452 = vpack.c.b16 %v4388, %v4388
      %v4453 = vpack.c.b16 %v4389, %v4389
      %v4454 = vpack.c.b16 %v4390, %v4390
      %v4455 = vpack.c.b16 %v4391, %v4391
      %v4456 = vpack.c.b16 %v4392, %v4392
      %v4457 = vpack.c.b16 %v4393, %v4393
      %4522 = vst [vmem:[%s441] sm:$0xf] %v4394
      %4523 = vst [vmem:[%s441 + $0x4] sm:$0xf] %v4395
      %4524 = vst [vmem:[%s441 + $0x8] sm:$0xf] %v4396
      %4525 = vst [vmem:[%s441 + $0xc] sm:$0xf] %v4397
      %4526 = vst [vmem:[%s441 + $0x10] sm:$0xf] %v4398
      %4527 = vst [vmem:[%s441 + $0x14] sm:$0xf] %v4399
      %4528 = vst [vmem:[%s441 + $0x18] sm:$0xf] %v4400
      %4529 = vst [vmem:[%s441 + $0x1c] sm:$0xf] %v4401
      %4530 = vst [vmem:[%s441 + $0x20] sm:$0xf] %v4402
      %4531 = vst [vmem:[%s441 + $0x24] sm:$0xf] %v4403
      %4532 = vst [vmem:[%s441 + $0x28] sm:$0xf] %v4404
      %4533 = vst [vmem:[%s441 + $0x2c] sm:$0xf] %v4405
      %4534 = vst [vmem:[%s441 + $0x30] sm:$0xf] %v4406
      %4535 = vst [vmem:[%s441 + $0x34] sm:$0xf] %v4407
      %4536 = vst [vmem:[%s441 + $0x38] sm:$0xf] %v4408
      %4537 = vst [vmem:[%s441 + $0x3c] sm:$0xf] %v4409
      %4538 = vst [vmem:[%s441 + $0x40] sm:$0xf] %v4410
      %4539 = vst [vmem:[%s441 + $0x44] sm:$0xf] %v4411
      %4540 = vst [vmem:[%s441 + $0x48] sm:$0xf] %v4412
      %4541 = vst [vmem:[%s441 + $0x4c] sm:$0xf] %v4413
      %4542 = vst [vmem:[%s441 + $0x50] sm:$0xf] %v4414
      %4543 = vst [vmem:[%s441 + $0x54] sm:$0xf] %v4415
      %4544 = vst [vmem:[%s441 + $0x58] sm:$0xf] %v4416
      %4545 = vst [vmem:[%s441 + $0x5c] sm:$0xf] %v4417
      %4546 = vst [vmem:[%s441 + $0x60] sm:$0xf] %v4418
      %4547 = vst [vmem:[%s441 + $0x64] sm:$0xf] %v4419
      %4548 = vst [vmem:[%s441 + $0x68] sm:$0xf] %v4420
      %4549 = vst [vmem:[%s441 + $0x6c] sm:$0xf] %v4421
      %4550 = vst [vmem:[%s441 + $0x70] sm:$0xf] %v4422
      %4551 = vst [vmem:[%s441 + $0x74] sm:$0xf] %v4423
      %4552 = vst [vmem:[%s441 + $0x78] sm:$0xf] %v4424
      %4553 = vst [vmem:[%s441 + $0x7c] sm:$0xf] %v4425
      %4554 = vst [vmem:[%s441 + $0x80] sm:$0xf] %v4426
      %4555 = vst [vmem:[%s441 + $0x84] sm:$0xf] %v4427
      %4556 = vst [vmem:[%s441 + $0x88] sm:$0xf] %v4428
      %4557 = vst [vmem:[%s441 + $0x8c] sm:$0xf] %v4429
      %4558 = vst [vmem:[%s441 + $0x90] sm:$0xf] %v4430
      %4559 = vst [vmem:[%s441 + $0x94] sm:$0xf] %v4431
      %4560 = vst [vmem:[%s441 + $0x98] sm:$0xf] %v4432
      %4561 = vst [vmem:[%s441 + $0x9c] sm:$0xf] %v4433
      %4562 = vst [vmem:[%s441 + $0xa0] sm:$0xf] %v4434
      %4563 = vst [vmem:[%s441 + $0xa4] sm:$0xf] %v4435
      %4564 = vst [vmem:[%s441 + $0xa8] sm:$0xf] %v4436
      %4565 = vst [vmem:[%s441 + $0xac] sm:$0xf] %v4437
      %4566 = vst [vmem:[%s441 + $0xb0] sm:$0xf] %v4438
      %4567 = vst [vmem:[%s441 + $0xb4] sm:$0xf] %v4439
      %4568 = vst [vmem:[%s441 + $0xb8] sm:$0xf] %v4440
      %4569 = vst [vmem:[%s441 + $0xbc] sm:$0xf] %v4441
      %4570 = vst [vmem:[%s441 + $0xc0] sm:$0xf] %v4442
      %4571 = vst [vmem:[%s441 + $0xc4] sm:$0xf] %v4443
      %4572 = vst [vmem:[%s441 + $0xc8] sm:$0xf] %v4444
      %4573 = vst [vmem:[%s441 + $0xcc] sm:$0xf] %v4445
      %4574 = vst [vmem:[%s441 + $0xd0] sm:$0xf] %v4446
      %4575 = vst [vmem:[%s441 + $0xd4] sm:$0xf] %v4447
      %4576 = vst [vmem:[%s441 + $0xd8] sm:$0xf] %v4448
      %4577 = vst [vmem:[%s441 + $0xdc] sm:$0xf] %v4449
      %4578 = vst [vmem:[%s441 + $0xe0] sm:$0xf] %v4450
      %4579 = vst [vmem:[%s441 + $0xe4] sm:$0xf] %v4451
      %4580 = vst [vmem:[%s441 + $0xe8] sm:$0xf] %v4452
      %4581 = vst [vmem:[%s441 + $0xec] sm:$0xf] %v4453
      %4582 = vst [vmem:[%s441 + $0xf0] sm:$0xf] %v4454
      %4583 = vst [vmem:[%s441 + $0xf4] sm:$0xf] %v4455
      %4584 = vst [vmem:[%s441 + $0xf8] sm:$0xf] %v4456
      %4585 = vst [vmem:[%s441 + $0xfc] sm:$0xf] %v4457
      %s4586 = smul.u32 64, %s19
      %p4587 = scmp.lt.s32.totalorder %s4586, 255
      %s4588 = scalar_select %p4587, %s4586, 255
      %s4589 = smul.addr %s4588, 4
      %s4590 = scalar_lea.vmem %s8, %s4589
      // Predicated region
      $region53: #{nlgnn_forward.4} parent=51 // pred_check
        %p4591 = pneg %p233
      $region54: #{nlgnn_forward.4} parent=51 // pred_check_branch
        %4593 = sbr.rel (%p4591) target = $region56
      $region55: #{nlgnn_forward.4} parent=51 // pred_region
        %s4594 = smul.u32 64, %s19
      $region56: #{nlgnn_forward.4} parent=51 // pred_fallthru
        _
    $region52: #{nlgnn_forward.4} parent=5 // pred_fallthru
      _
    %p4595 = scmp.le.s32.totalorder 2, %s14
    // Predicated region
    $region57: #{nlgnn_forward.4} parent=5 // pred_check
      %p4596 = pneg %p4595
    $region58: #{nlgnn_forward.4} parent=5 // pred_check_branch
      %4598 = sbr.rel (%p4596) target = $region60
    $region59: #{nlgnn_forward.4} parent=5 // pred_region
      %s4599 = ssub.s32 %s14, 2
      // Predicated region
      $region61: #{nlgnn_forward.4} parent=59 // pred_check
        %p4600 = pneg %p239
      $region62: #{nlgnn_forward.4} parent=59 // pred_check_branch
        %4602 = sbr.rel (%p4600) target = $region64
      $region63: #{nlgnn_forward.4} parent=59 // pred_region
        %s4603 = smul.u32 64, %s20
        %p4604 = scmp.lt.s32.totalorder %s4603, 255
        %s4605 = scalar_select %p4604, %s4603, 255
        %s4606 = smul.addr %s4605, 4
        %s4607 = scalar_lea.vmem %s8, %s4606
      $region64: #{nlgnn_forward.4} parent=59 // pred_fallthru
        _
    $region60: #{nlgnn_forward.4} parent=5 // pred_fallthru
      _
  $region6: #{nlgnn_forward.4} parent=0 // loop_footer
    %s18 = sadd.s32 1, %s14
  $region7: #{nlgnn_forward.4} parent=0 // loop_footer_branch
    %13 = sbr.rel target = $region3
  $region8: #{nlgnn_forward.4} parent=0 // loop_exit
    _

// kernel: nlgnn_forward.5
$region0: #{nlgnn_forward.5}
  #allocation0 [shape = 'u32[]', space=smem, size = 0x4, offset = 0x4, fixed_abs, tag = 'smem constant byte address 0x4 - core index']
  #allocation1 [shape = 'u32[144,128]{1,0:T(1,128)}', space=vmem, size = 0x12000, scoped, tag = 'internal scratch']
  %s0 = inlined_call_operand.vmem [shape: bf16[2048,128], index: 0, kind: input, shape index: {}]
  %s1 = inlined_call_operand.vmem [shape: bf16[2048,128], index: 1, kind: input, shape index: {}]
  %s2 = inlined_call_operand.vmem [shape: bf16[128,8], index: 2, kind: input, shape index: {}]
  %s3 = inlined_call_operand.vmem [shape: bf16[128,8], index: 3, kind: input, shape index: {}]
  %s4 = inlined_call_operand.vmem [shape: f32[1,8], index: 4, kind: input, shape index: {}]
  %s5 = inlined_call_operand.vmem [shape: f32[2048,8], index: 5, kind: output, shape index: {}]
  %s6 = sld [smem:[#allocation0]]
  $region53: #{nlgnn_forward.5} parent=0
    _
  %s8 = ssub.s32 1, %s6
  %s9 = scalar_select 0, %s8, %s6
  loop: start=0, step=1, limit=6
  $region2: #{nlgnn_forward.5} parent=0 // loop_pre_header
    _
  $region3: #{nlgnn_forward.5} parent=0 // loop_header
    %s11 = sphi 0, %s15
    %p12 = scmp.ge.s32.totalorder %s11, 6
    %s21 = sphi 0, %s23
    %s24 = sphi 0, %s21
    %s25 = sphi 0, %s24
    %s41 = sphi 0, %s25
    %s47 = sphi 0, %s49
    %s50 = sphi 0, %s47
    %s51 = sphi 0, %s50
    %s67 = sphi 0, %s51
    %s71 = sphi 0, %s71
    %s73 = sphi 0, %s71
    %s74 = sphi 0, %s73
    %s88 = sphi 0, %s74
    %s92 = sphi 0, %s92
    %s94 = sphi 0, %s92
    %s95 = sphi 0, %s94
    %s109 = sphi 0, %s95
    %s113 = sphi 0, %s113
    %s115 = sphi 0, %s113
    %s116 = sphi 0, %s115
    %s130 = sphi 0, %s116
    %s136 = sphi 0, %s138
    %s139 = sphi 0, %s136
    %s140 = sphi 0, %s139
    %s156 = sphi 0, %s140
  $region4: #{nlgnn_forward.5} parent=0 // loop_header_branch
    %14 = sbr.rel (%p12) target = $region8
  $region5: #{nlgnn_forward.5} parent=0 // loop_body
    %s16 = ssub.s32 %s11, 1
    %s17 = ssub.s32 %s11, 2
    %s18 = sadd.s32 %s11, 1
    %s19 = ssub.s32 %s11, %s18
    %p20 = scmp.eq.s32.totalorder %s19, 0
    %s22 = sadd.s32 %s21, 1
    %s23 = scalar_select %p20, %s21, %s22
    %p26 = pneg %p20
    %p27 = scmp.eq.s32.totalorder %s11, 3
    %p28 = por %p26, %p27
    %p29 = scmp.ne.s32.totalorder %s21, %s24
    %p30 = scmp.eq.s32.totalorder %s11, 0
    %p31 = por %p29, %p30
    %p32 = scmp.ne.s32.totalorder %s21, %s24
    %p33 = scmp.eq.s32.totalorder %s16, 3
    %p34 = por %p32, %p33
    %p35 = scmp.ne.s32.totalorder %s24, %s25
    %p36 = scmp.eq.s32.totalorder %s16, 0
    %p37 = por %p35, %p36
    %p38 = scmp.ne.s32.totalorder %s24, %s25
    %p39 = scmp.eq.s32.totalorder %s17, 3
    %p40 = por %p38, %p39
    %p42 = scmp.ne.s32.totalorder %s25, %s41
    %p43 = scmp.eq.s32.totalorder %s17, 0
    %p44 = por %p42, %p43
    %s45 = ssub.s32 %s11, %s18
    %p46 = scmp.eq.s32.totalorder %s45, 0
    %s48 = sadd.s32 %s47, 1
    %s49 = scalar_select %p46, %s47, %s48
    %p52 = pneg %p46
    %p53 = scmp.eq.s32.totalorder %s11, 3
    %p54 = por %p52, %p53
    %p55 = scmp.ne.s32.totalorder %s47, %s50
    %p56 = scmp.eq.s32.totalorder %s11, 0
    %p57 = por %p55, %p56
    %p58 = scmp.ne.s32.totalorder %s47, %s50
    %p59 = scmp.eq.s32.totalorder %s16, 3
    %p60 = por %p58, %p59
    %p61 = scmp.ne.s32.totalorder %s50, %s51
    %p62 = scmp.eq.s32.totalorder %s16, 0
    %p63 = por %p61, %p62
    %p64 = scmp.ne.s32.totalorder %s50, %s51
    %p65 = scmp.eq.s32.totalorder %s17, 3
    %p66 = por %p64, %p65
    %p68 = scmp.ne.s32.totalorder %s51, %s67
    %p69 = scmp.eq.s32.totalorder %s17, 0
    %p70 = por %p68, %p69
    %s72 = sadd.s32 %s71, 1
    %p75 = scmp.eq.s32.totalorder %s11, 3
    %p76 = scmp.ne.s32.totalorder %s71, %s73
    %p77 = scmp.eq.s32.totalorder %s11, 0
    %p78 = por %p76, %p77
    %p79 = scmp.ne.s32.totalorder %s71, %s73
    %p80 = scmp.eq.s32.totalorder %s16, 3
    %p81 = por %p79, %p80
    %p82 = scmp.ne.s32.totalorder %s73, %s74
    %p83 = scmp.eq.s32.totalorder %s16, 0
    %p84 = por %p82, %p83
    %p85 = scmp.ne.s32.totalorder %s73, %s74
    %p86 = scmp.eq.s32.totalorder %s17, 3
    %p87 = por %p85, %p86
    %p89 = scmp.ne.s32.totalorder %s74, %s88
    %p90 = scmp.eq.s32.totalorder %s17, 0
    %p91 = por %p89, %p90
    %s93 = sadd.s32 %s92, 1
    %p96 = scmp.eq.s32.totalorder %s11, 3
    %p97 = scmp.ne.s32.totalorder %s92, %s94
    %p98 = scmp.eq.s32.totalorder %s11, 0
    %p99 = por %p97, %p98
    %p100 = scmp.ne.s32.totalorder %s92, %s94
    %p101 = scmp.eq.s32.totalorder %s16, 3
    %p102 = por %p100, %p101
    %p103 = scmp.ne.s32.totalorder %s94, %s95
    %p104 = scmp.eq.s32.totalorder %s16, 0
    %p105 = por %p103, %p104
    %p106 = scmp.ne.s32.totalorder %s94, %s95
    %p107 = scmp.eq.s32.totalorder %s17, 3
    %p108 = por %p106, %p107
    %p110 = scmp.ne.s32.totalorder %s95, %s109
    %p111 = scmp.eq.s32.totalorder %s17, 0
    %p112 = por %p110, %p111
    %s114 = sadd.s32 %s113, 1
    %p117 = scmp.eq.s32.totalorder %s11, 3
    %p118 = scmp.ne.s32.totalorder %s113, %s115
    %p119 = scmp.eq.s32.totalorder %s11, 0
    %p120 = por %p118, %p119
    %p121 = scmp.ne.s32.totalorder %s113, %s115
    %p122 = scmp.eq.s32.totalorder %s16, 3
    %p123 = por %p121, %p122
    %p124 = scmp.ne.s32.totalorder %s115, %s116
    %p125 = scmp.eq.s32.totalorder %s16, 0
    %p126 = por %p124, %p125
    %p127 = scmp.ne.s32.totalorder %s115, %s116
    %p128 = scmp.eq.s32.totalorder %s17, 3
    %p129 = por %p127, %p128
    %p131 = scmp.ne.s32.totalorder %s116, %s130
    %p132 = scmp.eq.s32.totalorder %s17, 0
    %p133 = por %p131, %p132
    %s134 = ssub.s32 %s11, %s18
    %p135 = scmp.eq.s32.totalorder %s134, 0
    %s137 = sadd.s32 %s136, 1
    %s138 = scalar_select %p135, %s136, %s137
    %p141 = pneg %p135
    %p142 = scmp.eq.s32.totalorder %s11, 3
    %p143 = por %p141, %p142
    %p144 = scmp.ne.s32.totalorder %s136, %s139
    %p145 = scmp.eq.s32.totalorder %s11, 0
    %p146 = por %p144, %p145
    %p147 = scmp.ne.s32.totalorder %s136, %s139
    %p148 = scmp.eq.s32.totalorder %s16, 3
    %p149 = por %p147, %p148
    %p150 = scmp.ne.s32.totalorder %s139, %s140
    %p151 = scmp.eq.s32.totalorder %s16, 0
    %p152 = por %p150, %p151
    %p153 = scmp.ne.s32.totalorder %s139, %s140
    %p154 = scmp.eq.s32.totalorder %s17, 3
    %p155 = por %p153, %p154
    %p157 = scmp.ne.s32.totalorder %s140, %s156
    %p158 = scmp.eq.s32.totalorder %s17, 0
    %p159 = por %p157, %p158
    %p160 = scmp.le.s32.totalorder 1, %s11
    %p161 = scmp.lt.s32.totalorder %s11, 5
    %p162 = pnand %p160, %p161
    %p163 = pneg %p162
    // Predicated region
    $region9: #{nlgnn_forward.5} parent=5 // pred_check
      _
    $region10: #{nlgnn_forward.5} parent=5 // pred_check_branch
      %165 = sbr.rel (%p162) target = $region12
    $region11: #{nlgnn_forward.5} parent=5 // pred_region
      %s166 = ssub.s32 %s11, 1
      // Predicated region
      $region13: #{nlgnn_forward.5} parent=11 // pred_check
        %p167 = pneg %p84
      $region14: #{nlgnn_forward.5} parent=11 // pred_check_branch
        %169 = sbr.rel (%p167) target = $region16
      $region15: #{nlgnn_forward.5} parent=11 // pred_region
        _
      $region16: #{nlgnn_forward.5} parent=11 // pred_fallthru
        _
      // Predicated region
      $region17: #{nlgnn_forward.5} parent=11 // pred_check
        %p170 = pneg %p105
      $region18: #{nlgnn_forward.5} parent=11 // pred_check_branch
        %172 = sbr.rel (%p170) target = $region20
      $region19: #{nlgnn_forward.5} parent=11 // pred_region
        _
      $region20: #{nlgnn_forward.5} parent=11 // pred_fallthru
        _
      // Predicated region
      $region21: #{nlgnn_forward.5} parent=11 // pred_check
        %p173 = pneg %p126
      $region22: #{nlgnn_forward.5} parent=11 // pred_check_branch
        %175 = sbr.rel (%p173) target = $region24
      $region23: #{nlgnn_forward.5} parent=11 // pred_region
        _
      $region24: #{nlgnn_forward.5} parent=11 // pred_fallthru
        _
    $region12: #{nlgnn_forward.5} parent=5 // pred_fallthru
      _
    %p176 = scmp.lt.s32.totalorder %s11, 4
    // Predicated region
    $region25: #{nlgnn_forward.5} parent=5 // pred_check
      %p177 = pneg %p176
    $region26: #{nlgnn_forward.5} parent=5 // pred_check_branch
      %179 = sbr.rel (%p177) target = $region28
    $region27: #{nlgnn_forward.5} parent=5 // pred_region
      // Predicated region
      $region29: #{nlgnn_forward.5} parent=27 // pred_check
        %p180 = pneg %p31
      $region30: #{nlgnn_forward.5} parent=27 // pred_check_branch
        %182 = sbr.rel (%p180) target = $region32
      $region31: #{nlgnn_forward.5} parent=27 // pred_region
        %s183 = smul.u32 64, %s11
        %p184 = scmp.lt.s32.totalorder %s183, 255
        %s185 = scalar_select %p184, %s183, 255
        %s186 = smul.addr %s185, 4
        %s187 = scalar_lea.vmem %s0, %s186
        %s188 = smul.u32 64, %s11
      $region32: #{nlgnn_forward.5} parent=27 // pred_fallthru
        _
      // Predicated region
      $region33: #{nlgnn_forward.5} parent=27 // pred_check
        %p189 = pneg %p57
      $region34: #{nlgnn_forward.5} parent=27 // pred_check_branch
        %191 = sbr.rel (%p189) target = $region36
      $region35: #{nlgnn_forward.5} parent=27 // pred_region
        %s192 = smul.u32 64, %s11
        %p193 = scmp.lt.s32.totalorder %s192, 255
        %s194 = scalar_select %p193, %s192, 255
        %s195 = smul.addr %s194, 4
        %s196 = scalar_lea.vmem %s1, %s195
        %s197 = smul.u32 64, %s11
      $region36: #{nlgnn_forward.5} parent=27 // pred_fallthru
        _
    $region28: #{nlgnn_forward.5} parent=5 // pred_fallthru
      _
    %p198 = scmp.le.s32.totalorder 1, %s11
    %p199 = scmp.lt.s32.totalorder %s11, 5
    %p200 = pnand %p198, %p199
    %p201 = pneg %p200
    // Predicated region
    $region37: #{nlgnn_forward.5} parent=5 // pred_check
      _
    $region38: #{nlgnn_forward.5} parent=5 // pred_check_branch
      %203 = sbr.rel (%p200) target = $region40
    $region39: #{nlgnn_forward.5} parent=5 // pred_region
      %s204 = ssub.s32 %s11, 1
      %s205 = smul.u32 64, %s16
      %p206 = scmp.lt.s32.totalorder %s205, 255
      %s207 = scalar_select %p206, %s205, 255
      %s208 = smul.addr %s207, 4
      %s209 = scalar_lea.vmem %s0, %s208
      %p210 = pneg %p37
      %p211 = pneg %p34
      %s212 = smul.u32 64, %s16
      %p213 = scmp.lt.s32.totalorder %s212, 255
      %s214 = scalar_select %p213, %s212, 255
      %s215 = smul.addr %s214, 4
      %s216 = scalar_lea.vmem %s1, %s215
      %p217 = pneg %p63
      %p218 = pneg %p60
      %p219 = pneg %p84
      %p220 = pneg %p81
      %p221 = pneg %p105
      %p222 = pneg %p102
      %p223 = pneg %p126
      %p224 = pneg %p123
      %p225 = pneg %p152
      %p226 = pneg %p149
      %s227 = smul.u32 64, %s16
      %p228 = scmp.lt.s32.totalorder %s227, 255
      %s229 = scalar_select %p228, %s227, 255
      %s230 = smul.addr %s229, 8
      %s231 = scalar_lea.vmem %s5, %s230
      %s232 = smul.u32 64, %s16
      %p233 = scmp.lt.s32.totalorder %s232, 255
      %s234 = scalar_select %p233, %s232, 255
      %s235 = smul.addr %s234, 4
      %s236 = scalar_lea.vmem %s0, %s235
      %s237 = smul.u32 64, %s16
      %s238 = smul.u32 64, %s16
      %p239 = scmp.lt.s32.totalorder %s238, 255
      %s240 = scalar_select %p239, %s238, 255
      %s241 = smul.addr %s240, 4
      %s242 = scalar_lea.vmem %s1, %s241
      %s243 = smul.u32 64, %s16
      %s244 = smul.u32 64, %s16
      %p245 = scmp.lt.s32.totalorder %s244, 255
      %s246 = scalar_select %p245, %s244, 255
      %s247 = smul.addr %s246, 8
      %s248 = scalar_lea.vmem %s5, %s247
      %s249 = smul.u32 64, %s16
      %v251 = vld [vmem:[%s236] sm:$0xf]
      %v252 = vld [vmem:[%s236 + $0x4] sm:$0xf]
      %v253 = vld [vmem:[%s236 + $0x8] sm:$0xf]
      %v254 = vld [vmem:[%s236 + $0xc] sm:$0xf]
      %v255 = vld [vmem:[%s236 + $0x10] sm:$0xf]
      %v256 = vld [vmem:[%s236 + $0x14] sm:$0xf]
      %v257 = vld [vmem:[%s236 + $0x18] sm:$0xf]
      %v258 = vld [vmem:[%s236 + $0x1c] sm:$0xf]
      %v259 = vld [vmem:[%s236 + $0x20] sm:$0xf]
      %v260 = vld [vmem:[%s236 + $0x24] sm:$0xf]
      %v261 = vld [vmem:[%s236 + $0x28] sm:$0xf]
      %v262 = vld [vmem:[%s236 + $0x2c] sm:$0xf]
      %v263 = vld [vmem:[%s236 + $0x30] sm:$0xf]
      %v264 = vld [vmem:[%s236 + $0x34] sm:$0xf]
      %v265 = vld [vmem:[%s236 + $0x38] sm:$0xf]
      %v266 = vld [vmem:[%s236 + $0x3c] sm:$0xf]
      %v267 = vld [vmem:[%s236 + $0x40] sm:$0xf]
      %v268 = vld [vmem:[%s236 + $0x44] sm:$0xf]
      %v269 = vld [vmem:[%s236 + $0x48] sm:$0xf]
      %v270 = vld [vmem:[%s236 + $0x4c] sm:$0xf]
      %v271 = vld [vmem:[%s236 + $0x50] sm:$0xf]
      %v272 = vld [vmem:[%s236 + $0x54] sm:$0xf]
      %v273 = vld [vmem:[%s236 + $0x58] sm:$0xf]
      %v274 = vld [vmem:[%s236 + $0x5c] sm:$0xf]
      %v275 = vld [vmem:[%s236 + $0x60] sm:$0xf]
      %v276 = vld [vmem:[%s236 + $0x64] sm:$0xf]
      %v277 = vld [vmem:[%s236 + $0x68] sm:$0xf]
      %v278 = vld [vmem:[%s236 + $0x6c] sm:$0xf]
      %v279 = vld [vmem:[%s236 + $0x70] sm:$0xf]
      %v280 = vld [vmem:[%s236 + $0x74] sm:$0xf]
      %v281 = vld [vmem:[%s236 + $0x78] sm:$0xf]
      %v282 = vld [vmem:[%s236 + $0x7c] sm:$0xf]
      %v283 = vld [vmem:[%s236 + $0x80] sm:$0xf]
      %v284 = vld [vmem:[%s236 + $0x84] sm:$0xf]
      %v285 = vld [vmem:[%s236 + $0x88] sm:$0xf]
      %v286 = vld [vmem:[%s236 + $0x8c] sm:$0xf]
      %v287 = vld [vmem:[%s236 + $0x90] sm:$0xf]
      %v288 = vld [vmem:[%s236 + $0x94] sm:$0xf]
      %v289 = vld [vmem:[%s236 + $0x98] sm:$0xf]
      %v290 = vld [vmem:[%s236 + $0x9c] sm:$0xf]
      %v291 = vld [vmem:[%s236 + $0xa0] sm:$0xf]
      %v292 = vld [vmem:[%s236 + $0xa4] sm:$0xf]
      %v293 = vld [vmem:[%s236 + $0xa8] sm:$0xf]
      %v294 = vld [vmem:[%s236 + $0xac] sm:$0xf]
      %v295 = vld [vmem:[%s236 + $0xb0] sm:$0xf]
      %v296 = vld [vmem:[%s236 + $0xb4] sm:$0xf]
      %v297 = vld [vmem:[%s236 + $0xb8] sm:$0xf]
      %v298 = vld [vmem:[%s236 + $0xbc] sm:$0xf]
      %v299 = vld [vmem:[%s236 + $0xc0] sm:$0xf]
      %v300 = vld [vmem:[%s236 + $0xc4] sm:$0xf]
      %v301 = vld [vmem:[%s236 + $0xc8] sm:$0xf]
      %v302 = vld [vmem:[%s236 + $0xcc] sm:$0xf]
      %v303 = vld [vmem:[%s236 + $0xd0] sm:$0xf]
      %v304 = vld [vmem:[%s236 + $0xd4] sm:$0xf]
      %v305 = vld [vmem:[%s236 + $0xd8] sm:$0xf]
      %v306 = vld [vmem:[%s236 + $0xdc] sm:$0xf]
      %v307 = vld [vmem:[%s236 + $0xe0] sm:$0xf]
      %v308 = vld [vmem:[%s236 + $0xe4] sm:$0xf]
      %v309 = vld [vmem:[%s236 + $0xe8] sm:$0xf]
      %v310 = vld [vmem:[%s236 + $0xec] sm:$0xf]
      %v311 = vld [vmem:[%s236 + $0xf0] sm:$0xf]
      %v312 = vld [vmem:[%s236 + $0xf4] sm:$0xf]
      %v313 = vld [vmem:[%s236 + $0xf8] sm:$0xf]
      %v314 = vld [vmem:[%s236 + $0xfc] sm:$0xf]
      %v315 = vld [vmem:[%s2] sm:$0xf]
      %v316 = vld [vmem:[%s2 + $0x4] sm:$0xf]
      %v317 = vld [vmem:[%s2 + $0x8] sm:$0xf]
      %v318 = vld [vmem:[%s2 + $0xc] sm:$0xf]
      %v319 = vld [vmem:[%s2 + $0x10] sm:$0xf]
      %v320 = vld [vmem:[%s2 + $0x14] sm:$0xf]
      %v321 = vld [vmem:[%s2 + $0x18] sm:$0xf]
      %v322 = vld [vmem:[%s2 + $0x1c] sm:$0xf]
      %v323 = vld [vmem:[%s2 + $0x20] sm:$0xf]
      %v324 = vld [vmem:[%s2 + $0x24] sm:$0xf]
      %v325 = vld [vmem:[%s2 + $0x28] sm:$0xf]
      %v326 = vld [vmem:[%s2 + $0x2c] sm:$0xf]
      %v327 = vld [vmem:[%s2 + $0x30] sm:$0xf]
      %v328 = vld [vmem:[%s2 + $0x34] sm:$0xf]
      %v329 = vld [vmem:[%s2 + $0x38] sm:$0xf]
      %v330 = vld [vmem:[%s2 + $0x3c] sm:$0xf]
      %v331 = vld [vmem:[%s242] sm:$0xf]
      %v332 = vld [vmem:[%s242 + $0x4] sm:$0xf]
      %v333 = vld [vmem:[%s242 + $0x8] sm:$0xf]
      %v334 = vld [vmem:[%s242 + $0xc] sm:$0xf]
      %v335 = vld [vmem:[%s242 + $0x10] sm:$0xf]
      %v336 = vld [vmem:[%s242 + $0x14] sm:$0xf]
      %v337 = vld [vmem:[%s242 + $0x18] sm:$0xf]
      %v338 = vld [vmem:[%s242 + $0x1c] sm:$0xf]
      %v339 = vld [vmem:[%s242 + $0x20] sm:$0xf]
      %v340 = vld [vmem:[%s242 + $0x24] sm:$0xf]
      %v341 = vld [vmem:[%s242 + $0x28] sm:$0xf]
      %v342 = vld [vmem:[%s242 + $0x2c] sm:$0xf]
      %v343 = vld [vmem:[%s242 + $0x30] sm:$0xf]
      %v344 = vld [vmem:[%s242 + $0x34] sm:$0xf]
      %v345 = vld [vmem:[%s242 + $0x38] sm:$0xf]
      %v346 = vld [vmem:[%s242 + $0x3c] sm:$0xf]
      %v347 = vld [vmem:[%s242 + $0x40] sm:$0xf]
      %v348 = vld [vmem:[%s242 + $0x44] sm:$0xf]
      %v349 = vld [vmem:[%s242 + $0x48] sm:$0xf]
      %v350 = vld [vmem:[%s242 + $0x4c] sm:$0xf]
      %v351 = vld [vmem:[%s242 + $0x50] sm:$0xf]
      %v352 = vld [vmem:[%s242 + $0x54] sm:$0xf]
      %v353 = vld [vmem:[%s242 + $0x58] sm:$0xf]
      %v354 = vld [vmem:[%s242 + $0x5c] sm:$0xf]
      %v355 = vld [vmem:[%s242 + $0x60] sm:$0xf]
      %v356 = vld [vmem:[%s242 + $0x64] sm:$0xf]
      %v357 = vld [vmem:[%s242 + $0x68] sm:$0xf]
      %v358 = vld [vmem:[%s242 + $0x6c] sm:$0xf]
      %v359 = vld [vmem:[%s242 + $0x70] sm:$0xf]
      %v360 = vld [vmem:[%s242 + $0x74] sm:$0xf]
      %v361 = vld [vmem:[%s242 + $0x78] sm:$0xf]
      %v362 = vld [vmem:[%s242 + $0x7c] sm:$0xf]
      %v363 = vld [vmem:[%s242 + $0x80] sm:$0xf]
      %v364 = vld [vmem:[%s242 + $0x84] sm:$0xf]
      %v365 = vld [vmem:[%s242 + $0x88] sm:$0xf]
      %v366 = vld [vmem:[%s242 + $0x8c] sm:$0xf]
      %v367 = vld [vmem:[%s242 + $0x90] sm:$0xf]
      %v368 = vld [vmem:[%s242 + $0x94] sm:$0xf]
      %v369 = vld [vmem:[%s242 + $0x98] sm:$0xf]
      %v370 = vld [vmem:[%s242 + $0x9c] sm:$0xf]
      %v371 = vld [vmem:[%s242 + $0xa0] sm:$0xf]
      %v372 = vld [vmem:[%s242 + $0xa4] sm:$0xf]
      %v373 = vld [vmem:[%s242 + $0xa8] sm:$0xf]
      %v374 = vld [vmem:[%s242 + $0xac] sm:$0xf]
      %v375 = vld [vmem:[%s242 + $0xb0] sm:$0xf]
      %v376 = vld [vmem:[%s242 + $0xb4] sm:$0xf]
      %v377 = vld [vmem:[%s242 + $0xb8] sm:$0xf]
      %v378 = vld [vmem:[%s242 + $0xbc] sm:$0xf]
      %v379 = vld [vmem:[%s242 + $0xc0] sm:$0xf]
      %v380 = vld [vmem:[%s242 + $0xc4] sm:$0xf]
      %v381 = vld [vmem:[%s242 + $0xc8] sm:$0xf]
      %v382 = vld [vmem:[%s242 + $0xcc] sm:$0xf]
      %v383 = vld [vmem:[%s242 + $0xd0] sm:$0xf]
      %v384 = vld [vmem:[%s242 + $0xd4] sm:$0xf]
      %v385 = vld [vmem:[%s242 + $0xd8] sm:$0xf]
      %v386 = vld [vmem:[%s242 + $0xdc] sm:$0xf]
      %v387 = vld [vmem:[%s242 + $0xe0] sm:$0xf]
      %v388 = vld [vmem:[%s242 + $0xe4] sm:$0xf]
      %v389 = vld [vmem:[%s242 + $0xe8] sm:$0xf]
      %v390 = vld [vmem:[%s242 + $0xec] sm:$0xf]
      %v391 = vld [vmem:[%s242 + $0xf0] sm:$0xf]
      %v392 = vld [vmem:[%s242 + $0xf4] sm:$0xf]
      %v393 = vld [vmem:[%s242 + $0xf8] sm:$0xf]
      %v394 = vld [vmem:[%s242 + $0xfc] sm:$0xf]
      %v395 = vld [vmem:[%s3] sm:$0xf]
      %v396 = vld [vmem:[%s3 + $0x4] sm:$0xf]
      %v397 = vld [vmem:[%s3 + $0x8] sm:$0xf]
      %v398 = vld [vmem:[%s3 + $0xc] sm:$0xf]
      %v399 = vld [vmem:[%s3 + $0x10] sm:$0xf]
      %v400 = vld [vmem:[%s3 + $0x14] sm:$0xf]
      %v401 = vld [vmem:[%s3 + $0x18] sm:$0xf]
      %v402 = vld [vmem:[%s3 + $0x1c] sm:$0xf]
      %v403 = vld [vmem:[%s3 + $0x20] sm:$0xf]
      %v404 = vld [vmem:[%s3 + $0x24] sm:$0xf]
      %v405 = vld [vmem:[%s3 + $0x28] sm:$0xf]
      %v406 = vld [vmem:[%s3 + $0x2c] sm:$0xf]
      %v407 = vld [vmem:[%s3 + $0x30] sm:$0xf]
      %v408 = vld [vmem:[%s3 + $0x34] sm:$0xf]
      %v409 = vld [vmem:[%s3 + $0x38] sm:$0xf]
      %v410 = vld [vmem:[%s3 + $0x3c] sm:$0xf]
      %v475 = vunpack.c.l.b16 %v331
      %v476 = vunpack.c.l.b16 %v332
      %v477 = vunpack.c.l.b16 %v333
      %v478 = vunpack.c.l.b16 %v334
      %v479 = vunpack.c.l.b16 %v335
      %v480 = vunpack.c.l.b16 %v336
      %v481 = vunpack.c.l.b16 %v337
      %v482 = vunpack.c.l.b16 %v338
      %v483 = vunpack.c.l.b16 %v339
      %v484 = vunpack.c.l.b16 %v340
      %v485 = vunpack.c.l.b16 %v341
      %v486 = vunpack.c.l.b16 %v342
      %v487 = vunpack.c.l.b16 %v343
      %v488 = vunpack.c.l.b16 %v344
      %v489 = vunpack.c.l.b16 %v345
      %v490 = vunpack.c.l.b16 %v346
      %v491 = vunpack.c.l.b16 %v347
      %v492 = vunpack.c.l.b16 %v348
      %v493 = vunpack.c.l.b16 %v349
      %v494 = vunpack.c.l.b16 %v350
      %v495 = vunpack.c.l.b16 %v351
      %v496 = vunpack.c.l.b16 %v352
      %v497 = vunpack.c.l.b16 %v353
      %v498 = vunpack.c.l.b16 %v354
      %v499 = vunpack.c.l.b16 %v355
      %v500 = vunpack.c.l.b16 %v356
      %v501 = vunpack.c.l.b16 %v357
      %v502 = vunpack.c.l.b16 %v358
      %v503 = vunpack.c.l.b16 %v359
      %v504 = vunpack.c.l.b16 %v360
      %v505 = vunpack.c.l.b16 %v361
      %v506 = vunpack.c.l.b16 %v362
      %v507 = vunpack.c.l.b16 %v363
      %v508 = vunpack.c.l.b16 %v364
      %v509 = vunpack.c.l.b16 %v365
      %v510 = vunpack.c.l.b16 %v366
      %v511 = vunpack.c.l.b16 %v367
      %v512 = vunpack.c.l.b16 %v368
      %v513 = vunpack.c.l.b16 %v369
      %v514 = vunpack.c.l.b16 %v370
      %v515 = vunpack.c.l.b16 %v371
      %v516 = vunpack.c.l.b16 %v372
      %v517 = vunpack.c.l.b16 %v373
      %v518 = vunpack.c.l.b16 %v374
      %v519 = vunpack.c.l.b16 %v375
      %v520 = vunpack.c.l.b16 %v376
      %v521 = vunpack.c.l.b16 %v377
      %v522 = vunpack.c.l.b16 %v378
      %v523 = vunpack.c.l.b16 %v379
      %v524 = vunpack.c.l.b16 %v380
      %v525 = vunpack.c.l.b16 %v381
      %v526 = vunpack.c.l.b16 %v382
      %v527 = vunpack.c.l.b16 %v383
      %v528 = vunpack.c.l.b16 %v384
      %v529 = vunpack.c.l.b16 %v385
      %v530 = vunpack.c.l.b16 %v386
      %v531 = vunpack.c.l.b16 %v387
      %v532 = vunpack.c.l.b16 %v388
      %v533 = vunpack.c.l.b16 %v389
      %v534 = vunpack.c.l.b16 %v390
      %v535 = vunpack.c.l.b16 %v391
      %v536 = vunpack.c.l.b16 %v392
      %v537 = vunpack.c.l.b16 %v393
      %v538 = vunpack.c.l.b16 %v394
      %v539 = vpack.c.b16 %v476, %v475
      %v540 = vpack.c.b16 %v478, %v477
      %v541 = vpack.c.b16 %v480, %v479
      %v542 = vpack.c.b16 %v482, %v481
      %v543 = vpack.c.b16 %v484, %v483
      %v544 = vpack.c.b16 %v486, %v485
      %v545 = vpack.c.b16 %v488, %v487
      %v546 = vpack.c.b16 %v490, %v489
      %v547 = vpack.c.b16 %v492, %v491
      %v548 = vpack.c.b16 %v494, %v493
      %v549 = vpack.c.b16 %v496, %v495
      %v550 = vpack.c.b16 %v498, %v497
      %v551 = vpack.c.b16 %v500, %v499
      %v552 = vpack.c.b16 %v502, %v501
      %v553 = vpack.c.b16 %v504, %v503
      %v554 = vpack.c.b16 %v506, %v505
      %v555 = vpack.c.b16 %v508, %v507
      %v556 = vpack.c.b16 %v510, %v509
      %v557 = vpack.c.b16 %v512, %v511
      %v558 = vpack.c.b16 %v514, %v513
      %v559 = vpack.c.b16 %v516, %v515
      %v560 = vpack.c.b16 %v518, %v517
      %v561 = vpack.c.b16 %v520, %v519
      %v562 = vpack.c.b16 %v522, %v521
      %v563 = vpack.c.b16 %v524, %v523
      %v564 = vpack.c.b16 %v526, %v525
      %v565 = vpack.c.b16 %v528, %v527
      %v566 = vpack.c.b16 %v530, %v529
      %v567 = vpack.c.b16 %v532, %v531
      %v568 = vpack.c.b16 %v534, %v533
      %v569 = vpack.c.b16 %v536, %v535
      %v570 = vpack.c.b16 %v538, %v537
      %v619 = vunpack.c.l.b16 %v395
      %v620 = vunpack.c.l.b16 %v396
      %v621 = vunpack.c.l.b16 %v397
      %v622 = vunpack.c.l.b16 %v398
      %v623 = vunpack.c.l.b16 %v399
      %v624 = vunpack.c.l.b16 %v400
      %v625 = vunpack.c.l.b16 %v401
      %v626 = vunpack.c.l.b16 %v402
      %v627 = vunpack.c.l.b16 %v403
      %v628 = vunpack.c.l.b16 %v404
      %v629 = vunpack.c.l.b16 %v405
      %v630 = vunpack.c.l.b16 %v406
      %v631 = vunpack.c.l.b16 %v407
      %v632 = vunpack.c.l.b16 %v408
      %v633 = vunpack.c.l.b16 %v409
      %v634 = vunpack.c.l.b16 %v410
      %v635 = vpack.c.b16 %v620, %v619
      %v636 = vpack.c.b16 %v622, %v621
      %v637 = vpack.c.b16 %v624, %v623
      %v638 = vpack.c.b16 %v626, %v625
      %v639 = vpack.c.b16 %v628, %v627
      %v640 = vpack.c.b16 %v630, %v629
      %v641 = vpack.c.b16 %v632, %v631
      %v642 = vpack.c.b16 %v634, %v633
      %651 = vmatprep.subr.bf16.mxu0 0
      %652 = vmatpush1.bf16.msra.mxu0 %v635
      %653 = vmatprep.subr.bf16.mxu0 0
      %654 = vmatpush1.bf16.msra.mxu0 %v636
      %655 = vmatprep.subr.bf16.mxu0 0
      %656 = vmatpush1.bf16.msra.mxu0 %v637
      %657 = vmatprep.subr.bf16.mxu0 0
      %658 = vmatpush1.bf16.msra.mxu0 %v638
      %659 = vmatprep.subr.bf16.mxu0 0
      %660 = vmatpush1.bf16.msra.mxu0 %v639
      %661 = vmatprep.subr.bf16.mxu0 0
      %662 = vmatpush1.bf16.msra.mxu0 %v640
      %663 = vmatprep.subr.bf16.mxu0 0
      %664 = vmatpush1.bf16.msra.mxu0 %v641
      %665 = vmatprep.subr.bf16.mxu0 0
      %666 = vmatpush1.bf16.msra.mxu0 %v642
      %667 = vmatprep.subr.bf16.mxu0 0
      %668 = vmatpush1.bf16.msra.mxu0 0
      %669 = vmatprep.subr.bf16.mxu0 0
      %670 = vmatpush1.bf16.msra.mxu0 0
      %671 = vmatprep.subr.bf16.mxu0 0
      %672 = vmatpush1.bf16.msra.mxu0 0
      %673 = vmatprep.subr.bf16.mxu0 0
      %674 = vmatpush1.bf16.msra.mxu0 0
      %675 = vmatprep.subr.bf16.mxu0 0
      %676 = vmatpush1.bf16.msra.mxu0 0
      %677 = vmatprep.subr.bf16.mxu0 0
      %678 = vmatpush1.bf16.msra.mxu0 0
      %679 = vmatprep.subr.bf16.mxu0 0
      %680 = vmatpush1.bf16.msra.mxu0 0
      %681 = vmatprep.subr.bf16.mxu0 0
      %682 = vmatpush1.bf16.msra.mxu0 0
      %683 = vmatprep.mubr.bf16.mxu0 0
      %684 = vmatmul.mubr.bf16.gmra.mrb[0].mxu0 %v539
      %v685 = vpop.f32.mrb[0].mxu0
      %v686 = vadd.f32 0.0, %v685
      %v687 = vpop.f32.mrb[0].mxu0
      %v688 = vpop.f32.mrb[0].mxu0
      %v689 = vadd.f32 0.0, %v688
      %v690 = vpop.f32.mrb[0].mxu0
      %691 = vmatprep.mubr.bf16.mxu0 0
      %692 = vmatmul.mubr.bf16.gmra.mrb[0].mxu0 %v540
      %v693 = vpop.f32.mrb[0].mxu0
      %v694 = vadd.f32 0.0, %v693
      %v695 = vpop.f32.mrb[0].mxu0
      %v696 = vpop.f32.mrb[0].mxu0
      %v697 = vadd.f32 0.0, %v696
      %v698 = vpop.f32.mrb[0].mxu0
      %699 = vmatprep.mubr.bf16.mxu0 0
      %700 = vmatmul.mubr.bf16.gmra.mrb[0].mxu0 %v541
      %v701 = vpop.f32.mrb[0].mxu0
      %v702 = vadd.f32 0.0, %v701
      %v703 = vpop.f32.mrb[0].mxu0
      %v704 = vpop.f32.mrb[0].mxu0
      %v705 = vadd.f32 0.0, %v704
      %v706 = vpop.f32.mrb[0].mxu0
      %707 = vmatprep.mubr.bf16.mxu0 0
      %708 = vmatmul.mubr.bf16.gmra.mrb[0].mxu0 %v542
      %v709 = vpop.f32.mrb[0].mxu0
      %v710 = vadd.f32 0.0, %v709
      %v711 = vpop.f32.mrb[0].mxu0
      %v712 = vpop.f32.mrb[0].mxu0
      %v713 = vadd.f32 0.0, %v712
      %v714 = vpop.f32.mrb[0].mxu0
      %715 = vmatprep.mubr.bf16.mxu0 0
      %716 = vmatmul.mubr.bf16.gmra.mrb[0].mxu0 %v543
      %v717 = vpop.f32.mrb[0].mxu0
      %v718 = vadd.f32 0.0, %v717
      %v719 = vpop.f32.mrb[0].mxu0
      %v720 = vpop.f32.mrb[0].mxu0
      %v721 = vadd.f32 0.0, %v720
      %v722 = vpop.f32.mrb[0].mxu0
      %723 = vmatprep.mubr.bf16.mxu0 0
      %724 = vmatmul.mubr.bf16.gmra.mrb[0].mxu0 %v544
      %v725 = vpop.f32.mrb[0].mxu0
      %v726 = vadd.f32 0.0, %v725
      %v727 = vpop.f32.mrb[0].mxu0
      %v728 = vpop.f32.mrb[0].mxu0
      %v729 = vadd.f32 0.0, %v728
      %v730 = vpop.f32.mrb[0].mxu0
      %731 = vmatprep.mubr.bf16.mxu0 0
      %732 = vmatmul.mubr.bf16.gmra.mrb[0].mxu0 %v545
      %v733 = vpop.f32.mrb[0].mxu0
      %v734 = vadd.f32 0.0, %v733
      %v735 = vpop.f32.mrb[0].mxu0
      %v736 = vpop.f32.mrb[0].mxu0
      %v737 = vadd.f32 0.0, %v736
      %v738 = vpop.f32.mrb[0].mxu0
      %739 = vmatprep.mubr.bf16.mxu0 0
      %740 = vmatmul.mubr.bf16.gmra.mrb[0].mxu0 %v546
      %v741 = vpop.f32.mrb[0].mxu0
      %v742 = vadd.f32 0.0, %v741
      %v743 = vpop.f32.mrb[0].mxu0
      %v744 = vpop.f32.mrb[0].mxu0
      %v745 = vadd.f32 0.0, %v744
      %v746 = vpop.f32.mrb[0].mxu0
      %747 = vmatprep.mubr.bf16.mxu0 0
      %748 = vmatmul.mubr.bf16.gmra.mrb[0].mxu0 %v547
      %v749 = vpop.f32.mrb[0].mxu0
      %v750 = vadd.f32 0.0, %v749
      %v751 = vpop.f32.mrb[0].mxu0
      %v752 = vpop.f32.mrb[0].mxu0
      %v753 = vadd.f32 0.0, %v752
      %v754 = vpop.f32.mrb[0].mxu0
      %755 = vmatprep.mubr.bf16.mxu0 0
      %756 = vmatmul.mubr.bf16.gmra.mrb[0].mxu0 %v548
      %v757 = vpop.f32.mrb[0].mxu0
      %v758 = vadd.f32 0.0, %v757
      %v759 = vpop.f32.mrb[0].mxu0
      %v760 = vpop.f32.mrb[0].mxu0
      %v761 = vadd.f32 0.0, %v760
      %v762 = vpop.f32.mrb[0].mxu0
      %763 = vmatprep.mubr.bf16.mxu0 0
      %764 = vmatmul.mubr.bf16.gmra.mrb[0].mxu0 %v549
      %v765 = vpop.f32.mrb[0].mxu0
      %v766 = vadd.f32 0.0, %v765
      %v767 = vpop.f32.mrb[0].mxu0
      %v768 = vpop.f32.mrb[0].mxu0
      %v769 = vadd.f32 0.0, %v768
      %v770 = vpop.f32.mrb[0].mxu0
      %771 = vmatprep.mubr.bf16.mxu0 0
      %772 = vmatmul.mubr.bf16.gmra.mrb[0].mxu0 %v550
      %v773 = vpop.f32.mrb[0].mxu0
      %v774 = vadd.f32 0.0, %v773
      %v775 = vpop.f32.mrb[0].mxu0
      %v776 = vpop.f32.mrb[0].mxu0
      %v777 = vadd.f32 0.0, %v776
      %v778 = vpop.f32.mrb[0].mxu0
      %779 = vmatprep.mubr.bf16.mxu0 0
      %780 = vmatmul.mubr.bf16.gmra.mrb[0].mxu0 %v551
      %v781 = vpop.f32.mrb[0].mxu0
      %v782 = vadd.f32 0.0, %v781
      %v783 = vpop.f32.mrb[0].mxu0
      %v784 = vpop.f32.mrb[0].mxu0
      %v785 = vadd.f32 0.0, %v784
      %v786 = vpop.f32.mrb[0].mxu0
      %787 = vmatprep.mubr.bf16.mxu0 0
      %788 = vmatmul.mubr.bf16.gmra.mrb[0].mxu0 %v552
      %v789 = vpop.f32.mrb[0].mxu0
      %v790 = vadd.f32 0.0, %v789
      %v791 = vpop.f32.mrb[0].mxu0
      %v792 = vpop.f32.mrb[0].mxu0
      %v793 = vadd.f32 0.0, %v792
      %v794 = vpop.f32.mrb[0].mxu0
      %795 = vmatprep.mubr.bf16.mxu0 0
      %796 = vmatmul.mubr.bf16.gmra.mrb[0].mxu0 %v553
      %v797 = vpop.f32.mrb[0].mxu0
      %v798 = vadd.f32 0.0, %v797
      %v799 = vpop.f32.mrb[0].mxu0
      %v800 = vpop.f32.mrb[0].mxu0
      %v801 = vadd.f32 0.0, %v800
      %v802 = vpop.f32.mrb[0].mxu0
      %803 = vmatprep.mubr.bf16.mxu0 0
      %804 = vmatmul.mubr.bf16.gmra.mrb[0].mxu0 %v554
      %v805 = vpop.f32.mrb[0].mxu0
      %v806 = vadd.f32 0.0, %v805
      %v807 = vpop.f32.mrb[0].mxu0
      %v808 = vpop.f32.mrb[0].mxu0
      %v809 = vadd.f32 0.0, %v808
      %v810 = vpop.f32.mrb[0].mxu0
      %811 = vmatprep.mubr.bf16.mxu0 0
      %812 = vmatmul.mubr.bf16.gmra.mrb[0].mxu0 %v555
      %v813 = vpop.f32.mrb[0].mxu0
      %v814 = vadd.f32 0.0, %v813
      %v815 = vpop.f32.mrb[0].mxu0
      %v816 = vpop.f32.mrb[0].mxu0
      %v817 = vadd.f32 0.0, %v816
      %v818 = vpop.f32.mrb[0].mxu0
      %819 = vmatprep.mubr.bf16.mxu0 0
      %820 = vmatmul.mubr.bf16.gmra.mrb[0].mxu0 %v556
      %v821 = vpop.f32.mrb[0].mxu0
      %v822 = vadd.f32 0.0, %v821
      %v823 = vpop.f32.mrb[0].mxu0
      %v824 = vpop.f32.mrb[0].mxu0
      %v825 = vadd.f32 0.0, %v824
      %v826 = vpop.f32.mrb[0].mxu0
      %827 = vmatprep.mubr.bf16.mxu0 0
      %828 = vmatmul.mubr.bf16.gmra.mrb[0].mxu0 %v557
      %v829 = vpop.f32.mrb[0].mxu0
      %v830 = vadd.f32 0.0, %v829
      %v831 = vpop.f32.mrb[0].mxu0
      %v832 = vpop.f32.mrb[0].mxu0
      %v833 = vadd.f32 0.0, %v832
      %v834 = vpop.f32.mrb[0].mxu0
      %835 = vmatprep.mubr.bf16.mxu0 0
      %836 = vmatmul.mubr.bf16.gmra.mrb[0].mxu0 %v558
      %v837 = vpop.f32.mrb[0].mxu0
      %v838 = vadd.f32 0.0, %v837
      %v839 = vpop.f32.mrb[0].mxu0
      %v840 = vpop.f32.mrb[0].mxu0
      %v841 = vadd.f32 0.0, %v840
      %v842 = vpop.f32.mrb[0].mxu0
      %843 = vmatprep.mubr.bf16.mxu0 0
      %844 = vmatmul.mubr.bf16.gmra.mrb[0].mxu0 %v559
      %v845 = vpop.f32.mrb[0].mxu0
      %v846 = vadd.f32 0.0, %v845
      %v847 = vpop.f32.mrb[0].mxu0
      %v848 = vpop.f32.mrb[0].mxu0
      %v849 = vadd.f32 0.0, %v848
      %v850 = vpop.f32.mrb[0].mxu0
      %851 = vmatprep.mubr.bf16.mxu0 0
      %852 = vmatmul.mubr.bf16.gmra.mrb[0].mxu0 %v560
      %v853 = vpop.f32.mrb[0].mxu0
      %v854 = vadd.f32 0.0, %v853
      %v855 = vpop.f32.mrb[0].mxu0
      %v856 = vpop.f32.mrb[0].mxu0
      %v857 = vadd.f32 0.0, %v856
      %v858 = vpop.f32.mrb[0].mxu0
      %859 = vmatprep.mubr.bf16.mxu0 0
      %860 = vmatmul.mubr.bf16.gmra.mrb[0].mxu0 %v561
      %v861 = vpop.f32.mrb[0].mxu0
      %v862 = vadd.f32 0.0, %v861
      %v863 = vpop.f32.mrb[0].mxu0
      %v864 = vpop.f32.mrb[0].mxu0
      %v865 = vadd.f32 0.0, %v864
      %v866 = vpop.f32.mrb[0].mxu0
      %867 = vmatprep.mubr.bf16.mxu0 0
      %868 = vmatmul.mubr.bf16.gmra.mrb[0].mxu0 %v562
      %v869 = vpop.f32.mrb[0].mxu0
      %v870 = vadd.f32 0.0, %v869
      %v871 = vpop.f32.mrb[0].mxu0
      %v872 = vpop.f32.mrb[0].mxu0
      %v873 = vadd.f32 0.0, %v872
      %v874 = vpop.f32.mrb[0].mxu0
      %875 = vmatprep.mubr.bf16.mxu0 0
      %876 = vmatmul.mubr.bf16.gmra.mrb[0].mxu0 %v563
      %v877 = vpop.f32.mrb[0].mxu0
      %v878 = vadd.f32 0.0, %v877
      %v879 = vpop.f32.mrb[0].mxu0
      %v880 = vpop.f32.mrb[0].mxu0
      %v881 = vadd.f32 0.0, %v880
      %v882 = vpop.f32.mrb[0].mxu0
      %883 = vmatprep.mubr.bf16.mxu0 0
      %884 = vmatmul.mubr.bf16.gmra.mrb[0].mxu0 %v564
      %v885 = vpop.f32.mrb[0].mxu0
      %v886 = vadd.f32 0.0, %v885
      %v887 = vpop.f32.mrb[0].mxu0
      %v888 = vpop.f32.mrb[0].mxu0
      %v889 = vadd.f32 0.0, %v888
      %v890 = vpop.f32.mrb[0].mxu0
      %891 = vmatprep.mubr.bf16.mxu0 0
      %892 = vmatmul.mubr.bf16.gmra.mrb[0].mxu0 %v565
      %v893 = vpop.f32.mrb[0].mxu0
      %v894 = vadd.f32 0.0, %v893
      %v895 = vpop.f32.mrb[0].mxu0
      %v896 = vpop.f32.mrb[0].mxu0
      %v897 = vadd.f32 0.0, %v896
      %v898 = vpop.f32.mrb[0].mxu0
      %899 = vmatprep.mubr.bf16.mxu0 0
      %900 = vmatmul.mubr.bf16.gmra.mrb[0].mxu0 %v566
      %v901 = vpop.f32.mrb[0].mxu0
      %v902 = vadd.f32 0.0, %v901
      %v903 = vpop.f32.mrb[0].mxu0
      %v904 = vpop.f32.mrb[0].mxu0
      %v905 = vadd.f32 0.0, %v904
      %v906 = vpop.f32.mrb[0].mxu0
      %907 = vmatprep.mubr.bf16.mxu0 0
      %908 = vmatmul.mubr.bf16.gmra.mrb[0].mxu0 %v567
      %v909 = vpop.f32.mrb[0].mxu0
      %v910 = vadd.f32 0.0, %v909
      %v911 = vpop.f32.mrb[0].mxu0
      %v912 = vpop.f32.mrb[0].mxu0
      %v913 = vadd.f32 0.0, %v912
      %v914 = vpop.f32.mrb[0].mxu0
      %915 = vmatprep.mubr.bf16.mxu0 0
      %916 = vmatmul.mubr.bf16.gmra.mrb[0].mxu0 %v568
      %v917 = vpop.f32.mrb[0].mxu0
      %v918 = vadd.f32 0.0, %v917
      %v919 = vpop.f32.mrb[0].mxu0
      %v920 = vpop.f32.mrb[0].mxu0
      %v921 = vadd.f32 0.0, %v920
      %v922 = vpop.f32.mrb[0].mxu0
      %923 = vmatprep.mubr.bf16.mxu0 0
      %924 = vmatmul.mubr.bf16.gmra.mrb[0].mxu0 %v569
      %v925 = vpop.f32.mrb[0].mxu0
      %v926 = vadd.f32 0.0, %v925
      %v927 = vpop.f32.mrb[0].mxu0
      %v928 = vpop.f32.mrb[0].mxu0
      %v929 = vadd.f32 0.0, %v928
      %v930 = vpop.f32.mrb[0].mxu0
      %931 = vmatprep.mubr.bf16.mxu0 0
      %932 = vmatmul.mubr.bf16.gmra.mrb[0].mxu0 %v570
      %v933 = vpop.f32.mrb[0].mxu0
      %v934 = vadd.f32 0.0, %v933
      %v935 = vpop.f32.mrb[0].mxu0
      %v936 = vpop.f32.mrb[0].mxu0
      %v937 = vadd.f32 0.0, %v936
      %v938 = vpop.f32.mrb[0].mxu0
      %939 = vdwg.mxu0
      %v1004 = vunpack.c.l.b16 %v251
      %v1005 = vunpack.c.l.b16 %v252
      %v1006 = vunpack.c.l.b16 %v253
      %v1007 = vunpack.c.l.b16 %v254
      %v1008 = vunpack.c.l.b16 %v255
      %v1009 = vunpack.c.l.b16 %v256
      %v1010 = vunpack.c.l.b16 %v257
      %v1011 = vunpack.c.l.b16 %v258
      %v1012 = vunpack.c.l.b16 %v259
      %v1013 = vunpack.c.l.b16 %v260
      %v1014 = vunpack.c.l.b16 %v261
      %v1015 = vunpack.c.l.b16 %v262
      %v1016 = vunpack.c.l.b16 %v263
      %v1017 = vunpack.c.l.b16 %v264
      %v1018 = vunpack.c.l.b16 %v265
      %v1019 = vunpack.c.l.b16 %v266
      %v1020 = vunpack.c.l.b16 %v267
      %v1021 = vunpack.c.l.b16 %v268
      %v1022 = vunpack.c.l.b16 %v269
      %v1023 = vunpack.c.l.b16 %v270
      %v1024 = vunpack.c.l.b16 %v271
      %v1025 = vunpack.c.l.b16 %v272
      %v1026 = vunpack.c.l.b16 %v273
      %v1027 = vunpack.c.l.b16 %v274
      %v1028 = vunpack.c.l.b16 %v275
      %v1029 = vunpack.c.l.b16 %v276
      %v1030 = vunpack.c.l.b16 %v277
      %v1031 = vunpack.c.l.b16 %v278
      %v1032 = vunpack.c.l.b16 %v279
      %v1033 = vunpack.c.l.b16 %v280
      %v1034 = vunpack.c.l.b16 %v281
      %v1035 = vunpack.c.l.b16 %v282
      %v1036 = vunpack.c.l.b16 %v283
      %v1037 = vunpack.c.l.b16 %v284
      %v1038 = vunpack.c.l.b16 %v285
      %v1039 = vunpack.c.l.b16 %v286
      %v1040 = vunpack.c.l.b16 %v287
      %v1041 = vunpack.c.l.b16 %v288
      %v1042 = vunpack.c.l.b16 %v289
      %v1043 = vunpack.c.l.b16 %v290
      %v1044 = vunpack.c.l.b16 %v291
      %v1045 = vunpack.c.l.b16 %v292
      %v1046 = vunpack.c.l.b16 %v293
      %v1047 = vunpack.c.l.b16 %v294
      %v1048 = vunpack.c.l.b16 %v295
      %v1049 = vunpack.c.l.b16 %v296
      %v1050 = vunpack.c.l.b16 %v297
      %v1051 = vunpack.c.l.b16 %v298
      %v1052 = vunpack.c.l.b16 %v299
      %v1053 = vunpack.c.l.b16 %v300
      %v1054 = vunpack.c.l.b16 %v301
      %v1055 = vunpack.c.l.b16 %v302
      %v1056 = vunpack.c.l.b16 %v303
      %v1057 = vunpack.c.l.b16 %v304
      %v1058 = vunpack.c.l.b16 %v305
      %v1059 = vunpack.c.l.b16 %v306
      %v1060 = vunpack.c.l.b16 %v307
      %v1061 = vunpack.c.l.b16 %v308
      %v1062 = vunpack.c.l.b16 %v309
      %v1063 = vunpack.c.l.b16 %v310
      %v1064 = vunpack.c.l.b16 %v311
      %v1065 = vunpack.c.l.b16 %v312
      %v1066 = vunpack.c.l.b16 %v313
      %v1067 = vunpack.c.l.b16 %v314
      %v1068 = vpack.c.b16 %v1005, %v1004
      %v1069 = vpack.c.b16 %v1007, %v1006
      %v1070 = vpack.c.b16 %v1009, %v1008
      %v1071 = vpack.c.b16 %v1011, %v1010
      %v1072 = vpack.c.b16 %v1013, %v1012
      %v1073 = vpack.c.b16 %v1015, %v1014
      %v1074 = vpack.c.b16 %v1017, %v1016
      %v1075 = vpack.c.b16 %v1019, %v1018
      %v1076 = vpack.c.b16 %v1021, %v1020
      %v1077 = vpack.c.b16 %v1023, %v1022
      %v1078 = vpack.c.b16 %v1025, %v1024
      %v1079 = vpack.c.b16 %v1027, %v1026
      %v1080 = vpack.c.b16 %v1029, %v1028
      %v1081 = vpack.c.b16 %v1031, %v1030
      %v1082 = vpack.c.b16 %v1033, %v1032
      %v1083 = vpack.c.b16 %v1035, %v1034
      %v1084 = vpack.c.b16 %v1037, %v1036
      %v1085 = vpack.c.b16 %v1039, %v1038
      %v1086 = vpack.c.b16 %v1041, %v1040
      %v1087 = vpack.c.b16 %v1043, %v1042
      %v1088 = vpack.c.b16 %v1045, %v1044
      %v1089 = vpack.c.b16 %v1047, %v1046
      %v1090 = vpack.c.b16 %v1049, %v1048
      %v1091 = vpack.c.b16 %v1051, %v1050
      %v1092 = vpack.c.b16 %v1053, %v1052
      %v1093 = vpack.c.b16 %v1055, %v1054
      %v1094 = vpack.c.b16 %v1057, %v1056
      %v1095 = vpack.c.b16 %v1059, %v1058
      %v1096 = vpack.c.b16 %v1061, %v1060
      %v1097 = vpack.c.b16 %v1063, %v1062
      %v1098 = vpack.c.b16 %v1065, %v1064
      %v1099 = vpack.c.b16 %v1067, %v1066
      %v1148 = vunpack.c.l.b16 %v315
      %v1149 = vunpack.c.l.b16 %v316
      %v1150 = vunpack.c.l.b16 %v317
      %v1151 = vunpack.c.l.b16 %v318
      %v1152 = vunpack.c.l.b16 %v319
      %v1153 = vunpack.c.l.b16 %v320
      %v1154 = vunpack.c.l.b16 %v321
      %v1155 = vunpack.c.l.b16 %v322
      %v1156 = vunpack.c.l.b16 %v323
      %v1157 = vunpack.c.l.b16 %v324
      %v1158 = vunpack.c.l.b16 %v325
      %v1159 = vunpack.c.l.b16 %v326
      %v1160 = vunpack.c.l.b16 %v327
      %v1161 = vunpack.c.l.b16 %v328
      %v1162 = vunpack.c.l.b16 %v329
      %v1163 = vunpack.c.l.b16 %v330
      %v1164 = vpack.c.b16 %v1149, %v1148
      %v1165 = vpack.c.b16 %v1151, %v1150
      %v1166 = vpack.c.b16 %v1153, %v1152
      %v1167 = vpack.c.b16 %v1155, %v1154
      %v1168 = vpack.c.b16 %v1157, %v1156
      %v1169 = vpack.c.b16 %v1159, %v1158
      %v1170 = vpack.c.b16 %v1161, %v1160
      %v1171 = vpack.c.b16 %v1163, %v1162
      %1180 = vmatprep.subr.bf16.mxu0 0
      %1181 = vmatpush1.bf16.msra.mxu0 %v1164
      %1182 = vmatprep.subr.bf16.mxu0 0
      %1183 = vmatpush1.bf16.msra.mxu0 %v1165
      %1184 = vmatprep.subr.bf16.mxu0 0
      %1185 = vmatpush1.bf16.msra.mxu0 %v1166
      %1186 = vmatprep.subr.bf16.mxu0 0
      %1187 = vmatpush1.bf16.msra.mxu0 %v1167
      %1188 = vmatprep.subr.bf16.mxu0 0
      %1189 = vmatpush1.bf16.msra.mxu0 %v1168
      %1190 = vmatprep.subr.bf16.mxu0 0
      %1191 = vmatpush1.bf16.msra.mxu0 %v1169
      %1192 = vmatprep.subr.bf16.mxu0 0
      %1193 = vmatpush1.bf16.msra.mxu0 %v1170
      %1194 = vmatprep.subr.bf16.mxu0 0
      %1195 = vmatpush1.bf16.msra.mxu0 %v1171
      %1196 = vmatprep.subr.bf16.mxu0 0
      %1197 = vmatpush1.bf16.msra.mxu0 0
      %1198 = vmatprep.subr.bf16.mxu0 0
      %1199 = vmatpush1.bf16.msra.mxu0 0
      %1200 = vmatprep.subr.bf16.mxu0 0
      %1201 = vmatpush1.bf16.msra.mxu0 0
      %1202 = vmatprep.subr.bf16.mxu0 0
      %1203 = vmatpush1.bf16.msra.mxu0 0
      %1204 = vmatprep.subr.bf16.mxu0 0
      %1205 = vmatpush1.bf16.msra.mxu0 0
      %1206 = vmatprep.subr.bf16.mxu0 0
      %1207 = vmatpush1.bf16.msra.mxu0 0
      %1208 = vmatprep.subr.bf16.mxu0 0
      %1209 = vmatpush1.bf16.msra.mxu0 0
      %1210 = vmatprep.subr.bf16.mxu0 0
      %1211 = vmatpush1.bf16.msra.mxu0 0
      %1212 = vmatprep.mubr.bf16.mxu0 0
      %1213 = vmatmul.mubr.bf16.gmra.mrb[0].mxu0 %v1068
      %v1214 = vpop.f32.mrb[0].mxu0
      %v1215 = vadd.f32 %v686, %v1214
      %v1216 = vpop.f32.mrb[0].mxu0
      %v1217 = vpop.f32.mrb[0].mxu0
      %v1218 = vadd.f32 %v689, %v1217
      %v1219 = vpop.f32.mrb[0].mxu0
      %1220 = vmatprep.mubr.bf16.mxu0 0
      %1221 = vmatmul.mubr.bf16.gmra.mrb[0].mxu0 %v1069
      %v1222 = vpop.f32.mrb[0].mxu0
      %v1223 = vadd.f32 %v694, %v1222
      %v1224 = vpop.f32.mrb[0].mxu0
      %v1225 = vpop.f32.mrb[0].mxu0
      %v1226 = vadd.f32 %v697, %v1225
      %v1227 = vpop.f32.mrb[0].mxu0
      %1228 = vmatprep.mubr.bf16.mxu0 0
      %1229 = vmatmul.mubr.bf16.gmra.mrb[0].mxu0 %v1070
      %v1230 = vpop.f32.mrb[0].mxu0
      %v1231 = vadd.f32 %v702, %v1230
      %v1232 = vpop.f32.mrb[0].mxu0
      %v1233 = vpop.f32.mrb[0].mxu0
      %v1234 = vadd.f32 %v705, %v1233
      %v1235 = vpop.f32.mrb[0].mxu0
      %1236 = vmatprep.mubr.bf16.mxu0 0
      %1237 = vmatmul.mubr.bf16.gmra.mrb[0].mxu0 %v1071
      %v1238 = vpop.f32.mrb[0].mxu0
      %v1239 = vadd.f32 %v710, %v1238
      %v1240 = vpop.f32.mrb[0].mxu0
      %v1241 = vpop.f32.mrb[0].mxu0
      %v1242 = vadd.f32 %v713, %v1241
      %v1243 = vpop.f32.mrb[0].mxu0
      %1244 = vmatprep.mubr.bf16.mxu0 0
      %1245 = vmatmul.mubr.bf16.gmra.mrb[0].mxu0 %v1072
      %v1246 = vpop.f32.mrb[0].mxu0
      %v1247 = vadd.f32 %v718, %v1246
      %v1248 = vpop.f32.mrb[0].mxu0
      %v1249 = vpop.f32.mrb[0].mxu0
      %v1250 = vadd.f32 %v721, %v1249
      %v1251 = vpop.f32.mrb[0].mxu0
      %1252 = vmatprep.mubr.bf16.mxu0 0
      %1253 = vmatmul.mubr.bf16.gmra.mrb[0].mxu0 %v1073
      %v1254 = vpop.f32.mrb[0].mxu0
      %v1255 = vadd.f32 %v726, %v1254
      %v1256 = vpop.f32.mrb[0].mxu0
      %v1257 = vpop.f32.mrb[0].mxu0
      %v1258 = vadd.f32 %v729, %v1257
      %v1259 = vpop.f32.mrb[0].mxu0
      %1260 = vmatprep.mubr.bf16.mxu0 0
      %1261 = vmatmul.mubr.bf16.gmra.mrb[0].mxu0 %v1074
      %v1262 = vpop.f32.mrb[0].mxu0
      %v1263 = vadd.f32 %v734, %v1262
      %v1264 = vpop.f32.mrb[0].mxu0
      %v1265 = vpop.f32.mrb[0].mxu0
      %v1266 = vadd.f32 %v737, %v1265
      %v1267 = vpop.f32.mrb[0].mxu0
      %1268 = vmatprep.mubr.bf16.mxu0 0
      %1269 = vmatmul.mubr.bf16.gmra.mrb[0].mxu0 %v1075
      %v1270 = vpop.f32.mrb[0].mxu0
      %v1271 = vadd.f32 %v742, %v1270
      %v1272 = vpop.f32.mrb[0].mxu0
      %v1273 = vpop.f32.mrb[0].mxu0
      %v1274 = vadd.f32 %v745, %v1273
      %v1275 = vpop.f32.mrb[0].mxu0
      %1276 = vmatprep.mubr.bf16.mxu0 0
      %1277 = vmatmul.mubr.bf16.gmra.mrb[0].mxu0 %v1076
      %v1278 = vpop.f32.mrb[0].mxu0
      %v1279 = vadd.f32 %v750, %v1278
      %v1280 = vpop.f32.mrb[0].mxu0
      %v1281 = vpop.f32.mrb[0].mxu0
      %v1282 = vadd.f32 %v753, %v1281
      %v1283 = vpop.f32.mrb[0].mxu0
      %1284 = vmatprep.mubr.bf16.mxu0 0
      %1285 = vmatmul.mubr.bf16.gmra.mrb[0].mxu0 %v1077
      %v1286 = vpop.f32.mrb[0].mxu0
      %v1287 = vadd.f32 %v758, %v1286
      %v1288 = vpop.f32.mrb[0].mxu0
      %v1289 = vpop.f32.mrb[0].mxu0
      %v1290 = vadd.f32 %v761, %v1289
      %v1291 = vpop.f32.mrb[0].mxu0
      %1292 = vmatprep.mubr.bf16.mxu0 0
      %1293 = vmatmul.mubr.bf16.gmra.mrb[0].mxu0 %v1078
      %v1294 = vpop.f32.mrb[0].mxu0
      %v1295 = vadd.f32 %v766, %v1294
      %v1296 = vpop.f32.mrb[0].mxu0
      %v1297 = vpop.f32.mrb[0].mxu0
      %v1298 = vadd.f32 %v769, %v1297
      %v1299 = vpop.f32.mrb[0].mxu0
      %1300 = vmatprep.mubr.bf16.mxu0 0
      %1301 = vmatmul.mubr.bf16.gmra.mrb[0].mxu0 %v1079
      %v1302 = vpop.f32.mrb[0].mxu0
      %v1303 = vadd.f32 %v774, %v1302
      %v1304 = vpop.f32.mrb[0].mxu0
      %v1305 = vpop.f32.mrb[0].mxu0
      %v1306 = vadd.f32 %v777, %v1305
      %v1307 = vpop.f32.mrb[0].mxu0
      %1308 = vmatprep.mubr.bf16.mxu0 0
      %1309 = vmatmul.mubr.bf16.gmra.mrb[0].mxu0 %v1080
      %v1310 = vpop.f32.mrb[0].mxu0
      %v1311 = vadd.f32 %v782, %v1310
      %v1312 = vpop.f32.mrb[0].mxu0
      %v1313 = vpop.f32.mrb[0].mxu0
      %v1314 = vadd.f32 %v785, %v1313
      %v1315 = vpop.f32.mrb[0].mxu0
      %1316 = vmatprep.mubr.bf16.mxu0 0
      %1317 = vmatmul.mubr.bf16.gmra.mrb[0].mxu0 %v1081
      %v1318 = vpop.f32.mrb[0].mxu0
      %v1319 = vadd.f32 %v790, %v1318
      %v1320 = vpop.f32.mrb[0].mxu0
      %v1321 = vpop.f32.mrb[0].mxu0
      %v1322 = vadd.f32 %v793, %v1321
      %v1323 = vpop.f32.mrb[0].mxu0
      %1324 = vmatprep.mubr.bf16.mxu0 0
      %1325 = vmatmul.mubr.bf16.gmra.mrb[0].mxu0 %v1082
      %v1326 = vpop.f32.mrb[0].mxu0
      %v1327 = vadd.f32 %v798, %v1326
      %v1328 = vpop.f32.mrb[0].mxu0
      %v1329 = vpop.f32.mrb[0].mxu0
      %v1330 = vadd.f32 %v801, %v1329
      %v1331 = vpop.f32.mrb[0].mxu0
      %1332 = vmatprep.mubr.bf16.mxu0 0
      %1333 = vmatmul.mubr.bf16.gmra.mrb[0].mxu0 %v1083
      %v1334 = vpop.f32.mrb[0].mxu0
      %v1335 = vadd.f32 %v806, %v1334
      %v1336 = vpop.f32.mrb[0].mxu0
      %v1337 = vpop.f32.mrb[0].mxu0
      %v1338 = vadd.f32 %v809, %v1337
      %v1339 = vpop.f32.mrb[0].mxu0
      %1340 = vmatprep.mubr.bf16.mxu0 0
      %1341 = vmatmul.mubr.bf16.gmra.mrb[0].mxu0 %v1084
      %v1342 = vpop.f32.mrb[0].mxu0
      %v1343 = vadd.f32 %v814, %v1342
      %v1344 = vpop.f32.mrb[0].mxu0
      %v1345 = vpop.f32.mrb[0].mxu0
      %v1346 = vadd.f32 %v817, %v1345
      %v1347 = vpop.f32.mrb[0].mxu0
      %1348 = vmatprep.mubr.bf16.mxu0 0
      %1349 = vmatmul.mubr.bf16.gmra.mrb[0].mxu0 %v1085
      %v1350 = vpop.f32.mrb[0].mxu0
      %v1351 = vadd.f32 %v822, %v1350
      %v1352 = vpop.f32.mrb[0].mxu0
      %v1353 = vpop.f32.mrb[0].mxu0
      %v1354 = vadd.f32 %v825, %v1353
      %v1355 = vpop.f32.mrb[0].mxu0
      %1356 = vmatprep.mubr.bf16.mxu0 0
      %1357 = vmatmul.mubr.bf16.gmra.mrb[0].mxu0 %v1086
      %v1358 = vpop.f32.mrb[0].mxu0
      %v1359 = vadd.f32 %v830, %v1358
      %v1360 = vpop.f32.mrb[0].mxu0
      %v1361 = vpop.f32.mrb[0].mxu0
      %v1362 = vadd.f32 %v833, %v1361
      %v1363 = vpop.f32.mrb[0].mxu0
      %1364 = vmatprep.mubr.bf16.mxu0 0
      %1365 = vmatmul.mubr.bf16.gmra.mrb[0].mxu0 %v1087
      %v1366 = vpop.f32.mrb[0].mxu0
      %v1367 = vadd.f32 %v838, %v1366
      %v1368 = vpop.f32.mrb[0].mxu0
      %v1369 = vpop.f32.mrb[0].mxu0
      %v1370 = vadd.f32 %v841, %v1369
      %v1371 = vpop.f32.mrb[0].mxu0
      %1372 = vmatprep.mubr.bf16.mxu0 0
      %1373 = vmatmul.mubr.bf16.gmra.mrb[0].mxu0 %v1088
      %v1374 = vpop.f32.mrb[0].mxu0
      %v1375 = vadd.f32 %v846, %v1374
      %v1376 = vpop.f32.mrb[0].mxu0
      %v1377 = vpop.f32.mrb[0].mxu0
      %v1378 = vadd.f32 %v849, %v1377
      %v1379 = vpop.f32.mrb[0].mxu0
      %1380 = vmatprep.mubr.bf16.mxu0 0
      %1381 = vmatmul.mubr.bf16.gmra.mrb[0].mxu0 %v1089
      %v1382 = vpop.f32.mrb[0].mxu0
      %v1383 = vadd.f32 %v854, %v1382
      %v1384 = vpop.f32.mrb[0].mxu0
      %v1385 = vpop.f32.mrb[0].mxu0
      %v1386 = vadd.f32 %v857, %v1385
      %v1387 = vpop.f32.mrb[0].mxu0
      %1388 = vmatprep.mubr.bf16.mxu0 0
      %1389 = vmatmul.mubr.bf16.gmra.mrb[0].mxu0 %v1090
      %v1390 = vpop.f32.mrb[0].mxu0
      %v1391 = vadd.f32 %v862, %v1390
      %v1392 = vpop.f32.mrb[0].mxu0
      %v1393 = vpop.f32.mrb[0].mxu0
      %v1394 = vadd.f32 %v865, %v1393
      %v1395 = vpop.f32.mrb[0].mxu0
      %1396 = vmatprep.mubr.bf16.mxu0 0
      %1397 = vmatmul.mubr.bf16.gmra.mrb[0].mxu0 %v1091
      %v1398 = vpop.f32.mrb[0].mxu0
      %v1399 = vadd.f32 %v870, %v1398
      %v1400 = vpop.f32.mrb[0].mxu0
      %v1401 = vpop.f32.mrb[0].mxu0
      %v1402 = vadd.f32 %v873, %v1401
      %v1403 = vpop.f32.mrb[0].mxu0
      %1404 = vmatprep.mubr.bf16.mxu0 0
      %1405 = vmatmul.mubr.bf16.gmra.mrb[0].mxu0 %v1092
      %v1406 = vpop.f32.mrb[0].mxu0
      %v1407 = vadd.f32 %v878, %v1406
      %v1408 = vpop.f32.mrb[0].mxu0
      %v1409 = vpop.f32.mrb[0].mxu0
      %v1410 = vadd.f32 %v881, %v1409
      %v1411 = vpop.f32.mrb[0].mxu0
      %1412 = vmatprep.mubr.bf16.mxu0 0
      %1413 = vmatmul.mubr.bf16.gmra.mrb[0].mxu0 %v1093
      %v1414 = vpop.f32.mrb[0].mxu0
      %v1415 = vadd.f32 %v886, %v1414
      %v1416 = vpop.f32.mrb[0].mxu0
      %v1417 = vpop.f32.mrb[0].mxu0
      %v1418 = vadd.f32 %v889, %v1417
      %v1419 = vpop.f32.mrb[0].mxu0
      %1420 = vmatprep.mubr.bf16.mxu0 0
      %1421 = vmatmul.mubr.bf16.gmra.mrb[0].mxu0 %v1094
      %v1422 = vpop.f32.mrb[0].mxu0
      %v1423 = vadd.f32 %v894, %v1422
      %v1424 = vpop.f32.mrb[0].mxu0
      %v1425 = vpop.f32.mrb[0].mxu0
      %v1426 = vadd.f32 %v897, %v1425
      %v1427 = vpop.f32.mrb[0].mxu0
      %1428 = vmatprep.mubr.bf16.mxu0 0
      %1429 = vmatmul.mubr.bf16.gmra.mrb[0].mxu0 %v1095
      %v1430 = vpop.f32.mrb[0].mxu0
      %v1431 = vadd.f32 %v902, %v1430
      %v1432 = vpop.f32.mrb[0].mxu0
      %v1433 = vpop.f32.mrb[0].mxu0
      %v1434 = vadd.f32 %v905, %v1433
      %v1435 = vpop.f32.mrb[0].mxu0
      %1436 = vmatprep.mubr.bf16.mxu0 0
      %1437 = vmatmul.mubr.bf16.gmra.mrb[0].mxu0 %v1096
      %v1438 = vpop.f32.mrb[0].mxu0
      %v1439 = vadd.f32 %v910, %v1438
      %v1440 = vpop.f32.mrb[0].mxu0
      %v1441 = vpop.f32.mrb[0].mxu0
      %v1442 = vadd.f32 %v913, %v1441
      %v1443 = vpop.f32.mrb[0].mxu0
      %1444 = vmatprep.mubr.bf16.mxu0 0
      %1445 = vmatmul.mubr.bf16.gmra.mrb[0].mxu0 %v1097
      %v1446 = vpop.f32.mrb[0].mxu0
      %v1447 = vadd.f32 %v918, %v1446
      %v1448 = vpop.f32.mrb[0].mxu0
      %v1449 = vpop.f32.mrb[0].mxu0
      %v1450 = vadd.f32 %v921, %v1449
      %v1451 = vpop.f32.mrb[0].mxu0
      %1452 = vmatprep.mubr.bf16.mxu0 0
      %1453 = vmatmul.mubr.bf16.gmra.mrb[0].mxu0 %v1098
      %v1454 = vpop.f32.mrb[0].mxu0
      %v1455 = vadd.f32 %v926, %v1454
      %v1456 = vpop.f32.mrb[0].mxu0
      %v1457 = vpop.f32.mrb[0].mxu0
      %v1458 = vadd.f32 %v929, %v1457
      %v1459 = vpop.f32.mrb[0].mxu0
      %1460 = vmatprep.mubr.bf16.mxu0 0
      %1461 = vmatmul.mubr.bf16.gmra.mrb[0].mxu0 %v1099
      %v1462 = vpop.f32.mrb[0].mxu0
      %v1463 = vadd.f32 %v934, %v1462
      %v1464 = vpop.f32.mrb[0].mxu0
      %v1465 = vpop.f32.mrb[0].mxu0
      %v1466 = vadd.f32 %v937, %v1465
      %v1467 = vpop.f32.mrb[0].mxu0
      %1468 = vdwg.mxu0
      %v1469 = vld [vmem:[%s4] sm:$0x1]
      %v1471 = vlaneseq
      %v1472 = vshrl.u32 %v1471, 7
      %v1473 = vsub.s32 0, %v1472
      %v1474 = vrot.slane %v1469, %v1473
      %v1476 = vadd.f32 %v1215, %v1474
      %v1477 = vadd.f32 %v1218, %v1474
      %v1478 = vadd.f32 %v1223, %v1474
      %v1479 = vadd.f32 %v1226, %v1474
      %v1480 = vadd.f32 %v1231, %v1474
      %v1481 = vadd.f32 %v1234, %v1474
      %v1482 = vadd.f32 %v1239, %v1474
      %v1483 = vadd.f32 %v1242, %v1474
      %v1484 = vadd.f32 %v1247, %v1474
      %v1485 = vadd.f32 %v1250, %v1474
      %v1486 = vadd.f32 %v1255, %v1474
      %v1487 = vadd.f32 %v1258, %v1474
      %v1488 = vadd.f32 %v1263, %v1474
      %v1489 = vadd.f32 %v1266, %v1474
      %v1490 = vadd.f32 %v1271, %v1474
      %v1491 = vadd.f32 %v1274, %v1474
      %v1492 = vadd.f32 %v1279, %v1474
      %v1493 = vadd.f32 %v1282, %v1474
      %v1494 = vadd.f32 %v1287, %v1474
      %v1495 = vadd.f32 %v1290, %v1474
      %v1496 = vadd.f32 %v1295, %v1474
      %v1497 = vadd.f32 %v1298, %v1474
      %v1498 = vadd.f32 %v1303, %v1474
      %v1499 = vadd.f32 %v1306, %v1474
      %v1500 = vadd.f32 %v1311, %v1474
      %v1501 = vadd.f32 %v1314, %v1474
      %v1502 = vadd.f32 %v1319, %v1474
      %v1503 = vadd.f32 %v1322, %v1474
      %v1504 = vadd.f32 %v1327, %v1474
      %v1505 = vadd.f32 %v1330, %v1474
      %v1506 = vadd.f32 %v1335, %v1474
      %v1507 = vadd.f32 %v1338, %v1474
      %v1508 = vadd.f32 %v1343, %v1474
      %v1509 = vadd.f32 %v1346, %v1474
      %v1510 = vadd.f32 %v1351, %v1474
      %v1511 = vadd.f32 %v1354, %v1474
      %v1512 = vadd.f32 %v1359, %v1474
      %v1513 = vadd.f32 %v1362, %v1474
      %v1514 = vadd.f32 %v1367, %v1474
      %v1515 = vadd.f32 %v1370, %v1474
      %v1516 = vadd.f32 %v1375, %v1474
      %v1517 = vadd.f32 %v1378, %v1474
      %v1518 = vadd.f32 %v1383, %v1474
      %v1519 = vadd.f32 %v1386, %v1474
      %v1520 = vadd.f32 %v1391, %v1474
      %v1521 = vadd.f32 %v1394, %v1474
      %v1522 = vadd.f32 %v1399, %v1474
      %v1523 = vadd.f32 %v1402, %v1474
      %v1524 = vadd.f32 %v1407, %v1474
      %v1525 = vadd.f32 %v1410, %v1474
      %v1526 = vadd.f32 %v1415, %v1474
      %v1527 = vadd.f32 %v1418, %v1474
      %v1528 = vadd.f32 %v1423, %v1474
      %v1529 = vadd.f32 %v1426, %v1474
      %v1530 = vadd.f32 %v1431, %v1474
      %v1531 = vadd.f32 %v1434, %v1474
      %v1532 = vadd.f32 %v1439, %v1474
      %v1533 = vadd.f32 %v1442, %v1474
      %v1534 = vadd.f32 %v1447, %v1474
      %v1535 = vadd.f32 %v1450, %v1474
      %v1536 = vadd.f32 %v1455, %v1474
      %v1537 = vadd.f32 %v1458, %v1474
      %v1538 = vadd.f32 %v1463, %v1474
      %v1539 = vadd.f32 %v1466, %v1474
      %vm1540 = vcmask 64512
      %v1541 = vsel %vm1540, %v1476, -inf
      %1542 = vmax.xlane.f32.xlu0 %v1541
      %v1543 = vpop.xlane.xlu0 %1542
      %v1544 = vsel %vm1540, %v1477, -inf
      %1545 = vmax.xlane.f32.xlu0 %v1544
      %v1546 = vpop.xlane.xlu0 %1545
      %v1547 = vsel %vm1540, %v1478, -inf
      %1548 = vmax.xlane.f32.xlu0 %v1547
      %v1549 = vpop.xlane.xlu0 %1548
      %v1550 = vsel %vm1540, %v1479, -inf
      %1551 = vmax.xlane.f32.xlu0 %v1550
      %v1552 = vpop.xlane.xlu0 %1551
      %v1553 = vsel %vm1540, %v1480, -inf
      %1554 = vmax.xlane.f32.xlu0 %v1553
      %v1555 = vpop.xlane.xlu0 %1554
      %v1556 = vsel %vm1540, %v1481, -inf
      %1557 = vmax.xlane.f32.xlu0 %v1556
      %v1558 = vpop.xlane.xlu0 %1557
      %v1559 = vsel %vm1540, %v1482, -inf
      %1560 = vmax.xlane.f32.xlu0 %v1559
      %v1561 = vpop.xlane.xlu0 %1560
      %v1562 = vsel %vm1540, %v1483, -inf
      %1563 = vmax.xlane.f32.xlu0 %v1562
      %v1564 = vpop.xlane.xlu0 %1563
      %v1565 = vsel %vm1540, %v1484, -inf
      %1566 = vmax.xlane.f32.xlu0 %v1565
      %v1567 = vpop.xlane.xlu0 %1566
      %v1568 = vsel %vm1540, %v1485, -inf
      %1569 = vmax.xlane.f32.xlu0 %v1568
      %v1570 = vpop.xlane.xlu0 %1569
      %v1571 = vsel %vm1540, %v1486, -inf
      %1572 = vmax.xlane.f32.xlu0 %v1571
      %v1573 = vpop.xlane.xlu0 %1572
      %v1574 = vsel %vm1540, %v1487, -inf
      %1575 = vmax.xlane.f32.xlu0 %v1574
      %v1576 = vpop.xlane.xlu0 %1575
      %v1577 = vsel %vm1540, %v1488, -inf
      %1578 = vmax.xlane.f32.xlu0 %v1577
      %v1579 = vpop.xlane.xlu0 %1578
      %v1580 = vsel %vm1540, %v1489, -inf
      %1581 = vmax.xlane.f32.xlu0 %v1580
      %v1582 = vpop.xlane.xlu0 %1581
      %v1583 = vsel %vm1540, %v1490, -inf
      %1584 = vmax.xlane.f32.xlu0 %v1583
      %v1585 = vpop.xlane.xlu0 %1584
      %v1586 = vsel %vm1540, %v1491, -inf
      %1587 = vmax.xlane.f32.xlu0 %v1586
      %v1588 = vpop.xlane.xlu0 %1587
      %v1589 = vsel %vm1540, %v1492, -inf
      %1590 = vmax.xlane.f32.xlu0 %v1589
      %v1591 = vpop.xlane.xlu0 %1590
      %v1592 = vsel %vm1540, %v1493, -inf
      %1593 = vmax.xlane.f32.xlu0 %v1592
      %v1594 = vpop.xlane.xlu0 %1593
      %v1595 = vsel %vm1540, %v1494, -inf
      %1596 = vmax.xlane.f32.xlu0 %v1595
      %v1597 = vpop.xlane.xlu0 %1596
      %v1598 = vsel %vm1540, %v1495, -inf
      %1599 = vmax.xlane.f32.xlu0 %v1598
      %v1600 = vpop.xlane.xlu0 %1599
      %v1601 = vsel %vm1540, %v1496, -inf
      %1602 = vmax.xlane.f32.xlu0 %v1601
      %v1603 = vpop.xlane.xlu0 %1602
      %v1604 = vsel %vm1540, %v1497, -inf
      %1605 = vmax.xlane.f32.xlu0 %v1604
      %v1606 = vpop.xlane.xlu0 %1605
      %v1607 = vsel %vm1540, %v1498, -inf
      %1608 = vmax.xlane.f32.xlu0 %v1607
      %v1609 = vpop.xlane.xlu0 %1608
      %v1610 = vsel %vm1540, %v1499, -inf
      %1611 = vmax.xlane.f32.xlu0 %v1610
      %v1612 = vpop.xlane.xlu0 %1611
      %v1613 = vsel %vm1540, %v1500, -inf
      %1614 = vmax.xlane.f32.xlu0 %v1613
      %v1615 = vpop.xlane.xlu0 %1614
      %v1616 = vsel %vm1540, %v1501, -inf
      %1617 = vmax.xlane.f32.xlu0 %v1616
      %v1618 = vpop.xlane.xlu0 %1617
      %v1619 = vsel %vm1540, %v1502, -inf
      %1620 = vmax.xlane.f32.xlu0 %v1619
      %v1621 = vpop.xlane.xlu0 %1620
      %v1622 = vsel %vm1540, %v1503, -inf
      %1623 = vmax.xlane.f32.xlu0 %v1622
      %v1624 = vpop.xlane.xlu0 %1623
      %v1625 = vsel %vm1540, %v1504, -inf
      %1626 = vmax.xlane.f32.xlu0 %v1625
      %v1627 = vpop.xlane.xlu0 %1626
      %v1628 = vsel %vm1540, %v1505, -inf
      %1629 = vmax.xlane.f32.xlu0 %v1628
      %v1630 = vpop.xlane.xlu0 %1629
      %v1631 = vsel %vm1540, %v1506, -inf
      %1632 = vmax.xlane.f32.xlu0 %v1631
      %v1633 = vpop.xlane.xlu0 %1632
      %v1634 = vsel %vm1540, %v1507, -inf
      %1635 = vmax.xlane.f32.xlu0 %v1634
      %v1636 = vpop.xlane.xlu0 %1635
      %v1637 = vsel %vm1540, %v1508, -inf
      %1638 = vmax.xlane.f32.xlu0 %v1637
      %v1639 = vpop.xlane.xlu0 %1638
      %v1640 = vsel %vm1540, %v1509, -inf
      %1641 = vmax.xlane.f32.xlu0 %v1640
      %v1642 = vpop.xlane.xlu0 %1641
      %v1643 = vsel %vm1540, %v1510, -inf
      %1644 = vmax.xlane.f32.xlu0 %v1643
      %v1645 = vpop.xlane.xlu0 %1644
      %v1646 = vsel %vm1540, %v1511, -inf
      %1647 = vmax.xlane.f32.xlu0 %v1646
      %v1648 = vpop.xlane.xlu0 %1647
      %v1649 = vsel %vm1540, %v1512, -inf
      %1650 = vmax.xlane.f32.xlu0 %v1649
      %v1651 = vpop.xlane.xlu0 %1650
      %v1652 = vsel %vm1540, %v1513, -inf
      %1653 = vmax.xlane.f32.xlu0 %v1652
      %v1654 = vpop.xlane.xlu0 %1653
      %v1655 = vsel %vm1540, %v1514, -inf
      %1656 = vmax.xlane.f32.xlu0 %v1655
      %v1657 = vpop.xlane.xlu0 %1656
      %v1658 = vsel %vm1540, %v1515, -inf
      %1659 = vmax.xlane.f32.xlu0 %v1658
      %v1660 = vpop.xlane.xlu0 %1659
      %v1661 = vsel %vm1540, %v1516, -inf
      %1662 = vmax.xlane.f32.xlu0 %v1661
      %v1663 = vpop.xlane.xlu0 %1662
      %v1664 = vsel %vm1540, %v1517, -inf
      %1665 = vmax.xlane.f32.xlu0 %v1664
      %v1666 = vpop.xlane.xlu0 %1665
      %v1667 = vsel %vm1540, %v1518, -inf
      %1668 = vmax.xlane.f32.xlu0 %v1667
      %v1669 = vpop.xlane.xlu0 %1668
      %v1670 = vsel %vm1540, %v1519, -inf
      %1671 = vmax.xlane.f32.xlu0 %v1670
      %v1672 = vpop.xlane.xlu0 %1671
      %v1673 = vsel %vm1540, %v1520, -inf
      %1674 = vmax.xlane.f32.xlu0 %v1673
      %v1675 = vpop.xlane.xlu0 %1674
      %v1676 = vsel %vm1540, %v1521, -inf
      %1677 = vmax.xlane.f32.xlu0 %v1676
      %v1678 = vpop.xlane.xlu0 %1677
      %v1679 = vsel %vm1540, %v1522, -inf
      %1680 = vmax.xlane.f32.xlu0 %v1679
      %v1681 = vpop.xlane.xlu0 %1680
      %v1682 = vsel %vm1540, %v1523, -inf
      %1683 = vmax.xlane.f32.xlu0 %v1682
      %v1684 = vpop.xlane.xlu0 %1683
      %v1685 = vsel %vm1540, %v1524, -inf
      %1686 = vmax.xlane.f32.xlu0 %v1685
      %v1687 = vpop.xlane.xlu0 %1686
      %v1688 = vsel %vm1540, %v1525, -inf
      %1689 = vmax.xlane.f32.xlu0 %v1688
      %v1690 = vpop.xlane.xlu0 %1689
      %v1691 = vsel %vm1540, %v1526, -inf
      %1692 = vmax.xlane.f32.xlu0 %v1691
      %v1693 = vpop.xlane.xlu0 %1692
      %v1694 = vsel %vm1540, %v1527, -inf
      %1695 = vmax.xlane.f32.xlu0 %v1694
      %v1696 = vpop.xlane.xlu0 %1695
      %v1697 = vsel %vm1540, %v1528, -inf
      %1698 = vmax.xlane.f32.xlu0 %v1697
      %v1699 = vpop.xlane.xlu0 %1698
      %v1700 = vsel %vm1540, %v1529, -inf
      %1701 = vmax.xlane.f32.xlu0 %v1700
      %v1702 = vpop.xlane.xlu0 %1701
      %v1703 = vsel %vm1540, %v1530, -inf
      %1704 = vmax.xlane.f32.xlu0 %v1703
      %v1705 = vpop.xlane.xlu0 %1704
      %v1706 = vsel %vm1540, %v1531, -inf
      %1707 = vmax.xlane.f32.xlu0 %v1706
      %v1708 = vpop.xlane.xlu0 %1707
      %v1709 = vsel %vm1540, %v1532, -inf
      %1710 = vmax.xlane.f32.xlu0 %v1709
      %v1711 = vpop.xlane.xlu0 %1710
      %v1712 = vsel %vm1540, %v1533, -inf
      %1713 = vmax.xlane.f32.xlu0 %v1712
      %v1714 = vpop.xlane.xlu0 %1713
      %v1715 = vsel %vm1540, %v1534, -inf
      %1716 = vmax.xlane.f32.xlu0 %v1715
      %v1717 = vpop.xlane.xlu0 %1716
      %v1718 = vsel %vm1540, %v1535, -inf
      %1719 = vmax.xlane.f32.xlu0 %v1718
      %v1720 = vpop.xlane.xlu0 %1719
      %v1721 = vsel %vm1540, %v1536, -inf
      %1722 = vmax.xlane.f32.xlu0 %v1721
      %v1723 = vpop.xlane.xlu0 %1722
      %v1724 = vsel %vm1540, %v1537, -inf
      %1725 = vmax.xlane.f32.xlu0 %v1724
      %v1726 = vpop.xlane.xlu0 %1725
      %v1727 = vsel %vm1540, %v1538, -inf
      %1728 = vmax.xlane.f32.xlu0 %v1727
      %v1729 = vpop.xlane.xlu0 %1728
      %v1730 = vsel %vm1540, %v1539, -inf
      %1731 = vmax.xlane.f32.xlu0 %v1730
      %v1732 = vpop.xlane.xlu0 %1731
      %v1733 = vsub.f32 %v1476, %v1543
      %v1734 = vsub.f32 %v1477, %v1546
      %v1735 = vsub.f32 %v1478, %v1549
      %v1736 = vsub.f32 %v1479, %v1552
      %v1737 = vsub.f32 %v1480, %v1555
      %v1738 = vsub.f32 %v1481, %v1558
      %v1739 = vsub.f32 %v1482, %v1561
      %v1740 = vsub.f32 %v1483, %v1564
      %v1741 = vsub.f32 %v1484, %v1567
      %v1742 = vsub.f32 %v1485, %v1570
      %v1743 = vsub.f32 %v1486, %v1573
      %v1744 = vsub.f32 %v1487, %v1576
      %v1745 = vsub.f32 %v1488, %v1579
      %v1746 = vsub.f32 %v1489, %v1582
      %v1747 = vsub.f32 %v1490, %v1585
      %v1748 = vsub.f32 %v1491, %v1588
      %v1749 = vsub.f32 %v1492, %v1591
      %v1750 = vsub.f32 %v1493, %v1594
      %v1751 = vsub.f32 %v1494, %v1597
      %v1752 = vsub.f32 %v1495, %v1600
      %v1753 = vsub.f32 %v1496, %v1603
      %v1754 = vsub.f32 %v1497, %v1606
      %v1755 = vsub.f32 %v1498, %v1609
      %v1756 = vsub.f32 %v1499, %v1612
      %v1757 = vsub.f32 %v1500, %v1615
      %v1758 = vsub.f32 %v1501, %v1618
      %v1759 = vsub.f32 %v1502, %v1621
      %v1760 = vsub.f32 %v1503, %v1624
      %v1761 = vsub.f32 %v1504, %v1627
      %v1762 = vsub.f32 %v1505, %v1630
      %v1763 = vsub.f32 %v1506, %v1633
      %v1764 = vsub.f32 %v1507, %v1636
      %v1765 = vsub.f32 %v1508, %v1639
      %v1766 = vsub.f32 %v1509, %v1642
      %v1767 = vsub.f32 %v1510, %v1645
      %v1768 = vsub.f32 %v1511, %v1648
      %v1769 = vsub.f32 %v1512, %v1651
      %v1770 = vsub.f32 %v1513, %v1654
      %v1771 = vsub.f32 %v1514, %v1657
      %v1772 = vsub.f32 %v1515, %v1660
      %v1773 = vsub.f32 %v1516, %v1663
      %v1774 = vsub.f32 %v1517, %v1666
      %v1775 = vsub.f32 %v1518, %v1669
      %v1776 = vsub.f32 %v1519, %v1672
      %v1777 = vsub.f32 %v1520, %v1675
      %v1778 = vsub.f32 %v1521, %v1678
      %v1779 = vsub.f32 %v1522, %v1681
      %v1780 = vsub.f32 %v1523, %v1684
      %v1781 = vsub.f32 %v1524, %v1687
      %v1782 = vsub.f32 %v1525, %v1690
      %v1783 = vsub.f32 %v1526, %v1693
      %v1784 = vsub.f32 %v1527, %v1696
      %v1785 = vsub.f32 %v1528, %v1699
      %v1786 = vsub.f32 %v1529, %v1702
      %v1787 = vsub.f32 %v1530, %v1705
      %v1788 = vsub.f32 %v1531, %v1708
      %v1789 = vsub.f32 %v1532, %v1711
      %v1790 = vsub.f32 %v1533, %v1714
      %v1791 = vsub.f32 %v1534, %v1717
      %v1792 = vsub.f32 %v1535, %v1720
      %v1793 = vsub.f32 %v1536, %v1723
      %v1794 = vsub.f32 %v1537, %v1726
      %v1795 = vsub.f32 %v1538, %v1729
      %v1796 = vsub.f32 %v1539, %v1732
      %v1797 = vmul.f32 %v1733, 1.442695
      %v1798 = vpow.pop %v1797
      %v1799 = vmul.f32 %v1734, 1.442695
      %v1800 = vpow.pop %v1799
      %v1801 = vmul.f32 %v1735, 1.442695
      %v1802 = vpow.pop %v1801
      %v1803 = vmul.f32 %v1736, 1.442695
      %v1804 = vpow.pop %v1803
      %v1805 = vmul.f32 %v1737, 1.442695
      %v1806 = vpow.pop %v1805
      %v1807 = vmul.f32 %v1738, 1.442695
      %v1808 = vpow.pop %v1807
      %v1809 = vmul.f32 %v1739, 1.442695
      %v1810 = vpow.pop %v1809
      %v1811 = vmul.f32 %v1740, 1.442695
      %v1812 = vpow.pop %v1811
      %v1813 = vmul.f32 %v1741, 1.442695
      %v1814 = vpow.pop %v1813
      %v1815 = vmul.f32 %v1742, 1.442695
      %v1816 = vpow.pop %v1815
      %v1817 = vmul.f32 %v1743, 1.442695
      %v1818 = vpow.pop %v1817
      %v1819 = vmul.f32 %v1744, 1.442695
      %v1820 = vpow.pop %v1819
      %v1821 = vmul.f32 %v1745, 1.442695
      %v1822 = vpow.pop %v1821
      %v1823 = vmul.f32 %v1746, 1.442695
      %v1824 = vpow.pop %v1823
      %v1825 = vmul.f32 %v1747, 1.442695
      %v1826 = vpow.pop %v1825
      %v1827 = vmul.f32 %v1748, 1.442695
      %v1828 = vpow.pop %v1827
      %v1829 = vmul.f32 %v1749, 1.442695
      %v1830 = vpow.pop %v1829
      %v1831 = vmul.f32 %v1750, 1.442695
      %v1832 = vpow.pop %v1831
      %v1833 = vmul.f32 %v1751, 1.442695
      %v1834 = vpow.pop %v1833
      %v1835 = vmul.f32 %v1752, 1.442695
      %v1836 = vpow.pop %v1835
      %v1837 = vmul.f32 %v1753, 1.442695
      %v1838 = vpow.pop %v1837
      %v1839 = vmul.f32 %v1754, 1.442695
      %v1840 = vpow.pop %v1839
      %v1841 = vmul.f32 %v1755, 1.442695
      %v1842 = vpow.pop %v1841
      %v1843 = vmul.f32 %v1756, 1.442695
      %v1844 = vpow.pop %v1843
      %v1845 = vmul.f32 %v1757, 1.442695
      %v1846 = vpow.pop %v1845
      %v1847 = vmul.f32 %v1758, 1.442695
      %v1848 = vpow.pop %v1847
      %v1849 = vmul.f32 %v1759, 1.442695
      %v1850 = vpow.pop %v1849
      %v1851 = vmul.f32 %v1760, 1.442695
      %v1852 = vpow.pop %v1851
      %v1853 = vmul.f32 %v1761, 1.442695
      %v1854 = vpow.pop %v1853
      %v1855 = vmul.f32 %v1762, 1.442695
      %v1856 = vpow.pop %v1855
      %v1857 = vmul.f32 %v1763, 1.442695
      %v1858 = vpow.pop %v1857
      %v1859 = vmul.f32 %v1764, 1.442695
      %v1860 = vpow.pop %v1859
      %v1861 = vmul.f32 %v1765, 1.442695
      %v1862 = vpow.pop %v1861
      %v1863 = vmul.f32 %v1766, 1.442695
      %v1864 = vpow.pop %v1863
      %v1865 = vmul.f32 %v1767, 1.442695
      %v1866 = vpow.pop %v1865
      %v1867 = vmul.f32 %v1768, 1.442695
      %v1868 = vpow.pop %v1867
      %v1869 = vmul.f32 %v1769, 1.442695
      %v1870 = vpow.pop %v1869
      %v1871 = vmul.f32 %v1770, 1.442695
      %v1872 = vpow.pop %v1871
      %v1873 = vmul.f32 %v1771, 1.442695
      %v1874 = vpow.pop %v1873
      %v1875 = vmul.f32 %v1772, 1.442695
      %v1876 = vpow.pop %v1875
      %v1877 = vmul.f32 %v1773, 1.442695
      %v1878 = vpow.pop %v1877
      %v1879 = vmul.f32 %v1774, 1.442695
      %v1880 = vpow.pop %v1879
      %v1881 = vmul.f32 %v1775, 1.442695
      %v1882 = vpow.pop %v1881
      %v1883 = vmul.f32 %v1776, 1.442695
      %v1884 = vpow.pop %v1883
      %v1885 = vmul.f32 %v1777, 1.442695
      %v1886 = vpow.pop %v1885
      %v1887 = vmul.f32 %v1778, 1.442695
      %v1888 = vpow.pop %v1887
      %v1889 = vmul.f32 %v1779, 1.442695
      %v1890 = vpow.pop %v1889
      %v1891 = vmul.f32 %v1780, 1.442695
      %v1892 = vpow.pop %v1891
      %v1893 = vmul.f32 %v1781, 1.442695
      %v1894 = vpow.pop %v1893
      %v1895 = vmul.f32 %v1782, 1.442695
      %v1896 = vpow.pop %v1895
      %v1897 = vmul.f32 %v1783, 1.442695
      %v1898 = vpow.pop %v1897
      %v1899 = vmul.f32 %v1784, 1.442695
      %v1900 = vpow.pop %v1899
      %v1901 = vmul.f32 %v1785, 1.442695
      %v1902 = vpow.pop %v1901
      %v1903 = vmul.f32 %v1786, 1.442695
      %v1904 = vpow.pop %v1903
      %v1905 = vmul.f32 %v1787, 1.442695
      %v1906 = vpow.pop %v1905
      %v1907 = vmul.f32 %v1788, 1.442695
      %v1908 = vpow.pop %v1907
      %v1909 = vmul.f32 %v1789, 1.442695
      %v1910 = vpow.pop %v1909
      %v1911 = vmul.f32 %v1790, 1.442695
      %v1912 = vpow.pop %v1911
      %v1913 = vmul.f32 %v1791, 1.442695
      %v1914 = vpow.pop %v1913
      %v1915 = vmul.f32 %v1792, 1.442695
      %v1916 = vpow.pop %v1915
      %v1917 = vmul.f32 %v1793, 1.442695
      %v1918 = vpow.pop %v1917
      %v1919 = vmul.f32 %v1794, 1.442695
      %v1920 = vpow.pop %v1919
      %v1921 = vmul.f32 %v1795, 1.442695
      %v1922 = vpow.pop %v1921
      %v1923 = vmul.f32 %v1796, 1.442695
      %v1924 = vpow.pop %v1923
      %v1925 = vsel %vm1540, %v1798, 0.0
      %1926 = vadd.xlane.f32.xlu0 %v1925
      %v1927 = vpop.xlane.xlu0 %1926
      %v1928 = vsel %vm1540, %v1800, 0.0
      %1929 = vadd.xlane.f32.xlu0 %v1928
      %v1930 = vpop.xlane.xlu0 %1929
      %v1931 = vsel %vm1540, %v1802, 0.0
      %1932 = vadd.xlane.f32.xlu0 %v1931
      %v1933 = vpop.xlane.xlu0 %1932
      %v1934 = vsel %vm1540, %v1804, 0.0
      %1935 = vadd.xlane.f32.xlu0 %v1934
      %v1936 = vpop.xlane.xlu0 %1935
      %v1937 = vsel %vm1540, %v1806, 0.0
      %1938 = vadd.xlane.f32.xlu0 %v1937
      %v1939 = vpop.xlane.xlu0 %1938
      %v1940 = vsel %vm1540, %v1808, 0.0
      %1941 = vadd.xlane.f32.xlu0 %v1940
      %v1942 = vpop.xlane.xlu0 %1941
      %v1943 = vsel %vm1540, %v1810, 0.0
      %1944 = vadd.xlane.f32.xlu0 %v1943
      %v1945 = vpop.xlane.xlu0 %1944
      %v1946 = vsel %vm1540, %v1812, 0.0
      %1947 = vadd.xlane.f32.xlu0 %v1946
      %v1948 = vpop.xlane.xlu0 %1947
      %v1949 = vsel %vm1540, %v1814, 0.0
      %1950 = vadd.xlane.f32.xlu0 %v1949
      %v1951 = vpop.xlane.xlu0 %1950
      %v1952 = vsel %vm1540, %v1816, 0.0
      %1953 = vadd.xlane.f32.xlu0 %v1952
      %v1954 = vpop.xlane.xlu0 %1953
      %v1955 = vsel %vm1540, %v1818, 0.0
      %1956 = vadd.xlane.f32.xlu0 %v1955
      %v1957 = vpop.xlane.xlu0 %1956
      %v1958 = vsel %vm1540, %v1820, 0.0
      %1959 = vadd.xlane.f32.xlu0 %v1958
      %v1960 = vpop.xlane.xlu0 %1959
      %v1961 = vsel %vm1540, %v1822, 0.0
      %1962 = vadd.xlane.f32.xlu0 %v1961
      %v1963 = vpop.xlane.xlu0 %1962
      %v1964 = vsel %vm1540, %v1824, 0.0
      %1965 = vadd.xlane.f32.xlu0 %v1964
      %v1966 = vpop.xlane.xlu0 %1965
      %v1967 = vsel %vm1540, %v1826, 0.0
      %1968 = vadd.xlane.f32.xlu0 %v1967
      %v1969 = vpop.xlane.xlu0 %1968
      %v1970 = vsel %vm1540, %v1828, 0.0
      %1971 = vadd.xlane.f32.xlu0 %v1970
      %v1972 = vpop.xlane.xlu0 %1971
      %v1973 = vsel %vm1540, %v1830, 0.0
      %1974 = vadd.xlane.f32.xlu0 %v1973
      %v1975 = vpop.xlane.xlu0 %1974
      %v1976 = vsel %vm1540, %v1832, 0.0
      %1977 = vadd.xlane.f32.xlu0 %v1976
      %v1978 = vpop.xlane.xlu0 %1977
      %v1979 = vsel %vm1540, %v1834, 0.0
      %1980 = vadd.xlane.f32.xlu0 %v1979
      %v1981 = vpop.xlane.xlu0 %1980
      %v1982 = vsel %vm1540, %v1836, 0.0
      %1983 = vadd.xlane.f32.xlu0 %v1982
      %v1984 = vpop.xlane.xlu0 %1983
      %v1985 = vsel %vm1540, %v1838, 0.0
      %1986 = vadd.xlane.f32.xlu0 %v1985
      %v1987 = vpop.xlane.xlu0 %1986
      %v1988 = vsel %vm1540, %v1840, 0.0
      %1989 = vadd.xlane.f32.xlu0 %v1988
      %v1990 = vpop.xlane.xlu0 %1989
      %v1991 = vsel %vm1540, %v1842, 0.0
      %1992 = vadd.xlane.f32.xlu0 %v1991
      %v1993 = vpop.xlane.xlu0 %1992
      %v1994 = vsel %vm1540, %v1844, 0.0
      %1995 = vadd.xlane.f32.xlu0 %v1994
      %v1996 = vpop.xlane.xlu0 %1995
      %v1997 = vsel %vm1540, %v1846, 0.0
      %1998 = vadd.xlane.f32.xlu0 %v1997
      %v1999 = vpop.xlane.xlu0 %1998
      %v2000 = vsel %vm1540, %v1848, 0.0
      %2001 = vadd.xlane.f32.xlu0 %v2000
      %v2002 = vpop.xlane.xlu0 %2001
      %v2003 = vsel %vm1540, %v1850, 0.0
      %2004 = vadd.xlane.f32.xlu0 %v2003
      %v2005 = vpop.xlane.xlu0 %2004
      %v2006 = vsel %vm1540, %v1852, 0.0
      %2007 = vadd.xlane.f32.xlu0 %v2006
      %v2008 = vpop.xlane.xlu0 %2007
      %v2009 = vsel %vm1540, %v1854, 0.0
      %2010 = vadd.xlane.f32.xlu0 %v2009
      %v2011 = vpop.xlane.xlu0 %2010
      %v2012 = vsel %vm1540, %v1856, 0.0
      %2013 = vadd.xlane.f32.xlu0 %v2012
      %v2014 = vpop.xlane.xlu0 %2013
      %v2015 = vsel %vm1540, %v1858, 0.0
      %2016 = vadd.xlane.f32.xlu0 %v2015
      %v2017 = vpop.xlane.xlu0 %2016
      %v2018 = vsel %vm1540, %v1860, 0.0
      %2019 = vadd.xlane.f32.xlu0 %v2018
      %v2020 = vpop.xlane.xlu0 %2019
      %v2021 = vsel %vm1540, %v1862, 0.0
      %2022 = vadd.xlane.f32.xlu0 %v2021
      %v2023 = vpop.xlane.xlu0 %2022
      %v2024 = vsel %vm1540, %v1864, 0.0
      %2025 = vadd.xlane.f32.xlu0 %v2024
      %v2026 = vpop.xlane.xlu0 %2025
      %v2027 = vsel %vm1540, %v1866, 0.0
      %2028 = vadd.xlane.f32.xlu0 %v2027
      %v2029 = vpop.xlane.xlu0 %2028
      %v2030 = vsel %vm1540, %v1868, 0.0
      %2031 = vadd.xlane.f32.xlu0 %v2030
      %v2032 = vpop.xlane.xlu0 %2031
      %v2033 = vsel %vm1540, %v1870, 0.0
      %2034 = vadd.xlane.f32.xlu0 %v2033
      %v2035 = vpop.xlane.xlu0 %2034
      %v2036 = vsel %vm1540, %v1872, 0.0
      %2037 = vadd.xlane.f32.xlu0 %v2036
      %v2038 = vpop.xlane.xlu0 %2037
      %v2039 = vsel %vm1540, %v1874, 0.0
      %2040 = vadd.xlane.f32.xlu0 %v2039
      %v2041 = vpop.xlane.xlu0 %2040
      %v2042 = vsel %vm1540, %v1876, 0.0
      %2043 = vadd.xlane.f32.xlu0 %v2042
      %v2044 = vpop.xlane.xlu0 %2043
      %v2045 = vsel %vm1540, %v1878, 0.0
      %2046 = vadd.xlane.f32.xlu0 %v2045
      %v2047 = vpop.xlane.xlu0 %2046
      %v2048 = vsel %vm1540, %v1880, 0.0
      %2049 = vadd.xlane.f32.xlu0 %v2048
      %v2050 = vpop.xlane.xlu0 %2049
      %v2051 = vsel %vm1540, %v1882, 0.0
      %2052 = vadd.xlane.f32.xlu0 %v2051
      %v2053 = vpop.xlane.xlu0 %2052
      %v2054 = vsel %vm1540, %v1884, 0.0
      %2055 = vadd.xlane.f32.xlu0 %v2054
      %v2056 = vpop.xlane.xlu0 %2055
      %v2057 = vsel %vm1540, %v1886, 0.0
      %2058 = vadd.xlane.f32.xlu0 %v2057
      %v2059 = vpop.xlane.xlu0 %2058
      %v2060 = vsel %vm1540, %v1888, 0.0
      %2061 = vadd.xlane.f32.xlu0 %v2060
      %v2062 = vpop.xlane.xlu0 %2061
      %v2063 = vsel %vm1540, %v1890, 0.0
      %2064 = vadd.xlane.f32.xlu0 %v2063
      %v2065 = vpop.xlane.xlu0 %2064
      %v2066 = vsel %vm1540, %v1892, 0.0
      %2067 = vadd.xlane.f32.xlu0 %v2066
      %v2068 = vpop.xlane.xlu0 %2067
      %v2069 = vsel %vm1540, %v1894, 0.0
      %2070 = vadd.xlane.f32.xlu0 %v2069
      %v2071 = vpop.xlane.xlu0 %2070
      %v2072 = vsel %vm1540, %v1896, 0.0
      %2073 = vadd.xlane.f32.xlu0 %v2072
      %v2074 = vpop.xlane.xlu0 %2073
      %v2075 = vsel %vm1540, %v1898, 0.0
      %2076 = vadd.xlane.f32.xlu0 %v2075
      %v2077 = vpop.xlane.xlu0 %2076
      %v2078 = vsel %vm1540, %v1900, 0.0
      %2079 = vadd.xlane.f32.xlu0 %v2078
      %v2080 = vpop.xlane.xlu0 %2079
      %v2081 = vsel %vm1540, %v1902, 0.0
      %2082 = vadd.xlane.f32.xlu0 %v2081
      %v2083 = vpop.xlane.xlu0 %2082
      %v2084 = vsel %vm1540, %v1904, 0.0
      %2085 = vadd.xlane.f32.xlu0 %v2084
      %v2086 = vpop.xlane.xlu0 %2085
      %v2087 = vsel %vm1540, %v1906, 0.0
      %2088 = vadd.xlane.f32.xlu0 %v2087
      %v2089 = vpop.xlane.xlu0 %2088
      %v2090 = vsel %vm1540, %v1908, 0.0
      %2091 = vadd.xlane.f32.xlu0 %v2090
      %v2092 = vpop.xlane.xlu0 %2091
      %v2093 = vsel %vm1540, %v1910, 0.0
      %2094 = vadd.xlane.f32.xlu0 %v2093
      %v2095 = vpop.xlane.xlu0 %2094
      %v2096 = vsel %vm1540, %v1912, 0.0
      %2097 = vadd.xlane.f32.xlu0 %v2096
      %v2098 = vpop.xlane.xlu0 %2097
      %v2099 = vsel %vm1540, %v1914, 0.0
      %2100 = vadd.xlane.f32.xlu0 %v2099
      %v2101 = vpop.xlane.xlu0 %2100
      %v2102 = vsel %vm1540, %v1916, 0.0
      %2103 = vadd.xlane.f32.xlu0 %v2102
      %v2104 = vpop.xlane.xlu0 %2103
      %v2105 = vsel %vm1540, %v1918, 0.0
      %2106 = vadd.xlane.f32.xlu0 %v2105
      %v2107 = vpop.xlane.xlu0 %2106
      %v2108 = vsel %vm1540, %v1920, 0.0
      %2109 = vadd.xlane.f32.xlu0 %v2108
      %v2110 = vpop.xlane.xlu0 %2109
      %v2111 = vsel %vm1540, %v1922, 0.0
      %2112 = vadd.xlane.f32.xlu0 %v2111
      %v2113 = vpop.xlane.xlu0 %2112
      %v2114 = vsel %vm1540, %v1924, 0.0
      %2115 = vadd.xlane.f32.xlu0 %v2114
      %v2116 = vpop.xlane.xlu0 %2115
      %v2117 = vlog2.pop %v1927
      %v2118 = vmul.f32 %v2117, 0.6931472
      %v2119 = vlog2.pop %v1930
      %v2120 = vmul.f32 %v2119, 0.6931472
      %v2121 = vlog2.pop %v1933
      %v2122 = vmul.f32 %v2121, 0.6931472
      %v2123 = vlog2.pop %v1936
      %v2124 = vmul.f32 %v2123, 0.6931472
      %v2125 = vlog2.pop %v1939
      %v2126 = vmul.f32 %v2125, 0.6931472
      %v2127 = vlog2.pop %v1942
      %v2128 = vmul.f32 %v2127, 0.6931472
      %v2129 = vlog2.pop %v1945
      %v2130 = vmul.f32 %v2129, 0.6931472
      %v2131 = vlog2.pop %v1948
      %v2132 = vmul.f32 %v2131, 0.6931472
      %v2133 = vlog2.pop %v1951
      %v2134 = vmul.f32 %v2133, 0.6931472
      %v2135 = vlog2.pop %v1954
      %v2136 = vmul.f32 %v2135, 0.6931472
      %v2137 = vlog2.pop %v1957
      %v2138 = vmul.f32 %v2137, 0.6931472
      %v2139 = vlog2.pop %v1960
      %v2140 = vmul.f32 %v2139, 0.6931472
      %v2141 = vlog2.pop %v1963
      %v2142 = vmul.f32 %v2141, 0.6931472
      %v2143 = vlog2.pop %v1966
      %v2144 = vmul.f32 %v2143, 0.6931472
      %v2145 = vlog2.pop %v1969
      %v2146 = vmul.f32 %v2145, 0.6931472
      %v2147 = vlog2.pop %v1972
      %v2148 = vmul.f32 %v2147, 0.6931472
      %v2149 = vlog2.pop %v1975
      %v2150 = vmul.f32 %v2149, 0.6931472
      %v2151 = vlog2.pop %v1978
      %v2152 = vmul.f32 %v2151, 0.6931472
      %v2153 = vlog2.pop %v1981
      %v2154 = vmul.f32 %v2153, 0.6931472
      %v2155 = vlog2.pop %v1984
      %v2156 = vmul.f32 %v2155, 0.6931472
      %v2157 = vlog2.pop %v1987
      %v2158 = vmul.f32 %v2157, 0.6931472
      %v2159 = vlog2.pop %v1990
      %v2160 = vmul.f32 %v2159, 0.6931472
      %v2161 = vlog2.pop %v1993
      %v2162 = vmul.f32 %v2161, 0.6931472
      %v2163 = vlog2.pop %v1996
      %v2164 = vmul.f32 %v2163, 0.6931472
      %v2165 = vlog2.pop %v1999
      %v2166 = vmul.f32 %v2165, 0.6931472
      %v2167 = vlog2.pop %v2002
      %v2168 = vmul.f32 %v2167, 0.6931472
      %v2169 = vlog2.pop %v2005
      %v2170 = vmul.f32 %v2169, 0.6931472
      %v2171 = vlog2.pop %v2008
      %v2172 = vmul.f32 %v2171, 0.6931472
      %v2173 = vlog2.pop %v2011
      %v2174 = vmul.f32 %v2173, 0.6931472
      %v2175 = vlog2.pop %v2014
      %v2176 = vmul.f32 %v2175, 0.6931472
      %v2177 = vlog2.pop %v2017
      %v2178 = vmul.f32 %v2177, 0.6931472
      %v2179 = vlog2.pop %v2020
      %v2180 = vmul.f32 %v2179, 0.6931472
      %v2181 = vlog2.pop %v2023
      %v2182 = vmul.f32 %v2181, 0.6931472
      %v2183 = vlog2.pop %v2026
      %v2184 = vmul.f32 %v2183, 0.6931472
      %v2185 = vlog2.pop %v2029
      %v2186 = vmul.f32 %v2185, 0.6931472
      %v2187 = vlog2.pop %v2032
      %v2188 = vmul.f32 %v2187, 0.6931472
      %v2189 = vlog2.pop %v2035
      %v2190 = vmul.f32 %v2189, 0.6931472
      %v2191 = vlog2.pop %v2038
      %v2192 = vmul.f32 %v2191, 0.6931472
      %v2193 = vlog2.pop %v2041
      %v2194 = vmul.f32 %v2193, 0.6931472
      %v2195 = vlog2.pop %v2044
      %v2196 = vmul.f32 %v2195, 0.6931472
      %v2197 = vlog2.pop %v2047
      %v2198 = vmul.f32 %v2197, 0.6931472
      %v2199 = vlog2.pop %v2050
      %v2200 = vmul.f32 %v2199, 0.6931472
      %v2201 = vlog2.pop %v2053
      %v2202 = vmul.f32 %v2201, 0.6931472
      %v2203 = vlog2.pop %v2056
      %v2204 = vmul.f32 %v2203, 0.6931472
      %v2205 = vlog2.pop %v2059
      %v2206 = vmul.f32 %v2205, 0.6931472
      %v2207 = vlog2.pop %v2062
      %v2208 = vmul.f32 %v2207, 0.6931472
      %v2209 = vlog2.pop %v2065
      %v2210 = vmul.f32 %v2209, 0.6931472
      %v2211 = vlog2.pop %v2068
      %v2212 = vmul.f32 %v2211, 0.6931472
      %v2213 = vlog2.pop %v2071
      %v2214 = vmul.f32 %v2213, 0.6931472
      %v2215 = vlog2.pop %v2074
      %v2216 = vmul.f32 %v2215, 0.6931472
      %v2217 = vlog2.pop %v2077
      %v2218 = vmul.f32 %v2217, 0.6931472
      %v2219 = vlog2.pop %v2080
      %v2220 = vmul.f32 %v2219, 0.6931472
      %v2221 = vlog2.pop %v2083
      %v2222 = vmul.f32 %v2221, 0.6931472
      %v2223 = vlog2.pop %v2086
      %v2224 = vmul.f32 %v2223, 0.6931472
      %v2225 = vlog2.pop %v2089
      %v2226 = vmul.f32 %v2225, 0.6931472
      %v2227 = vlog2.pop %v2092
      %v2228 = vmul.f32 %v2227, 0.6931472
      %v2229 = vlog2.pop %v2095
      %v2230 = vmul.f32 %v2229, 0.6931472
      %v2231 = vlog2.pop %v2098
      %v2232 = vmul.f32 %v2231, 0.6931472
      %v2233 = vlog2.pop %v2101
      %v2234 = vmul.f32 %v2233, 0.6931472
      %v2235 = vlog2.pop %v2104
      %v2236 = vmul.f32 %v2235, 0.6931472
      %v2237 = vlog2.pop %v2107
      %v2238 = vmul.f32 %v2237, 0.6931472
      %v2239 = vlog2.pop %v2110
      %v2240 = vmul.f32 %v2239, 0.6931472
      %v2241 = vlog2.pop %v2113
      %v2242 = vmul.f32 %v2241, 0.6931472
      %v2243 = vlog2.pop %v2116
      %v2244 = vmul.f32 %v2243, 0.6931472
      %v2245 = vsub.f32 %v1733, %v2118
      %v2246 = vsub.f32 %v1734, %v2120
      %v2247 = vsub.f32 %v1735, %v2122
      %v2248 = vsub.f32 %v1736, %v2124
      %v2249 = vsub.f32 %v1737, %v2126
      %v2250 = vsub.f32 %v1738, %v2128
      %v2251 = vsub.f32 %v1739, %v2130
      %v2252 = vsub.f32 %v1740, %v2132
      %v2253 = vsub.f32 %v1741, %v2134
      %v2254 = vsub.f32 %v1742, %v2136
      %v2255 = vsub.f32 %v1743, %v2138
      %v2256 = vsub.f32 %v1744, %v2140
      %v2257 = vsub.f32 %v1745, %v2142
      %v2258 = vsub.f32 %v1746, %v2144
      %v2259 = vsub.f32 %v1747, %v2146
      %v2260 = vsub.f32 %v1748, %v2148
      %v2261 = vsub.f32 %v1749, %v2150
      %v2262 = vsub.f32 %v1750, %v2152
      %v2263 = vsub.f32 %v1751, %v2154
      %v2264 = vsub.f32 %v1752, %v2156
      %v2265 = vsub.f32 %v1753, %v2158
      %v2266 = vsub.f32 %v1754, %v2160
      %v2267 = vsub.f32 %v1755, %v2162
      %v2268 = vsub.f32 %v1756, %v2164
      %v2269 = vsub.f32 %v1757, %v2166
      %v2270 = vsub.f32 %v1758, %v2168
      %v2271 = vsub.f32 %v1759, %v2170
      %v2272 = vsub.f32 %v1760, %v2172
      %v2273 = vsub.f32 %v1761, %v2174
      %v2274 = vsub.f32 %v1762, %v2176
      %v2275 = vsub.f32 %v1763, %v2178
      %v2276 = vsub.f32 %v1764, %v2180
      %v2277 = vsub.f32 %v1765, %v2182
      %v2278 = vsub.f32 %v1766, %v2184
      %v2279 = vsub.f32 %v1767, %v2186
      %v2280 = vsub.f32 %v1768, %v2188
      %v2281 = vsub.f32 %v1769, %v2190
      %v2282 = vsub.f32 %v1770, %v2192
      %v2283 = vsub.f32 %v1771, %v2194
      %v2284 = vsub.f32 %v1772, %v2196
      %v2285 = vsub.f32 %v1773, %v2198
      %v2286 = vsub.f32 %v1774, %v2200
      %v2287 = vsub.f32 %v1775, %v2202
      %v2288 = vsub.f32 %v1776, %v2204
      %v2289 = vsub.f32 %v1777, %v2206
      %v2290 = vsub.f32 %v1778, %v2208
      %v2291 = vsub.f32 %v1779, %v2210
      %v2292 = vsub.f32 %v1780, %v2212
      %v2293 = vsub.f32 %v1781, %v2214
      %v2294 = vsub.f32 %v1782, %v2216
      %v2295 = vsub.f32 %v1783, %v2218
      %v2296 = vsub.f32 %v1784, %v2220
      %v2297 = vsub.f32 %v1785, %v2222
      %v2298 = vsub.f32 %v1786, %v2224
      %v2299 = vsub.f32 %v1787, %v2226
      %v2300 = vsub.f32 %v1788, %v2228
      %v2301 = vsub.f32 %v1789, %v2230
      %v2302 = vsub.f32 %v1790, %v2232
      %v2303 = vsub.f32 %v1791, %v2234
      %v2304 = vsub.f32 %v1792, %v2236
      %v2305 = vsub.f32 %v1793, %v2238
      %v2306 = vsub.f32 %v1794, %v2240
      %v2307 = vsub.f32 %v1795, %v2242
      %v2308 = vsub.f32 %v1796, %v2244
      %2309 = vst.msk [vmem:[%s248] sm:$0xff] %vm1540, %v2245
      %2310 = vst.msk [vmem:[%s248 + $0x8] sm:$0xff] %vm1540, %v2246
      %2311 = vst.msk [vmem:[%s248 + $0x10] sm:$0xff] %vm1540, %v2247
      %2312 = vst.msk [vmem:[%s248 + $0x18] sm:$0xff] %vm1540, %v2248
      %2313 = vst.msk [vmem:[%s248 + $0x20] sm:$0xff] %vm1540, %v2249
      %2314 = vst.msk [vmem:[%s248 + $0x28] sm:$0xff] %vm1540, %v2250
      %2315 = vst.msk [vmem:[%s248 + $0x30] sm:$0xff] %vm1540, %v2251
      %2316 = vst.msk [vmem:[%s248 + $0x38] sm:$0xff] %vm1540, %v2252
      %2317 = vst.msk [vmem:[%s248 + $0x40] sm:$0xff] %vm1540, %v2253
      %2318 = vst.msk [vmem:[%s248 + $0x48] sm:$0xff] %vm1540, %v2254
      %2319 = vst.msk [vmem:[%s248 + $0x50] sm:$0xff] %vm1540, %v2255
      %2320 = vst.msk [vmem:[%s248 + $0x58] sm:$0xff] %vm1540, %v2256
      %2321 = vst.msk [vmem:[%s248 + $0x60] sm:$0xff] %vm1540, %v2257
      %2322 = vst.msk [vmem:[%s248 + $0x68] sm:$0xff] %vm1540, %v2258
      %2323 = vst.msk [vmem:[%s248 + $0x70] sm:$0xff] %vm1540, %v2259
      %2324 = vst.msk [vmem:[%s248 + $0x78] sm:$0xff] %vm1540, %v2260
      %2325 = vst.msk [vmem:[%s248 + $0x80] sm:$0xff] %vm1540, %v2261
      %2326 = vst.msk [vmem:[%s248 + $0x88] sm:$0xff] %vm1540, %v2262
      %2327 = vst.msk [vmem:[%s248 + $0x90] sm:$0xff] %vm1540, %v2263
      %2328 = vst.msk [vmem:[%s248 + $0x98] sm:$0xff] %vm1540, %v2264
      %2329 = vst.msk [vmem:[%s248 + $0xa0] sm:$0xff] %vm1540, %v2265
      %2330 = vst.msk [vmem:[%s248 + $0xa8] sm:$0xff] %vm1540, %v2266
      %2331 = vst.msk [vmem:[%s248 + $0xb0] sm:$0xff] %vm1540, %v2267
      %2332 = vst.msk [vmem:[%s248 + $0xb8] sm:$0xff] %vm1540, %v2268
      %2333 = vst.msk [vmem:[%s248 + $0xc0] sm:$0xff] %vm1540, %v2269
      %2334 = vst.msk [vmem:[%s248 + $0xc8] sm:$0xff] %vm1540, %v2270
      %2335 = vst.msk [vmem:[%s248 + $0xd0] sm:$0xff] %vm1540, %v2271
      %2336 = vst.msk [vmem:[%s248 + $0xd8] sm:$0xff] %vm1540, %v2272
      %2337 = vst.msk [vmem:[%s248 + $0xe0] sm:$0xff] %vm1540, %v2273
      %2338 = vst.msk [vmem:[%s248 + $0xe8] sm:$0xff] %vm1540, %v2274
      %2339 = vst.msk [vmem:[%s248 + $0xf0] sm:$0xff] %vm1540, %v2275
      %2340 = vst.msk [vmem:[%s248 + $0xf8] sm:$0xff] %vm1540, %v2276
      %2341 = vst.msk [vmem:[%s248 + $0x100] sm:$0xff] %vm1540, %v2277
      %2342 = vst.msk [vmem:[%s248 + $0x108] sm:$0xff] %vm1540, %v2278
      %2343 = vst.msk [vmem:[%s248 + $0x110] sm:$0xff] %vm1540, %v2279
      %2344 = vst.msk [vmem:[%s248 + $0x118] sm:$0xff] %vm1540, %v2280
      %2345 = vst.msk [vmem:[%s248 + $0x120] sm:$0xff] %vm1540, %v2281
      %2346 = vst.msk [vmem:[%s248 + $0x128] sm:$0xff] %vm1540, %v2282
      %2347 = vst.msk [vmem:[%s248 + $0x130] sm:$0xff] %vm1540, %v2283
      %2348 = vst.msk [vmem:[%s248 + $0x138] sm:$0xff] %vm1540, %v2284
      %2349 = vst.msk [vmem:[%s248 + $0x140] sm:$0xff] %vm1540, %v2285
      %2350 = vst.msk [vmem:[%s248 + $0x148] sm:$0xff] %vm1540, %v2286
      %2351 = vst.msk [vmem:[%s248 + $0x150] sm:$0xff] %vm1540, %v2287
      %2352 = vst.msk [vmem:[%s248 + $0x158] sm:$0xff] %vm1540, %v2288
      %2353 = vst.msk [vmem:[%s248 + $0x160] sm:$0xff] %vm1540, %v2289
      %2354 = vst.msk [vmem:[%s248 + $0x168] sm:$0xff] %vm1540, %v2290
      %2355 = vst.msk [vmem:[%s248 + $0x170] sm:$0xff] %vm1540, %v2291
      %2356 = vst.msk [vmem:[%s248 + $0x178] sm:$0xff] %vm1540, %v2292
      %2357 = vst.msk [vmem:[%s248 + $0x180] sm:$0xff] %vm1540, %v2293
      %2358 = vst.msk [vmem:[%s248 + $0x188] sm:$0xff] %vm1540, %v2294
      %2359 = vst.msk [vmem:[%s248 + $0x190] sm:$0xff] %vm1540, %v2295
      %2360 = vst.msk [vmem:[%s248 + $0x198] sm:$0xff] %vm1540, %v2296
      %2361 = vst.msk [vmem:[%s248 + $0x1a0] sm:$0xff] %vm1540, %v2297
      %2362 = vst.msk [vmem:[%s248 + $0x1a8] sm:$0xff] %vm1540, %v2298
      %2363 = vst.msk [vmem:[%s248 + $0x1b0] sm:$0xff] %vm1540, %v2299
      %2364 = vst.msk [vmem:[%s248 + $0x1b8] sm:$0xff] %vm1540, %v2300
      %2365 = vst.msk [vmem:[%s248 + $0x1c0] sm:$0xff] %vm1540, %v2301
      %2366 = vst.msk [vmem:[%s248 + $0x1c8] sm:$0xff] %vm1540, %v2302
      %2367 = vst.msk [vmem:[%s248 + $0x1d0] sm:$0xff] %vm1540, %v2303
      %2368 = vst.msk [vmem:[%s248 + $0x1d8] sm:$0xff] %vm1540, %v2304
      %2369 = vst.msk [vmem:[%s248 + $0x1e0] sm:$0xff] %vm1540, %v2305
      %2370 = vst.msk [vmem:[%s248 + $0x1e8] sm:$0xff] %vm1540, %v2306
      %2371 = vst.msk [vmem:[%s248 + $0x1f0] sm:$0xff] %vm1540, %v2307
      %2372 = vst.msk [vmem:[%s248 + $0x1f8] sm:$0xff] %vm1540, %v2308
      %s2373 = smul.u32 64, %s16
      %p2374 = scmp.lt.s32.totalorder %s2373, 255
      %s2375 = scalar_select %p2374, %s2373, 255
      %s2376 = smul.addr %s2375, 8
      %s2377 = scalar_lea.vmem %s5, %s2376
      // Predicated region
      $region41: #{nlgnn_forward.5} parent=39 // pred_check
        %p2378 = pneg %p149
      $region42: #{nlgnn_forward.5} parent=39 // pred_check_branch
        %2380 = sbr.rel (%p2378) target = $region44
      $region43: #{nlgnn_forward.5} parent=39 // pred_region
        %s2381 = smul.u32 64, %s16
      $region44: #{nlgnn_forward.5} parent=39 // pred_fallthru
        _
    $region40: #{nlgnn_forward.5} parent=5 // pred_fallthru
      _
    %p2382 = scmp.le.s32.totalorder 2, %s11
    // Predicated region
    $region45: #{nlgnn_forward.5} parent=5 // pred_check
      %p2383 = pneg %p2382
    $region46: #{nlgnn_forward.5} parent=5 // pred_check_branch
      %2385 = sbr.rel (%p2383) target = $region48
    $region47: #{nlgnn_forward.5} parent=5 // pred_region
      %s2386 = ssub.s32 %s11, 2
      // Predicated region
      $region49: #{nlgnn_forward.5} parent=47 // pred_check
        %p2387 = pneg %p155
      $region50: #{nlgnn_forward.5} parent=47 // pred_check_branch
        %2389 = sbr.rel (%p2387) target = $region52
      $region51: #{nlgnn_forward.5} parent=47 // pred_region
        %s2390 = smul.u32 64, %s17
        %p2391 = scmp.lt.s32.totalorder %s2390, 255
        %s2392 = scalar_select %p2391, %s2390, 255
        %s2393 = smul.addr %s2392, 8
        %s2394 = scalar_lea.vmem %s5, %s2393
      $region52: #{nlgnn_forward.5} parent=47 // pred_fallthru
        _
    $region48: #{nlgnn_forward.5} parent=5 // pred_fallthru
      _
  $region6: #{nlgnn_forward.5} parent=0 // loop_footer
    %s15 = sadd.s32 1, %s11
  $region7: #{nlgnn_forward.5} parent=0 // loop_footer_branch
    %10 = sbr.rel target = $region3
  $region8: #{nlgnn_forward.5} parent=0 // loop_exit
    _

</llo_original>
